<compile_context>
chip_gen: v7x
topology: tpu7x:2x2x1
jax: 0.10.0
libtpu: 0.0.40
codegen_flags: <defaults>
</compile_context>

<pallas_src>
import functools

import jax
import jax.numpy as jnp
from jax import lax
from jax.experimental import pallas as pl
from jax.experimental.pallas import tpu as pltpu

F_DIM = 512
FFN_HID = 1024
FC1, FC2, FC3 = 256, 24, 1
NUM_HEADS = 4
LN_EPS = 1e-5  # PyTorch nn.LayerNorm default
# Zero-padded batch rows go through LayerNorm with var == 0; they stay finite
# (and are sliced off) only because LN_EPS > 0.
assert LN_EPS > 0.0

# ----------------------------------------------------------------------------
# Packed small-vector layout: one [16, 1024] f32 array holds all biases,
# LayerNorm params, the final 24->1 weight row and its bias (one DMA total).
# ----------------------------------------------------------------------------
_VEC_LAYOUT = (
    ("pb1", F_DIM), ("pb2", F_DIM),
    ("sa_bv", F_DIM), ("ln1_g", F_DIM), ("ln1_b", F_DIM),
    ("ca_bv", F_DIM), ("ln2_g", F_DIM), ("ln2_b", F_DIM),
    ("ffn_b1", FFN_HID), ("ffn_b2", F_DIM),
    ("ln3_g", F_DIM), ("ln3_b", F_DIM),
    ("fc_b1", FC1), ("fc_b2", FC2),
    ("fc_w3", FC2), ("fc_b3", FC3),
)
VEC_ROWS = len(_VEC_LAYOUT)   # 16
VEC_COLS = FFN_HID            # 1024 (widest vector)

_MAT_ORDER = ("pw1", "pw2", "sa_wv", "ca_wv", "ffn_w1", "ffn_w2", "fc_w1", "fc_w2")


def pack_vectors(vec_dict):
    """Pack named 1-D f32 vectors into a single [16, 1024] VMEM-friendly array."""
    rows = []
    for name, n in _VEC_LAYOUT:
        v = jnp.asarray(vec_dict[name], jnp.float32).reshape(-1)
        rows.append(jnp.pad(v, (0, VEC_COLS - n)))
    return jnp.stack(rows, axis=0)


def _round_up(x, m):
    return ((x + m - 1) // m) * m


def _layer_norm(x, gamma, beta):
    mean = jnp.mean(x, axis=-1, keepdims=True)
    var = jnp.mean((x - mean) ** 2, axis=-1, keepdims=True)
    return (x - mean) * lax.rsqrt(var + LN_EPS) * gamma + beta


# ----------------------------------------------------------------------------
# Shared math for kernel body and the exact-semantics XLA twin.
# `vecs` may be a VMEM Ref (kernel) or a plain array (reference); the per-row
# static slices work identically on both.
# ----------------------------------------------------------------------------
def _block_math(g, s, vecs, pw1, pw2, sa_wv, ca_wv, ffn_w1, ffn_w2, fc_w1, fc_w2):
    relu = lambda x: jnp.maximum(x, 0.0)
    # bf16 only at the MXU inputs; accumulate + everything else in f32.
    dot = lambda x, w: jnp.dot(x.astype(w.dtype), w, preferred_element_type=jnp.float32)
    row = lambda r, n: vecs[r:r + 1, :n]      # static slice (Ref or array)

    pb1, pb2 = row(0, F_DIM), row(1, F_DIM)
    sa_bv, ln1_g, ln1_b = row(2, F_DIM), row(3, F_DIM), row(4, F_DIM)
    ca_bv, ln2_g, ln2_b = row(5, F_DIM), row(6, F_DIM), row(7, F_DIM)
    ffn_b1, ffn_b2 = row(8, FFN_HID), row(9, F_DIM)
    ln3_g, ln3_b = row(10, F_DIM), row(11, F_DIM)
    fc_b1, fc_b2 = row(12, FC1), row(13, FC2)
    fc_w3, fc_b3 = row(14, FC2), row(15, FC3)

    # --- projection_head: Linear(512,512) + ReLU + Linear(512,512) ---
    m1 = dot(relu(dot(g, pw1) + pb1), pw2) + pb2
    m2 = s

    # --- MultimodalEncoderBlock (single block == reference loop result) ---
    # self-attention: softmax over a length-1 axis == 1 -> relu(Wv m1 + b) + m1
    attn1 = relu(dot(m1, sa_wv) + sa_bv) + m1
    # AddNorm adds the residual AGAIN (matches reference: `a += queries`, LN(Y+X))
    m1n = _layer_norm(attn1 + m1, ln1_g, ln1_b)

    # cross-attention: queries = m1n, keys = values = m2
    attn2 = relu(dot(m2, ca_wv) + ca_bv) + m1n
    m2n = _layer_norm(attn2 + m2, ln2_g, ln2_b)

    # FFN 512 -> 1024 -> 512, then AddNorm
    ff = dot(relu(dot(m2n, ffn_w1) + ffn_b1), ffn_w2) + ffn_b2
    blk = _layer_norm(ff + m2n, ln3_g, ln3_b)

    # --- FC_layer: 512 -> 256 -> 24 -> 1 (ReLU after first two) ---
    f1 = relu(dot(blk, fc_w1) + fc_b1)
    f2 = relu(dot(f1, fc_w2) + fc_b2)
    # final 24 -> 1 as VPU multiply + lane reduce (avoids a padded MXU op)
    return jnp.sum(f2 * fc_w3, axis=-1, keepdims=True) + fc_b3


def _encoder_kernel(g_ref, s_ref, vecs_ref,
                    pw1_ref, pw2_ref, sa_wv_ref, ca_wv_ref,
                    ffn_w1_ref, ffn_w2_ref, fc_w1_ref, fc_w2_ref,
                    out_ref, *, n_sub):
    mats = (pw1_ref[...], pw2_ref[...], sa_wv_ref[...], ca_wv_ref[...],
            ffn_w1_ref[...], ffn_w2_ref[...], fc_w1_ref[...], fc_w2_ref[...])
    tm = g_ref.shape[0]
    sub = tm // n_sub
    # Statically-unrolled, independent sub-tiles: lets the scheduler overlap one
    # half's LayerNorm/ReLU (VPU/XLU/EUP) with the other half's matmuls (MXU).
    for i in range(n_sub):
        r = i * sub
        out_ref[r:r + sub, :] = _block_math(
            g_ref[r:r + sub, :], s_ref[r:r + sub, :], vecs_ref, *mats)


# ----------------------------------------------------------------------------
# Parameters.  f32 "PyTorch-like" parameter set (incl. the dead Wq/Wk) is the
# source of truth; the kernel parameters (bf16 matrices + packed f32 vectors)
# are derived from it.
# ----------------------------------------------------------------------------
def init_params_f32(key):
    ks = iter(jax.random.split(key, 40))
    mat = lambda shape, s=0.05: jax.random.normal(next(ks), shape, jnp.float32) * s
    vec = lambda n, s=0.02: jax.random.normal(next(ks), (n,), jnp.float32) * s
    gamma = lambda n: 1.0 + 0.1 * jax.random.normal(next(ks), (n,), jnp.float32)
    return {
        # projection_head
        "pw1": mat((F_DIM, F_DIM)), "pb1": vec(F_DIM),
        "pw2": mat((F_DIM, F_DIM)), "pb2": vec(F_DIM),
        # self-attention (Wq/Wk are dead in the forward math; kept for reference)
        "sa_wq": mat((F_DIM, F_DIM)), "sa_bq": vec(F_DIM),
        "sa_wk": mat((F_DIM, F_DIM)), "sa_bk": vec(F_DIM),
        "sa_wv": mat((F_DIM, F_DIM)), "sa_bv": vec(F_DIM),
        "ln1_g": gamma(F_DIM), "ln1_b": vec(F_DIM),
        # cross-attention
        "ca_wq": mat((F_DIM, F_DIM)), "ca_bq": vec(F_DIM),
        "ca_wk": mat((F_DIM, F_DIM)), "ca_bk": vec(F_DIM),
        "ca_wv": mat((F_DIM, F_DIM)), "ca_bv": vec(F_DIM),
        "ln2_g": gamma(F_DIM), "ln2_b": vec(F_DIM),
        # FFN
        "ffn_w1": mat((F_DIM, FFN_HID)), "ffn_b1": vec(FFN_HID),
        "ffn_w2": mat((FFN_HID, F_DIM)), "ffn_b2": vec(F_DIM),
        "ln3_g": gamma(F_DIM), "ln3_b": vec(F_DIM),
        # FC head
        "fc_w1": mat((F_DIM, FC1)), "fc_b1": vec(FC1),
        "fc_w2": mat((FC1, FC2)), "fc_b2": vec(FC2),
        "fc_w3": mat((FC2, FC3)), "fc_b3": vec(FC3),
    }


def kernel_params_from_f32(p):
    vdict = {
        "pb1": p["pb1"], "pb2": p["pb2"],
        "sa_bv": p["sa_bv"], "ln1_g": p["ln1_g"], "ln1_b": p["ln1_b"],
        "ca_bv": p["ca_bv"], "ln2_g": p["ln2_g"], "ln2_b": p["ln2_b"],
        "ffn_b1": p["ffn_b1"], "ffn_b2": p["ffn_b2"],
        "ln3_g": p["ln3_g"], "ln3_b": p["ln3_b"],
        "fc_b1": p["fc_b1"], "fc_b2": p["fc_b2"],
        "fc_w3": p["fc_w3"].reshape(-1), "fc_b3": p["fc_b3"],
    }
    kp = {"vecs": pack_vectors(vdict)}
    for name in _MAT_ORDER:
        kp[name] = p[name].astype(jnp.bfloat16)
    return kp


def global_mean_pool(x, batch, num_graphs):
    """torch_geometric.global_mean_pool (plain-JAX glue: data-dependent scatter)."""
    sums = jax.ops.segment_sum(x, batch, num_segments=num_graphs)
    counts = jax.ops.segment_sum(jnp.ones((x.shape[0], 1), x.dtype), batch,
                                 num_segments=num_graphs)
    return sums / jnp.maximum(counts, 1.0)


# ----------------------------------------------------------------------------
# Generation-aware tiling / VMEM budget
# ----------------------------------------------------------------------------
def _tpu_vmem_bytes():
    try:
        info = pltpu.get_tpu_info()
        return int(getattr(info, "vmem_capacity_bytes", 64 << 20))
    except Exception:
        return 64 << 20  # safe fallback (v7x-class budget works everywhere)


def _vmem_budget():
    cap = _tpu_vmem_bytes()
    if cap <= (64 << 20):              # v7x-class: 64 MiB VMEM per TensorCore
        return 512, 48 << 20, True     # tm_max, vmem_limit, prefer >= 2 grid steps
    return 1024, 96 << 20, False       # v5e / v6e: 128 MiB VMEM


def _pick_tile(batch, block_m, tm_max, prefer_two_steps):
    b16 = max(16, _round_up(batch, 16))        # multiple of 16: full bf16 vregs
    if block_m is not None:                    # explicit override
        return _round_up(min(block_m, tm_max, b16), 16)
    if b16 <= 128:
        return b16
    cands = [c for c in (128, 256, 512, 1024) if c <= tm_max]

    def cost(c):
        steps = -(-b16 // c)
        # v7x: de-prioritise single-step grids so both TensorCores get work.
        pen = 1 if (prefer_two_steps and steps < 2) else 0
        # padded rows of work + ~64-row-equivalent fixed overhead per grid step;
        # ties broken towards the larger tile.
        return (pen, steps * c + steps * 64, -c)

    return min(cands, key=cost)


# ----------------------------------------------------------------------------
# Wrapper
# ----------------------------------------------------------------------------
@functools.partial(jax.jit, static_argnames=("num_graphs", "block_m"))
def multimodal_forward(node_feats, batch_idx, seq_feats, params, *,
                       num_graphs, block_m=None):
    # TODO(synk): graph_enc / seq_enc are external frozen encoders passed to
    # __init__; `node_feats` and `seq_feats` stand in for their outputs.
    pooled = global_mean_pool(node_feats, batch_idx, num_graphs)   # [B, 512] f32

    tm_max, vmem_limit, prefer_two = _vmem_budget()
    tm = _pick_tile(num_graphs, block_m, tm_max, prefer_two)
    n_sub = 2 if (tm >= 256 and tm % 32 == 0) else 1
    b_pad = _round_up(num_graphs, tm)

    # g only ever feeds MXU inputs (which the kernel casts to bf16 anyway), so
    # pre-cast to bf16 in the wrapper: halves that DMA stream, bit-identical.
    g = pooled.astype(jnp.bfloat16)
    s = seq_feats
    if b_pad != num_graphs:
        g = jnp.pad(g, ((0, b_pad - num_graphs), (0, 0)))
        s = jnp.pad(s, ((0, b_pad - num_graphs), (0, 0)))

    vecs = params["vecs"]
    mats = [params[k] for k in _MAT_ORDER]

    act_spec = pl.BlockSpec((tm, F_DIM), lambda i: (i, 0))
    # Constant index_maps keep weights + packed vectors VMEM-resident.
    vec_spec = pl.BlockSpec(vecs.shape, lambda i: (0, 0))
    mat_specs = [pl.BlockSpec(m.shape, lambda i: (0, 0)) for m in mats]
    out_spec = pl.BlockSpec((tm, FC3), lambda i: (i, 0))

    flops = 2 * b_pad * (2 * F_DIM * F_DIM          # projection head
                         + 2 * F_DIM * F_DIM        # two attention V projections
                         + F_DIM * FFN_HID + FFN_HID * F_DIM
                         + F_DIM * FC1 + FC1 * FC2 + FC2 * FC3)
    bytes_accessed = int(sum(int(m.size) * m.dtype.itemsize for m in mats)
                         + int(vecs.size) * 4
                         + b_pad * F_DIM * 2        # g (bf16)
                         + b_pad * F_DIM * 4        # s (f32)
                         + b_pad * FC3 * 4)

    out = pl.pallas_call(
        functools.partial(_encoder_kernel, n_sub=n_sub),
        out_shape=jax.ShapeDtypeStruct((b_pad, FC3), jnp.float32),
        grid=(b_pad // tm,),
        in_specs=[act_spec, act_spec, vec_spec] + mat_specs,
        out_specs=out_spec,
        compiler_params=pltpu.CompilerParams(
            dimension_semantics=("parallel",),
            vmem_limit_bytes=vmem_limit),
        cost_estimate=pl.CostEstimate(flops=flops,
                                      transcendentals=3 * b_pad,
                                      bytes_accessed=bytes_accessed),
    )(g, s, vecs, *mats)

    # reference returns (output, output_seq); output_seq is the seq_enc output.
    return out[:num_graphs], seq_feats


# ----------------------------------------------------------------------------
# References
# ----------------------------------------------------------------------------
def reference_forward_exact(node_feats, batch_idx, seq_feats, kernel_params, *,
                            num_graphs):
    """Exact-semantics XLA twin: same math + same bf16 weights as the kernel."""
    pooled = global_mean_pool(node_feats, batch_idx, num_graphs)
    mats = [kernel_params[k] for k in _MAT_ORDER]
    out = _block_math(pooled, seq_feats, kernel_params["vecs"], *mats)
    return out, seq_feats


def _mha_reference(q_in, k_in, v_in, wq, bq, wk, bk, wv, bv, num_heads=NUM_HEADS):
    """Literal port of the PyTorch MultiHeadAttention.forward (f32)."""
    relu = lambda x: jnp.maximum(x, 0.0)
    q = relu(q_in @ wq + bq)
    k = relu(k_in @ wk + bk)
    v = relu(v_in @ wv + bv)
    b, h = q.shape[0], num_heads
    d = q.shape[1] // h
    qs = q.reshape(b, 1, h, d).transpose(0, 2, 1, 3)     # [B,H,1,d]
    ks = k.reshape(b, 1, h, d).transpose(0, 2, 1, 3)
    vs = v.reshape(b, 1, h, d).transpose(0, 2, 1, 3)
    score = jnp.matmul(qs, jnp.swapaxes(ks, -1, -2)) / (d ** 0.5)   # [B,H,1,1]
    score = jax.nn.softmax(score, axis=-1)               # length-1 axis -> all ones
    a = jnp.matmul(score, vs)                            # [B,H,1,d]
    a = jnp.transpose(a, (0, 1, 3, 2)).reshape(b, h * d)
    return a + q_in                                      # `a += queries`


def reference_forward_f32(node_feats, batch_idx, seq_feats, p, *, num_graphs):
    """Independent pure-f32 reference mirroring the PyTorch module structure."""
    relu = lambda x: jnp.maximum(x, 0.0)
    pooled = global_mean_pool(node_feats, batch_idx, num_graphs)
    m1 = relu(pooled @ p["pw1"] + p["pb1"]) @ p["pw2"] + p["pb2"]
    m2 = seq_feats
    attn1 = _mha_reference(m1, m1, m1, p["sa_wq"], p["sa_bq"],
                           p["sa_wk"], p["sa_bk"], p["sa_wv"], p["sa_bv"])
    m1 = _layer_norm(attn1 + m1, p["ln1_g"], p["ln1_b"])
    attn2 = _mha_reference(m1, m2, m2, p["ca_wq"], p["ca_bq"],
                           p["ca_wk"], p["ca_bk"], p["ca_wv"], p["ca_bv"])
    m2 = _layer_norm(attn2 + m2, p["ln2_g"], p["ln2_b"])
    ff = relu(m2 @ p["ffn_w1"] + p["ffn_b1"]) @ p["ffn_w2"] + p["ffn_b2"]
    blk = _layer_norm(ff + m2, p["ln3_g"], p["ln3_b"])
    out = relu(blk @ p["fc_w1"] + p["fc_b1"])
    out = relu(out @ p["fc_w2"] + p["fc_b2"])
    out = out @ p["fc_w3"] + p["fc_b3"]
    return out, seq_feats


# ----------------------------------------------------------------------------
if __name__ == "__main__":
    key = jax.random.PRNGKey(0)
    k_params, k_data1, k_data2 = jax.random.split(key, 3)

    f32_params = init_params_f32(k_params)
    params = kernel_params_from_f32(f32_params)

    def make_case(k, num_graphs, nodes_per_graph):
        kn, ks_ = jax.random.split(k)
        n_nodes = num_graphs * nodes_per_graph
        node_feats = jax.random.normal(kn, (n_nodes, F_DIM), jnp.float32) * 0.1
        batch_idx = jnp.repeat(jnp.arange(num_graphs, dtype=jnp.int32),
                               nodes_per_graph)
        seq_feats = jax.random.normal(ks_, (num_graphs, F_DIM), jnp.float32) * 0.1
        return node_feats, batch_idx, seq_feats

    def check(case, *, num_graphs, block_m):
        node_feats, batch_idx, seq_feats = case
        out, out_seq = multimodal_forward(node_feats, batch_idx, seq_feats, params,
                                          num_graphs=num_graphs, block_m=block_m)
        jax.block_until_ready((out, out_seq))
        assert out.shape == (num_graphs, FC3) and out_seq.shape == (num_graphs, F_DIM)
        assert bool(jnp.all(jnp.isfinite(out)))

        # (a) exact-semantics twin (same bf16 weights): tight tolerance.
        ref_exact, _ = reference_forward_exact(node_feats, batch_idx, seq_feats,
                                               params, num_graphs=num_graphs)
        d_exact = float(jnp.max(jnp.abs(out - ref_exact)))
        assert bool(jnp.allclose(out, ref_exact, atol=2e-3, rtol=2e-3)), (
            f"exact-reference mismatch, max abs diff {d_exact}")

        # (b) independent pure-f32 reference of the PyTorch module: looser
        # tolerance (bf16 weight storage is the only numerics difference).
        ref_f32, _ = reference_forward_f32(node_feats, batch_idx, seq_feats,
                                           f32_params, num_graphs=num_graphs)
        d_f32 = float(jnp.max(jnp.abs(out - ref_f32)))
        assert bool(jnp.allclose(out, ref_f32, atol=3e-2, rtol=3e-2)), (
            f"f32-reference mismatch, max abs diff {d_f32}")

    # Small case: B=8 graphs (5 nodes each), single tiny tile.
    check(make_case(k_data1, 8, 5), num_graphs=8, block_m=None)
    # Tiled/padded case: B=300 with block_m=256 -> tm=256, b_pad=512, grid of 2
    # "parallel" steps, 2 ILP sub-tiles per step, 212 padded rows discarded.
    check(make_case(k_data2, 300, 3), num_graphs=300, block_m=256)

    print("KERNEL_OK")
</pallas_src>

<mosaic_0001>
module attributes {stable_mosaic.version = 11 : i64} {
  func.func @_encoder_kernel(%arg0: i32, %arg1: memref<16x512xbf16, #tpu.memory_space<vmem>>, %arg2: memref<16x512xf32, #tpu.memory_space<vmem>>, %arg3: memref<16x1024xf32, #tpu.memory_space<vmem>>, %arg4: memref<512x512xbf16, #tpu.memory_space<vmem>>, %arg5: memref<512x512xbf16, #tpu.memory_space<vmem>>, %arg6: memref<512x512xbf16, #tpu.memory_space<vmem>>, %arg7: memref<512x512xbf16, #tpu.memory_space<vmem>>, %arg8: memref<512x1024xbf16, #tpu.memory_space<vmem>>, %arg9: memref<1024x512xbf16, #tpu.memory_space<vmem>>, %arg10: memref<512x256xbf16, #tpu.memory_space<vmem>>, %arg11: memref<256x24xbf16, #tpu.memory_space<vmem>>, %arg12: memref<16x1xf32, #tpu.memory_space<vmem>>) attributes {dimension_semantics = [#tpu.dimension_semantics<parallel>], iteration_bounds = array<i64: 1>, scalar_prefetch = 0 : i64, scratch_operands = 0 : i64, tpu.core_type = #tpu.core_type<tc>, window_params = [{transform_indices = @transform_0, window_bounds = array<i64: 16, 512>}, {transform_indices = @transform_1, window_bounds = array<i64: 16, 512>}, {pipeline_mode = #tpu.pipeline_mode<synchronous>, transform_indices = @transform_2, window_bounds = array<i64: 16, 1024>}, {pipeline_mode = #tpu.pipeline_mode<synchronous>, transform_indices = @transform_3, window_bounds = array<i64: 512, 512>}, {pipeline_mode = #tpu.pipeline_mode<synchronous>, transform_indices = @transform_4, window_bounds = array<i64: 512, 512>}, {pipeline_mode = #tpu.pipeline_mode<synchronous>, transform_indices = @transform_5, window_bounds = array<i64: 512, 512>}, {pipeline_mode = #tpu.pipeline_mode<synchronous>, transform_indices = @transform_6, window_bounds = array<i64: 512, 512>}, {pipeline_mode = #tpu.pipeline_mode<synchronous>, transform_indices = @transform_7, window_bounds = array<i64: 512, 1024>}, {pipeline_mode = #tpu.pipeline_mode<synchronous>, transform_indices = @transform_8, window_bounds = array<i64: 1024, 512>}, {pipeline_mode = #tpu.pipeline_mode<synchronous>, transform_indices = @transform_9, window_bounds = array<i64: 512, 256>}, {pipeline_mode = #tpu.pipeline_mode<synchronous>, transform_indices = @transform_10, window_bounds = array<i64: 256, 24>}, {transform_indices = @transform_11, window_bounds = array<i64: 16, 1>}]} {
    %c0 = arith.constant 0 : index
    %c0_0 = arith.constant 0 : index
    %0 = vector.load %arg4[%c0, %c0_0] : memref<512x512xbf16, #tpu.memory_space<vmem>>, vector<512x512xbf16>
    %c0_1 = arith.constant 0 : index
    %c0_2 = arith.constant 0 : index
    %1 = vector.load %arg5[%c0_1, %c0_2] : memref<512x512xbf16, #tpu.memory_space<vmem>>, vector<512x512xbf16>
    %c0_3 = arith.constant 0 : index
    %c0_4 = arith.constant 0 : index
    %2 = vector.load %arg6[%c0_3, %c0_4] : memref<512x512xbf16, #tpu.memory_space<vmem>>, vector<512x512xbf16>
    %c0_5 = arith.constant 0 : index
    %c0_6 = arith.constant 0 : index
    %3 = vector.load %arg7[%c0_5, %c0_6] : memref<512x512xbf16, #tpu.memory_space<vmem>>, vector<512x512xbf16>
    %c0_7 = arith.constant 0 : index
    %c0_8 = arith.constant 0 : index
    %4 = vector.load %arg8[%c0_7, %c0_8] : memref<512x1024xbf16, #tpu.memory_space<vmem>>, vector<512x1024xbf16>
    %c0_9 = arith.constant 0 : index
    %c0_10 = arith.constant 0 : index
    %5 = vector.load %arg9[%c0_9, %c0_10] : memref<1024x512xbf16, #tpu.memory_space<vmem>>, vector<1024x512xbf16>
    %c0_11 = arith.constant 0 : index
    %c0_12 = arith.constant 0 : index
    %6 = vector.load %arg10[%c0_11, %c0_12] : memref<512x256xbf16, #tpu.memory_space<vmem>>, vector<512x256xbf16>
    %c0_13 = arith.constant 0 : index
    %c0_14 = arith.constant 0 : index
    %7 = vector.load %arg11[%c0_13, %c0_14] : memref<256x24xbf16, #tpu.memory_space<vmem>>, vector<256x24xbf16>
    %c0_15 = arith.constant 0 : index
    %c0_16 = arith.constant 0 : index
    %8 = vector.load %arg1[%c0_15, %c0_16] : memref<16x512xbf16, #tpu.memory_space<vmem>>, vector<16x512xbf16>
    %c0_17 = arith.constant 0 : index
    %c0_18 = arith.constant 0 : index
    %9 = vector.load %arg2[%c0_17, %c0_18] : memref<16x512xf32, #tpu.memory_space<vmem>>, vector<16x512xf32>
    %c0_19 = arith.constant 0 : index
    %c0_20 = arith.constant 0 : index
    %10 = vector.load %arg3[%c0_19, %c0_20] : memref<16x1024xf32, #tpu.memory_space<vmem>>, vector<1x512xf32>
    %c1 = arith.constant 1 : index
    %c0_21 = arith.constant 0 : index
    %11 = vector.load %arg3[%c1, %c0_21] : memref<16x1024xf32, #tpu.memory_space<vmem>>, vector<1x512xf32>
    %c2 = arith.constant 2 : index
    %c0_22 = arith.constant 0 : index
    %12 = vector.load %arg3[%c2, %c0_22] : memref<16x1024xf32, #tpu.memory_space<vmem>>, vector<1x512xf32>
    %c3 = arith.constant 3 : index
    %c0_23 = arith.constant 0 : index
    %13 = vector.load %arg3[%c3, %c0_23] : memref<16x1024xf32, #tpu.memory_space<vmem>>, vector<1x512xf32>
    %c4 = arith.constant 4 : index
    %c0_24 = arith.constant 0 : index
    %14 = vector.load %arg3[%c4, %c0_24] : memref<16x1024xf32, #tpu.memory_space<vmem>>, vector<1x512xf32>
    %c5 = arith.constant 5 : index
    %c0_25 = arith.constant 0 : index
    %15 = vector.load %arg3[%c5, %c0_25] : memref<16x1024xf32, #tpu.memory_space<vmem>>, vector<1x512xf32>
    %c6 = arith.constant 6 : index
    %c0_26 = arith.constant 0 : index
    %16 = vector.load %arg3[%c6, %c0_26] : memref<16x1024xf32, #tpu.memory_space<vmem>>, vector<1x512xf32>
    %c7 = arith.constant 7 : index
    %c0_27 = arith.constant 0 : index
    %17 = vector.load %arg3[%c7, %c0_27] : memref<16x1024xf32, #tpu.memory_space<vmem>>, vector<1x512xf32>
    %c8 = arith.constant 8 : index
    %c0_28 = arith.constant 0 : index
    %18 = vector.load %arg3[%c8, %c0_28] : memref<16x1024xf32, #tpu.memory_space<vmem>>, vector<1x1024xf32>
    %c9 = arith.constant 9 : index
    %c0_29 = arith.constant 0 : index
    %19 = vector.load %arg3[%c9, %c0_29] : memref<16x1024xf32, #tpu.memory_space<vmem>>, vector<1x512xf32>
    %c10 = arith.constant 10 : index
    %c0_30 = arith.constant 0 : index
    %20 = vector.load %arg3[%c10, %c0_30] : memref<16x1024xf32, #tpu.memory_space<vmem>>, vector<1x512xf32>
    %c11 = arith.constant 11 : index
    %c0_31 = arith.constant 0 : index
    %21 = vector.load %arg3[%c11, %c0_31] : memref<16x1024xf32, #tpu.memory_space<vmem>>, vector<1x512xf32>
    %c12 = arith.constant 12 : index
    %c0_32 = arith.constant 0 : index
    %22 = vector.load %arg3[%c12, %c0_32] : memref<16x1024xf32, #tpu.memory_space<vmem>>, vector<1x256xf32>
    %c13 = arith.constant 13 : index
    %c0_33 = arith.constant 0 : index
    %23 = vector.load %arg3[%c13, %c0_33] : memref<16x1024xf32, #tpu.memory_space<vmem>>, vector<1x24xf32>
    %c14 = arith.constant 14 : index
    %c0_34 = arith.constant 0 : index
    %24 = vector.load %arg3[%c14, %c0_34] : memref<16x1024xf32, #tpu.memory_space<vmem>>, vector<1x24xf32>
    %c15 = arith.constant 15 : index
    %c0_35 = arith.constant 0 : index
    %25 = vector.load %arg3[%c15, %c0_35] : memref<16x1024xf32, #tpu.memory_space<vmem>>, vector<1x1xf32>
    %cst = arith.constant dense<0.000000e+00> : vector<16x512xf32>
    %26 = tpu.matmul %8, %0, %cst {dimension_numbers = #tpu.dot_dimension_numbers<[1], [0], [0], [1], [0, 0, 1, 1], [], []>} : vector<16x512xbf16>, vector<512x512xbf16>, vector<16x512xf32> -> vector<16x512xf32>
    %27 = vector.broadcast %10 : vector<1x512xf32> to vector<16x512xf32>
    %28 = arith.addf %26, %27 : vector<16x512xf32>
    %cst_36 = arith.constant 0.000000e+00 : f32
    %29 = vector.broadcast %cst_36 : f32 to vector<16x512xf32>
    %30 = arith.maximumf %28, %29 : vector<16x512xf32>
    %31 = arith.truncf %30 : vector<16x512xf32> to vector<16x512xbf16>
    %cst_37 = arith.constant dense<0.000000e+00> : vector<16x512xf32>
    %32 = tpu.matmul %31, %1, %cst_37 {dimension_numbers = #tpu.dot_dimension_numbers<[1], [0], [0], [1], [0, 0, 1, 1], [], []>} : vector<16x512xbf16>, vector<512x512xbf16>, vector<16x512xf32> -> vector<16x512xf32>
    %33 = vector.broadcast %11 : vector<1x512xf32> to vector<16x512xf32>
    %34 = arith.addf %32, %33 : vector<16x512xf32>
    %35 = arith.truncf %34 : vector<16x512xf32> to vector<16x512xbf16>
    %cst_38 = arith.constant dense<0.000000e+00> : vector<16x512xf32>
    %36 = tpu.matmul %35, %2, %cst_38 {dimension_numbers = #tpu.dot_dimension_numbers<[1], [0], [0], [1], [0, 0, 1, 1], [], []>} : vector<16x512xbf16>, vector<512x512xbf16>, vector<16x512xf32> -> vector<16x512xf32>
    %37 = vector.broadcast %12 : vector<1x512xf32> to vector<16x512xf32>
    %38 = arith.addf %36, %37 : vector<16x512xf32>
    %cst_39 = arith.constant 0.000000e+00 : f32
    %39 = vector.broadcast %cst_39 : f32 to vector<16x512xf32>
    %40 = arith.maximumf %38, %39 : vector<16x512xf32>
    %41 = arith.addf %40, %34 : vector<16x512xf32>
    %42 = arith.addf %41, %34 : vector<16x512xf32>
    %cst_40 = arith.constant dense<0.000000e+00> : vector<16xf32>
    %43 = vector.multi_reduction <add>, %42, %cst_40 [1] : vector<16x512xf32> to vector<16xf32>
    %44 = vector.shape_cast %43 : vector<16xf32> to vector<16x1xf32>
    %cst_41 = arith.constant 5.120000e+02 : f32
    %45 = vector.broadcast %cst_41 : f32 to vector<16x1xf32>
    %46 = arith.divf %44, %45 : vector<16x1xf32>
    %47 = vector.broadcast %46 : vector<16x1xf32> to vector<16x512xf32>
    %48 = arith.subf %42, %47 : vector<16x512xf32>
    %49 = arith.mulf %48, %48 : vector<16x512xf32>
    %cst_42 = arith.constant dense<0.000000e+00> : vector<16xf32>
    %50 = vector.multi_reduction <add>, %49, %cst_42 [1] : vector<16x512xf32> to vector<16xf32>
    %51 = vector.shape_cast %50 : vector<16xf32> to vector<16x1xf32>
    %cst_43 = arith.constant 5.120000e+02 : f32
    %52 = vector.broadcast %cst_43 : f32 to vector<16x1xf32>
    %53 = arith.divf %51, %52 : vector<16x1xf32>
    %54 = vector.broadcast %46 : vector<16x1xf32> to vector<16x512xf32>
    %55 = arith.subf %42, %54 : vector<16x512xf32>
    %cst_44 = arith.constant 9.99999974E-6 : f32
    %56 = vector.broadcast %cst_44 : f32 to vector<16x1xf32>
    %57 = arith.addf %53, %56 : vector<16x1xf32>
    %58 = math.rsqrt %57 : vector<16x1xf32>
    %59 = vector.broadcast %58 : vector<16x1xf32> to vector<16x512xf32>
    %60 = arith.mulf %55, %59 : vector<16x512xf32>
    %61 = vector.broadcast %13 : vector<1x512xf32> to vector<16x512xf32>
    %62 = arith.mulf %60, %61 : vector<16x512xf32>
    %63 = vector.broadcast %14 : vector<1x512xf32> to vector<16x512xf32>
    %64 = arith.addf %62, %63 : vector<16x512xf32>
    %65 = arith.truncf %9 : vector<16x512xf32> to vector<16x512xbf16>
    %cst_45 = arith.constant dense<0.000000e+00> : vector<16x512xf32>
    %66 = tpu.matmul %65, %3, %cst_45 {dimension_numbers = #tpu.dot_dimension_numbers<[1], [0], [0], [1], [0, 0, 1, 1], [], []>} : vector<16x512xbf16>, vector<512x512xbf16>, vector<16x512xf32> -> vector<16x512xf32>
    %67 = vector.broadcast %15 : vector<1x512xf32> to vector<16x512xf32>
    %68 = arith.addf %66, %67 : vector<16x512xf32>
    %cst_46 = arith.constant 0.000000e+00 : f32
    %69 = vector.broadcast %cst_46 : f32 to vector<16x512xf32>
    %70 = arith.maximumf %68, %69 : vector<16x512xf32>
    %71 = arith.addf %70, %64 : vector<16x512xf32>
    %72 = arith.addf %71, %9 : vector<16x512xf32>
    %cst_47 = arith.constant dense<0.000000e+00> : vector<16xf32>
    %73 = vector.multi_reduction <add>, %72, %cst_47 [1] : vector<16x512xf32> to vector<16xf32>
    %74 = vector.shape_cast %73 : vector<16xf32> to vector<16x1xf32>
    %cst_48 = arith.constant 5.120000e+02 : f32
    %75 = vector.broadcast %cst_48 : f32 to vector<16x1xf32>
    %76 = arith.divf %74, %75 : vector<16x1xf32>
    %77 = vector.broadcast %76 : vector<16x1xf32> to vector<16x512xf32>
    %78 = arith.subf %72, %77 : vector<16x512xf32>
    %79 = arith.mulf %78, %78 : vector<16x512xf32>
    %cst_49 = arith.constant dense<0.000000e+00> : vector<16xf32>
    %80 = vector.multi_reduction <add>, %79, %cst_49 [1] : vector<16x512xf32> to vector<16xf32>
    %81 = vector.shape_cast %80 : vector<16xf32> to vector<16x1xf32>
    %cst_50 = arith.constant 5.120000e+02 : f32
    %82 = vector.broadcast %cst_50 : f32 to vector<16x1xf32>
    %83 = arith.divf %81, %82 : vector<16x1xf32>
    %84 = vector.broadcast %76 : vector<16x1xf32> to vector<16x512xf32>
    %85 = arith.subf %72, %84 : vector<16x512xf32>
    %cst_51 = arith.constant 9.99999974E-6 : f32
    %86 = vector.broadcast %cst_51 : f32 to vector<16x1xf32>
    %87 = arith.addf %83, %86 : vector<16x1xf32>
    %88 = math.rsqrt %87 : vector<16x1xf32>
    %89 = vector.broadcast %88 : vector<16x1xf32> to vector<16x512xf32>
    %90 = arith.mulf %85, %89 : vector<16x512xf32>
    %91 = vector.broadcast %16 : vector<1x512xf32> to vector<16x512xf32>
    %92 = arith.mulf %90, %91 : vector<16x512xf32>
    %93 = vector.broadcast %17 : vector<1x512xf32> to vector<16x512xf32>
    %94 = arith.addf %92, %93 : vector<16x512xf32>
    %95 = arith.truncf %94 : vector<16x512xf32> to vector<16x512xbf16>
    %cst_52 = arith.constant dense<0.000000e+00> : vector<16x1024xf32>
    %96 = tpu.matmul %95, %4, %cst_52 {dimension_numbers = #tpu.dot_dimension_numbers<[1], [0], [0], [1], [0, 0, 1, 1], [], []>} : vector<16x512xbf16>, vector<512x1024xbf16>, vector<16x1024xf32> -> vector<16x1024xf32>
    %97 = vector.broadcast %18 : vector<1x1024xf32> to vector<16x1024xf32>
    %98 = arith.addf %96, %97 : vector<16x1024xf32>
    %cst_53 = arith.constant 0.000000e+00 : f32
    %99 = vector.broadcast %cst_53 : f32 to vector<16x1024xf32>
    %100 = arith.maximumf %98, %99 : vector<16x1024xf32>
    %101 = arith.truncf %100 : vector<16x1024xf32> to vector<16x1024xbf16>
    %cst_54 = arith.constant dense<0.000000e+00> : vector<16x512xf32>
    %102 = tpu.matmul %101, %5, %cst_54 {dimension_numbers = #tpu.dot_dimension_numbers<[1], [0], [0], [1], [0, 0, 1, 1], [], []>} : vector<16x1024xbf16>, vector<1024x512xbf16>, vector<16x512xf32> -> vector<16x512xf32>
    %103 = vector.broadcast %19 : vector<1x512xf32> to vector<16x512xf32>
    %104 = arith.addf %102, %103 : vector<16x512xf32>
    %105 = arith.addf %104, %94 : vector<16x512xf32>
    %cst_55 = arith.constant dense<0.000000e+00> : vector<16xf32>
    %106 = vector.multi_reduction <add>, %105, %cst_55 [1] : vector<16x512xf32> to vector<16xf32>
    %107 = vector.shape_cast %106 : vector<16xf32> to vector<16x1xf32>
    %cst_56 = arith.constant 5.120000e+02 : f32
    %108 = vector.broadcast %cst_56 : f32 to vector<16x1xf32>
    %109 = arith.divf %107, %108 : vector<16x1xf32>
    %110 = vector.broadcast %109 : vector<16x1xf32> to vector<16x512xf32>
    %111 = arith.subf %105, %110 : vector<16x512xf32>
    %112 = arith.mulf %111, %111 : vector<16x512xf32>
    %cst_57 = arith.constant dense<0.000000e+00> : vector<16xf32>
    %113 = vector.multi_reduction <add>, %112, %cst_57 [1] : vector<16x512xf32> to vector<16xf32>
    %114 = vector.shape_cast %113 : vector<16xf32> to vector<16x1xf32>
    %cst_58 = arith.constant 5.120000e+02 : f32
    %115 = vector.broadcast %cst_58 : f32 to vector<16x1xf32>
    %116 = arith.divf %114, %115 : vector<16x1xf32>
    %117 = vector.broadcast %109 : vector<16x1xf32> to vector<16x512xf32>
    %118 = arith.subf %105, %117 : vector<16x512xf32>
    %cst_59 = arith.constant 9.99999974E-6 : f32
    %119 = vector.broadcast %cst_59 : f32 to vector<16x1xf32>
    %120 = arith.addf %116, %119 : vector<16x1xf32>
    %121 = math.rsqrt %120 : vector<16x1xf32>
    %122 = vector.broadcast %121 : vector<16x1xf32> to vector<16x512xf32>
    %123 = arith.mulf %118, %122 : vector<16x512xf32>
    %124 = vector.broadcast %20 : vector<1x512xf32> to vector<16x512xf32>
    %125 = arith.mulf %123, %124 : vector<16x512xf32>
    %126 = vector.broadcast %21 : vector<1x512xf32> to vector<16x512xf32>
    %127 = arith.addf %125, %126 : vector<16x512xf32>
    %128 = arith.truncf %127 : vector<16x512xf32> to vector<16x512xbf16>
    %cst_60 = arith.constant dense<0.000000e+00> : vector<16x256xf32>
    %129 = tpu.matmul %128, %6, %cst_60 {dimension_numbers = #tpu.dot_dimension_numbers<[1], [0], [0], [1], [0, 0, 1, 1], [], []>} : vector<16x512xbf16>, vector<512x256xbf16>, vector<16x256xf32> -> vector<16x256xf32>
    %130 = vector.broadcast %22 : vector<1x256xf32> to vector<16x256xf32>
    %131 = arith.addf %129, %130 : vector<16x256xf32>
    %cst_61 = arith.constant 0.000000e+00 : f32
    %132 = vector.broadcast %cst_61 : f32 to vector<16x256xf32>
    %133 = arith.maximumf %131, %132 : vector<16x256xf32>
    %134 = arith.truncf %133 : vector<16x256xf32> to vector<16x256xbf16>
    %cst_62 = arith.constant dense<0.000000e+00> : vector<16x24xf32>
    %135 = tpu.matmul %134, %7, %cst_62 {dimension_numbers = #tpu.dot_dimension_numbers<[1], [0], [0], [1], [0, 0, 1, 1], [], []>} : vector<16x256xbf16>, vector<256x24xbf16>, vector<16x24xf32> -> vector<16x24xf32>
    %136 = vector.broadcast %23 : vector<1x24xf32> to vector<16x24xf32>
    %137 = arith.addf %135, %136 : vector<16x24xf32>
    %cst_63 = arith.constant 0.000000e+00 : f32
    %138 = vector.broadcast %cst_63 : f32 to vector<16x24xf32>
    %139 = arith.maximumf %137, %138 : vector<16x24xf32>
    %140 = vector.broadcast %24 : vector<1x24xf32> to vector<16x24xf32>
    %141 = arith.mulf %139, %140 : vector<16x24xf32>
    %cst_64 = arith.constant dense<0.000000e+00> : vector<16xf32>
    %142 = vector.multi_reduction <add>, %141, %cst_64 [1] : vector<16x24xf32> to vector<16xf32>
    %143 = vector.shape_cast %142 : vector<16xf32> to vector<16x1xf32>
    %144 = vector.broadcast %25 : vector<1x1xf32> to vector<16x1xf32>
    %145 = arith.addf %143, %144 : vector<16x1xf32>
    %c0_65 = arith.constant 0 : index
    %c0_66 = arith.constant 0 : index
    %146 = vector.load %arg12[%c0_65, %c0_66] : memref<16x1xf32, #tpu.memory_space<vmem>>, vector<16x1xf32>
    tpu.vector_store %arg12[%c0_65, %c0_66], %145 {strides = array<i32>} : memref<16x1xf32, #tpu.memory_space<vmem>>, vector<16x1xf32>,
    return
  }
  func.func @transform_0(%arg0: i32) -> (i32, i32) {
    %c0_i32 = arith.constant 0 : i32
    %c0_i32_0 = arith.constant 0 : i32
    return %arg0, %c0_i32 : i32, i32
  }
  func.func @transform_1(%arg0: i32) -> (i32, i32) {
    %c0_i32 = arith.constant 0 : i32
    %c0_i32_0 = arith.constant 0 : i32
    return %arg0, %c0_i32 : i32, i32
  }
  func.func @transform_2(%arg0: i32) -> (i32, i32) {
    %c0_i32 = arith.constant 0 : i32
    %c0_i32_0 = arith.constant 0 : i32
    %c0_i32_1 = arith.constant 0 : i32
    return %c0_i32, %c0_i32_0 : i32, i32
  }
  func.func @transform_3(%arg0: i32) -> (i32, i32) {
    %c0_i32 = arith.constant 0 : i32
    %c0_i32_0 = arith.constant 0 : i32
    %c0_i32_1 = arith.constant 0 : i32
    return %c0_i32, %c0_i32_0 : i32, i32
  }
  func.func @transform_4(%arg0: i32) -> (i32, i32) {
    %c0_i32 = arith.constant 0 : i32
    %c0_i32_0 = arith.constant 0 : i32
    %c0_i32_1 = arith.constant 0 : i32
    return %c0_i32, %c0_i32_0 : i32, i32
  }
  func.func @transform_5(%arg0: i32) -> (i32, i32) {
    %c0_i32 = arith.constant 0 : i32
    %c0_i32_0 = arith.constant 0 : i32
    %c0_i32_1 = arith.constant 0 : i32
    return %c0_i32, %c0_i32_0 : i32, i32
  }
  func.func @transform_6(%arg0: i32) -> (i32, i32) {
    %c0_i32 = arith.constant 0 : i32
    %c0_i32_0 = arith.constant 0 : i32
    %c0_i32_1 = arith.constant 0 : i32
    return %c0_i32, %c0_i32_0 : i32, i32
  }
  func.func @transform_7(%arg0: i32) -> (i32, i32) {
    %c0_i32 = arith.constant 0 : i32
    %c0_i32_0 = arith.constant 0 : i32
    %c0_i32_1 = arith.constant 0 : i32
    return %c0_i32, %c0_i32_0 : i32, i32
  }
  func.func @transform_8(%arg0: i32) -> (i32, i32) {
    %c0_i32 = arith.constant 0 : i32
    %c0_i32_0 = arith.constant 0 : i32
    %c0_i32_1 = arith.constant 0 : i32
    return %c0_i32, %c0_i32_0 : i32, i32
  }
  func.func @transform_9(%arg0: i32) -> (i32, i32) {
    %c0_i32 = arith.constant 0 : i32
    %c0_i32_0 = arith.constant 0 : i32
    %c0_i32_1 = arith.constant 0 : i32
    return %c0_i32, %c0_i32_0 : i32, i32
  }
  func.func @transform_10(%arg0: i32) -> (i32, i32) {
    %c0_i32 = arith.constant 0 : i32
    %c0_i32_0 = arith.constant 0 : i32
    %c0_i32_1 = arith.constant 0 : i32
    return %c0_i32, %c0_i32_0 : i32, i32
  }
  func.func @transform_11(%arg0: i32) -> (i32, i32) {
    %c0_i32 = arith.constant 0 : i32
    %c0_i32_0 = arith.constant 0 : i32
    return %arg0, %c0_i32 : i32, i32
  }
}

</mosaic_0001>

<llo_original>
// kernel: multimodal_forward.1
$region0: #{multimodal_forward.1}
  #allocation0 [shape = 'u32[]', space=smem, size = 0x4, offset = 0x4, fixed_abs, tag = 'smem constant byte address 0x4 - core index']
  #allocation1 [shape = 'u32[144,128]{1,0:T(1,128)}', space=vmem, size = 0x12000, scoped, tag = 'internal scratch']
  %s0 = inlined_call_operand.vmem [shape: bf16[16,512], index: 0, kind: input, shape index: {}]
  %s1 = inlined_call_operand.vmem [shape: f32[16,512], index: 1, kind: input, shape index: {}]
  %s2 = inlined_call_operand.vmem [shape: f32[16,1024], index: 2, kind: input, shape index: {}]
  %s3 = inlined_call_operand.hbm [shape: bf16[512,512], index: 3, kind: input, shape index: {}]
  %s4 = inlined_call_operand.hbm [shape: bf16[512,512], index: 4, kind: input, shape index: {}]
  %s5 = inlined_call_operand.hbm [shape: bf16[512,512], index: 5, kind: input, shape index: {}]
  %s6 = inlined_call_operand.hbm [shape: bf16[512,512], index: 6, kind: input, shape index: {}]
  %s7 = inlined_call_operand.hbm [shape: bf16[512,1024], index: 7, kind: input, shape index: {}]
  %s8 = inlined_call_operand.hbm [shape: bf16[1024,512], index: 8, kind: input, shape index: {}]
  %s9 = inlined_call_operand.hbm [shape: bf16[512,256], index: 9, kind: input, shape index: {}]
  %s10 = inlined_call_operand.vmem [shape: bf16[256,24], index: 10, kind: input, shape index: {}]
  %s11 = inlined_call_operand.vmem [shape: f32[16,1], index: 11, kind: output, shape index: {}]
  %s12 = sld [smem:[#allocation0]]
  $region82: #{multimodal_forward.1} parent=0
    _
  %s14 = ssub.s32 1, %s12
  %s15 = scalar_select 0, %s14, %s12
  $region1: #{multimodal_forward.1} parent=0
    #allocation2 [shape = 'u8[524288]{0}', space=vmem, size = 0x80000, scoped, tag = 'input window, operand 3, single buffered']
    #allocation3 [shape = 's32[1]{0}', space=sflag, size = 0x4, scoped, tag = 'scoped memory for multimodal_forward.1']
    #allocation4 [shape = 'u8[524288]{0}', space=vmem, size = 0x80000, scoped, tag = 'input window, operand 4, single buffered']
    #allocation5 [shape = 's32[1]{0}', space=sflag, size = 0x4, scoped, tag = 'scoped memory for multimodal_forward.1']
    #allocation6 [shape = 'u8[524288]{0}', space=vmem, size = 0x80000, scoped, tag = 'input window, operand 5, single buffered']
    #allocation7 [shape = 'u8[524288]{0}', space=vmem, size = 0x80000, scoped, tag = 'input window, operand 6, single buffered']
    #allocation8 [shape = 's32[1]{0}', space=sflag, size = 0x4, scoped, tag = 'scoped memory for multimodal_forward.1']
    #allocation9 [shape = 'u8[1048576]{0}', space=vmem, size = 0x100000, scoped, tag = 'input window, operand 7, single buffered']
    #allocation10 [shape = 'u8[1048576]{0}', space=vmem, size = 0x100000, scoped, tag = 'input window, operand 8, single buffered']
    #allocation11 [shape = 's32[1]{0}', space=sflag, size = 0x4, scoped, tag = 'scoped memory for multimodal_forward.1']
    #allocation12 [shape = 'u8[262144]{0}', space=vmem, size = 0x40000, scoped, tag = 'input window, operand 9, single buffered']
    %16 = vsyncpa [#allocation3], 0
    %17 = vsyncpa [#allocation5], 0
    %18 = vsyncpa [#allocation8], 0
    %19 = vsyncpa [#allocation11], 0
    // Predicated region
    $region2: #{multimodal_forward.1} parent=1 // pred_check
      _
    $region3: #{multimodal_forward.1} parent=1 // pred_check_branch
      %21 = sbr.rel (0) target = $region5
    $region4: #{multimodal_forward.1} parent=1 // pred_region
      _
    $region5: #{multimodal_forward.1} parent=1 // pred_fallthru
      _
    // Predicated region
    $region6: #{multimodal_forward.1} parent=1 // pred_check
      _
    $region7: #{multimodal_forward.1} parent=1 // pred_check_branch
      %23 = sbr.rel (0) target = $region9
    $region8: #{multimodal_forward.1} parent=1 // pred_region
      _
    $region9: #{multimodal_forward.1} parent=1 // pred_fallthru
      _
    // Predicated region
    $region10: #{multimodal_forward.1} parent=1 // pred_check
      _
    $region11: #{multimodal_forward.1} parent=1 // pred_check_branch
      %25 = sbr.rel (0) target = $region13
    $region12: #{multimodal_forward.1} parent=1 // pred_region
      _
    $region13: #{multimodal_forward.1} parent=1 // pred_fallthru
      _
    // Predicated region
    $region14: #{multimodal_forward.1} parent=1 // pred_check
      _
    $region15: #{multimodal_forward.1} parent=1 // pred_check_branch
      %27 = sbr.rel (0) target = $region17
    $region16: #{multimodal_forward.1} parent=1 // pred_region
      %s29 = ssub.s32 16384, 16384
      %30 = vsyncadd [#allocation3], %s29
      %s31 = sshll.u32 [#allocation2], 4
      %s32 = int_to_ptr.vmem [resolvable:$true] %s31
      %37 = dma.hbm_to_vmem [thread:$0]  %s3, 16384, %s32, [#allocation3], 256, 256, 16
    $region17: #{multimodal_forward.1} parent=1 // pred_fallthru
      _
    // Predicated region
    $region18: #{multimodal_forward.1} parent=1 // pred_check
      _
    $region19: #{multimodal_forward.1} parent=1 // pred_check_branch
      %39 = sbr.rel (0) target = $region21
    $region20: #{multimodal_forward.1} parent=1 // pred_region
      %s41 = ssub.s32 16384, 16384
      %42 = vsyncadd [#allocation5], %s41
      %s43 = sshll.u32 [#allocation4], 4
      %s44 = int_to_ptr.vmem [resolvable:$true] %s43
      %49 = dma.hbm_to_vmem [thread:$0]  %s4, 16384, %s44, [#allocation5], 256, 256, 16
    $region21: #{multimodal_forward.1} parent=1 // pred_fallthru
      _
    // Predicated region
    $region22: #{multimodal_forward.1} parent=1 // pred_check
      _
    $region23: #{multimodal_forward.1} parent=1 // pred_check_branch
      %51 = sbr.rel (0) target = $region25
    $region24: #{multimodal_forward.1} parent=1 // pred_region
      %s53 = ssub.s32 16384, 16384
      %54 = vsyncadd [#allocation5], %s53
      %s55 = sshll.u32 [#allocation6], 4
      %s56 = int_to_ptr.vmem [resolvable:$true] %s55
      %61 = dma.hbm_to_vmem [thread:$0]  %s5, 16384, %s56, [#allocation5], 256, 256, 16
    $region25: #{multimodal_forward.1} parent=1 // pred_fallthru
      _
    // Predicated region
    $region26: #{multimodal_forward.1} parent=1 // pred_check
      _
    $region27: #{multimodal_forward.1} parent=1 // pred_check_branch
      %63 = sbr.rel (0) target = $region29
    $region28: #{multimodal_forward.1} parent=1 // pred_region
      %s65 = ssub.s32 16384, 16384
      %66 = vsyncadd [#allocation8], %s65
      %s67 = sshll.u32 [#allocation7], 4
      %s68 = int_to_ptr.vmem [resolvable:$true] %s67
      %73 = dma.hbm_to_vmem [thread:$0]  %s6, 16384, %s68, [#allocation8], 256, 256, 16
    $region29: #{multimodal_forward.1} parent=1 // pred_fallthru
      _
    // Predicated region
    $region30: #{multimodal_forward.1} parent=1 // pred_check
      _
    $region31: #{multimodal_forward.1} parent=1 // pred_check_branch
      %75 = sbr.rel (0) target = $region33
    $region32: #{multimodal_forward.1} parent=1 // pred_region
      %s77 = ssub.s32 32768, 32768
      %78 = vsyncadd [#allocation8], %s77
      %s79 = sshll.u32 [#allocation9], 4
      %s80 = int_to_ptr.vmem [resolvable:$true] %s79
      %85 = dma.hbm_to_vmem [thread:$0]  %s7, 32768, %s80, [#allocation8], 512, 512, 32
    $region33: #{multimodal_forward.1} parent=1 // pred_fallthru
      _
    // Predicated region
    $region34: #{multimodal_forward.1} parent=1 // pred_check
      _
    $region35: #{multimodal_forward.1} parent=1 // pred_check_branch
      %87 = sbr.rel (0) target = $region37
    $region36: #{multimodal_forward.1} parent=1 // pred_region
      %s89 = ssub.s32 32768, 32768
      %90 = vsyncadd [#allocation11], %s89
      %s91 = sshll.u32 [#allocation10], 4
      %s92 = int_to_ptr.vmem [resolvable:$true] %s91
      %97 = dma.hbm_to_vmem [thread:$0]  %s8, 32768, %s92, [#allocation11], 256, 256, 16
    $region37: #{multimodal_forward.1} parent=1 // pred_fallthru
      _
    // Predicated region
    $region38: #{multimodal_forward.1} parent=1 // pred_check
      _
    $region39: #{multimodal_forward.1} parent=1 // pred_check_branch
      %99 = sbr.rel (0) target = $region41
    $region40: #{multimodal_forward.1} parent=1 // pred_region
      %s101 = ssub.s32 8192, 8192
      %102 = vsyncadd [#allocation11], %s101
      %s103 = sshll.u32 [#allocation12], 4
      %s104 = int_to_ptr.vmem [resolvable:$true] %s103
      %109 = dma.hbm_to_vmem [thread:$0]  %s9, 8192, %s104, [#allocation11], 128, 128, 8
    $region41: #{multimodal_forward.1} parent=1 // pred_fallthru
      _
    // Predicated region
    $region42: #{multimodal_forward.1} parent=1 // pred_check
      _
    $region43: #{multimodal_forward.1} parent=1 // pred_check_branch
      %111 = sbr.rel (0) target = $region45
    $region44: #{multimodal_forward.1} parent=1 // pred_region
      _
    $region45: #{multimodal_forward.1} parent=1 // pred_fallthru
      _
    // Predicated region
    $region46: #{multimodal_forward.1} parent=1 // pred_check
      _
    $region47: #{multimodal_forward.1} parent=1 // pred_check_branch
      %113 = sbr.rel (0) target = $region49
    $region48: #{multimodal_forward.1} parent=1 // pred_region
      %114 = dma.done [#allocation3], 16384
    $region49: #{multimodal_forward.1} parent=1 // pred_fallthru
      _
    // Predicated region
    $region50: #{multimodal_forward.1} parent=1 // pred_check
      _
    $region51: #{multimodal_forward.1} parent=1 // pred_check_branch
      %116 = sbr.rel (0) target = $region53
    $region52: #{multimodal_forward.1} parent=1 // pred_region
      %117 = dma.done [#allocation5], 16384
    $region53: #{multimodal_forward.1} parent=1 // pred_fallthru
      _
    // Predicated region
    $region54: #{multimodal_forward.1} parent=1 // pred_check
      _
    $region55: #{multimodal_forward.1} parent=1 // pred_check_branch
      %119 = sbr.rel (0) target = $region57
    $region56: #{multimodal_forward.1} parent=1 // pred_region
      %120 = dma.done [#allocation5], 16384
    $region57: #{multimodal_forward.1} parent=1 // pred_fallthru
      _
    // Predicated region
    $region58: #{multimodal_forward.1} parent=1 // pred_check
      _
    $region59: #{multimodal_forward.1} parent=1 // pred_check_branch
      %122 = sbr.rel (0) target = $region61
    $region60: #{multimodal_forward.1} parent=1 // pred_region
      %123 = dma.done [#allocation8], 16384
    $region61: #{multimodal_forward.1} parent=1 // pred_fallthru
      _
    // Predicated region
    $region62: #{multimodal_forward.1} parent=1 // pred_check
      _
    $region63: #{multimodal_forward.1} parent=1 // pred_check_branch
      %125 = sbr.rel (0) target = $region65
    $region64: #{multimodal_forward.1} parent=1 // pred_region
      %126 = dma.done [#allocation8], 32768
    $region65: #{multimodal_forward.1} parent=1 // pred_fallthru
      _
    // Predicated region
    $region66: #{multimodal_forward.1} parent=1 // pred_check
      _
    $region67: #{multimodal_forward.1} parent=1 // pred_check_branch
      %128 = sbr.rel (0) target = $region69
    $region68: #{multimodal_forward.1} parent=1 // pred_region
      %129 = dma.done [#allocation11], 32768
    $region69: #{multimodal_forward.1} parent=1 // pred_fallthru
      _
    // Predicated region
    $region70: #{multimodal_forward.1} parent=1 // pred_check
      _
    $region71: #{multimodal_forward.1} parent=1 // pred_check_branch
      %131 = sbr.rel (0) target = $region73
    $region72: #{multimodal_forward.1} parent=1 // pred_region
      %132 = dma.done [#allocation11], 8192
    $region73: #{multimodal_forward.1} parent=1 // pred_fallthru
      _
    %v134 = vld [vmem:[#allocation2] sm:$0xff]
    %v135 = vld [vmem:[#allocation2 + $0x8] sm:$0xff]
    %v136 = vld [vmem:[#allocation2 + $0x10] sm:$0xff]
    %v137 = vld [vmem:[#allocation2 + $0x18] sm:$0xff]
    %v138 = vld [vmem:[#allocation2 + $0x20] sm:$0xff]
    %v139 = vld [vmem:[#allocation2 + $0x28] sm:$0xff]
    %v140 = vld [vmem:[#allocation2 + $0x30] sm:$0xff]
    %v141 = vld [vmem:[#allocation2 + $0x38] sm:$0xff]
    %v142 = vld [vmem:[#allocation2 + $0x40] sm:$0xff]
    %v143 = vld [vmem:[#allocation2 + $0x48] sm:$0xff]
    %v144 = vld [vmem:[#allocation2 + $0x50] sm:$0xff]
    %v145 = vld [vmem:[#allocation2 + $0x58] sm:$0xff]
    %v146 = vld [vmem:[#allocation2 + $0x60] sm:$0xff]
    %v147 = vld [vmem:[#allocation2 + $0x68] sm:$0xff]
    %v148 = vld [vmem:[#allocation2 + $0x70] sm:$0xff]
    %v149 = vld [vmem:[#allocation2 + $0x78] sm:$0xff]
    %v150 = vld [vmem:[#allocation2 + $0x80] sm:$0xff]
    %v151 = vld [vmem:[#allocation2 + $0x88] sm:$0xff]
    %v152 = vld [vmem:[#allocation2 + $0x90] sm:$0xff]
    %v153 = vld [vmem:[#allocation2 + $0x98] sm:$0xff]
    %v154 = vld [vmem:[#allocation2 + $0xa0] sm:$0xff]
    %v155 = vld [vmem:[#allocation2 + $0xa8] sm:$0xff]
    %v156 = vld [vmem:[#allocation2 + $0xb0] sm:$0xff]
    %v157 = vld [vmem:[#allocation2 + $0xb8] sm:$0xff]
    %v158 = vld [vmem:[#allocation2 + $0xc0] sm:$0xff]
    %v159 = vld [vmem:[#allocation2 + $0xc8] sm:$0xff]
    %v160 = vld [vmem:[#allocation2 + $0xd0] sm:$0xff]
    %v161 = vld [vmem:[#allocation2 + $0xd8] sm:$0xff]
    %v162 = vld [vmem:[#allocation2 + $0xe0] sm:$0xff]
    %v163 = vld [vmem:[#allocation2 + $0xe8] sm:$0xff]
    %v164 = vld [vmem:[#allocation2 + $0xf0] sm:$0xff]
    %v165 = vld [vmem:[#allocation2 + $0xf8] sm:$0xff]
    %v166 = vld [vmem:[#allocation2 + $0x100] sm:$0xff]
    %v167 = vld [vmem:[#allocation2 + $0x108] sm:$0xff]
    %v168 = vld [vmem:[#allocation2 + $0x110] sm:$0xff]
    %v169 = vld [vmem:[#allocation2 + $0x118] sm:$0xff]
    %v170 = vld [vmem:[#allocation2 + $0x120] sm:$0xff]
    %v171 = vld [vmem:[#allocation2 + $0x128] sm:$0xff]
    %v172 = vld [vmem:[#allocation2 + $0x130] sm:$0xff]
    %v173 = vld [vmem:[#allocation2 + $0x138] sm:$0xff]
    %v174 = vld [vmem:[#allocation2 + $0x140] sm:$0xff]
    %v175 = vld [vmem:[#allocation2 + $0x148] sm:$0xff]
    %v176 = vld [vmem:[#allocation2 + $0x150] sm:$0xff]
    %v177 = vld [vmem:[#allocation2 + $0x158] sm:$0xff]
    %v178 = vld [vmem:[#allocation2 + $0x160] sm:$0xff]
    %v179 = vld [vmem:[#allocation2 + $0x168] sm:$0xff]
    %v180 = vld [vmem:[#allocation2 + $0x170] sm:$0xff]
    %v181 = vld [vmem:[#allocation2 + $0x178] sm:$0xff]
    %v182 = vld [vmem:[#allocation2 + $0x180] sm:$0xff]
    %v183 = vld [vmem:[#allocation2 + $0x188] sm:$0xff]
    %v184 = vld [vmem:[#allocation2 + $0x190] sm:$0xff]
    %v185 = vld [vmem:[#allocation2 + $0x198] sm:$0xff]
    %v186 = vld [vmem:[#allocation2 + $0x1a0] sm:$0xff]
    %v187 = vld [vmem:[#allocation2 + $0x1a8] sm:$0xff]
    %v188 = vld [vmem:[#allocation2 + $0x1b0] sm:$0xff]
    %v189 = vld [vmem:[#allocation2 + $0x1b8] sm:$0xff]
    %v190 = vld [vmem:[#allocation2 + $0x1c0] sm:$0xff]
    %v191 = vld [vmem:[#allocation2 + $0x1c8] sm:$0xff]
    %v192 = vld [vmem:[#allocation2 + $0x1d0] sm:$0xff]
    %v193 = vld [vmem:[#allocation2 + $0x1d8] sm:$0xff]
    %v194 = vld [vmem:[#allocation2 + $0x1e0] sm:$0xff]
    %v195 = vld [vmem:[#allocation2 + $0x1e8] sm:$0xff]
    %v196 = vld [vmem:[#allocation2 + $0x1f0] sm:$0xff]
    %v197 = vld [vmem:[#allocation2 + $0x1f8] sm:$0xff]
    %v198 = vld [vmem:[#allocation2 + $0x200] sm:$0xff]
    %v199 = vld [vmem:[#allocation2 + $0x208] sm:$0xff]
    %v200 = vld [vmem:[#allocation2 + $0x210] sm:$0xff]
    %v201 = vld [vmem:[#allocation2 + $0x218] sm:$0xff]
    %v202 = vld [vmem:[#allocation2 + $0x220] sm:$0xff]
    %v203 = vld [vmem:[#allocation2 + $0x228] sm:$0xff]
    %v204 = vld [vmem:[#allocation2 + $0x230] sm:$0xff]
    %v205 = vld [vmem:[#allocation2 + $0x238] sm:$0xff]
    %v206 = vld [vmem:[#allocation2 + $0x240] sm:$0xff]
    %v207 = vld [vmem:[#allocation2 + $0x248] sm:$0xff]
    %v208 = vld [vmem:[#allocation2 + $0x250] sm:$0xff]
    %v209 = vld [vmem:[#allocation2 + $0x258] sm:$0xff]
    %v210 = vld [vmem:[#allocation2 + $0x260] sm:$0xff]
    %v211 = vld [vmem:[#allocation2 + $0x268] sm:$0xff]
    %v212 = vld [vmem:[#allocation2 + $0x270] sm:$0xff]
    %v213 = vld [vmem:[#allocation2 + $0x278] sm:$0xff]
    %v214 = vld [vmem:[#allocation2 + $0x280] sm:$0xff]
    %v215 = vld [vmem:[#allocation2 + $0x288] sm:$0xff]
    %v216 = vld [vmem:[#allocation2 + $0x290] sm:$0xff]
    %v217 = vld [vmem:[#allocation2 + $0x298] sm:$0xff]
    %v218 = vld [vmem:[#allocation2 + $0x2a0] sm:$0xff]
    %v219 = vld [vmem:[#allocation2 + $0x2a8] sm:$0xff]
    %v220 = vld [vmem:[#allocation2 + $0x2b0] sm:$0xff]
    %v221 = vld [vmem:[#allocation2 + $0x2b8] sm:$0xff]
    %v222 = vld [vmem:[#allocation2 + $0x2c0] sm:$0xff]
    %v223 = vld [vmem:[#allocation2 + $0x2c8] sm:$0xff]
    %v224 = vld [vmem:[#allocation2 + $0x2d0] sm:$0xff]
    %v225 = vld [vmem:[#allocation2 + $0x2d8] sm:$0xff]
    %v226 = vld [vmem:[#allocation2 + $0x2e0] sm:$0xff]
    %v227 = vld [vmem:[#allocation2 + $0x2e8] sm:$0xff]
    %v228 = vld [vmem:[#allocation2 + $0x2f0] sm:$0xff]
    %v229 = vld [vmem:[#allocation2 + $0x2f8] sm:$0xff]
    %v230 = vld [vmem:[#allocation2 + $0x300] sm:$0xff]
    %v231 = vld [vmem:[#allocation2 + $0x308] sm:$0xff]
    %v232 = vld [vmem:[#allocation2 + $0x310] sm:$0xff]
    %v233 = vld [vmem:[#allocation2 + $0x318] sm:$0xff]
    %v234 = vld [vmem:[#allocation2 + $0x320] sm:$0xff]
    %v235 = vld [vmem:[#allocation2 + $0x328] sm:$0xff]
    %v236 = vld [vmem:[#allocation2 + $0x330] sm:$0xff]
    %v237 = vld [vmem:[#allocation2 + $0x338] sm:$0xff]
    %v238 = vld [vmem:[#allocation2 + $0x340] sm:$0xff]
    %v239 = vld [vmem:[#allocation2 + $0x348] sm:$0xff]
    %v240 = vld [vmem:[#allocation2 + $0x350] sm:$0xff]
    %v241 = vld [vmem:[#allocation2 + $0x358] sm:$0xff]
    %v242 = vld [vmem:[#allocation2 + $0x360] sm:$0xff]
    %v243 = vld [vmem:[#allocation2 + $0x368] sm:$0xff]
    %v244 = vld [vmem:[#allocation2 + $0x370] sm:$0xff]
    %v245 = vld [vmem:[#allocation2 + $0x378] sm:$0xff]
    %v246 = vld [vmem:[#allocation2 + $0x380] sm:$0xff]
    %v247 = vld [vmem:[#allocation2 + $0x388] sm:$0xff]
    %v248 = vld [vmem:[#allocation2 + $0x390] sm:$0xff]
    %v249 = vld [vmem:[#allocation2 + $0x398] sm:$0xff]
    %v250 = vld [vmem:[#allocation2 + $0x3a0] sm:$0xff]
    %v251 = vld [vmem:[#allocation2 + $0x3a8] sm:$0xff]
    %v252 = vld [vmem:[#allocation2 + $0x3b0] sm:$0xff]
    %v253 = vld [vmem:[#allocation2 + $0x3b8] sm:$0xff]
    %v254 = vld [vmem:[#allocation2 + $0x3c0] sm:$0xff]
    %v255 = vld [vmem:[#allocation2 + $0x3c8] sm:$0xff]
    %v256 = vld [vmem:[#allocation2 + $0x3d0] sm:$0xff]
    %v257 = vld [vmem:[#allocation2 + $0x3d8] sm:$0xff]
    %v258 = vld [vmem:[#allocation2 + $0x3e0] sm:$0xff]
    %v259 = vld [vmem:[#allocation2 + $0x3e8] sm:$0xff]
    %v260 = vld [vmem:[#allocation2 + $0x3f0] sm:$0xff]
    %v261 = vld [vmem:[#allocation2 + $0x3f8] sm:$0xff]
    %v262 = vld [vmem:[#allocation4] sm:$0xff]
    %v263 = vld [vmem:[#allocation4 + $0x8] sm:$0xff]
    %v264 = vld [vmem:[#allocation4 + $0x10] sm:$0xff]
    %v265 = vld [vmem:[#allocation4 + $0x18] sm:$0xff]
    %v266 = vld [vmem:[#allocation4 + $0x20] sm:$0xff]
    %v267 = vld [vmem:[#allocation4 + $0x28] sm:$0xff]
    %v268 = vld [vmem:[#allocation4 + $0x30] sm:$0xff]
    %v269 = vld [vmem:[#allocation4 + $0x38] sm:$0xff]
    %v270 = vld [vmem:[#allocation4 + $0x40] sm:$0xff]
    %v271 = vld [vmem:[#allocation4 + $0x48] sm:$0xff]
    %v272 = vld [vmem:[#allocation4 + $0x50] sm:$0xff]
    %v273 = vld [vmem:[#allocation4 + $0x58] sm:$0xff]
    %v274 = vld [vmem:[#allocation4 + $0x60] sm:$0xff]
    %v275 = vld [vmem:[#allocation4 + $0x68] sm:$0xff]
    %v276 = vld [vmem:[#allocation4 + $0x70] sm:$0xff]
    %v277 = vld [vmem:[#allocation4 + $0x78] sm:$0xff]
    %v278 = vld [vmem:[#allocation4 + $0x80] sm:$0xff]
    %v279 = vld [vmem:[#allocation4 + $0x88] sm:$0xff]
    %v280 = vld [vmem:[#allocation4 + $0x90] sm:$0xff]
    %v281 = vld [vmem:[#allocation4 + $0x98] sm:$0xff]
    %v282 = vld [vmem:[#allocation4 + $0xa0] sm:$0xff]
    %v283 = vld [vmem:[#allocation4 + $0xa8] sm:$0xff]
    %v284 = vld [vmem:[#allocation4 + $0xb0] sm:$0xff]
    %v285 = vld [vmem:[#allocation4 + $0xb8] sm:$0xff]
    %v286 = vld [vmem:[#allocation4 + $0xc0] sm:$0xff]
    %v287 = vld [vmem:[#allocation4 + $0xc8] sm:$0xff]
    %v288 = vld [vmem:[#allocation4 + $0xd0] sm:$0xff]
    %v289 = vld [vmem:[#allocation4 + $0xd8] sm:$0xff]
    %v290 = vld [vmem:[#allocation4 + $0xe0] sm:$0xff]
    %v291 = vld [vmem:[#allocation4 + $0xe8] sm:$0xff]
    %v292 = vld [vmem:[#allocation4 + $0xf0] sm:$0xff]
    %v293 = vld [vmem:[#allocation4 + $0xf8] sm:$0xff]
    %v294 = vld [vmem:[#allocation4 + $0x100] sm:$0xff]
    %v295 = vld [vmem:[#allocation4 + $0x108] sm:$0xff]
    %v296 = vld [vmem:[#allocation4 + $0x110] sm:$0xff]
    %v297 = vld [vmem:[#allocation4 + $0x118] sm:$0xff]
    %v298 = vld [vmem:[#allocation4 + $0x120] sm:$0xff]
    %v299 = vld [vmem:[#allocation4 + $0x128] sm:$0xff]
    %v300 = vld [vmem:[#allocation4 + $0x130] sm:$0xff]
    %v301 = vld [vmem:[#allocation4 + $0x138] sm:$0xff]
    %v302 = vld [vmem:[#allocation4 + $0x140] sm:$0xff]
    %v303 = vld [vmem:[#allocation4 + $0x148] sm:$0xff]
    %v304 = vld [vmem:[#allocation4 + $0x150] sm:$0xff]
    %v305 = vld [vmem:[#allocation4 + $0x158] sm:$0xff]
    %v306 = vld [vmem:[#allocation4 + $0x160] sm:$0xff]
    %v307 = vld [vmem:[#allocation4 + $0x168] sm:$0xff]
    %v308 = vld [vmem:[#allocation4 + $0x170] sm:$0xff]
    %v309 = vld [vmem:[#allocation4 + $0x178] sm:$0xff]
    %v310 = vld [vmem:[#allocation4 + $0x180] sm:$0xff]
    %v311 = vld [vmem:[#allocation4 + $0x188] sm:$0xff]
    %v312 = vld [vmem:[#allocation4 + $0x190] sm:$0xff]
    %v313 = vld [vmem:[#allocation4 + $0x198] sm:$0xff]
    %v314 = vld [vmem:[#allocation4 + $0x1a0] sm:$0xff]
    %v315 = vld [vmem:[#allocation4 + $0x1a8] sm:$0xff]
    %v316 = vld [vmem:[#allocation4 + $0x1b0] sm:$0xff]
    %v317 = vld [vmem:[#allocation4 + $0x1b8] sm:$0xff]
    %v318 = vld [vmem:[#allocation4 + $0x1c0] sm:$0xff]
    %v319 = vld [vmem:[#allocation4 + $0x1c8] sm:$0xff]
    %v320 = vld [vmem:[#allocation4 + $0x1d0] sm:$0xff]
    %v321 = vld [vmem:[#allocation4 + $0x1d8] sm:$0xff]
    %v322 = vld [vmem:[#allocation4 + $0x1e0] sm:$0xff]
    %v323 = vld [vmem:[#allocation4 + $0x1e8] sm:$0xff]
    %v324 = vld [vmem:[#allocation4 + $0x1f0] sm:$0xff]
    %v325 = vld [vmem:[#allocation4 + $0x1f8] sm:$0xff]
    %v326 = vld [vmem:[#allocation4 + $0x200] sm:$0xff]
    %v327 = vld [vmem:[#allocation4 + $0x208] sm:$0xff]
    %v328 = vld [vmem:[#allocation4 + $0x210] sm:$0xff]
    %v329 = vld [vmem:[#allocation4 + $0x218] sm:$0xff]
    %v330 = vld [vmem:[#allocation4 + $0x220] sm:$0xff]
    %v331 = vld [vmem:[#allocation4 + $0x228] sm:$0xff]
    %v332 = vld [vmem:[#allocation4 + $0x230] sm:$0xff]
    %v333 = vld [vmem:[#allocation4 + $0x238] sm:$0xff]
    %v334 = vld [vmem:[#allocation4 + $0x240] sm:$0xff]
    %v335 = vld [vmem:[#allocation4 + $0x248] sm:$0xff]
    %v336 = vld [vmem:[#allocation4 + $0x250] sm:$0xff]
    %v337 = vld [vmem:[#allocation4 + $0x258] sm:$0xff]
    %v338 = vld [vmem:[#allocation4 + $0x260] sm:$0xff]
    %v339 = vld [vmem:[#allocation4 + $0x268] sm:$0xff]
    %v340 = vld [vmem:[#allocation4 + $0x270] sm:$0xff]
    %v341 = vld [vmem:[#allocation4 + $0x278] sm:$0xff]
    %v342 = vld [vmem:[#allocation4 + $0x280] sm:$0xff]
    %v343 = vld [vmem:[#allocation4 + $0x288] sm:$0xff]
    %v344 = vld [vmem:[#allocation4 + $0x290] sm:$0xff]
    %v345 = vld [vmem:[#allocation4 + $0x298] sm:$0xff]
    %v346 = vld [vmem:[#allocation4 + $0x2a0] sm:$0xff]
    %v347 = vld [vmem:[#allocation4 + $0x2a8] sm:$0xff]
    %v348 = vld [vmem:[#allocation4 + $0x2b0] sm:$0xff]
    %v349 = vld [vmem:[#allocation4 + $0x2b8] sm:$0xff]
    %v350 = vld [vmem:[#allocation4 + $0x2c0] sm:$0xff]
    %v351 = vld [vmem:[#allocation4 + $0x2c8] sm:$0xff]
    %v352 = vld [vmem:[#allocation4 + $0x2d0] sm:$0xff]
    %v353 = vld [vmem:[#allocation4 + $0x2d8] sm:$0xff]
    %v354 = vld [vmem:[#allocation4 + $0x2e0] sm:$0xff]
    %v355 = vld [vmem:[#allocation4 + $0x2e8] sm:$0xff]
    %v356 = vld [vmem:[#allocation4 + $0x2f0] sm:$0xff]
    %v357 = vld [vmem:[#allocation4 + $0x2f8] sm:$0xff]
    %v358 = vld [vmem:[#allocation4 + $0x300] sm:$0xff]
    %v359 = vld [vmem:[#allocation4 + $0x308] sm:$0xff]
    %v360 = vld [vmem:[#allocation4 + $0x310] sm:$0xff]
    %v361 = vld [vmem:[#allocation4 + $0x318] sm:$0xff]
    %v362 = vld [vmem:[#allocation4 + $0x320] sm:$0xff]
    %v363 = vld [vmem:[#allocation4 + $0x328] sm:$0xff]
    %v364 = vld [vmem:[#allocation4 + $0x330] sm:$0xff]
    %v365 = vld [vmem:[#allocation4 + $0x338] sm:$0xff]
    %v366 = vld [vmem:[#allocation4 + $0x340] sm:$0xff]
    %v367 = vld [vmem:[#allocation4 + $0x348] sm:$0xff]
    %v368 = vld [vmem:[#allocation4 + $0x350] sm:$0xff]
    %v369 = vld [vmem:[#allocation4 + $0x358] sm:$0xff]
    %v370 = vld [vmem:[#allocation4 + $0x360] sm:$0xff]
    %v371 = vld [vmem:[#allocation4 + $0x368] sm:$0xff]
    %v372 = vld [vmem:[#allocation4 + $0x370] sm:$0xff]
    %v373 = vld [vmem:[#allocation4 + $0x378] sm:$0xff]
    %v374 = vld [vmem:[#allocation4 + $0x380] sm:$0xff]
    %v375 = vld [vmem:[#allocation4 + $0x388] sm:$0xff]
    %v376 = vld [vmem:[#allocation4 + $0x390] sm:$0xff]
    %v377 = vld [vmem:[#allocation4 + $0x398] sm:$0xff]
    %v378 = vld [vmem:[#allocation4 + $0x3a0] sm:$0xff]
    %v379 = vld [vmem:[#allocation4 + $0x3a8] sm:$0xff]
    %v380 = vld [vmem:[#allocation4 + $0x3b0] sm:$0xff]
    %v381 = vld [vmem:[#allocation4 + $0x3b8] sm:$0xff]
    %v382 = vld [vmem:[#allocation4 + $0x3c0] sm:$0xff]
    %v383 = vld [vmem:[#allocation4 + $0x3c8] sm:$0xff]
    %v384 = vld [vmem:[#allocation4 + $0x3d0] sm:$0xff]
    %v385 = vld [vmem:[#allocation4 + $0x3d8] sm:$0xff]
    %v386 = vld [vmem:[#allocation4 + $0x3e0] sm:$0xff]
    %v387 = vld [vmem:[#allocation4 + $0x3e8] sm:$0xff]
    %v388 = vld [vmem:[#allocation4 + $0x3f0] sm:$0xff]
    %v389 = vld [vmem:[#allocation4 + $0x3f8] sm:$0xff]
    %v390 = vld [vmem:[#allocation6] sm:$0xff]
    %v391 = vld [vmem:[#allocation6 + $0x8] sm:$0xff]
    %v392 = vld [vmem:[#allocation6 + $0x10] sm:$0xff]
    %v393 = vld [vmem:[#allocation6 + $0x18] sm:$0xff]
    %v394 = vld [vmem:[#allocation6 + $0x20] sm:$0xff]
    %v395 = vld [vmem:[#allocation6 + $0x28] sm:$0xff]
    %v396 = vld [vmem:[#allocation6 + $0x30] sm:$0xff]
    %v397 = vld [vmem:[#allocation6 + $0x38] sm:$0xff]
    %v398 = vld [vmem:[#allocation6 + $0x40] sm:$0xff]
    %v399 = vld [vmem:[#allocation6 + $0x48] sm:$0xff]
    %v400 = vld [vmem:[#allocation6 + $0x50] sm:$0xff]
    %v401 = vld [vmem:[#allocation6 + $0x58] sm:$0xff]
    %v402 = vld [vmem:[#allocation6 + $0x60] sm:$0xff]
    %v403 = vld [vmem:[#allocation6 + $0x68] sm:$0xff]
    %v404 = vld [vmem:[#allocation6 + $0x70] sm:$0xff]
    %v405 = vld [vmem:[#allocation6 + $0x78] sm:$0xff]
    %v406 = vld [vmem:[#allocation6 + $0x80] sm:$0xff]
    %v407 = vld [vmem:[#allocation6 + $0x88] sm:$0xff]
    %v408 = vld [vmem:[#allocation6 + $0x90] sm:$0xff]
    %v409 = vld [vmem:[#allocation6 + $0x98] sm:$0xff]
    %v410 = vld [vmem:[#allocation6 + $0xa0] sm:$0xff]
    %v411 = vld [vmem:[#allocation6 + $0xa8] sm:$0xff]
    %v412 = vld [vmem:[#allocation6 + $0xb0] sm:$0xff]
    %v413 = vld [vmem:[#allocation6 + $0xb8] sm:$0xff]
    %v414 = vld [vmem:[#allocation6 + $0xc0] sm:$0xff]
    %v415 = vld [vmem:[#allocation6 + $0xc8] sm:$0xff]
    %v416 = vld [vmem:[#allocation6 + $0xd0] sm:$0xff]
    %v417 = vld [vmem:[#allocation6 + $0xd8] sm:$0xff]
    %v418 = vld [vmem:[#allocation6 + $0xe0] sm:$0xff]
    %v419 = vld [vmem:[#allocation6 + $0xe8] sm:$0xff]
    %v420 = vld [vmem:[#allocation6 + $0xf0] sm:$0xff]
    %v421 = vld [vmem:[#allocation6 + $0xf8] sm:$0xff]
    %v422 = vld [vmem:[#allocation6 + $0x100] sm:$0xff]
    %v423 = vld [vmem:[#allocation6 + $0x108] sm:$0xff]
    %v424 = vld [vmem:[#allocation6 + $0x110] sm:$0xff]
    %v425 = vld [vmem:[#allocation6 + $0x118] sm:$0xff]
    %v426 = vld [vmem:[#allocation6 + $0x120] sm:$0xff]
    %v427 = vld [vmem:[#allocation6 + $0x128] sm:$0xff]
    %v428 = vld [vmem:[#allocation6 + $0x130] sm:$0xff]
    %v429 = vld [vmem:[#allocation6 + $0x138] sm:$0xff]
    %v430 = vld [vmem:[#allocation6 + $0x140] sm:$0xff]
    %v431 = vld [vmem:[#allocation6 + $0x148] sm:$0xff]
    %v432 = vld [vmem:[#allocation6 + $0x150] sm:$0xff]
    %v433 = vld [vmem:[#allocation6 + $0x158] sm:$0xff]
    %v434 = vld [vmem:[#allocation6 + $0x160] sm:$0xff]
    %v435 = vld [vmem:[#allocation6 + $0x168] sm:$0xff]
    %v436 = vld [vmem:[#allocation6 + $0x170] sm:$0xff]
    %v437 = vld [vmem:[#allocation6 + $0x178] sm:$0xff]
    %v438 = vld [vmem:[#allocation6 + $0x180] sm:$0xff]
    %v439 = vld [vmem:[#allocation6 + $0x188] sm:$0xff]
    %v440 = vld [vmem:[#allocation6 + $0x190] sm:$0xff]
    %v441 = vld [vmem:[#allocation6 + $0x198] sm:$0xff]
    %v442 = vld [vmem:[#allocation6 + $0x1a0] sm:$0xff]
    %v443 = vld [vmem:[#allocation6 + $0x1a8] sm:$0xff]
    %v444 = vld [vmem:[#allocation6 + $0x1b0] sm:$0xff]
    %v445 = vld [vmem:[#allocation6 + $0x1b8] sm:$0xff]
    %v446 = vld [vmem:[#allocation6 + $0x1c0] sm:$0xff]
    %v447 = vld [vmem:[#allocation6 + $0x1c8] sm:$0xff]
    %v448 = vld [vmem:[#allocation6 + $0x1d0] sm:$0xff]
    %v449 = vld [vmem:[#allocation6 + $0x1d8] sm:$0xff]
    %v450 = vld [vmem:[#allocation6 + $0x1e0] sm:$0xff]
    %v451 = vld [vmem:[#allocation6 + $0x1e8] sm:$0xff]
    %v452 = vld [vmem:[#allocation6 + $0x1f0] sm:$0xff]
    %v453 = vld [vmem:[#allocation6 + $0x1f8] sm:$0xff]
    %v454 = vld [vmem:[#allocation6 + $0x200] sm:$0xff]
    %v455 = vld [vmem:[#allocation6 + $0x208] sm:$0xff]
    %v456 = vld [vmem:[#allocation6 + $0x210] sm:$0xff]
    %v457 = vld [vmem:[#allocation6 + $0x218] sm:$0xff]
    %v458 = vld [vmem:[#allocation6 + $0x220] sm:$0xff]
    %v459 = vld [vmem:[#allocation6 + $0x228] sm:$0xff]
    %v460 = vld [vmem:[#allocation6 + $0x230] sm:$0xff]
    %v461 = vld [vmem:[#allocation6 + $0x238] sm:$0xff]
    %v462 = vld [vmem:[#allocation6 + $0x240] sm:$0xff]
    %v463 = vld [vmem:[#allocation6 + $0x248] sm:$0xff]
    %v464 = vld [vmem:[#allocation6 + $0x250] sm:$0xff]
    %v465 = vld [vmem:[#allocation6 + $0x258] sm:$0xff]
    %v466 = vld [vmem:[#allocation6 + $0x260] sm:$0xff]
    %v467 = vld [vmem:[#allocation6 + $0x268] sm:$0xff]
    %v468 = vld [vmem:[#allocation6 + $0x270] sm:$0xff]
    %v469 = vld [vmem:[#allocation6 + $0x278] sm:$0xff]
    %v470 = vld [vmem:[#allocation6 + $0x280] sm:$0xff]
    %v471 = vld [vmem:[#allocation6 + $0x288] sm:$0xff]
    %v472 = vld [vmem:[#allocation6 + $0x290] sm:$0xff]
    %v473 = vld [vmem:[#allocation6 + $0x298] sm:$0xff]
    %v474 = vld [vmem:[#allocation6 + $0x2a0] sm:$0xff]
    %v475 = vld [vmem:[#allocation6 + $0x2a8] sm:$0xff]
    %v476 = vld [vmem:[#allocation6 + $0x2b0] sm:$0xff]
    %v477 = vld [vmem:[#allocation6 + $0x2b8] sm:$0xff]
    %v478 = vld [vmem:[#allocation6 + $0x2c0] sm:$0xff]
    %v479 = vld [vmem:[#allocation6 + $0x2c8] sm:$0xff]
    %v480 = vld [vmem:[#allocation6 + $0x2d0] sm:$0xff]
    %v481 = vld [vmem:[#allocation6 + $0x2d8] sm:$0xff]
    %v482 = vld [vmem:[#allocation6 + $0x2e0] sm:$0xff]
    %v483 = vld [vmem:[#allocation6 + $0x2e8] sm:$0xff]
    %v484 = vld [vmem:[#allocation6 + $0x2f0] sm:$0xff]
    %v485 = vld [vmem:[#allocation6 + $0x2f8] sm:$0xff]
    %v486 = vld [vmem:[#allocation6 + $0x300] sm:$0xff]
    %v487 = vld [vmem:[#allocation6 + $0x308] sm:$0xff]
    %v488 = vld [vmem:[#allocation6 + $0x310] sm:$0xff]
    %v489 = vld [vmem:[#allocation6 + $0x318] sm:$0xff]
    %v490 = vld [vmem:[#allocation6 + $0x320] sm:$0xff]
    %v491 = vld [vmem:[#allocation6 + $0x328] sm:$0xff]
    %v492 = vld [vmem:[#allocation6 + $0x330] sm:$0xff]
    %v493 = vld [vmem:[#allocation6 + $0x338] sm:$0xff]
    %v494 = vld [vmem:[#allocation6 + $0x340] sm:$0xff]
    %v495 = vld [vmem:[#allocation6 + $0x348] sm:$0xff]
    %v496 = vld [vmem:[#allocation6 + $0x350] sm:$0xff]
    %v497 = vld [vmem:[#allocation6 + $0x358] sm:$0xff]
    %v498 = vld [vmem:[#allocation6 + $0x360] sm:$0xff]
    %v499 = vld [vmem:[#allocation6 + $0x368] sm:$0xff]
    %v500 = vld [vmem:[#allocation6 + $0x370] sm:$0xff]
    %v501 = vld [vmem:[#allocation6 + $0x378] sm:$0xff]
    %v502 = vld [vmem:[#allocation6 + $0x380] sm:$0xff]
    %v503 = vld [vmem:[#allocation6 + $0x388] sm:$0xff]
    %v504 = vld [vmem:[#allocation6 + $0x390] sm:$0xff]
    %v505 = vld [vmem:[#allocation6 + $0x398] sm:$0xff]
    %v506 = vld [vmem:[#allocation6 + $0x3a0] sm:$0xff]
    %v507 = vld [vmem:[#allocation6 + $0x3a8] sm:$0xff]
    %v508 = vld [vmem:[#allocation6 + $0x3b0] sm:$0xff]
    %v509 = vld [vmem:[#allocation6 + $0x3b8] sm:$0xff]
    %v510 = vld [vmem:[#allocation6 + $0x3c0] sm:$0xff]
    %v511 = vld [vmem:[#allocation6 + $0x3c8] sm:$0xff]
    %v512 = vld [vmem:[#allocation6 + $0x3d0] sm:$0xff]
    %v513 = vld [vmem:[#allocation6 + $0x3d8] sm:$0xff]
    %v514 = vld [vmem:[#allocation6 + $0x3e0] sm:$0xff]
    %v515 = vld [vmem:[#allocation6 + $0x3e8] sm:$0xff]
    %v516 = vld [vmem:[#allocation6 + $0x3f0] sm:$0xff]
    %v517 = vld [vmem:[#allocation6 + $0x3f8] sm:$0xff]
    %v518 = vld [vmem:[#allocation7] sm:$0xff]
    %v519 = vld [vmem:[#allocation7 + $0x8] sm:$0xff]
    %v520 = vld [vmem:[#allocation7 + $0x10] sm:$0xff]
    %v521 = vld [vmem:[#allocation7 + $0x18] sm:$0xff]
    %v522 = vld [vmem:[#allocation7 + $0x20] sm:$0xff]
    %v523 = vld [vmem:[#allocation7 + $0x28] sm:$0xff]
    %v524 = vld [vmem:[#allocation7 + $0x30] sm:$0xff]
    %v525 = vld [vmem:[#allocation7 + $0x38] sm:$0xff]
    %v526 = vld [vmem:[#allocation7 + $0x40] sm:$0xff]
    %v527 = vld [vmem:[#allocation7 + $0x48] sm:$0xff]
    %v528 = vld [vmem:[#allocation7 + $0x50] sm:$0xff]
    %v529 = vld [vmem:[#allocation7 + $0x58] sm:$0xff]
    %v530 = vld [vmem:[#allocation7 + $0x60] sm:$0xff]
    %v531 = vld [vmem:[#allocation7 + $0x68] sm:$0xff]
    %v532 = vld [vmem:[#allocation7 + $0x70] sm:$0xff]
    %v533 = vld [vmem:[#allocation7 + $0x78] sm:$0xff]
    %v534 = vld [vmem:[#allocation7 + $0x80] sm:$0xff]
    %v535 = vld [vmem:[#allocation7 + $0x88] sm:$0xff]
    %v536 = vld [vmem:[#allocation7 + $0x90] sm:$0xff]
    %v537 = vld [vmem:[#allocation7 + $0x98] sm:$0xff]
    %v538 = vld [vmem:[#allocation7 + $0xa0] sm:$0xff]
    %v539 = vld [vmem:[#allocation7 + $0xa8] sm:$0xff]
    %v540 = vld [vmem:[#allocation7 + $0xb0] sm:$0xff]
    %v541 = vld [vmem:[#allocation7 + $0xb8] sm:$0xff]
    %v542 = vld [vmem:[#allocation7 + $0xc0] sm:$0xff]
    %v543 = vld [vmem:[#allocation7 + $0xc8] sm:$0xff]
    %v544 = vld [vmem:[#allocation7 + $0xd0] sm:$0xff]
    %v545 = vld [vmem:[#allocation7 + $0xd8] sm:$0xff]
    %v546 = vld [vmem:[#allocation7 + $0xe0] sm:$0xff]
    %v547 = vld [vmem:[#allocation7 + $0xe8] sm:$0xff]
    %v548 = vld [vmem:[#allocation7 + $0xf0] sm:$0xff]
    %v549 = vld [vmem:[#allocation7 + $0xf8] sm:$0xff]
    %v550 = vld [vmem:[#allocation7 + $0x100] sm:$0xff]
    %v551 = vld [vmem:[#allocation7 + $0x108] sm:$0xff]
    %v552 = vld [vmem:[#allocation7 + $0x110] sm:$0xff]
    %v553 = vld [vmem:[#allocation7 + $0x118] sm:$0xff]
    %v554 = vld [vmem:[#allocation7 + $0x120] sm:$0xff]
    %v555 = vld [vmem:[#allocation7 + $0x128] sm:$0xff]
    %v556 = vld [vmem:[#allocation7 + $0x130] sm:$0xff]
    %v557 = vld [vmem:[#allocation7 + $0x138] sm:$0xff]
    %v558 = vld [vmem:[#allocation7 + $0x140] sm:$0xff]
    %v559 = vld [vmem:[#allocation7 + $0x148] sm:$0xff]
    %v560 = vld [vmem:[#allocation7 + $0x150] sm:$0xff]
    %v561 = vld [vmem:[#allocation7 + $0x158] sm:$0xff]
    %v562 = vld [vmem:[#allocation7 + $0x160] sm:$0xff]
    %v563 = vld [vmem:[#allocation7 + $0x168] sm:$0xff]
    %v564 = vld [vmem:[#allocation7 + $0x170] sm:$0xff]
    %v565 = vld [vmem:[#allocation7 + $0x178] sm:$0xff]
    %v566 = vld [vmem:[#allocation7 + $0x180] sm:$0xff]
    %v567 = vld [vmem:[#allocation7 + $0x188] sm:$0xff]
    %v568 = vld [vmem:[#allocation7 + $0x190] sm:$0xff]
    %v569 = vld [vmem:[#allocation7 + $0x198] sm:$0xff]
    %v570 = vld [vmem:[#allocation7 + $0x1a0] sm:$0xff]
    %v571 = vld [vmem:[#allocation7 + $0x1a8] sm:$0xff]
    %v572 = vld [vmem:[#allocation7 + $0x1b0] sm:$0xff]
    %v573 = vld [vmem:[#allocation7 + $0x1b8] sm:$0xff]
    %v574 = vld [vmem:[#allocation7 + $0x1c0] sm:$0xff]
    %v575 = vld [vmem:[#allocation7 + $0x1c8] sm:$0xff]
    %v576 = vld [vmem:[#allocation7 + $0x1d0] sm:$0xff]
    %v577 = vld [vmem:[#allocation7 + $0x1d8] sm:$0xff]
    %v578 = vld [vmem:[#allocation7 + $0x1e0] sm:$0xff]
    %v579 = vld [vmem:[#allocation7 + $0x1e8] sm:$0xff]
    %v580 = vld [vmem:[#allocation7 + $0x1f0] sm:$0xff]
    %v581 = vld [vmem:[#allocation7 + $0x1f8] sm:$0xff]
    %v582 = vld [vmem:[#allocation7 + $0x200] sm:$0xff]
    %v583 = vld [vmem:[#allocation7 + $0x208] sm:$0xff]
    %v584 = vld [vmem:[#allocation7 + $0x210] sm:$0xff]
    %v585 = vld [vmem:[#allocation7 + $0x218] sm:$0xff]
    %v586 = vld [vmem:[#allocation7 + $0x220] sm:$0xff]
    %v587 = vld [vmem:[#allocation7 + $0x228] sm:$0xff]
    %v588 = vld [vmem:[#allocation7 + $0x230] sm:$0xff]
    %v589 = vld [vmem:[#allocation7 + $0x238] sm:$0xff]
    %v590 = vld [vmem:[#allocation7 + $0x240] sm:$0xff]
    %v591 = vld [vmem:[#allocation7 + $0x248] sm:$0xff]
    %v592 = vld [vmem:[#allocation7 + $0x250] sm:$0xff]
    %v593 = vld [vmem:[#allocation7 + $0x258] sm:$0xff]
    %v594 = vld [vmem:[#allocation7 + $0x260] sm:$0xff]
    %v595 = vld [vmem:[#allocation7 + $0x268] sm:$0xff]
    %v596 = vld [vmem:[#allocation7 + $0x270] sm:$0xff]
    %v597 = vld [vmem:[#allocation7 + $0x278] sm:$0xff]
    %v598 = vld [vmem:[#allocation7 + $0x280] sm:$0xff]
    %v599 = vld [vmem:[#allocation7 + $0x288] sm:$0xff]
    %v600 = vld [vmem:[#allocation7 + $0x290] sm:$0xff]
    %v601 = vld [vmem:[#allocation7 + $0x298] sm:$0xff]
    %v602 = vld [vmem:[#allocation7 + $0x2a0] sm:$0xff]
    %v603 = vld [vmem:[#allocation7 + $0x2a8] sm:$0xff]
    %v604 = vld [vmem:[#allocation7 + $0x2b0] sm:$0xff]
    %v605 = vld [vmem:[#allocation7 + $0x2b8] sm:$0xff]
    %v606 = vld [vmem:[#allocation7 + $0x2c0] sm:$0xff]
    %v607 = vld [vmem:[#allocation7 + $0x2c8] sm:$0xff]
    %v608 = vld [vmem:[#allocation7 + $0x2d0] sm:$0xff]
    %v609 = vld [vmem:[#allocation7 + $0x2d8] sm:$0xff]
    %v610 = vld [vmem:[#allocation7 + $0x2e0] sm:$0xff]
    %v611 = vld [vmem:[#allocation7 + $0x2e8] sm:$0xff]
    %v612 = vld [vmem:[#allocation7 + $0x2f0] sm:$0xff]
    %v613 = vld [vmem:[#allocation7 + $0x2f8] sm:$0xff]
    %v614 = vld [vmem:[#allocation7 + $0x300] sm:$0xff]
    %v615 = vld [vmem:[#allocation7 + $0x308] sm:$0xff]
    %v616 = vld [vmem:[#allocation7 + $0x310] sm:$0xff]
    %v617 = vld [vmem:[#allocation7 + $0x318] sm:$0xff]
    %v618 = vld [vmem:[#allocation7 + $0x320] sm:$0xff]
    %v619 = vld [vmem:[#allocation7 + $0x328] sm:$0xff]
    %v620 = vld [vmem:[#allocation7 + $0x330] sm:$0xff]
    %v621 = vld [vmem:[#allocation7 + $0x338] sm:$0xff]
    %v622 = vld [vmem:[#allocation7 + $0x340] sm:$0xff]
    %v623 = vld [vmem:[#allocation7 + $0x348] sm:$0xff]
    %v624 = vld [vmem:[#allocation7 + $0x350] sm:$0xff]
    %v625 = vld [vmem:[#allocation7 + $0x358] sm:$0xff]
    %v626 = vld [vmem:[#allocation7 + $0x360] sm:$0xff]
    %v627 = vld [vmem:[#allocation7 + $0x368] sm:$0xff]
    %v628 = vld [vmem:[#allocation7 + $0x370] sm:$0xff]
    %v629 = vld [vmem:[#allocation7 + $0x378] sm:$0xff]
    %v630 = vld [vmem:[#allocation7 + $0x380] sm:$0xff]
    %v631 = vld [vmem:[#allocation7 + $0x388] sm:$0xff]
    %v632 = vld [vmem:[#allocation7 + $0x390] sm:$0xff]
    %v633 = vld [vmem:[#allocation7 + $0x398] sm:$0xff]
    %v634 = vld [vmem:[#allocation7 + $0x3a0] sm:$0xff]
    %v635 = vld [vmem:[#allocation7 + $0x3a8] sm:$0xff]
    %v636 = vld [vmem:[#allocation7 + $0x3b0] sm:$0xff]
    %v637 = vld [vmem:[#allocation7 + $0x3b8] sm:$0xff]
    %v638 = vld [vmem:[#allocation7 + $0x3c0] sm:$0xff]
    %v639 = vld [vmem:[#allocation7 + $0x3c8] sm:$0xff]
    %v640 = vld [vmem:[#allocation7 + $0x3d0] sm:$0xff]
    %v641 = vld [vmem:[#allocation7 + $0x3d8] sm:$0xff]
    %v642 = vld [vmem:[#allocation7 + $0x3e0] sm:$0xff]
    %v643 = vld [vmem:[#allocation7 + $0x3e8] sm:$0xff]
    %v644 = vld [vmem:[#allocation7 + $0x3f0] sm:$0xff]
    %v645 = vld [vmem:[#allocation7 + $0x3f8] sm:$0xff]
    %v646 = vld [vmem:[#allocation9] sm:$0xff]
    %v647 = vld [vmem:[#allocation9 + $0x8] sm:$0xff]
    %v648 = vld [vmem:[#allocation9 + $0x10] sm:$0xff]
    %v649 = vld [vmem:[#allocation9 + $0x18] sm:$0xff]
    %v650 = vld [vmem:[#allocation9 + $0x20] sm:$0xff]
    %v651 = vld [vmem:[#allocation9 + $0x28] sm:$0xff]
    %v652 = vld [vmem:[#allocation9 + $0x30] sm:$0xff]
    %v653 = vld [vmem:[#allocation9 + $0x38] sm:$0xff]
    %v654 = vld [vmem:[#allocation9 + $0x40] sm:$0xff]
    %v655 = vld [vmem:[#allocation9 + $0x48] sm:$0xff]
    %v656 = vld [vmem:[#allocation9 + $0x50] sm:$0xff]
    %v657 = vld [vmem:[#allocation9 + $0x58] sm:$0xff]
    %v658 = vld [vmem:[#allocation9 + $0x60] sm:$0xff]
    %v659 = vld [vmem:[#allocation9 + $0x68] sm:$0xff]
    %v660 = vld [vmem:[#allocation9 + $0x70] sm:$0xff]
    %v661 = vld [vmem:[#allocation9 + $0x78] sm:$0xff]
    %v662 = vld [vmem:[#allocation9 + $0x80] sm:$0xff]
    %v663 = vld [vmem:[#allocation9 + $0x88] sm:$0xff]
    %v664 = vld [vmem:[#allocation9 + $0x90] sm:$0xff]
    %v665 = vld [vmem:[#allocation9 + $0x98] sm:$0xff]
    %v666 = vld [vmem:[#allocation9 + $0xa0] sm:$0xff]
    %v667 = vld [vmem:[#allocation9 + $0xa8] sm:$0xff]
    %v668 = vld [vmem:[#allocation9 + $0xb0] sm:$0xff]
    %v669 = vld [vmem:[#allocation9 + $0xb8] sm:$0xff]
    %v670 = vld [vmem:[#allocation9 + $0xc0] sm:$0xff]
    %v671 = vld [vmem:[#allocation9 + $0xc8] sm:$0xff]
    %v672 = vld [vmem:[#allocation9 + $0xd0] sm:$0xff]
    %v673 = vld [vmem:[#allocation9 + $0xd8] sm:$0xff]
    %v674 = vld [vmem:[#allocation9 + $0xe0] sm:$0xff]
    %v675 = vld [vmem:[#allocation9 + $0xe8] sm:$0xff]
    %v676 = vld [vmem:[#allocation9 + $0xf0] sm:$0xff]
    %v677 = vld [vmem:[#allocation9 + $0xf8] sm:$0xff]
    %v678 = vld [vmem:[#allocation9 + $0x100] sm:$0xff]
    %v679 = vld [vmem:[#allocation9 + $0x108] sm:$0xff]
    %v680 = vld [vmem:[#allocation9 + $0x110] sm:$0xff]
    %v681 = vld [vmem:[#allocation9 + $0x118] sm:$0xff]
    %v682 = vld [vmem:[#allocation9 + $0x120] sm:$0xff]
    %v683 = vld [vmem:[#allocation9 + $0x128] sm:$0xff]
    %v684 = vld [vmem:[#allocation9 + $0x130] sm:$0xff]
    %v685 = vld [vmem:[#allocation9 + $0x138] sm:$0xff]
    %v686 = vld [vmem:[#allocation9 + $0x140] sm:$0xff]
    %v687 = vld [vmem:[#allocation9 + $0x148] sm:$0xff]
    %v688 = vld [vmem:[#allocation9 + $0x150] sm:$0xff]
    %v689 = vld [vmem:[#allocation9 + $0x158] sm:$0xff]
    %v690 = vld [vmem:[#allocation9 + $0x160] sm:$0xff]
    %v691 = vld [vmem:[#allocation9 + $0x168] sm:$0xff]
    %v692 = vld [vmem:[#allocation9 + $0x170] sm:$0xff]
    %v693 = vld [vmem:[#allocation9 + $0x178] sm:$0xff]
    %v694 = vld [vmem:[#allocation9 + $0x180] sm:$0xff]
    %v695 = vld [vmem:[#allocation9 + $0x188] sm:$0xff]
    %v696 = vld [vmem:[#allocation9 + $0x190] sm:$0xff]
    %v697 = vld [vmem:[#allocation9 + $0x198] sm:$0xff]
    %v698 = vld [vmem:[#allocation9 + $0x1a0] sm:$0xff]
    %v699 = vld [vmem:[#allocation9 + $0x1a8] sm:$0xff]
    %v700 = vld [vmem:[#allocation9 + $0x1b0] sm:$0xff]
    %v701 = vld [vmem:[#allocation9 + $0x1b8] sm:$0xff]
    %v702 = vld [vmem:[#allocation9 + $0x1c0] sm:$0xff]
    %v703 = vld [vmem:[#allocation9 + $0x1c8] sm:$0xff]
    %v704 = vld [vmem:[#allocation9 + $0x1d0] sm:$0xff]
    %v705 = vld [vmem:[#allocation9 + $0x1d8] sm:$0xff]
    %v706 = vld [vmem:[#allocation9 + $0x1e0] sm:$0xff]
    %v707 = vld [vmem:[#allocation9 + $0x1e8] sm:$0xff]
    %v708 = vld [vmem:[#allocation9 + $0x1f0] sm:$0xff]
    %v709 = vld [vmem:[#allocation9 + $0x1f8] sm:$0xff]
    %v710 = vld [vmem:[#allocation9 + $0x200] sm:$0xff]
    %v711 = vld [vmem:[#allocation9 + $0x208] sm:$0xff]
    %v712 = vld [vmem:[#allocation9 + $0x210] sm:$0xff]
    %v713 = vld [vmem:[#allocation9 + $0x218] sm:$0xff]
    %v714 = vld [vmem:[#allocation9 + $0x220] sm:$0xff]
    %v715 = vld [vmem:[#allocation9 + $0x228] sm:$0xff]
    %v716 = vld [vmem:[#allocation9 + $0x230] sm:$0xff]
    %v717 = vld [vmem:[#allocation9 + $0x238] sm:$0xff]
    %v718 = vld [vmem:[#allocation9 + $0x240] sm:$0xff]
    %v719 = vld [vmem:[#allocation9 + $0x248] sm:$0xff]
    %v720 = vld [vmem:[#allocation9 + $0x250] sm:$0xff]
    %v721 = vld [vmem:[#allocation9 + $0x258] sm:$0xff]
    %v722 = vld [vmem:[#allocation9 + $0x260] sm:$0xff]
    %v723 = vld [vmem:[#allocation9 + $0x268] sm:$0xff]
    %v724 = vld [vmem:[#allocation9 + $0x270] sm:$0xff]
    %v725 = vld [vmem:[#allocation9 + $0x278] sm:$0xff]
    %v726 = vld [vmem:[#allocation9 + $0x280] sm:$0xff]
    %v727 = vld [vmem:[#allocation9 + $0x288] sm:$0xff]
    %v728 = vld [vmem:[#allocation9 + $0x290] sm:$0xff]
    %v729 = vld [vmem:[#allocation9 + $0x298] sm:$0xff]
    %v730 = vld [vmem:[#allocation9 + $0x2a0] sm:$0xff]
    %v731 = vld [vmem:[#allocation9 + $0x2a8] sm:$0xff]
    %v732 = vld [vmem:[#allocation9 + $0x2b0] sm:$0xff]
    %v733 = vld [vmem:[#allocation9 + $0x2b8] sm:$0xff]
    %v734 = vld [vmem:[#allocation9 + $0x2c0] sm:$0xff]
    %v735 = vld [vmem:[#allocation9 + $0x2c8] sm:$0xff]
    %v736 = vld [vmem:[#allocation9 + $0x2d0] sm:$0xff]
    %v737 = vld [vmem:[#allocation9 + $0x2d8] sm:$0xff]
    %v738 = vld [vmem:[#allocation9 + $0x2e0] sm:$0xff]
    %v739 = vld [vmem:[#allocation9 + $0x2e8] sm:$0xff]
    %v740 = vld [vmem:[#allocation9 + $0x2f0] sm:$0xff]
    %v741 = vld [vmem:[#allocation9 + $0x2f8] sm:$0xff]
    %v742 = vld [vmem:[#allocation9 + $0x300] sm:$0xff]
    %v743 = vld [vmem:[#allocation9 + $0x308] sm:$0xff]
    %v744 = vld [vmem:[#allocation9 + $0x310] sm:$0xff]
    %v745 = vld [vmem:[#allocation9 + $0x318] sm:$0xff]
    %v746 = vld [vmem:[#allocation9 + $0x320] sm:$0xff]
    %v747 = vld [vmem:[#allocation9 + $0x328] sm:$0xff]
    %v748 = vld [vmem:[#allocation9 + $0x330] sm:$0xff]
    %v749 = vld [vmem:[#allocation9 + $0x338] sm:$0xff]
    %v750 = vld [vmem:[#allocation9 + $0x340] sm:$0xff]
    %v751 = vld [vmem:[#allocation9 + $0x348] sm:$0xff]
    %v752 = vld [vmem:[#allocation9 + $0x350] sm:$0xff]
    %v753 = vld [vmem:[#allocation9 + $0x358] sm:$0xff]
    %v754 = vld [vmem:[#allocation9 + $0x360] sm:$0xff]
    %v755 = vld [vmem:[#allocation9 + $0x368] sm:$0xff]
    %v756 = vld [vmem:[#allocation9 + $0x370] sm:$0xff]
    %v757 = vld [vmem:[#allocation9 + $0x378] sm:$0xff]
    %v758 = vld [vmem:[#allocation9 + $0x380] sm:$0xff]
    %v759 = vld [vmem:[#allocation9 + $0x388] sm:$0xff]
    %v760 = vld [vmem:[#allocation9 + $0x390] sm:$0xff]
    %v761 = vld [vmem:[#allocation9 + $0x398] sm:$0xff]
    %v762 = vld [vmem:[#allocation9 + $0x3a0] sm:$0xff]
    %v763 = vld [vmem:[#allocation9 + $0x3a8] sm:$0xff]
    %v764 = vld [vmem:[#allocation9 + $0x3b0] sm:$0xff]
    %v765 = vld [vmem:[#allocation9 + $0x3b8] sm:$0xff]
    %v766 = vld [vmem:[#allocation9 + $0x3c0] sm:$0xff]
    %v767 = vld [vmem:[#allocation9 + $0x3c8] sm:$0xff]
    %v768 = vld [vmem:[#allocation9 + $0x3d0] sm:$0xff]
    %v769 = vld [vmem:[#allocation9 + $0x3d8] sm:$0xff]
    %v770 = vld [vmem:[#allocation9 + $0x3e0] sm:$0xff]
    %v771 = vld [vmem:[#allocation9 + $0x3e8] sm:$0xff]
    %v772 = vld [vmem:[#allocation9 + $0x3f0] sm:$0xff]
    %v773 = vld [vmem:[#allocation9 + $0x3f8] sm:$0xff]
    %v774 = vld [vmem:[#allocation9 + $0x400] sm:$0xff]
    %v775 = vld [vmem:[#allocation9 + $0x408] sm:$0xff]
    %v776 = vld [vmem:[#allocation9 + $0x410] sm:$0xff]
    %v777 = vld [vmem:[#allocation9 + $0x418] sm:$0xff]
    %v778 = vld [vmem:[#allocation9 + $0x420] sm:$0xff]
    %v779 = vld [vmem:[#allocation9 + $0x428] sm:$0xff]
    %v780 = vld [vmem:[#allocation9 + $0x430] sm:$0xff]
    %v781 = vld [vmem:[#allocation9 + $0x438] sm:$0xff]
    %v782 = vld [vmem:[#allocation9 + $0x440] sm:$0xff]
    %v783 = vld [vmem:[#allocation9 + $0x448] sm:$0xff]
    %v784 = vld [vmem:[#allocation9 + $0x450] sm:$0xff]
    %v785 = vld [vmem:[#allocation9 + $0x458] sm:$0xff]
    %v786 = vld [vmem:[#allocation9 + $0x460] sm:$0xff]
    %v787 = vld [vmem:[#allocation9 + $0x468] sm:$0xff]
    %v788 = vld [vmem:[#allocation9 + $0x470] sm:$0xff]
    %v789 = vld [vmem:[#allocation9 + $0x478] sm:$0xff]
    %v790 = vld [vmem:[#allocation9 + $0x480] sm:$0xff]
    %v791 = vld [vmem:[#allocation9 + $0x488] sm:$0xff]
    %v792 = vld [vmem:[#allocation9 + $0x490] sm:$0xff]
    %v793 = vld [vmem:[#allocation9 + $0x498] sm:$0xff]
    %v794 = vld [vmem:[#allocation9 + $0x4a0] sm:$0xff]
    %v795 = vld [vmem:[#allocation9 + $0x4a8] sm:$0xff]
    %v796 = vld [vmem:[#allocation9 + $0x4b0] sm:$0xff]
    %v797 = vld [vmem:[#allocation9 + $0x4b8] sm:$0xff]
    %v798 = vld [vmem:[#allocation9 + $0x4c0] sm:$0xff]
    %v799 = vld [vmem:[#allocation9 + $0x4c8] sm:$0xff]
    %v800 = vld [vmem:[#allocation9 + $0x4d0] sm:$0xff]
    %v801 = vld [vmem:[#allocation9 + $0x4d8] sm:$0xff]
    %v802 = vld [vmem:[#allocation9 + $0x4e0] sm:$0xff]
    %v803 = vld [vmem:[#allocation9 + $0x4e8] sm:$0xff]
    %v804 = vld [vmem:[#allocation9 + $0x4f0] sm:$0xff]
    %v805 = vld [vmem:[#allocation9 + $0x4f8] sm:$0xff]
    %v806 = vld [vmem:[#allocation9 + $0x500] sm:$0xff]
    %v807 = vld [vmem:[#allocation9 + $0x508] sm:$0xff]
    %v808 = vld [vmem:[#allocation9 + $0x510] sm:$0xff]
    %v809 = vld [vmem:[#allocation9 + $0x518] sm:$0xff]
    %v810 = vld [vmem:[#allocation9 + $0x520] sm:$0xff]
    %v811 = vld [vmem:[#allocation9 + $0x528] sm:$0xff]
    %v812 = vld [vmem:[#allocation9 + $0x530] sm:$0xff]
    %v813 = vld [vmem:[#allocation9 + $0x538] sm:$0xff]
    %v814 = vld [vmem:[#allocation9 + $0x540] sm:$0xff]
    %v815 = vld [vmem:[#allocation9 + $0x548] sm:$0xff]
    %v816 = vld [vmem:[#allocation9 + $0x550] sm:$0xff]
    %v817 = vld [vmem:[#allocation9 + $0x558] sm:$0xff]
    %v818 = vld [vmem:[#allocation9 + $0x560] sm:$0xff]
    %v819 = vld [vmem:[#allocation9 + $0x568] sm:$0xff]
    %v820 = vld [vmem:[#allocation9 + $0x570] sm:$0xff]
    %v821 = vld [vmem:[#allocation9 + $0x578] sm:$0xff]
    %v822 = vld [vmem:[#allocation9 + $0x580] sm:$0xff]
    %v823 = vld [vmem:[#allocation9 + $0x588] sm:$0xff]
    %v824 = vld [vmem:[#allocation9 + $0x590] sm:$0xff]
    %v825 = vld [vmem:[#allocation9 + $0x598] sm:$0xff]
    %v826 = vld [vmem:[#allocation9 + $0x5a0] sm:$0xff]
    %v827 = vld [vmem:[#allocation9 + $0x5a8] sm:$0xff]
    %v828 = vld [vmem:[#allocation9 + $0x5b0] sm:$0xff]
    %v829 = vld [vmem:[#allocation9 + $0x5b8] sm:$0xff]
    %v830 = vld [vmem:[#allocation9 + $0x5c0] sm:$0xff]
    %v831 = vld [vmem:[#allocation9 + $0x5c8] sm:$0xff]
    %v832 = vld [vmem:[#allocation9 + $0x5d0] sm:$0xff]
    %v833 = vld [vmem:[#allocation9 + $0x5d8] sm:$0xff]
    %v834 = vld [vmem:[#allocation9 + $0x5e0] sm:$0xff]
    %v835 = vld [vmem:[#allocation9 + $0x5e8] sm:$0xff]
    %v836 = vld [vmem:[#allocation9 + $0x5f0] sm:$0xff]
    %v837 = vld [vmem:[#allocation9 + $0x5f8] sm:$0xff]
    %v838 = vld [vmem:[#allocation9 + $0x600] sm:$0xff]
    %v839 = vld [vmem:[#allocation9 + $0x608] sm:$0xff]
    %v840 = vld [vmem:[#allocation9 + $0x610] sm:$0xff]
    %v841 = vld [vmem:[#allocation9 + $0x618] sm:$0xff]
    %v842 = vld [vmem:[#allocation9 + $0x620] sm:$0xff]
    %v843 = vld [vmem:[#allocation9 + $0x628] sm:$0xff]
    %v844 = vld [vmem:[#allocation9 + $0x630] sm:$0xff]
    %v845 = vld [vmem:[#allocation9 + $0x638] sm:$0xff]
    %v846 = vld [vmem:[#allocation9 + $0x640] sm:$0xff]
    %v847 = vld [vmem:[#allocation9 + $0x648] sm:$0xff]
    %v848 = vld [vmem:[#allocation9 + $0x650] sm:$0xff]
    %v849 = vld [vmem:[#allocation9 + $0x658] sm:$0xff]
    %v850 = vld [vmem:[#allocation9 + $0x660] sm:$0xff]
    %v851 = vld [vmem:[#allocation9 + $0x668] sm:$0xff]
    %v852 = vld [vmem:[#allocation9 + $0x670] sm:$0xff]
    %v853 = vld [vmem:[#allocation9 + $0x678] sm:$0xff]
    %v854 = vld [vmem:[#allocation9 + $0x680] sm:$0xff]
    %v855 = vld [vmem:[#allocation9 + $0x688] sm:$0xff]
    %v856 = vld [vmem:[#allocation9 + $0x690] sm:$0xff]
    %v857 = vld [vmem:[#allocation9 + $0x698] sm:$0xff]
    %v858 = vld [vmem:[#allocation9 + $0x6a0] sm:$0xff]
    %v859 = vld [vmem:[#allocation9 + $0x6a8] sm:$0xff]
    %v860 = vld [vmem:[#allocation9 + $0x6b0] sm:$0xff]
    %v861 = vld [vmem:[#allocation9 + $0x6b8] sm:$0xff]
    %v862 = vld [vmem:[#allocation9 + $0x6c0] sm:$0xff]
    %v863 = vld [vmem:[#allocation9 + $0x6c8] sm:$0xff]
    %v864 = vld [vmem:[#allocation9 + $0x6d0] sm:$0xff]
    %v865 = vld [vmem:[#allocation9 + $0x6d8] sm:$0xff]
    %v866 = vld [vmem:[#allocation9 + $0x6e0] sm:$0xff]
    %v867 = vld [vmem:[#allocation9 + $0x6e8] sm:$0xff]
    %v868 = vld [vmem:[#allocation9 + $0x6f0] sm:$0xff]
    %v869 = vld [vmem:[#allocation9 + $0x6f8] sm:$0xff]
    %v870 = vld [vmem:[#allocation9 + $0x700] sm:$0xff]
    %v871 = vld [vmem:[#allocation9 + $0x708] sm:$0xff]
    %v872 = vld [vmem:[#allocation9 + $0x710] sm:$0xff]
    %v873 = vld [vmem:[#allocation9 + $0x718] sm:$0xff]
    %v874 = vld [vmem:[#allocation9 + $0x720] sm:$0xff]
    %v875 = vld [vmem:[#allocation9 + $0x728] sm:$0xff]
    %v876 = vld [vmem:[#allocation9 + $0x730] sm:$0xff]
    %v877 = vld [vmem:[#allocation9 + $0x738] sm:$0xff]
    %v878 = vld [vmem:[#allocation9 + $0x740] sm:$0xff]
    %v879 = vld [vmem:[#allocation9 + $0x748] sm:$0xff]
    %v880 = vld [vmem:[#allocation9 + $0x750] sm:$0xff]
    %v881 = vld [vmem:[#allocation9 + $0x758] sm:$0xff]
    %v882 = vld [vmem:[#allocation9 + $0x760] sm:$0xff]
    %v883 = vld [vmem:[#allocation9 + $0x768] sm:$0xff]
    %v884 = vld [vmem:[#allocation9 + $0x770] sm:$0xff]
    %v885 = vld [vmem:[#allocation9 + $0x778] sm:$0xff]
    %v886 = vld [vmem:[#allocation9 + $0x780] sm:$0xff]
    %v887 = vld [vmem:[#allocation9 + $0x788] sm:$0xff]
    %v888 = vld [vmem:[#allocation9 + $0x790] sm:$0xff]
    %v889 = vld [vmem:[#allocation9 + $0x798] sm:$0xff]
    %v890 = vld [vmem:[#allocation9 + $0x7a0] sm:$0xff]
    %v891 = vld [vmem:[#allocation9 + $0x7a8] sm:$0xff]
    %v892 = vld [vmem:[#allocation9 + $0x7b0] sm:$0xff]
    %v893 = vld [vmem:[#allocation9 + $0x7b8] sm:$0xff]
    %v894 = vld [vmem:[#allocation9 + $0x7c0] sm:$0xff]
    %v895 = vld [vmem:[#allocation9 + $0x7c8] sm:$0xff]
    %v896 = vld [vmem:[#allocation9 + $0x7d0] sm:$0xff]
    %v897 = vld [vmem:[#allocation9 + $0x7d8] sm:$0xff]
    %v898 = vld [vmem:[#allocation9 + $0x7e0] sm:$0xff]
    %v899 = vld [vmem:[#allocation9 + $0x7e8] sm:$0xff]
    %v900 = vld [vmem:[#allocation9 + $0x7f0] sm:$0xff]
    %v901 = vld [vmem:[#allocation9 + $0x7f8] sm:$0xff]
    %v902 = vld [vmem:[#allocation10] sm:$0xff]
    %v903 = vld [vmem:[#allocation10 + $0x8] sm:$0xff]
    %v904 = vld [vmem:[#allocation10 + $0x10] sm:$0xff]
    %v905 = vld [vmem:[#allocation10 + $0x18] sm:$0xff]
    %v906 = vld [vmem:[#allocation10 + $0x20] sm:$0xff]
    %v907 = vld [vmem:[#allocation10 + $0x28] sm:$0xff]
    %v908 = vld [vmem:[#allocation10 + $0x30] sm:$0xff]
    %v909 = vld [vmem:[#allocation10 + $0x38] sm:$0xff]
    %v910 = vld [vmem:[#allocation10 + $0x40] sm:$0xff]
    %v911 = vld [vmem:[#allocation10 + $0x48] sm:$0xff]
    %v912 = vld [vmem:[#allocation10 + $0x50] sm:$0xff]
    %v913 = vld [vmem:[#allocation10 + $0x58] sm:$0xff]
    %v914 = vld [vmem:[#allocation10 + $0x60] sm:$0xff]
    %v915 = vld [vmem:[#allocation10 + $0x68] sm:$0xff]
    %v916 = vld [vmem:[#allocation10 + $0x70] sm:$0xff]
    %v917 = vld [vmem:[#allocation10 + $0x78] sm:$0xff]
    %v918 = vld [vmem:[#allocation10 + $0x80] sm:$0xff]
    %v919 = vld [vmem:[#allocation10 + $0x88] sm:$0xff]
    %v920 = vld [vmem:[#allocation10 + $0x90] sm:$0xff]
    %v921 = vld [vmem:[#allocation10 + $0x98] sm:$0xff]
    %v922 = vld [vmem:[#allocation10 + $0xa0] sm:$0xff]
    %v923 = vld [vmem:[#allocation10 + $0xa8] sm:$0xff]
    %v924 = vld [vmem:[#allocation10 + $0xb0] sm:$0xff]
    %v925 = vld [vmem:[#allocation10 + $0xb8] sm:$0xff]
    %v926 = vld [vmem:[#allocation10 + $0xc0] sm:$0xff]
    %v927 = vld [vmem:[#allocation10 + $0xc8] sm:$0xff]
    %v928 = vld [vmem:[#allocation10 + $0xd0] sm:$0xff]
    %v929 = vld [vmem:[#allocation10 + $0xd8] sm:$0xff]
    %v930 = vld [vmem:[#allocation10 + $0xe0] sm:$0xff]
    %v931 = vld [vmem:[#allocation10 + $0xe8] sm:$0xff]
    %v932 = vld [vmem:[#allocation10 + $0xf0] sm:$0xff]
    %v933 = vld [vmem:[#allocation10 + $0xf8] sm:$0xff]
    %v934 = vld [vmem:[#allocation10 + $0x100] sm:$0xff]
    %v935 = vld [vmem:[#allocation10 + $0x108] sm:$0xff]
    %v936 = vld [vmem:[#allocation10 + $0x110] sm:$0xff]
    %v937 = vld [vmem:[#allocation10 + $0x118] sm:$0xff]
    %v938 = vld [vmem:[#allocation10 + $0x120] sm:$0xff]
    %v939 = vld [vmem:[#allocation10 + $0x128] sm:$0xff]
    %v940 = vld [vmem:[#allocation10 + $0x130] sm:$0xff]
    %v941 = vld [vmem:[#allocation10 + $0x138] sm:$0xff]
    %v942 = vld [vmem:[#allocation10 + $0x140] sm:$0xff]
    %v943 = vld [vmem:[#allocation10 + $0x148] sm:$0xff]
    %v944 = vld [vmem:[#allocation10 + $0x150] sm:$0xff]
    %v945 = vld [vmem:[#allocation10 + $0x158] sm:$0xff]
    %v946 = vld [vmem:[#allocation10 + $0x160] sm:$0xff]
    %v947 = vld [vmem:[#allocation10 + $0x168] sm:$0xff]
    %v948 = vld [vmem:[#allocation10 + $0x170] sm:$0xff]
    %v949 = vld [vmem:[#allocation10 + $0x178] sm:$0xff]
    %v950 = vld [vmem:[#allocation10 + $0x180] sm:$0xff]
    %v951 = vld [vmem:[#allocation10 + $0x188] sm:$0xff]
    %v952 = vld [vmem:[#allocation10 + $0x190] sm:$0xff]
    %v953 = vld [vmem:[#allocation10 + $0x198] sm:$0xff]
    %v954 = vld [vmem:[#allocation10 + $0x1a0] sm:$0xff]
    %v955 = vld [vmem:[#allocation10 + $0x1a8] sm:$0xff]
    %v956 = vld [vmem:[#allocation10 + $0x1b0] sm:$0xff]
    %v957 = vld [vmem:[#allocation10 + $0x1b8] sm:$0xff]
    %v958 = vld [vmem:[#allocation10 + $0x1c0] sm:$0xff]
    %v959 = vld [vmem:[#allocation10 + $0x1c8] sm:$0xff]
    %v960 = vld [vmem:[#allocation10 + $0x1d0] sm:$0xff]
    %v961 = vld [vmem:[#allocation10 + $0x1d8] sm:$0xff]
    %v962 = vld [vmem:[#allocation10 + $0x1e0] sm:$0xff]
    %v963 = vld [vmem:[#allocation10 + $0x1e8] sm:$0xff]
    %v964 = vld [vmem:[#allocation10 + $0x1f0] sm:$0xff]
    %v965 = vld [vmem:[#allocation10 + $0x1f8] sm:$0xff]
    %v966 = vld [vmem:[#allocation10 + $0x200] sm:$0xff]
    %v967 = vld [vmem:[#allocation10 + $0x208] sm:$0xff]
    %v968 = vld [vmem:[#allocation10 + $0x210] sm:$0xff]
    %v969 = vld [vmem:[#allocation10 + $0x218] sm:$0xff]
    %v970 = vld [vmem:[#allocation10 + $0x220] sm:$0xff]
    %v971 = vld [vmem:[#allocation10 + $0x228] sm:$0xff]
    %v972 = vld [vmem:[#allocation10 + $0x230] sm:$0xff]
    %v973 = vld [vmem:[#allocation10 + $0x238] sm:$0xff]
    %v974 = vld [vmem:[#allocation10 + $0x240] sm:$0xff]
    %v975 = vld [vmem:[#allocation10 + $0x248] sm:$0xff]
    %v976 = vld [vmem:[#allocation10 + $0x250] sm:$0xff]
    %v977 = vld [vmem:[#allocation10 + $0x258] sm:$0xff]
    %v978 = vld [vmem:[#allocation10 + $0x260] sm:$0xff]
    %v979 = vld [vmem:[#allocation10 + $0x268] sm:$0xff]
    %v980 = vld [vmem:[#allocation10 + $0x270] sm:$0xff]
    %v981 = vld [vmem:[#allocation10 + $0x278] sm:$0xff]
    %v982 = vld [vmem:[#allocation10 + $0x280] sm:$0xff]
    %v983 = vld [vmem:[#allocation10 + $0x288] sm:$0xff]
    %v984 = vld [vmem:[#allocation10 + $0x290] sm:$0xff]
    %v985 = vld [vmem:[#allocation10 + $0x298] sm:$0xff]
    %v986 = vld [vmem:[#allocation10 + $0x2a0] sm:$0xff]
    %v987 = vld [vmem:[#allocation10 + $0x2a8] sm:$0xff]
    %v988 = vld [vmem:[#allocation10 + $0x2b0] sm:$0xff]
    %v989 = vld [vmem:[#allocation10 + $0x2b8] sm:$0xff]
    %v990 = vld [vmem:[#allocation10 + $0x2c0] sm:$0xff]
    %v991 = vld [vmem:[#allocation10 + $0x2c8] sm:$0xff]
    %v992 = vld [vmem:[#allocation10 + $0x2d0] sm:$0xff]
    %v993 = vld [vmem:[#allocation10 + $0x2d8] sm:$0xff]
    %v994 = vld [vmem:[#allocation10 + $0x2e0] sm:$0xff]
    %v995 = vld [vmem:[#allocation10 + $0x2e8] sm:$0xff]
    %v996 = vld [vmem:[#allocation10 + $0x2f0] sm:$0xff]
    %v997 = vld [vmem:[#allocation10 + $0x2f8] sm:$0xff]
    %v998 = vld [vmem:[#allocation10 + $0x300] sm:$0xff]
    %v999 = vld [vmem:[#allocation10 + $0x308] sm:$0xff]
    %v1000 = vld [vmem:[#allocation10 + $0x310] sm:$0xff]
    %v1001 = vld [vmem:[#allocation10 + $0x318] sm:$0xff]
    %v1002 = vld [vmem:[#allocation10 + $0x320] sm:$0xff]
    %v1003 = vld [vmem:[#allocation10 + $0x328] sm:$0xff]
    %v1004 = vld [vmem:[#allocation10 + $0x330] sm:$0xff]
    %v1005 = vld [vmem:[#allocation10 + $0x338] sm:$0xff]
    %v1006 = vld [vmem:[#allocation10 + $0x340] sm:$0xff]
    %v1007 = vld [vmem:[#allocation10 + $0x348] sm:$0xff]
    %v1008 = vld [vmem:[#allocation10 + $0x350] sm:$0xff]
    %v1009 = vld [vmem:[#allocation10 + $0x358] sm:$0xff]
    %v1010 = vld [vmem:[#allocation10 + $0x360] sm:$0xff]
    %v1011 = vld [vmem:[#allocation10 + $0x368] sm:$0xff]
    %v1012 = vld [vmem:[#allocation10 + $0x370] sm:$0xff]
    %v1013 = vld [vmem:[#allocation10 + $0x378] sm:$0xff]
    %v1014 = vld [vmem:[#allocation10 + $0x380] sm:$0xff]
    %v1015 = vld [vmem:[#allocation10 + $0x388] sm:$0xff]
    %v1016 = vld [vmem:[#allocation10 + $0x390] sm:$0xff]
    %v1017 = vld [vmem:[#allocation10 + $0x398] sm:$0xff]
    %v1018 = vld [vmem:[#allocation10 + $0x3a0] sm:$0xff]
    %v1019 = vld [vmem:[#allocation10 + $0x3a8] sm:$0xff]
    %v1020 = vld [vmem:[#allocation10 + $0x3b0] sm:$0xff]
    %v1021 = vld [vmem:[#allocation10 + $0x3b8] sm:$0xff]
    %v1022 = vld [vmem:[#allocation10 + $0x3c0] sm:$0xff]
    %v1023 = vld [vmem:[#allocation10 + $0x3c8] sm:$0xff]
    %v1024 = vld [vmem:[#allocation10 + $0x3d0] sm:$0xff]
    %v1025 = vld [vmem:[#allocation10 + $0x3d8] sm:$0xff]
    %v1026 = vld [vmem:[#allocation10 + $0x3e0] sm:$0xff]
    %v1027 = vld [vmem:[#allocation10 + $0x3e8] sm:$0xff]
    %v1028 = vld [vmem:[#allocation10 + $0x3f0] sm:$0xff]
    %v1029 = vld [vmem:[#allocation10 + $0x3f8] sm:$0xff]
    %v1030 = vld [vmem:[#allocation10 + $0x400] sm:$0xff]
    %v1031 = vld [vmem:[#allocation10 + $0x408] sm:$0xff]
    %v1032 = vld [vmem:[#allocation10 + $0x410] sm:$0xff]
    %v1033 = vld [vmem:[#allocation10 + $0x418] sm:$0xff]
    %v1034 = vld [vmem:[#allocation10 + $0x420] sm:$0xff]
    %v1035 = vld [vmem:[#allocation10 + $0x428] sm:$0xff]
    %v1036 = vld [vmem:[#allocation10 + $0x430] sm:$0xff]
    %v1037 = vld [vmem:[#allocation10 + $0x438] sm:$0xff]
    %v1038 = vld [vmem:[#allocation10 + $0x440] sm:$0xff]
    %v1039 = vld [vmem:[#allocation10 + $0x448] sm:$0xff]
    %v1040 = vld [vmem:[#allocation10 + $0x450] sm:$0xff]
    %v1041 = vld [vmem:[#allocation10 + $0x458] sm:$0xff]
    %v1042 = vld [vmem:[#allocation10 + $0x460] sm:$0xff]
    %v1043 = vld [vmem:[#allocation10 + $0x468] sm:$0xff]
    %v1044 = vld [vmem:[#allocation10 + $0x470] sm:$0xff]
    %v1045 = vld [vmem:[#allocation10 + $0x478] sm:$0xff]
    %v1046 = vld [vmem:[#allocation10 + $0x480] sm:$0xff]
    %v1047 = vld [vmem:[#allocation10 + $0x488] sm:$0xff]
    %v1048 = vld [vmem:[#allocation10 + $0x490] sm:$0xff]
    %v1049 = vld [vmem:[#allocation10 + $0x498] sm:$0xff]
    %v1050 = vld [vmem:[#allocation10 + $0x4a0] sm:$0xff]
    %v1051 = vld [vmem:[#allocation10 + $0x4a8] sm:$0xff]
    %v1052 = vld [vmem:[#allocation10 + $0x4b0] sm:$0xff]
    %v1053 = vld [vmem:[#allocation10 + $0x4b8] sm:$0xff]
    %v1054 = vld [vmem:[#allocation10 + $0x4c0] sm:$0xff]
    %v1055 = vld [vmem:[#allocation10 + $0x4c8] sm:$0xff]
    %v1056 = vld [vmem:[#allocation10 + $0x4d0] sm:$0xff]
    %v1057 = vld [vmem:[#allocation10 + $0x4d8] sm:$0xff]
    %v1058 = vld [vmem:[#allocation10 + $0x4e0] sm:$0xff]
    %v1059 = vld [vmem:[#allocation10 + $0x4e8] sm:$0xff]
    %v1060 = vld [vmem:[#allocation10 + $0x4f0] sm:$0xff]
    %v1061 = vld [vmem:[#allocation10 + $0x4f8] sm:$0xff]
    %v1062 = vld [vmem:[#allocation10 + $0x500] sm:$0xff]
    %v1063 = vld [vmem:[#allocation10 + $0x508] sm:$0xff]
    %v1064 = vld [vmem:[#allocation10 + $0x510] sm:$0xff]
    %v1065 = vld [vmem:[#allocation10 + $0x518] sm:$0xff]
    %v1066 = vld [vmem:[#allocation10 + $0x520] sm:$0xff]
    %v1067 = vld [vmem:[#allocation10 + $0x528] sm:$0xff]
    %v1068 = vld [vmem:[#allocation10 + $0x530] sm:$0xff]
    %v1069 = vld [vmem:[#allocation10 + $0x538] sm:$0xff]
    %v1070 = vld [vmem:[#allocation10 + $0x540] sm:$0xff]
    %v1071 = vld [vmem:[#allocation10 + $0x548] sm:$0xff]
    %v1072 = vld [vmem:[#allocation10 + $0x550] sm:$0xff]
    %v1073 = vld [vmem:[#allocation10 + $0x558] sm:$0xff]
    %v1074 = vld [vmem:[#allocation10 + $0x560] sm:$0xff]
    %v1075 = vld [vmem:[#allocation10 + $0x568] sm:$0xff]
    %v1076 = vld [vmem:[#allocation10 + $0x570] sm:$0xff]
    %v1077 = vld [vmem:[#allocation10 + $0x578] sm:$0xff]
    %v1078 = vld [vmem:[#allocation10 + $0x580] sm:$0xff]
    %v1079 = vld [vmem:[#allocation10 + $0x588] sm:$0xff]
    %v1080 = vld [vmem:[#allocation10 + $0x590] sm:$0xff]
    %v1081 = vld [vmem:[#allocation10 + $0x598] sm:$0xff]
    %v1082 = vld [vmem:[#allocation10 + $0x5a0] sm:$0xff]
    %v1083 = vld [vmem:[#allocation10 + $0x5a8] sm:$0xff]
    %v1084 = vld [vmem:[#allocation10 + $0x5b0] sm:$0xff]
    %v1085 = vld [vmem:[#allocation10 + $0x5b8] sm:$0xff]
    %v1086 = vld [vmem:[#allocation10 + $0x5c0] sm:$0xff]
    %v1087 = vld [vmem:[#allocation10 + $0x5c8] sm:$0xff]
    %v1088 = vld [vmem:[#allocation10 + $0x5d0] sm:$0xff]
    %v1089 = vld [vmem:[#allocation10 + $0x5d8] sm:$0xff]
    %v1090 = vld [vmem:[#allocation10 + $0x5e0] sm:$0xff]
    %v1091 = vld [vmem:[#allocation10 + $0x5e8] sm:$0xff]
    %v1092 = vld [vmem:[#allocation10 + $0x5f0] sm:$0xff]
    %v1093 = vld [vmem:[#allocation10 + $0x5f8] sm:$0xff]
    %v1094 = vld [vmem:[#allocation10 + $0x600] sm:$0xff]
    %v1095 = vld [vmem:[#allocation10 + $0x608] sm:$0xff]
    %v1096 = vld [vmem:[#allocation10 + $0x610] sm:$0xff]
    %v1097 = vld [vmem:[#allocation10 + $0x618] sm:$0xff]
    %v1098 = vld [vmem:[#allocation10 + $0x620] sm:$0xff]
    %v1099 = vld [vmem:[#allocation10 + $0x628] sm:$0xff]
    %v1100 = vld [vmem:[#allocation10 + $0x630] sm:$0xff]
    %v1101 = vld [vmem:[#allocation10 + $0x638] sm:$0xff]
    %v1102 = vld [vmem:[#allocation10 + $0x640] sm:$0xff]
    %v1103 = vld [vmem:[#allocation10 + $0x648] sm:$0xff]
    %v1104 = vld [vmem:[#allocation10 + $0x650] sm:$0xff]
    %v1105 = vld [vmem:[#allocation10 + $0x658] sm:$0xff]
    %v1106 = vld [vmem:[#allocation10 + $0x660] sm:$0xff]
    %v1107 = vld [vmem:[#allocation10 + $0x668] sm:$0xff]
    %v1108 = vld [vmem:[#allocation10 + $0x670] sm:$0xff]
    %v1109 = vld [vmem:[#allocation10 + $0x678] sm:$0xff]
    %v1110 = vld [vmem:[#allocation10 + $0x680] sm:$0xff]
    %v1111 = vld [vmem:[#allocation10 + $0x688] sm:$0xff]
    %v1112 = vld [vmem:[#allocation10 + $0x690] sm:$0xff]
    %v1113 = vld [vmem:[#allocation10 + $0x698] sm:$0xff]
    %v1114 = vld [vmem:[#allocation10 + $0x6a0] sm:$0xff]
    %v1115 = vld [vmem:[#allocation10 + $0x6a8] sm:$0xff]
    %v1116 = vld [vmem:[#allocation10 + $0x6b0] sm:$0xff]
    %v1117 = vld [vmem:[#allocation10 + $0x6b8] sm:$0xff]
    %v1118 = vld [vmem:[#allocation10 + $0x6c0] sm:$0xff]
    %v1119 = vld [vmem:[#allocation10 + $0x6c8] sm:$0xff]
    %v1120 = vld [vmem:[#allocation10 + $0x6d0] sm:$0xff]
    %v1121 = vld [vmem:[#allocation10 + $0x6d8] sm:$0xff]
    %v1122 = vld [vmem:[#allocation10 + $0x6e0] sm:$0xff]
    %v1123 = vld [vmem:[#allocation10 + $0x6e8] sm:$0xff]
    %v1124 = vld [vmem:[#allocation10 + $0x6f0] sm:$0xff]
    %v1125 = vld [vmem:[#allocation10 + $0x6f8] sm:$0xff]
    %v1126 = vld [vmem:[#allocation10 + $0x700] sm:$0xff]
    %v1127 = vld [vmem:[#allocation10 + $0x708] sm:$0xff]
    %v1128 = vld [vmem:[#allocation10 + $0x710] sm:$0xff]
    %v1129 = vld [vmem:[#allocation10 + $0x718] sm:$0xff]
    %v1130 = vld [vmem:[#allocation10 + $0x720] sm:$0xff]
    %v1131 = vld [vmem:[#allocation10 + $0x728] sm:$0xff]
    %v1132 = vld [vmem:[#allocation10 + $0x730] sm:$0xff]
    %v1133 = vld [vmem:[#allocation10 + $0x738] sm:$0xff]
    %v1134 = vld [vmem:[#allocation10 + $0x740] sm:$0xff]
    %v1135 = vld [vmem:[#allocation10 + $0x748] sm:$0xff]
    %v1136 = vld [vmem:[#allocation10 + $0x750] sm:$0xff]
    %v1137 = vld [vmem:[#allocation10 + $0x758] sm:$0xff]
    %v1138 = vld [vmem:[#allocation10 + $0x760] sm:$0xff]
    %v1139 = vld [vmem:[#allocation10 + $0x768] sm:$0xff]
    %v1140 = vld [vmem:[#allocation10 + $0x770] sm:$0xff]
    %v1141 = vld [vmem:[#allocation10 + $0x778] sm:$0xff]
    %v1142 = vld [vmem:[#allocation10 + $0x780] sm:$0xff]
    %v1143 = vld [vmem:[#allocation10 + $0x788] sm:$0xff]
    %v1144 = vld [vmem:[#allocation10 + $0x790] sm:$0xff]
    %v1145 = vld [vmem:[#allocation10 + $0x798] sm:$0xff]
    %v1146 = vld [vmem:[#allocation10 + $0x7a0] sm:$0xff]
    %v1147 = vld [vmem:[#allocation10 + $0x7a8] sm:$0xff]
    %v1148 = vld [vmem:[#allocation10 + $0x7b0] sm:$0xff]
    %v1149 = vld [vmem:[#allocation10 + $0x7b8] sm:$0xff]
    %v1150 = vld [vmem:[#allocation10 + $0x7c0] sm:$0xff]
    %v1151 = vld [vmem:[#allocation10 + $0x7c8] sm:$0xff]
    %v1152 = vld [vmem:[#allocation10 + $0x7d0] sm:$0xff]
    %v1153 = vld [vmem:[#allocation10 + $0x7d8] sm:$0xff]
    %v1154 = vld [vmem:[#allocation10 + $0x7e0] sm:$0xff]
    %v1155 = vld [vmem:[#allocation10 + $0x7e8] sm:$0xff]
    %v1156 = vld [vmem:[#allocation10 + $0x7f0] sm:$0xff]
    %v1157 = vld [vmem:[#allocation10 + $0x7f8] sm:$0xff]
    %v1158 = vld [vmem:[#allocation12] sm:$0xff]
    %v1159 = vld [vmem:[#allocation12 + $0x8] sm:$0xff]
    %v1160 = vld [vmem:[#allocation12 + $0x10] sm:$0xff]
    %v1161 = vld [vmem:[#allocation12 + $0x18] sm:$0xff]
    %v1162 = vld [vmem:[#allocation12 + $0x20] sm:$0xff]
    %v1163 = vld [vmem:[#allocation12 + $0x28] sm:$0xff]
    %v1164 = vld [vmem:[#allocation12 + $0x30] sm:$0xff]
    %v1165 = vld [vmem:[#allocation12 + $0x38] sm:$0xff]
    %v1166 = vld [vmem:[#allocation12 + $0x40] sm:$0xff]
    %v1167 = vld [vmem:[#allocation12 + $0x48] sm:$0xff]
    %v1168 = vld [vmem:[#allocation12 + $0x50] sm:$0xff]
    %v1169 = vld [vmem:[#allocation12 + $0x58] sm:$0xff]
    %v1170 = vld [vmem:[#allocation12 + $0x60] sm:$0xff]
    %v1171 = vld [vmem:[#allocation12 + $0x68] sm:$0xff]
    %v1172 = vld [vmem:[#allocation12 + $0x70] sm:$0xff]
    %v1173 = vld [vmem:[#allocation12 + $0x78] sm:$0xff]
    %v1174 = vld [vmem:[#allocation12 + $0x80] sm:$0xff]
    %v1175 = vld [vmem:[#allocation12 + $0x88] sm:$0xff]
    %v1176 = vld [vmem:[#allocation12 + $0x90] sm:$0xff]
    %v1177 = vld [vmem:[#allocation12 + $0x98] sm:$0xff]
    %v1178 = vld [vmem:[#allocation12 + $0xa0] sm:$0xff]
    %v1179 = vld [vmem:[#allocation12 + $0xa8] sm:$0xff]
    %v1180 = vld [vmem:[#allocation12 + $0xb0] sm:$0xff]
    %v1181 = vld [vmem:[#allocation12 + $0xb8] sm:$0xff]
    %v1182 = vld [vmem:[#allocation12 + $0xc0] sm:$0xff]
    %v1183 = vld [vmem:[#allocation12 + $0xc8] sm:$0xff]
    %v1184 = vld [vmem:[#allocation12 + $0xd0] sm:$0xff]
    %v1185 = vld [vmem:[#allocation12 + $0xd8] sm:$0xff]
    %v1186 = vld [vmem:[#allocation12 + $0xe0] sm:$0xff]
    %v1187 = vld [vmem:[#allocation12 + $0xe8] sm:$0xff]
    %v1188 = vld [vmem:[#allocation12 + $0xf0] sm:$0xff]
    %v1189 = vld [vmem:[#allocation12 + $0xf8] sm:$0xff]
    %v1190 = vld [vmem:[#allocation12 + $0x100] sm:$0xff]
    %v1191 = vld [vmem:[#allocation12 + $0x108] sm:$0xff]
    %v1192 = vld [vmem:[#allocation12 + $0x110] sm:$0xff]
    %v1193 = vld [vmem:[#allocation12 + $0x118] sm:$0xff]
    %v1194 = vld [vmem:[#allocation12 + $0x120] sm:$0xff]
    %v1195 = vld [vmem:[#allocation12 + $0x128] sm:$0xff]
    %v1196 = vld [vmem:[#allocation12 + $0x130] sm:$0xff]
    %v1197 = vld [vmem:[#allocation12 + $0x138] sm:$0xff]
    %v1198 = vld [vmem:[#allocation12 + $0x140] sm:$0xff]
    %v1199 = vld [vmem:[#allocation12 + $0x148] sm:$0xff]
    %v1200 = vld [vmem:[#allocation12 + $0x150] sm:$0xff]
    %v1201 = vld [vmem:[#allocation12 + $0x158] sm:$0xff]
    %v1202 = vld [vmem:[#allocation12 + $0x160] sm:$0xff]
    %v1203 = vld [vmem:[#allocation12 + $0x168] sm:$0xff]
    %v1204 = vld [vmem:[#allocation12 + $0x170] sm:$0xff]
    %v1205 = vld [vmem:[#allocation12 + $0x178] sm:$0xff]
    %v1206 = vld [vmem:[#allocation12 + $0x180] sm:$0xff]
    %v1207 = vld [vmem:[#allocation12 + $0x188] sm:$0xff]
    %v1208 = vld [vmem:[#allocation12 + $0x190] sm:$0xff]
    %v1209 = vld [vmem:[#allocation12 + $0x198] sm:$0xff]
    %v1210 = vld [vmem:[#allocation12 + $0x1a0] sm:$0xff]
    %v1211 = vld [vmem:[#allocation12 + $0x1a8] sm:$0xff]
    %v1212 = vld [vmem:[#allocation12 + $0x1b0] sm:$0xff]
    %v1213 = vld [vmem:[#allocation12 + $0x1b8] sm:$0xff]
    %v1214 = vld [vmem:[#allocation12 + $0x1c0] sm:$0xff]
    %v1215 = vld [vmem:[#allocation12 + $0x1c8] sm:$0xff]
    %v1216 = vld [vmem:[#allocation12 + $0x1d0] sm:$0xff]
    %v1217 = vld [vmem:[#allocation12 + $0x1d8] sm:$0xff]
    %v1218 = vld [vmem:[#allocation12 + $0x1e0] sm:$0xff]
    %v1219 = vld [vmem:[#allocation12 + $0x1e8] sm:$0xff]
    %v1220 = vld [vmem:[#allocation12 + $0x1f0] sm:$0xff]
    %v1221 = vld [vmem:[#allocation12 + $0x1f8] sm:$0xff]
    %v1222 = vld [vmem:[%s10] sm:$0xf]
    %v1223 = vld [vmem:[%s10 + $0x4] sm:$0xf]
    %v1224 = vld [vmem:[%s10 + $0x8] sm:$0xf]
    %v1225 = vld [vmem:[%s10 + $0xc] sm:$0xf]
    %v1226 = vld [vmem:[%s10 + $0x10] sm:$0xf]
    %v1227 = vld [vmem:[%s10 + $0x14] sm:$0xf]
    %v1228 = vld [vmem:[%s10 + $0x18] sm:$0xf]
    %v1229 = vld [vmem:[%s10 + $0x1c] sm:$0xf]
    %v1230 = vld [vmem:[%s10 + $0x20] sm:$0xf]
    %v1231 = vld [vmem:[%s10 + $0x24] sm:$0xf]
    %v1232 = vld [vmem:[%s10 + $0x28] sm:$0xf]
    %v1233 = vld [vmem:[%s10 + $0x2c] sm:$0xf]
    %v1234 = vld [vmem:[%s10 + $0x30] sm:$0xf]
    %v1235 = vld [vmem:[%s10 + $0x34] sm:$0xf]
    %v1236 = vld [vmem:[%s10 + $0x38] sm:$0xf]
    %v1237 = vld [vmem:[%s10 + $0x3c] sm:$0xf]
    %v1238 = vld [vmem:[%s10 + $0x40] sm:$0xf]
    %v1239 = vld [vmem:[%s10 + $0x44] sm:$0xf]
    %v1240 = vld [vmem:[%s10 + $0x48] sm:$0xf]
    %v1241 = vld [vmem:[%s10 + $0x4c] sm:$0xf]
    %v1242 = vld [vmem:[%s10 + $0x50] sm:$0xf]
    %v1243 = vld [vmem:[%s10 + $0x54] sm:$0xf]
    %v1244 = vld [vmem:[%s10 + $0x58] sm:$0xf]
    %v1245 = vld [vmem:[%s10 + $0x5c] sm:$0xf]
    %v1246 = vld [vmem:[%s10 + $0x60] sm:$0xf]
    %v1247 = vld [vmem:[%s10 + $0x64] sm:$0xf]
    %v1248 = vld [vmem:[%s10 + $0x68] sm:$0xf]
    %v1249 = vld [vmem:[%s10 + $0x6c] sm:$0xf]
    %v1250 = vld [vmem:[%s10 + $0x70] sm:$0xf]
    %v1251 = vld [vmem:[%s10 + $0x74] sm:$0xf]
    %v1252 = vld [vmem:[%s10 + $0x78] sm:$0xf]
    %v1253 = vld [vmem:[%s10 + $0x7c] sm:$0xf]
    %v1254 = vld [vmem:[%s0] sm:$0xff]
    %v1255 = vld [vmem:[%s0 + $0x8] sm:$0xff]
    %v1256 = vld [vmem:[%s0 + $0x10] sm:$0xff]
    %v1257 = vld [vmem:[%s0 + $0x18] sm:$0xff]
    %v1258 = vld [vmem:[%s1] sm:$0xff]
    %v1259 = vld [vmem:[%s1 + $0x8] sm:$0xff]
    %v1260 = vld [vmem:[%s1 + $0x10] sm:$0xff]
    %v1261 = vld [vmem:[%s1 + $0x18] sm:$0xff]
    %v1262 = vld [vmem:[%s1 + $0x20] sm:$0xff]
    %v1263 = vld [vmem:[%s1 + $0x28] sm:$0xff]
    %v1264 = vld [vmem:[%s1 + $0x30] sm:$0xff]
    %v1265 = vld [vmem:[%s1 + $0x38] sm:$0xff]
    %v1266 = vld [vmem:[%s2] ss:$8 sm:$0xf]
    %s1267 = scalar_lea.vmem %s2, 1
    %v1268 = vld [vmem:[%s1267] ss:$8 sm:$0xf]
    %s1269 = scalar_lea.vmem %s2, 2
    %v1270 = vld [vmem:[%s1269] ss:$8 sm:$0xf]
    %s1271 = scalar_lea.vmem %s2, 3
    %v1272 = vld [vmem:[%s1271] ss:$8 sm:$0xf]
    %s1273 = scalar_lea.vmem %s2, 4
    %v1274 = vld [vmem:[%s1273] ss:$8 sm:$0xf]
    %s1275 = scalar_lea.vmem %s2, 5
    %v1276 = vld [vmem:[%s1275] ss:$8 sm:$0xf]
    %s1277 = scalar_lea.vmem %s2, 6
    %v1278 = vld [vmem:[%s1277] ss:$8 sm:$0xf]
    %s1279 = scalar_lea.vmem %s2, 7
    %v1280 = vld [vmem:[%s1279] ss:$8 sm:$0xf]
    %s1281 = scalar_lea.vmem %s2, 64
    %v1282 = vld [vmem:[%s1281] ss:$8 sm:$0xf]
    %v1283 = vld [vmem:[%s1281] ss:$8 sm:$0xf0]
    %v1284 = vor.u32 %v1282, %v1283
    %s1285 = scalar_lea.vmem %s2, 65
    %v1286 = vld [vmem:[%s1285] ss:$8 sm:$0xf]
    %s1287 = scalar_lea.vmem %s2, 66
    %v1288 = vld [vmem:[%s1287] ss:$8 sm:$0xf]
    %s1289 = scalar_lea.vmem %s2, 67
    %v1290 = vld [vmem:[%s1289] ss:$8 sm:$0xf]
    %s1291 = scalar_lea.vmem %s2, 68
    %v1292 = vld [vmem:[%s1291] ss:$8 sm:$0x3]
    %v1293 = vld [vmem:[%s2 + $0x45] ss:$0 sm:$0xff]
    %v1294 = vld [vmem:[%s2 + $0x46] ss:$0 sm:$0xff]
    %v1295 = vld [vmem:[%s2 + $0x47] ss:$0 sm:$0xff]
    %v1297 = vlaneseq
    %v1298 = vshrl.u32 %v1297, 7
    %v1299 = vsub.s32 0, %v1298
    %v1300 = vrot.slane %v1266, %v1299
    %v1301 = vlaneseq
    %v1302 = vshrl.u32 %v1301, 7
    %v1303 = vsub.s32 1, %v1302
    %v1304 = vrot.slane %v1266, %v1303
    %v1305 = vlaneseq
    %v1306 = vshrl.u32 %v1305, 7
    %v1307 = vsub.s32 2, %v1306
    %v1308 = vrot.slane %v1266, %v1307
    %v1309 = vlaneseq
    %v1310 = vshrl.u32 %v1309, 7
    %v1311 = vsub.s32 3, %v1310
    %v1312 = vrot.slane %v1266, %v1311
    %v1321 = vunpack.c.l.b16 %v1254
    %v1322 = vunpack.c.h.b16 %v1254
    %v1323 = vunpack.c.l.b16 %v1255
    %v1324 = vunpack.c.h.b16 %v1255
    %v1325 = vunpack.c.l.b16 %v1256
    %v1326 = vunpack.c.h.b16 %v1256
    %v1327 = vunpack.c.l.b16 %v1257
    %v1328 = vunpack.c.h.b16 %v1257
    %v1329 = vpack.c.b16 %v1325, %v1321
    %v1330 = vpack.c.b16 %v1326, %v1322
    %v1331 = vpack.c.b16 %v1327, %v1323
    %v1332 = vpack.c.b16 %v1328, %v1324
    %v1465 = vunpack.c.l.b16 %v134
    %v1466 = vunpack.c.h.b16 %v134
    %v1467 = vunpack.c.l.b16 %v135
    %v1468 = vunpack.c.h.b16 %v135
    %v1469 = vunpack.c.l.b16 %v136
    %v1470 = vunpack.c.h.b16 %v136
    %v1471 = vunpack.c.l.b16 %v137
    %v1472 = vunpack.c.h.b16 %v137
    %v1473 = vunpack.c.l.b16 %v138
    %v1474 = vunpack.c.h.b16 %v138
    %v1475 = vunpack.c.l.b16 %v139
    %v1476 = vunpack.c.h.b16 %v139
    %v1477 = vunpack.c.l.b16 %v140
    %v1478 = vunpack.c.h.b16 %v140
    %v1479 = vunpack.c.l.b16 %v141
    %v1480 = vunpack.c.h.b16 %v141
    %v1481 = vunpack.c.l.b16 %v142
    %v1482 = vunpack.c.h.b16 %v142
    %v1483 = vunpack.c.l.b16 %v143
    %v1484 = vunpack.c.h.b16 %v143
    %v1485 = vunpack.c.l.b16 %v144
    %v1486 = vunpack.c.h.b16 %v144
    %v1487 = vunpack.c.l.b16 %v145
    %v1488 = vunpack.c.h.b16 %v145
    %v1489 = vunpack.c.l.b16 %v146
    %v1490 = vunpack.c.h.b16 %v146
    %v1491 = vunpack.c.l.b16 %v147
    %v1492 = vunpack.c.h.b16 %v147
    %v1493 = vunpack.c.l.b16 %v148
    %v1494 = vunpack.c.h.b16 %v148
    %v1495 = vunpack.c.l.b16 %v149
    %v1496 = vunpack.c.h.b16 %v149
    %v1497 = vunpack.c.l.b16 %v150
    %v1498 = vunpack.c.h.b16 %v150
    %v1499 = vunpack.c.l.b16 %v151
    %v1500 = vunpack.c.h.b16 %v151
    %v1501 = vunpack.c.l.b16 %v152
    %v1502 = vunpack.c.h.b16 %v152
    %v1503 = vunpack.c.l.b16 %v153
    %v1504 = vunpack.c.h.b16 %v153
    %v1505 = vunpack.c.l.b16 %v154
    %v1506 = vunpack.c.h.b16 %v154
    %v1507 = vunpack.c.l.b16 %v155
    %v1508 = vunpack.c.h.b16 %v155
    %v1509 = vunpack.c.l.b16 %v156
    %v1510 = vunpack.c.h.b16 %v156
    %v1511 = vunpack.c.l.b16 %v157
    %v1512 = vunpack.c.h.b16 %v157
    %v1513 = vunpack.c.l.b16 %v158
    %v1514 = vunpack.c.h.b16 %v158
    %v1515 = vunpack.c.l.b16 %v159
    %v1516 = vunpack.c.h.b16 %v159
    %v1517 = vunpack.c.l.b16 %v160
    %v1518 = vunpack.c.h.b16 %v160
    %v1519 = vunpack.c.l.b16 %v161
    %v1520 = vunpack.c.h.b16 %v161
    %v1521 = vunpack.c.l.b16 %v162
    %v1522 = vunpack.c.h.b16 %v162
    %v1523 = vunpack.c.l.b16 %v163
    %v1524 = vunpack.c.h.b16 %v163
    %v1525 = vunpack.c.l.b16 %v164
    %v1526 = vunpack.c.h.b16 %v164
    %v1527 = vunpack.c.l.b16 %v165
    %v1528 = vunpack.c.h.b16 %v165
    %v1529 = vunpack.c.l.b16 %v166
    %v1530 = vunpack.c.h.b16 %v166
    %v1531 = vunpack.c.l.b16 %v167
    %v1532 = vunpack.c.h.b16 %v167
    %v1533 = vunpack.c.l.b16 %v168
    %v1534 = vunpack.c.h.b16 %v168
    %v1535 = vunpack.c.l.b16 %v169
    %v1536 = vunpack.c.h.b16 %v169
    %v1537 = vunpack.c.l.b16 %v170
    %v1538 = vunpack.c.h.b16 %v170
    %v1539 = vunpack.c.l.b16 %v171
    %v1540 = vunpack.c.h.b16 %v171
    %v1541 = vunpack.c.l.b16 %v172
    %v1542 = vunpack.c.h.b16 %v172
    %v1543 = vunpack.c.l.b16 %v173
    %v1544 = vunpack.c.h.b16 %v173
    %v1545 = vunpack.c.l.b16 %v174
    %v1546 = vunpack.c.h.b16 %v174
    %v1547 = vunpack.c.l.b16 %v175
    %v1548 = vunpack.c.h.b16 %v175
    %v1549 = vunpack.c.l.b16 %v176
    %v1550 = vunpack.c.h.b16 %v176
    %v1551 = vunpack.c.l.b16 %v177
    %v1552 = vunpack.c.h.b16 %v177
    %v1553 = vunpack.c.l.b16 %v178
    %v1554 = vunpack.c.h.b16 %v178
    %v1555 = vunpack.c.l.b16 %v179
    %v1556 = vunpack.c.h.b16 %v179
    %v1557 = vunpack.c.l.b16 %v180
    %v1558 = vunpack.c.h.b16 %v180
    %v1559 = vunpack.c.l.b16 %v181
    %v1560 = vunpack.c.h.b16 %v181
    %v1561 = vunpack.c.l.b16 %v182
    %v1562 = vunpack.c.h.b16 %v182
    %v1563 = vunpack.c.l.b16 %v183
    %v1564 = vunpack.c.h.b16 %v183
    %v1565 = vunpack.c.l.b16 %v184
    %v1566 = vunpack.c.h.b16 %v184
    %v1567 = vunpack.c.l.b16 %v185
    %v1568 = vunpack.c.h.b16 %v185
    %v1569 = vunpack.c.l.b16 %v186
    %v1570 = vunpack.c.h.b16 %v186
    %v1571 = vunpack.c.l.b16 %v187
    %v1572 = vunpack.c.h.b16 %v187
    %v1573 = vunpack.c.l.b16 %v188
    %v1574 = vunpack.c.h.b16 %v188
    %v1575 = vunpack.c.l.b16 %v189
    %v1576 = vunpack.c.h.b16 %v189
    %v1577 = vunpack.c.l.b16 %v190
    %v1578 = vunpack.c.h.b16 %v190
    %v1579 = vunpack.c.l.b16 %v191
    %v1580 = vunpack.c.h.b16 %v191
    %v1581 = vunpack.c.l.b16 %v192
    %v1582 = vunpack.c.h.b16 %v192
    %v1583 = vunpack.c.l.b16 %v193
    %v1584 = vunpack.c.h.b16 %v193
    %v1585 = vunpack.c.l.b16 %v194
    %v1586 = vunpack.c.h.b16 %v194
    %v1587 = vunpack.c.l.b16 %v195
    %v1588 = vunpack.c.h.b16 %v195
    %v1589 = vunpack.c.l.b16 %v196
    %v1590 = vunpack.c.h.b16 %v196
    %v1591 = vunpack.c.l.b16 %v197
    %v1592 = vunpack.c.h.b16 %v197
    %v1593 = vunpack.c.l.b16 %v198
    %v1594 = vunpack.c.h.b16 %v198
    %v1595 = vunpack.c.l.b16 %v199
    %v1596 = vunpack.c.h.b16 %v199
    %v1597 = vunpack.c.l.b16 %v200
    %v1598 = vunpack.c.h.b16 %v200
    %v1599 = vunpack.c.l.b16 %v201
    %v1600 = vunpack.c.h.b16 %v201
    %v1601 = vunpack.c.l.b16 %v202
    %v1602 = vunpack.c.h.b16 %v202
    %v1603 = vunpack.c.l.b16 %v203
    %v1604 = vunpack.c.h.b16 %v203
    %v1605 = vunpack.c.l.b16 %v204
    %v1606 = vunpack.c.h.b16 %v204
    %v1607 = vunpack.c.l.b16 %v205
    %v1608 = vunpack.c.h.b16 %v205
    %v1609 = vunpack.c.l.b16 %v206
    %v1610 = vunpack.c.h.b16 %v206
    %v1611 = vunpack.c.l.b16 %v207
    %v1612 = vunpack.c.h.b16 %v207
    %v1613 = vunpack.c.l.b16 %v208
    %v1614 = vunpack.c.h.b16 %v208
    %v1615 = vunpack.c.l.b16 %v209
    %v1616 = vunpack.c.h.b16 %v209
    %v1617 = vunpack.c.l.b16 %v210
    %v1618 = vunpack.c.h.b16 %v210
    %v1619 = vunpack.c.l.b16 %v211
    %v1620 = vunpack.c.h.b16 %v211
    %v1621 = vunpack.c.l.b16 %v212
    %v1622 = vunpack.c.h.b16 %v212
    %v1623 = vunpack.c.l.b16 %v213
    %v1624 = vunpack.c.h.b16 %v213
    %v1625 = vunpack.c.l.b16 %v214
    %v1626 = vunpack.c.h.b16 %v214
    %v1627 = vunpack.c.l.b16 %v215
    %v1628 = vunpack.c.h.b16 %v215
    %v1629 = vunpack.c.l.b16 %v216
    %v1630 = vunpack.c.h.b16 %v216
    %v1631 = vunpack.c.l.b16 %v217
    %v1632 = vunpack.c.h.b16 %v217
    %v1633 = vunpack.c.l.b16 %v218
    %v1634 = vunpack.c.h.b16 %v218
    %v1635 = vunpack.c.l.b16 %v219
    %v1636 = vunpack.c.h.b16 %v219
    %v1637 = vunpack.c.l.b16 %v220
    %v1638 = vunpack.c.h.b16 %v220
    %v1639 = vunpack.c.l.b16 %v221
    %v1640 = vunpack.c.h.b16 %v221
    %v1641 = vunpack.c.l.b16 %v222
    %v1642 = vunpack.c.h.b16 %v222
    %v1643 = vunpack.c.l.b16 %v223
    %v1644 = vunpack.c.h.b16 %v223
    %v1645 = vunpack.c.l.b16 %v224
    %v1646 = vunpack.c.h.b16 %v224
    %v1647 = vunpack.c.l.b16 %v225
    %v1648 = vunpack.c.h.b16 %v225
    %v1649 = vunpack.c.l.b16 %v226
    %v1650 = vunpack.c.h.b16 %v226
    %v1651 = vunpack.c.l.b16 %v227
    %v1652 = vunpack.c.h.b16 %v227
    %v1653 = vunpack.c.l.b16 %v228
    %v1654 = vunpack.c.h.b16 %v228
    %v1655 = vunpack.c.l.b16 %v229
    %v1656 = vunpack.c.h.b16 %v229
    %v1657 = vunpack.c.l.b16 %v230
    %v1658 = vunpack.c.h.b16 %v230
    %v1659 = vunpack.c.l.b16 %v231
    %v1660 = vunpack.c.h.b16 %v231
    %v1661 = vunpack.c.l.b16 %v232
    %v1662 = vunpack.c.h.b16 %v232
    %v1663 = vunpack.c.l.b16 %v233
    %v1664 = vunpack.c.h.b16 %v233
    %v1665 = vunpack.c.l.b16 %v234
    %v1666 = vunpack.c.h.b16 %v234
    %v1667 = vunpack.c.l.b16 %v235
    %v1668 = vunpack.c.h.b16 %v235
    %v1669 = vunpack.c.l.b16 %v236
    %v1670 = vunpack.c.h.b16 %v236
    %v1671 = vunpack.c.l.b16 %v237
    %v1672 = vunpack.c.h.b16 %v237
    %v1673 = vunpack.c.l.b16 %v238
    %v1674 = vunpack.c.h.b16 %v238
    %v1675 = vunpack.c.l.b16 %v239
    %v1676 = vunpack.c.h.b16 %v239
    %v1677 = vunpack.c.l.b16 %v240
    %v1678 = vunpack.c.h.b16 %v240
    %v1679 = vunpack.c.l.b16 %v241
    %v1680 = vunpack.c.h.b16 %v241
    %v1681 = vunpack.c.l.b16 %v242
    %v1682 = vunpack.c.h.b16 %v242
    %v1683 = vunpack.c.l.b16 %v243
    %v1684 = vunpack.c.h.b16 %v243
    %v1685 = vunpack.c.l.b16 %v244
    %v1686 = vunpack.c.h.b16 %v244
    %v1687 = vunpack.c.l.b16 %v245
    %v1688 = vunpack.c.h.b16 %v245
    %v1689 = vunpack.c.l.b16 %v246
    %v1690 = vunpack.c.h.b16 %v246
    %v1691 = vunpack.c.l.b16 %v247
    %v1692 = vunpack.c.h.b16 %v247
    %v1693 = vunpack.c.l.b16 %v248
    %v1694 = vunpack.c.h.b16 %v248
    %v1695 = vunpack.c.l.b16 %v249
    %v1696 = vunpack.c.h.b16 %v249
    %v1697 = vunpack.c.l.b16 %v250
    %v1698 = vunpack.c.h.b16 %v250
    %v1699 = vunpack.c.l.b16 %v251
    %v1700 = vunpack.c.h.b16 %v251
    %v1701 = vunpack.c.l.b16 %v252
    %v1702 = vunpack.c.h.b16 %v252
    %v1703 = vunpack.c.l.b16 %v253
    %v1704 = vunpack.c.h.b16 %v253
    %v1705 = vunpack.c.l.b16 %v254
    %v1706 = vunpack.c.h.b16 %v254
    %v1707 = vunpack.c.l.b16 %v255
    %v1708 = vunpack.c.h.b16 %v255
    %v1709 = vunpack.c.l.b16 %v256
    %v1710 = vunpack.c.h.b16 %v256
    %v1711 = vunpack.c.l.b16 %v257
    %v1712 = vunpack.c.h.b16 %v257
    %v1713 = vunpack.c.l.b16 %v258
    %v1714 = vunpack.c.h.b16 %v258
    %v1715 = vunpack.c.l.b16 %v259
    %v1716 = vunpack.c.h.b16 %v259
    %v1717 = vunpack.c.l.b16 %v260
    %v1718 = vunpack.c.h.b16 %v260
    %v1719 = vunpack.c.l.b16 %v261
    %v1720 = vunpack.c.h.b16 %v261
    %v1721 = vpack.c.b16 %v1469, %v1465
    %v1722 = vpack.c.b16 %v1470, %v1466
    %v1723 = vpack.c.b16 %v1471, %v1467
    %v1724 = vpack.c.b16 %v1472, %v1468
    %v1725 = vpack.c.b16 %v1477, %v1473
    %v1726 = vpack.c.b16 %v1478, %v1474
    %v1727 = vpack.c.b16 %v1479, %v1475
    %v1728 = vpack.c.b16 %v1480, %v1476
    %v1729 = vpack.c.b16 %v1485, %v1481
    %v1730 = vpack.c.b16 %v1486, %v1482
    %v1731 = vpack.c.b16 %v1487, %v1483
    %v1732 = vpack.c.b16 %v1488, %v1484
    %v1733 = vpack.c.b16 %v1493, %v1489
    %v1734 = vpack.c.b16 %v1494, %v1490
    %v1735 = vpack.c.b16 %v1495, %v1491
    %v1736 = vpack.c.b16 %v1496, %v1492
    %v1737 = vpack.c.b16 %v1501, %v1497
    %v1738 = vpack.c.b16 %v1502, %v1498
    %v1739 = vpack.c.b16 %v1503, %v1499
    %v1740 = vpack.c.b16 %v1504, %v1500
    %v1741 = vpack.c.b16 %v1509, %v1505
    %v1742 = vpack.c.b16 %v1510, %v1506
    %v1743 = vpack.c.b16 %v1511, %v1507
    %v1744 = vpack.c.b16 %v1512, %v1508
    %v1745 = vpack.c.b16 %v1517, %v1513
    %v1746 = vpack.c.b16 %v1518, %v1514
    %v1747 = vpack.c.b16 %v1519, %v1515
    %v1748 = vpack.c.b16 %v1520, %v1516
    %v1749 = vpack.c.b16 %v1525, %v1521
    %v1750 = vpack.c.b16 %v1526, %v1522
    %v1751 = vpack.c.b16 %v1527, %v1523
    %v1752 = vpack.c.b16 %v1528, %v1524
    %v1753 = vpack.c.b16 %v1533, %v1529
    %v1754 = vpack.c.b16 %v1534, %v1530
    %v1755 = vpack.c.b16 %v1535, %v1531
    %v1756 = vpack.c.b16 %v1536, %v1532
    %v1757 = vpack.c.b16 %v1541, %v1537
    %v1758 = vpack.c.b16 %v1542, %v1538
    %v1759 = vpack.c.b16 %v1543, %v1539
    %v1760 = vpack.c.b16 %v1544, %v1540
    %v1761 = vpack.c.b16 %v1549, %v1545
    %v1762 = vpack.c.b16 %v1550, %v1546
    %v1763 = vpack.c.b16 %v1551, %v1547
    %v1764 = vpack.c.b16 %v1552, %v1548
    %v1765 = vpack.c.b16 %v1557, %v1553
    %v1766 = vpack.c.b16 %v1558, %v1554
    %v1767 = vpack.c.b16 %v1559, %v1555
    %v1768 = vpack.c.b16 %v1560, %v1556
    %v1769 = vpack.c.b16 %v1565, %v1561
    %v1770 = vpack.c.b16 %v1566, %v1562
    %v1771 = vpack.c.b16 %v1567, %v1563
    %v1772 = vpack.c.b16 %v1568, %v1564
    %v1773 = vpack.c.b16 %v1573, %v1569
    %v1774 = vpack.c.b16 %v1574, %v1570
    %v1775 = vpack.c.b16 %v1575, %v1571
    %v1776 = vpack.c.b16 %v1576, %v1572
    %v1777 = vpack.c.b16 %v1581, %v1577
    %v1778 = vpack.c.b16 %v1582, %v1578
    %v1779 = vpack.c.b16 %v1583, %v1579
    %v1780 = vpack.c.b16 %v1584, %v1580
    %v1781 = vpack.c.b16 %v1589, %v1585
    %v1782 = vpack.c.b16 %v1590, %v1586
    %v1783 = vpack.c.b16 %v1591, %v1587
    %v1784 = vpack.c.b16 %v1592, %v1588
    %v1785 = vpack.c.b16 %v1597, %v1593
    %v1786 = vpack.c.b16 %v1598, %v1594
    %v1787 = vpack.c.b16 %v1599, %v1595
    %v1788 = vpack.c.b16 %v1600, %v1596
    %v1789 = vpack.c.b16 %v1605, %v1601
    %v1790 = vpack.c.b16 %v1606, %v1602
    %v1791 = vpack.c.b16 %v1607, %v1603
    %v1792 = vpack.c.b16 %v1608, %v1604
    %v1793 = vpack.c.b16 %v1613, %v1609
    %v1794 = vpack.c.b16 %v1614, %v1610
    %v1795 = vpack.c.b16 %v1615, %v1611
    %v1796 = vpack.c.b16 %v1616, %v1612
    %v1797 = vpack.c.b16 %v1621, %v1617
    %v1798 = vpack.c.b16 %v1622, %v1618
    %v1799 = vpack.c.b16 %v1623, %v1619
    %v1800 = vpack.c.b16 %v1624, %v1620
    %v1801 = vpack.c.b16 %v1629, %v1625
    %v1802 = vpack.c.b16 %v1630, %v1626
    %v1803 = vpack.c.b16 %v1631, %v1627
    %v1804 = vpack.c.b16 %v1632, %v1628
    %v1805 = vpack.c.b16 %v1637, %v1633
    %v1806 = vpack.c.b16 %v1638, %v1634
    %v1807 = vpack.c.b16 %v1639, %v1635
    %v1808 = vpack.c.b16 %v1640, %v1636
    %v1809 = vpack.c.b16 %v1645, %v1641
    %v1810 = vpack.c.b16 %v1646, %v1642
    %v1811 = vpack.c.b16 %v1647, %v1643
    %v1812 = vpack.c.b16 %v1648, %v1644
    %v1813 = vpack.c.b16 %v1653, %v1649
    %v1814 = vpack.c.b16 %v1654, %v1650
    %v1815 = vpack.c.b16 %v1655, %v1651
    %v1816 = vpack.c.b16 %v1656, %v1652
    %v1817 = vpack.c.b16 %v1661, %v1657
    %v1818 = vpack.c.b16 %v1662, %v1658
    %v1819 = vpack.c.b16 %v1663, %v1659
    %v1820 = vpack.c.b16 %v1664, %v1660
    %v1821 = vpack.c.b16 %v1669, %v1665
    %v1822 = vpack.c.b16 %v1670, %v1666
    %v1823 = vpack.c.b16 %v1671, %v1667
    %v1824 = vpack.c.b16 %v1672, %v1668
    %v1825 = vpack.c.b16 %v1677, %v1673
    %v1826 = vpack.c.b16 %v1678, %v1674
    %v1827 = vpack.c.b16 %v1679, %v1675
    %v1828 = vpack.c.b16 %v1680, %v1676
    %v1829 = vpack.c.b16 %v1685, %v1681
    %v1830 = vpack.c.b16 %v1686, %v1682
    %v1831 = vpack.c.b16 %v1687, %v1683
    %v1832 = vpack.c.b16 %v1688, %v1684
    %v1833 = vpack.c.b16 %v1693, %v1689
    %v1834 = vpack.c.b16 %v1694, %v1690
    %v1835 = vpack.c.b16 %v1695, %v1691
    %v1836 = vpack.c.b16 %v1696, %v1692
    %v1837 = vpack.c.b16 %v1701, %v1697
    %v1838 = vpack.c.b16 %v1702, %v1698
    %v1839 = vpack.c.b16 %v1703, %v1699
    %v1840 = vpack.c.b16 %v1704, %v1700
    %v1841 = vpack.c.b16 %v1709, %v1705
    %v1842 = vpack.c.b16 %v1710, %v1706
    %v1843 = vpack.c.b16 %v1711, %v1707
    %v1844 = vpack.c.b16 %v1712, %v1708
    %v1845 = vpack.c.b16 %v1717, %v1713
    %v1846 = vpack.c.b16 %v1718, %v1714
    %v1847 = vpack.c.b16 %v1719, %v1715
    %v1848 = vpack.c.b16 %v1720, %v1716
    %1977 = vmatprep.subr.bf16.mxu0 %v1722
    %1978 = vmatpush1.bf16.msra.mxu0 %v1721
    %1979 = vmatprep.subr.bf16.mxu0 %v1726
    %1980 = vmatpush1.bf16.msra.mxu0 %v1725
    %1981 = vmatprep.subr.bf16.mxu0 %v1730
    %1982 = vmatpush1.bf16.msra.mxu0 %v1729
    %1983 = vmatprep.subr.bf16.mxu0 %v1734
    %1984 = vmatpush1.bf16.msra.mxu0 %v1733
    %1985 = vmatprep.subr.bf16.mxu0 %v1738
    %1986 = vmatpush1.bf16.msra.mxu0 %v1737
    %1987 = vmatprep.subr.bf16.mxu0 %v1742
    %1988 = vmatpush1.bf16.msra.mxu0 %v1741
    %1989 = vmatprep.subr.bf16.mxu0 %v1746
    %1990 = vmatpush1.bf16.msra.mxu0 %v1745
    %1991 = vmatprep.subr.bf16.mxu0 %v1750
    %1992 = vmatpush1.bf16.msra.mxu0 %v1749
    %1993 = vmatprep.subr.bf16.mxu0 %v1754
    %1994 = vmatpush1.bf16.msra.mxu0 %v1753
    %1995 = vmatprep.subr.bf16.mxu0 %v1758
    %1996 = vmatpush1.bf16.msra.mxu0 %v1757
    %1997 = vmatprep.subr.bf16.mxu0 %v1762
    %1998 = vmatpush1.bf16.msra.mxu0 %v1761
    %1999 = vmatprep.subr.bf16.mxu0 %v1766
    %2000 = vmatpush1.bf16.msra.mxu0 %v1765
    %2001 = vmatprep.subr.bf16.mxu0 %v1770
    %2002 = vmatpush1.bf16.msra.mxu0 %v1769
    %2003 = vmatprep.subr.bf16.mxu0 %v1774
    %2004 = vmatpush1.bf16.msra.mxu0 %v1773
    %2005 = vmatprep.subr.bf16.mxu0 %v1778
    %2006 = vmatpush1.bf16.msra.mxu0 %v1777
    %2007 = vmatprep.subr.bf16.mxu0 %v1782
    %2008 = vmatpush1.bf16.msra.mxu0 %v1781
    %2009 = vmatprep.mubr.bf16.mxu0 %v1330
    %2010 = vmatmul.mubr.bf16.gmra.mrb[0].mxu0 %v1329
    %v2011 = vpop.f32.mrb[0].mxu0
    %v2012 = vadd.f32 %v1300, %v2011
    %v2013 = vpop.f32.mrb[0].mxu0
    %v2014 = vadd.f32 %v1304, %v2013
    %v2015 = vpop.f32.mrb[0].mxu0
    %v2016 = vadd.f32 %v1300, %v2015
    %v2017 = vpop.f32.mrb[0].mxu0
    %v2018 = vadd.f32 %v1304, %v2017
    %2019 = vdwg.mxu0
    %2020 = vmatprep.subr.bf16.mxu0 %v1786
    %2021 = vmatpush1.bf16.msra.mxu0 %v1785
    %2022 = vmatprep.subr.bf16.mxu0 %v1790
    %2023 = vmatpush1.bf16.msra.mxu0 %v1789
    %2024 = vmatprep.subr.bf16.mxu0 %v1794
    %2025 = vmatpush1.bf16.msra.mxu0 %v1793
    %2026 = vmatprep.subr.bf16.mxu0 %v1798
    %2027 = vmatpush1.bf16.msra.mxu0 %v1797
    %2028 = vmatprep.subr.bf16.mxu0 %v1802
    %2029 = vmatpush1.bf16.msra.mxu0 %v1801
    %2030 = vmatprep.subr.bf16.mxu0 %v1806
    %2031 = vmatpush1.bf16.msra.mxu0 %v1805
    %2032 = vmatprep.subr.bf16.mxu0 %v1810
    %2033 = vmatpush1.bf16.msra.mxu0 %v1809
    %2034 = vmatprep.subr.bf16.mxu0 %v1814
    %2035 = vmatpush1.bf16.msra.mxu0 %v1813
    %2036 = vmatprep.subr.bf16.mxu0 %v1818
    %2037 = vmatpush1.bf16.msra.mxu0 %v1817
    %2038 = vmatprep.subr.bf16.mxu0 %v1822
    %2039 = vmatpush1.bf16.msra.mxu0 %v1821
    %2040 = vmatprep.subr.bf16.mxu0 %v1826
    %2041 = vmatpush1.bf16.msra.mxu0 %v1825
    %2042 = vmatprep.subr.bf16.mxu0 %v1830
    %2043 = vmatpush1.bf16.msra.mxu0 %v1829
    %2044 = vmatprep.subr.bf16.mxu0 %v1834
    %2045 = vmatpush1.bf16.msra.mxu0 %v1833
    %2046 = vmatprep.subr.bf16.mxu0 %v1838
    %2047 = vmatpush1.bf16.msra.mxu0 %v1837
    %2048 = vmatprep.subr.bf16.mxu0 %v1842
    %2049 = vmatpush1.bf16.msra.mxu0 %v1841
    %2050 = vmatprep.subr.bf16.mxu0 %v1846
    %2051 = vmatpush1.bf16.msra.mxu0 %v1845
    %2052 = vmatprep.mubr.bf16.mxu0 %v1332
    %2053 = vmatmul.mubr.bf16.gmra.mrb[0].mxu0 %v1331
    %v2054 = vpop.f32.mrb[0].mxu0
    %v2055 = vadd.f32 %v2012, %v2054
    %v2056 = vpop.f32.mrb[0].mxu0
    %v2057 = vadd.f32 %v2014, %v2056
    %v2058 = vpop.f32.mrb[0].mxu0
    %v2059 = vadd.f32 %v2016, %v2058
    %v2060 = vpop.f32.mrb[0].mxu0
    %v2061 = vadd.f32 %v2018, %v2060
    %2062 = vdwg.mxu0
    %2063 = vmatprep.subr.bf16.mxu0 %v1724
    %2064 = vmatpush1.bf16.msra.mxu0 %v1723
    %2065 = vmatprep.subr.bf16.mxu0 %v1728
    %2066 = vmatpush1.bf16.msra.mxu0 %v1727
    %2067 = vmatprep.subr.bf16.mxu0 %v1732
    %2068 = vmatpush1.bf16.msra.mxu0 %v1731
    %2069 = vmatprep.subr.bf16.mxu0 %v1736
    %2070 = vmatpush1.bf16.msra.mxu0 %v1735
    %2071 = vmatprep.subr.bf16.mxu0 %v1740
    %2072 = vmatpush1.bf16.msra.mxu0 %v1739
    %2073 = vmatprep.subr.bf16.mxu0 %v1744
    %2074 = vmatpush1.bf16.msra.mxu0 %v1743
    %2075 = vmatprep.subr.bf16.mxu0 %v1748
    %2076 = vmatpush1.bf16.msra.mxu0 %v1747
    %2077 = vmatprep.subr.bf16.mxu0 %v1752
    %2078 = vmatpush1.bf16.msra.mxu0 %v1751
    %2079 = vmatprep.subr.bf16.mxu0 %v1756
    %2080 = vmatpush1.bf16.msra.mxu0 %v1755
    %2081 = vmatprep.subr.bf16.mxu0 %v1760
    %2082 = vmatpush1.bf16.msra.mxu0 %v1759
    %2083 = vmatprep.subr.bf16.mxu0 %v1764
    %2084 = vmatpush1.bf16.msra.mxu0 %v1763
    %2085 = vmatprep.subr.bf16.mxu0 %v1768
    %2086 = vmatpush1.bf16.msra.mxu0 %v1767
    %2087 = vmatprep.subr.bf16.mxu0 %v1772
    %2088 = vmatpush1.bf16.msra.mxu0 %v1771
    %2089 = vmatprep.subr.bf16.mxu0 %v1776
    %2090 = vmatpush1.bf16.msra.mxu0 %v1775
    %2091 = vmatprep.subr.bf16.mxu0 %v1780
    %2092 = vmatpush1.bf16.msra.mxu0 %v1779
    %2093 = vmatprep.subr.bf16.mxu0 %v1784
    %2094 = vmatpush1.bf16.msra.mxu0 %v1783
    %2095 = vmatprep.mubr.bf16.mxu0 %v1330
    %2096 = vmatmul.mubr.bf16.gmra.mrb[0].mxu0 %v1329
    %v2097 = vpop.f32.mrb[0].mxu0
    %v2098 = vadd.f32 %v1308, %v2097
    %v2099 = vpop.f32.mrb[0].mxu0
    %v2100 = vadd.f32 %v1312, %v2099
    %v2101 = vpop.f32.mrb[0].mxu0
    %v2102 = vadd.f32 %v1308, %v2101
    %v2103 = vpop.f32.mrb[0].mxu0
    %v2104 = vadd.f32 %v1312, %v2103
    %2105 = vdwg.mxu0
    %2106 = vmatprep.subr.bf16.mxu0 %v1788
    %2107 = vmatpush1.bf16.msra.mxu0 %v1787
    %2108 = vmatprep.subr.bf16.mxu0 %v1792
    %2109 = vmatpush1.bf16.msra.mxu0 %v1791
    %2110 = vmatprep.subr.bf16.mxu0 %v1796
    %2111 = vmatpush1.bf16.msra.mxu0 %v1795
    %2112 = vmatprep.subr.bf16.mxu0 %v1800
    %2113 = vmatpush1.bf16.msra.mxu0 %v1799
    %2114 = vmatprep.subr.bf16.mxu0 %v1804
    %2115 = vmatpush1.bf16.msra.mxu0 %v1803
    %2116 = vmatprep.subr.bf16.mxu0 %v1808
    %2117 = vmatpush1.bf16.msra.mxu0 %v1807
    %2118 = vmatprep.subr.bf16.mxu0 %v1812
    %2119 = vmatpush1.bf16.msra.mxu0 %v1811
    %2120 = vmatprep.subr.bf16.mxu0 %v1816
    %2121 = vmatpush1.bf16.msra.mxu0 %v1815
    %2122 = vmatprep.subr.bf16.mxu0 %v1820
    %2123 = vmatpush1.bf16.msra.mxu0 %v1819
    %2124 = vmatprep.subr.bf16.mxu0 %v1824
    %2125 = vmatpush1.bf16.msra.mxu0 %v1823
    %2126 = vmatprep.subr.bf16.mxu0 %v1828
    %2127 = vmatpush1.bf16.msra.mxu0 %v1827
    %2128 = vmatprep.subr.bf16.mxu0 %v1832
    %2129 = vmatpush1.bf16.msra.mxu0 %v1831
    %2130 = vmatprep.subr.bf16.mxu0 %v1836
    %2131 = vmatpush1.bf16.msra.mxu0 %v1835
    %2132 = vmatprep.subr.bf16.mxu0 %v1840
    %2133 = vmatpush1.bf16.msra.mxu0 %v1839
    %2134 = vmatprep.subr.bf16.mxu0 %v1844
    %2135 = vmatpush1.bf16.msra.mxu0 %v1843
    %2136 = vmatprep.subr.bf16.mxu0 %v1848
    %2137 = vmatpush1.bf16.msra.mxu0 %v1847
    %2138 = vmatprep.mubr.bf16.mxu0 %v1332
    %2139 = vmatmul.mubr.bf16.gmra.mrb[0].mxu0 %v1331
    %v2140 = vpop.f32.mrb[0].mxu0
    %v2141 = vadd.f32 %v2098, %v2140
    %v2142 = vpop.f32.mrb[0].mxu0
    %v2143 = vadd.f32 %v2100, %v2142
    %v2144 = vpop.f32.mrb[0].mxu0
    %v2145 = vadd.f32 %v2102, %v2144
    %v2146 = vpop.f32.mrb[0].mxu0
    %v2147 = vadd.f32 %v2104, %v2146
    %2148 = vdwg.mxu0
    %v2149 = vmax.f32 %v2055, 0.0
    %v2150 = vmax.f32 %v2057, 0.0
    %v2151 = vmax.f32 %v2141, 0.0
    %v2152 = vmax.f32 %v2143, 0.0
    %v2153 = vmax.f32 %v2059, 0.0
    %v2154 = vmax.f32 %v2061, 0.0
    %v2155 = vmax.f32 %v2145, 0.0
    %v2156 = vmax.f32 %v2147, 0.0
    %v2157 = vpack.c.bf16 %v2153, %v2149
    %v2158 = vpack.c.bf16 %v2154, %v2150
    %v2159 = vpack.c.bf16 %v2155, %v2151
    %v2160 = vpack.c.bf16 %v2156, %v2152
    %v2162 = vlaneseq
    %v2163 = vshrl.u32 %v2162, 7
    %v2164 = vsub.s32 0, %v2163
    %v2165 = vrot.slane %v1268, %v2164
    %v2166 = vlaneseq
    %v2167 = vshrl.u32 %v2166, 7
    %v2168 = vsub.s32 1, %v2167
    %v2169 = vrot.slane %v1268, %v2168
    %v2170 = vlaneseq
    %v2171 = vshrl.u32 %v2170, 7
    %v2172 = vsub.s32 2, %v2171
    %v2173 = vrot.slane %v1268, %v2172
    %v2174 = vlaneseq
    %v2175 = vshrl.u32 %v2174, 7
    %v2176 = vsub.s32 3, %v2175
    %v2177 = vrot.slane %v1268, %v2176
    %v2310 = vunpack.c.l.b16 %v262
    %v2311 = vunpack.c.h.b16 %v262
    %v2312 = vunpack.c.l.b16 %v263
    %v2313 = vunpack.c.h.b16 %v263
    %v2314 = vunpack.c.l.b16 %v264
    %v2315 = vunpack.c.h.b16 %v264
    %v2316 = vunpack.c.l.b16 %v265
    %v2317 = vunpack.c.h.b16 %v265
    %v2318 = vunpack.c.l.b16 %v266
    %v2319 = vunpack.c.h.b16 %v266
    %v2320 = vunpack.c.l.b16 %v267
    %v2321 = vunpack.c.h.b16 %v267
    %v2322 = vunpack.c.l.b16 %v268
    %v2323 = vunpack.c.h.b16 %v268
    %v2324 = vunpack.c.l.b16 %v269
    %v2325 = vunpack.c.h.b16 %v269
    %v2326 = vunpack.c.l.b16 %v270
    %v2327 = vunpack.c.h.b16 %v270
    %v2328 = vunpack.c.l.b16 %v271
    %v2329 = vunpack.c.h.b16 %v271
    %v2330 = vunpack.c.l.b16 %v272
    %v2331 = vunpack.c.h.b16 %v272
    %v2332 = vunpack.c.l.b16 %v273
    %v2333 = vunpack.c.h.b16 %v273
    %v2334 = vunpack.c.l.b16 %v274
    %v2335 = vunpack.c.h.b16 %v274
    %v2336 = vunpack.c.l.b16 %v275
    %v2337 = vunpack.c.h.b16 %v275
    %v2338 = vunpack.c.l.b16 %v276
    %v2339 = vunpack.c.h.b16 %v276
    %v2340 = vunpack.c.l.b16 %v277
    %v2341 = vunpack.c.h.b16 %v277
    %v2342 = vunpack.c.l.b16 %v278
    %v2343 = vunpack.c.h.b16 %v278
    %v2344 = vunpack.c.l.b16 %v279
    %v2345 = vunpack.c.h.b16 %v279
    %v2346 = vunpack.c.l.b16 %v280
    %v2347 = vunpack.c.h.b16 %v280
    %v2348 = vunpack.c.l.b16 %v281
    %v2349 = vunpack.c.h.b16 %v281
    %v2350 = vunpack.c.l.b16 %v282
    %v2351 = vunpack.c.h.b16 %v282
    %v2352 = vunpack.c.l.b16 %v283
    %v2353 = vunpack.c.h.b16 %v283
    %v2354 = vunpack.c.l.b16 %v284
    %v2355 = vunpack.c.h.b16 %v284
    %v2356 = vunpack.c.l.b16 %v285
    %v2357 = vunpack.c.h.b16 %v285
    %v2358 = vunpack.c.l.b16 %v286
    %v2359 = vunpack.c.h.b16 %v286
    %v2360 = vunpack.c.l.b16 %v287
    %v2361 = vunpack.c.h.b16 %v287
    %v2362 = vunpack.c.l.b16 %v288
    %v2363 = vunpack.c.h.b16 %v288
    %v2364 = vunpack.c.l.b16 %v289
    %v2365 = vunpack.c.h.b16 %v289
    %v2366 = vunpack.c.l.b16 %v290
    %v2367 = vunpack.c.h.b16 %v290
    %v2368 = vunpack.c.l.b16 %v291
    %v2369 = vunpack.c.h.b16 %v291
    %v2370 = vunpack.c.l.b16 %v292
    %v2371 = vunpack.c.h.b16 %v292
    %v2372 = vunpack.c.l.b16 %v293
    %v2373 = vunpack.c.h.b16 %v293
    %v2374 = vunpack.c.l.b16 %v294
    %v2375 = vunpack.c.h.b16 %v294
    %v2376 = vunpack.c.l.b16 %v295
    %v2377 = vunpack.c.h.b16 %v295
    %v2378 = vunpack.c.l.b16 %v296
    %v2379 = vunpack.c.h.b16 %v296
    %v2380 = vunpack.c.l.b16 %v297
    %v2381 = vunpack.c.h.b16 %v297
    %v2382 = vunpack.c.l.b16 %v298
    %v2383 = vunpack.c.h.b16 %v298
    %v2384 = vunpack.c.l.b16 %v299
    %v2385 = vunpack.c.h.b16 %v299
    %v2386 = vunpack.c.l.b16 %v300
    %v2387 = vunpack.c.h.b16 %v300
    %v2388 = vunpack.c.l.b16 %v301
    %v2389 = vunpack.c.h.b16 %v301
    %v2390 = vunpack.c.l.b16 %v302
    %v2391 = vunpack.c.h.b16 %v302
    %v2392 = vunpack.c.l.b16 %v303
    %v2393 = vunpack.c.h.b16 %v303
    %v2394 = vunpack.c.l.b16 %v304
    %v2395 = vunpack.c.h.b16 %v304
    %v2396 = vunpack.c.l.b16 %v305
    %v2397 = vunpack.c.h.b16 %v305
    %v2398 = vunpack.c.l.b16 %v306
    %v2399 = vunpack.c.h.b16 %v306
    %v2400 = vunpack.c.l.b16 %v307
    %v2401 = vunpack.c.h.b16 %v307
    %v2402 = vunpack.c.l.b16 %v308
    %v2403 = vunpack.c.h.b16 %v308
    %v2404 = vunpack.c.l.b16 %v309
    %v2405 = vunpack.c.h.b16 %v309
    %v2406 = vunpack.c.l.b16 %v310
    %v2407 = vunpack.c.h.b16 %v310
    %v2408 = vunpack.c.l.b16 %v311
    %v2409 = vunpack.c.h.b16 %v311
    %v2410 = vunpack.c.l.b16 %v312
    %v2411 = vunpack.c.h.b16 %v312
    %v2412 = vunpack.c.l.b16 %v313
    %v2413 = vunpack.c.h.b16 %v313
    %v2414 = vunpack.c.l.b16 %v314
    %v2415 = vunpack.c.h.b16 %v314
    %v2416 = vunpack.c.l.b16 %v315
    %v2417 = vunpack.c.h.b16 %v315
    %v2418 = vunpack.c.l.b16 %v316
    %v2419 = vunpack.c.h.b16 %v316
    %v2420 = vunpack.c.l.b16 %v317
    %v2421 = vunpack.c.h.b16 %v317
    %v2422 = vunpack.c.l.b16 %v318
    %v2423 = vunpack.c.h.b16 %v318
    %v2424 = vunpack.c.l.b16 %v319
    %v2425 = vunpack.c.h.b16 %v319
    %v2426 = vunpack.c.l.b16 %v320
    %v2427 = vunpack.c.h.b16 %v320
    %v2428 = vunpack.c.l.b16 %v321
    %v2429 = vunpack.c.h.b16 %v321
    %v2430 = vunpack.c.l.b16 %v322
    %v2431 = vunpack.c.h.b16 %v322
    %v2432 = vunpack.c.l.b16 %v323
    %v2433 = vunpack.c.h.b16 %v323
    %v2434 = vunpack.c.l.b16 %v324
    %v2435 = vunpack.c.h.b16 %v324
    %v2436 = vunpack.c.l.b16 %v325
    %v2437 = vunpack.c.h.b16 %v325
    %v2438 = vunpack.c.l.b16 %v326
    %v2439 = vunpack.c.h.b16 %v326
    %v2440 = vunpack.c.l.b16 %v327
    %v2441 = vunpack.c.h.b16 %v327
    %v2442 = vunpack.c.l.b16 %v328
    %v2443 = vunpack.c.h.b16 %v328
    %v2444 = vunpack.c.l.b16 %v329
    %v2445 = vunpack.c.h.b16 %v329
    %v2446 = vunpack.c.l.b16 %v330
    %v2447 = vunpack.c.h.b16 %v330
    %v2448 = vunpack.c.l.b16 %v331
    %v2449 = vunpack.c.h.b16 %v331
    %v2450 = vunpack.c.l.b16 %v332
    %v2451 = vunpack.c.h.b16 %v332
    %v2452 = vunpack.c.l.b16 %v333
    %v2453 = vunpack.c.h.b16 %v333
    %v2454 = vunpack.c.l.b16 %v334
    %v2455 = vunpack.c.h.b16 %v334
    %v2456 = vunpack.c.l.b16 %v335
    %v2457 = vunpack.c.h.b16 %v335
    %v2458 = vunpack.c.l.b16 %v336
    %v2459 = vunpack.c.h.b16 %v336
    %v2460 = vunpack.c.l.b16 %v337
    %v2461 = vunpack.c.h.b16 %v337
    %v2462 = vunpack.c.l.b16 %v338
    %v2463 = vunpack.c.h.b16 %v338
    %v2464 = vunpack.c.l.b16 %v339
    %v2465 = vunpack.c.h.b16 %v339
    %v2466 = vunpack.c.l.b16 %v340
    %v2467 = vunpack.c.h.b16 %v340
    %v2468 = vunpack.c.l.b16 %v341
    %v2469 = vunpack.c.h.b16 %v341
    %v2470 = vunpack.c.l.b16 %v342
    %v2471 = vunpack.c.h.b16 %v342
    %v2472 = vunpack.c.l.b16 %v343
    %v2473 = vunpack.c.h.b16 %v343
    %v2474 = vunpack.c.l.b16 %v344
    %v2475 = vunpack.c.h.b16 %v344
    %v2476 = vunpack.c.l.b16 %v345
    %v2477 = vunpack.c.h.b16 %v345
    %v2478 = vunpack.c.l.b16 %v346
    %v2479 = vunpack.c.h.b16 %v346
    %v2480 = vunpack.c.l.b16 %v347
    %v2481 = vunpack.c.h.b16 %v347
    %v2482 = vunpack.c.l.b16 %v348
    %v2483 = vunpack.c.h.b16 %v348
    %v2484 = vunpack.c.l.b16 %v349
    %v2485 = vunpack.c.h.b16 %v349
    %v2486 = vunpack.c.l.b16 %v350
    %v2487 = vunpack.c.h.b16 %v350
    %v2488 = vunpack.c.l.b16 %v351
    %v2489 = vunpack.c.h.b16 %v351
    %v2490 = vunpack.c.l.b16 %v352
    %v2491 = vunpack.c.h.b16 %v352
    %v2492 = vunpack.c.l.b16 %v353
    %v2493 = vunpack.c.h.b16 %v353
    %v2494 = vunpack.c.l.b16 %v354
    %v2495 = vunpack.c.h.b16 %v354
    %v2496 = vunpack.c.l.b16 %v355
    %v2497 = vunpack.c.h.b16 %v355
    %v2498 = vunpack.c.l.b16 %v356
    %v2499 = vunpack.c.h.b16 %v356
    %v2500 = vunpack.c.l.b16 %v357
    %v2501 = vunpack.c.h.b16 %v357
    %v2502 = vunpack.c.l.b16 %v358
    %v2503 = vunpack.c.h.b16 %v358
    %v2504 = vunpack.c.l.b16 %v359
    %v2505 = vunpack.c.h.b16 %v359
    %v2506 = vunpack.c.l.b16 %v360
    %v2507 = vunpack.c.h.b16 %v360
    %v2508 = vunpack.c.l.b16 %v361
    %v2509 = vunpack.c.h.b16 %v361
    %v2510 = vunpack.c.l.b16 %v362
    %v2511 = vunpack.c.h.b16 %v362
    %v2512 = vunpack.c.l.b16 %v363
    %v2513 = vunpack.c.h.b16 %v363
    %v2514 = vunpack.c.l.b16 %v364
    %v2515 = vunpack.c.h.b16 %v364
    %v2516 = vunpack.c.l.b16 %v365
    %v2517 = vunpack.c.h.b16 %v365
    %v2518 = vunpack.c.l.b16 %v366
    %v2519 = vunpack.c.h.b16 %v366
    %v2520 = vunpack.c.l.b16 %v367
    %v2521 = vunpack.c.h.b16 %v367
    %v2522 = vunpack.c.l.b16 %v368
    %v2523 = vunpack.c.h.b16 %v368
    %v2524 = vunpack.c.l.b16 %v369
    %v2525 = vunpack.c.h.b16 %v369
    %v2526 = vunpack.c.l.b16 %v370
    %v2527 = vunpack.c.h.b16 %v370
    %v2528 = vunpack.c.l.b16 %v371
    %v2529 = vunpack.c.h.b16 %v371
    %v2530 = vunpack.c.l.b16 %v372
    %v2531 = vunpack.c.h.b16 %v372
    %v2532 = vunpack.c.l.b16 %v373
    %v2533 = vunpack.c.h.b16 %v373
    %v2534 = vunpack.c.l.b16 %v374
    %v2535 = vunpack.c.h.b16 %v374
    %v2536 = vunpack.c.l.b16 %v375
    %v2537 = vunpack.c.h.b16 %v375
    %v2538 = vunpack.c.l.b16 %v376
    %v2539 = vunpack.c.h.b16 %v376
    %v2540 = vunpack.c.l.b16 %v377
    %v2541 = vunpack.c.h.b16 %v377
    %v2542 = vunpack.c.l.b16 %v378
    %v2543 = vunpack.c.h.b16 %v378
    %v2544 = vunpack.c.l.b16 %v379
    %v2545 = vunpack.c.h.b16 %v379
    %v2546 = vunpack.c.l.b16 %v380
    %v2547 = vunpack.c.h.b16 %v380
    %v2548 = vunpack.c.l.b16 %v381
    %v2549 = vunpack.c.h.b16 %v381
    %v2550 = vunpack.c.l.b16 %v382
    %v2551 = vunpack.c.h.b16 %v382
    %v2552 = vunpack.c.l.b16 %v383
    %v2553 = vunpack.c.h.b16 %v383
    %v2554 = vunpack.c.l.b16 %v384
    %v2555 = vunpack.c.h.b16 %v384
    %v2556 = vunpack.c.l.b16 %v385
    %v2557 = vunpack.c.h.b16 %v385
    %v2558 = vunpack.c.l.b16 %v386
    %v2559 = vunpack.c.h.b16 %v386
    %v2560 = vunpack.c.l.b16 %v387
    %v2561 = vunpack.c.h.b16 %v387
    %v2562 = vunpack.c.l.b16 %v388
    %v2563 = vunpack.c.h.b16 %v388
    %v2564 = vunpack.c.l.b16 %v389
    %v2565 = vunpack.c.h.b16 %v389
    %v2566 = vpack.c.b16 %v2314, %v2310
    %v2567 = vpack.c.b16 %v2315, %v2311
    %v2568 = vpack.c.b16 %v2316, %v2312
    %v2569 = vpack.c.b16 %v2317, %v2313
    %v2570 = vpack.c.b16 %v2322, %v2318
    %v2571 = vpack.c.b16 %v2323, %v2319
    %v2572 = vpack.c.b16 %v2324, %v2320
    %v2573 = vpack.c.b16 %v2325, %v2321
    %v2574 = vpack.c.b16 %v2330, %v2326
    %v2575 = vpack.c.b16 %v2331, %v2327
    %v2576 = vpack.c.b16 %v2332, %v2328
    %v2577 = vpack.c.b16 %v2333, %v2329
    %v2578 = vpack.c.b16 %v2338, %v2334
    %v2579 = vpack.c.b16 %v2339, %v2335
    %v2580 = vpack.c.b16 %v2340, %v2336
    %v2581 = vpack.c.b16 %v2341, %v2337
    %v2582 = vpack.c.b16 %v2346, %v2342
    %v2583 = vpack.c.b16 %v2347, %v2343
    %v2584 = vpack.c.b16 %v2348, %v2344
    %v2585 = vpack.c.b16 %v2349, %v2345
    %v2586 = vpack.c.b16 %v2354, %v2350
    %v2587 = vpack.c.b16 %v2355, %v2351
    %v2588 = vpack.c.b16 %v2356, %v2352
    %v2589 = vpack.c.b16 %v2357, %v2353
    %v2590 = vpack.c.b16 %v2362, %v2358
    %v2591 = vpack.c.b16 %v2363, %v2359
    %v2592 = vpack.c.b16 %v2364, %v2360
    %v2593 = vpack.c.b16 %v2365, %v2361
    %v2594 = vpack.c.b16 %v2370, %v2366
    %v2595 = vpack.c.b16 %v2371, %v2367
    %v2596 = vpack.c.b16 %v2372, %v2368
    %v2597 = vpack.c.b16 %v2373, %v2369
    %v2598 = vpack.c.b16 %v2378, %v2374
    %v2599 = vpack.c.b16 %v2379, %v2375
    %v2600 = vpack.c.b16 %v2380, %v2376
    %v2601 = vpack.c.b16 %v2381, %v2377
    %v2602 = vpack.c.b16 %v2386, %v2382
    %v2603 = vpack.c.b16 %v2387, %v2383
    %v2604 = vpack.c.b16 %v2388, %v2384
    %v2605 = vpack.c.b16 %v2389, %v2385
    %v2606 = vpack.c.b16 %v2394, %v2390
    %v2607 = vpack.c.b16 %v2395, %v2391
    %v2608 = vpack.c.b16 %v2396, %v2392
    %v2609 = vpack.c.b16 %v2397, %v2393
    %v2610 = vpack.c.b16 %v2402, %v2398
    %v2611 = vpack.c.b16 %v2403, %v2399
    %v2612 = vpack.c.b16 %v2404, %v2400
    %v2613 = vpack.c.b16 %v2405, %v2401
    %v2614 = vpack.c.b16 %v2410, %v2406
    %v2615 = vpack.c.b16 %v2411, %v2407
    %v2616 = vpack.c.b16 %v2412, %v2408
    %v2617 = vpack.c.b16 %v2413, %v2409
    %v2618 = vpack.c.b16 %v2418, %v2414
    %v2619 = vpack.c.b16 %v2419, %v2415
    %v2620 = vpack.c.b16 %v2420, %v2416
    %v2621 = vpack.c.b16 %v2421, %v2417
    %v2622 = vpack.c.b16 %v2426, %v2422
    %v2623 = vpack.c.b16 %v2427, %v2423
    %v2624 = vpack.c.b16 %v2428, %v2424
    %v2625 = vpack.c.b16 %v2429, %v2425
    %v2626 = vpack.c.b16 %v2434, %v2430
    %v2627 = vpack.c.b16 %v2435, %v2431
    %v2628 = vpack.c.b16 %v2436, %v2432
    %v2629 = vpack.c.b16 %v2437, %v2433
    %v2630 = vpack.c.b16 %v2442, %v2438
    %v2631 = vpack.c.b16 %v2443, %v2439
    %v2632 = vpack.c.b16 %v2444, %v2440
    %v2633 = vpack.c.b16 %v2445, %v2441
    %v2634 = vpack.c.b16 %v2450, %v2446
    %v2635 = vpack.c.b16 %v2451, %v2447
    %v2636 = vpack.c.b16 %v2452, %v2448
    %v2637 = vpack.c.b16 %v2453, %v2449
    %v2638 = vpack.c.b16 %v2458, %v2454
    %v2639 = vpack.c.b16 %v2459, %v2455
    %v2640 = vpack.c.b16 %v2460, %v2456
    %v2641 = vpack.c.b16 %v2461, %v2457
    %v2642 = vpack.c.b16 %v2466, %v2462
    %v2643 = vpack.c.b16 %v2467, %v2463
    %v2644 = vpack.c.b16 %v2468, %v2464
    %v2645 = vpack.c.b16 %v2469, %v2465
    %v2646 = vpack.c.b16 %v2474, %v2470
    %v2647 = vpack.c.b16 %v2475, %v2471
    %v2648 = vpack.c.b16 %v2476, %v2472
    %v2649 = vpack.c.b16 %v2477, %v2473
    %v2650 = vpack.c.b16 %v2482, %v2478
    %v2651 = vpack.c.b16 %v2483, %v2479
    %v2652 = vpack.c.b16 %v2484, %v2480
    %v2653 = vpack.c.b16 %v2485, %v2481
    %v2654 = vpack.c.b16 %v2490, %v2486
    %v2655 = vpack.c.b16 %v2491, %v2487
    %v2656 = vpack.c.b16 %v2492, %v2488
    %v2657 = vpack.c.b16 %v2493, %v2489
    %v2658 = vpack.c.b16 %v2498, %v2494
    %v2659 = vpack.c.b16 %v2499, %v2495
    %v2660 = vpack.c.b16 %v2500, %v2496
    %v2661 = vpack.c.b16 %v2501, %v2497
    %v2662 = vpack.c.b16 %v2506, %v2502
    %v2663 = vpack.c.b16 %v2507, %v2503
    %v2664 = vpack.c.b16 %v2508, %v2504
    %v2665 = vpack.c.b16 %v2509, %v2505
    %v2666 = vpack.c.b16 %v2514, %v2510
    %v2667 = vpack.c.b16 %v2515, %v2511
    %v2668 = vpack.c.b16 %v2516, %v2512
    %v2669 = vpack.c.b16 %v2517, %v2513
    %v2670 = vpack.c.b16 %v2522, %v2518
    %v2671 = vpack.c.b16 %v2523, %v2519
    %v2672 = vpack.c.b16 %v2524, %v2520
    %v2673 = vpack.c.b16 %v2525, %v2521
    %v2674 = vpack.c.b16 %v2530, %v2526
    %v2675 = vpack.c.b16 %v2531, %v2527
    %v2676 = vpack.c.b16 %v2532, %v2528
    %v2677 = vpack.c.b16 %v2533, %v2529
    %v2678 = vpack.c.b16 %v2538, %v2534
    %v2679 = vpack.c.b16 %v2539, %v2535
    %v2680 = vpack.c.b16 %v2540, %v2536
    %v2681 = vpack.c.b16 %v2541, %v2537
    %v2682 = vpack.c.b16 %v2546, %v2542
    %v2683 = vpack.c.b16 %v2547, %v2543
    %v2684 = vpack.c.b16 %v2548, %v2544
    %v2685 = vpack.c.b16 %v2549, %v2545
    %v2686 = vpack.c.b16 %v2554, %v2550
    %v2687 = vpack.c.b16 %v2555, %v2551
    %v2688 = vpack.c.b16 %v2556, %v2552
    %v2689 = vpack.c.b16 %v2557, %v2553
    %v2690 = vpack.c.b16 %v2562, %v2558
    %v2691 = vpack.c.b16 %v2563, %v2559
    %v2692 = vpack.c.b16 %v2564, %v2560
    %v2693 = vpack.c.b16 %v2565, %v2561
    %2822 = vmatprep.subr.bf16.mxu0 %v2567
    %2823 = vmatpush1.bf16.msra.mxu0 %v2566
    %2824 = vmatprep.subr.bf16.mxu0 %v2571
    %2825 = vmatpush1.bf16.msra.mxu0 %v2570
    %2826 = vmatprep.subr.bf16.mxu0 %v2575
    %2827 = vmatpush1.bf16.msra.mxu0 %v2574
    %2828 = vmatprep.subr.bf16.mxu0 %v2579
    %2829 = vmatpush1.bf16.msra.mxu0 %v2578
    %2830 = vmatprep.subr.bf16.mxu0 %v2583
    %2831 = vmatpush1.bf16.msra.mxu0 %v2582
    %2832 = vmatprep.subr.bf16.mxu0 %v2587
    %2833 = vmatpush1.bf16.msra.mxu0 %v2586
    %2834 = vmatprep.subr.bf16.mxu0 %v2591
    %2835 = vmatpush1.bf16.msra.mxu0 %v2590
    %2836 = vmatprep.subr.bf16.mxu0 %v2595
    %2837 = vmatpush1.bf16.msra.mxu0 %v2594
    %2838 = vmatprep.subr.bf16.mxu0 %v2599
    %2839 = vmatpush1.bf16.msra.mxu0 %v2598
    %2840 = vmatprep.subr.bf16.mxu0 %v2603
    %2841 = vmatpush1.bf16.msra.mxu0 %v2602
    %2842 = vmatprep.subr.bf16.mxu0 %v2607
    %2843 = vmatpush1.bf16.msra.mxu0 %v2606
    %2844 = vmatprep.subr.bf16.mxu0 %v2611
    %2845 = vmatpush1.bf16.msra.mxu0 %v2610
    %2846 = vmatprep.subr.bf16.mxu0 %v2615
    %2847 = vmatpush1.bf16.msra.mxu0 %v2614
    %2848 = vmatprep.subr.bf16.mxu0 %v2619
    %2849 = vmatpush1.bf16.msra.mxu0 %v2618
    %2850 = vmatprep.subr.bf16.mxu0 %v2623
    %2851 = vmatpush1.bf16.msra.mxu0 %v2622
    %2852 = vmatprep.subr.bf16.mxu0 %v2627
    %2853 = vmatpush1.bf16.msra.mxu0 %v2626
    %2854 = vmatprep.mubr.bf16.mxu0 %v2158
    %2855 = vmatmul.mubr.bf16.gmra.mrb[0].mxu0 %v2157
    %v2856 = vpop.f32.mrb[0].mxu0
    %v2857 = vadd.f32 %v2165, %v2856
    %v2858 = vpop.f32.mrb[0].mxu0
    %v2859 = vadd.f32 %v2169, %v2858
    %v2860 = vpop.f32.mrb[0].mxu0
    %v2861 = vadd.f32 %v2165, %v2860
    %v2862 = vpop.f32.mrb[0].mxu0
    %v2863 = vadd.f32 %v2169, %v2862
    %2864 = vdwg.mxu0
    %2865 = vmatprep.subr.bf16.mxu0 %v2631
    %2866 = vmatpush1.bf16.msra.mxu0 %v2630
    %2867 = vmatprep.subr.bf16.mxu0 %v2635
    %2868 = vmatpush1.bf16.msra.mxu0 %v2634
    %2869 = vmatprep.subr.bf16.mxu0 %v2639
    %2870 = vmatpush1.bf16.msra.mxu0 %v2638
    %2871 = vmatprep.subr.bf16.mxu0 %v2643
    %2872 = vmatpush1.bf16.msra.mxu0 %v2642
    %2873 = vmatprep.subr.bf16.mxu0 %v2647
    %2874 = vmatpush1.bf16.msra.mxu0 %v2646
    %2875 = vmatprep.subr.bf16.mxu0 %v2651
    %2876 = vmatpush1.bf16.msra.mxu0 %v2650
    %2877 = vmatprep.subr.bf16.mxu0 %v2655
    %2878 = vmatpush1.bf16.msra.mxu0 %v2654
    %2879 = vmatprep.subr.bf16.mxu0 %v2659
    %2880 = vmatpush1.bf16.msra.mxu0 %v2658
    %2881 = vmatprep.subr.bf16.mxu0 %v2663
    %2882 = vmatpush1.bf16.msra.mxu0 %v2662
    %2883 = vmatprep.subr.bf16.mxu0 %v2667
    %2884 = vmatpush1.bf16.msra.mxu0 %v2666
    %2885 = vmatprep.subr.bf16.mxu0 %v2671
    %2886 = vmatpush1.bf16.msra.mxu0 %v2670
    %2887 = vmatprep.subr.bf16.mxu0 %v2675
    %2888 = vmatpush1.bf16.msra.mxu0 %v2674
    %2889 = vmatprep.subr.bf16.mxu0 %v2679
    %2890 = vmatpush1.bf16.msra.mxu0 %v2678
    %2891 = vmatprep.subr.bf16.mxu0 %v2683
    %2892 = vmatpush1.bf16.msra.mxu0 %v2682
    %2893 = vmatprep.subr.bf16.mxu0 %v2687
    %2894 = vmatpush1.bf16.msra.mxu0 %v2686
    %2895 = vmatprep.subr.bf16.mxu0 %v2691
    %2896 = vmatpush1.bf16.msra.mxu0 %v2690
    %2897 = vmatprep.mubr.bf16.mxu0 %v2160
    %2898 = vmatmul.mubr.bf16.gmra.mrb[0].mxu0 %v2159
    %v2899 = vpop.f32.mrb[0].mxu0
    %v2900 = vadd.f32 %v2857, %v2899
    %v2901 = vpop.f32.mrb[0].mxu0
    %v2902 = vadd.f32 %v2859, %v2901
    %v2903 = vpop.f32.mrb[0].mxu0
    %v2904 = vadd.f32 %v2861, %v2903
    %v2905 = vpop.f32.mrb[0].mxu0
    %v2906 = vadd.f32 %v2863, %v2905
    %2907 = vdwg.mxu0
    %2908 = vmatprep.subr.bf16.mxu0 %v2569
    %2909 = vmatpush1.bf16.msra.mxu0 %v2568
    %2910 = vmatprep.subr.bf16.mxu0 %v2573
    %2911 = vmatpush1.bf16.msra.mxu0 %v2572
    %2912 = vmatprep.subr.bf16.mxu0 %v2577
    %2913 = vmatpush1.bf16.msra.mxu0 %v2576
    %2914 = vmatprep.subr.bf16.mxu0 %v2581
    %2915 = vmatpush1.bf16.msra.mxu0 %v2580
    %2916 = vmatprep.subr.bf16.mxu0 %v2585
    %2917 = vmatpush1.bf16.msra.mxu0 %v2584
    %2918 = vmatprep.subr.bf16.mxu0 %v2589
    %2919 = vmatpush1.bf16.msra.mxu0 %v2588
    %2920 = vmatprep.subr.bf16.mxu0 %v2593
    %2921 = vmatpush1.bf16.msra.mxu0 %v2592
    %2922 = vmatprep.subr.bf16.mxu0 %v2597
    %2923 = vmatpush1.bf16.msra.mxu0 %v2596
    %2924 = vmatprep.subr.bf16.mxu0 %v2601
    %2925 = vmatpush1.bf16.msra.mxu0 %v2600
    %2926 = vmatprep.subr.bf16.mxu0 %v2605
    %2927 = vmatpush1.bf16.msra.mxu0 %v2604
    %2928 = vmatprep.subr.bf16.mxu0 %v2609
    %2929 = vmatpush1.bf16.msra.mxu0 %v2608
    %2930 = vmatprep.subr.bf16.mxu0 %v2613
    %2931 = vmatpush1.bf16.msra.mxu0 %v2612
    %2932 = vmatprep.subr.bf16.mxu0 %v2617
    %2933 = vmatpush1.bf16.msra.mxu0 %v2616
    %2934 = vmatprep.subr.bf16.mxu0 %v2621
    %2935 = vmatpush1.bf16.msra.mxu0 %v2620
    %2936 = vmatprep.subr.bf16.mxu0 %v2625
    %2937 = vmatpush1.bf16.msra.mxu0 %v2624
    %2938 = vmatprep.subr.bf16.mxu0 %v2629
    %2939 = vmatpush1.bf16.msra.mxu0 %v2628
    %2940 = vmatprep.mubr.bf16.mxu0 %v2158
    %2941 = vmatmul.mubr.bf16.gmra.mrb[0].mxu0 %v2157
    %v2942 = vpop.f32.mrb[0].mxu0
    %v2943 = vadd.f32 %v2173, %v2942
    %v2944 = vpop.f32.mrb[0].mxu0
    %v2945 = vadd.f32 %v2177, %v2944
    %v2946 = vpop.f32.mrb[0].mxu0
    %v2947 = vadd.f32 %v2173, %v2946
    %v2948 = vpop.f32.mrb[0].mxu0
    %v2949 = vadd.f32 %v2177, %v2948
    %2950 = vdwg.mxu0
    %2951 = vmatprep.subr.bf16.mxu0 %v2633
    %2952 = vmatpush1.bf16.msra.mxu0 %v2632
    %2953 = vmatprep.subr.bf16.mxu0 %v2637
    %2954 = vmatpush1.bf16.msra.mxu0 %v2636
    %2955 = vmatprep.subr.bf16.mxu0 %v2641
    %2956 = vmatpush1.bf16.msra.mxu0 %v2640
    %2957 = vmatprep.subr.bf16.mxu0 %v2645
    %2958 = vmatpush1.bf16.msra.mxu0 %v2644
    %2959 = vmatprep.subr.bf16.mxu0 %v2649
    %2960 = vmatpush1.bf16.msra.mxu0 %v2648
    %2961 = vmatprep.subr.bf16.mxu0 %v2653
    %2962 = vmatpush1.bf16.msra.mxu0 %v2652
    %2963 = vmatprep.subr.bf16.mxu0 %v2657
    %2964 = vmatpush1.bf16.msra.mxu0 %v2656
    %2965 = vmatprep.subr.bf16.mxu0 %v2661
    %2966 = vmatpush1.bf16.msra.mxu0 %v2660
    %2967 = vmatprep.subr.bf16.mxu0 %v2665
    %2968 = vmatpush1.bf16.msra.mxu0 %v2664
    %2969 = vmatprep.subr.bf16.mxu0 %v2669
    %2970 = vmatpush1.bf16.msra.mxu0 %v2668
    %2971 = vmatprep.subr.bf16.mxu0 %v2673
    %2972 = vmatpush1.bf16.msra.mxu0 %v2672
    %2973 = vmatprep.subr.bf16.mxu0 %v2677
    %2974 = vmatpush1.bf16.msra.mxu0 %v2676
    %2975 = vmatprep.subr.bf16.mxu0 %v2681
    %2976 = vmatpush1.bf16.msra.mxu0 %v2680
    %2977 = vmatprep.subr.bf16.mxu0 %v2685
    %2978 = vmatpush1.bf16.msra.mxu0 %v2684
    %2979 = vmatprep.subr.bf16.mxu0 %v2689
    %2980 = vmatpush1.bf16.msra.mxu0 %v2688
    %2981 = vmatprep.subr.bf16.mxu0 %v2693
    %2982 = vmatpush1.bf16.msra.mxu0 %v2692
    %2983 = vmatprep.mubr.bf16.mxu0 %v2160
    %2984 = vmatmul.mubr.bf16.gmra.mrb[0].mxu0 %v2159
    %v2985 = vpop.f32.mrb[0].mxu0
    %v2986 = vadd.f32 %v2943, %v2985
    %v2987 = vpop.f32.mrb[0].mxu0
    %v2988 = vadd.f32 %v2945, %v2987
    %v2989 = vpop.f32.mrb[0].mxu0
    %v2990 = vadd.f32 %v2947, %v2989
    %v2991 = vpop.f32.mrb[0].mxu0
    %v2992 = vadd.f32 %v2949, %v2991
    %2993 = vdwg.mxu0
    %v2994 = vpack.c.bf16 %v2904, %v2900
    %v2995 = vpack.c.bf16 %v2906, %v2902
    %v2996 = vpack.c.bf16 %v2990, %v2986
    %v2997 = vpack.c.bf16 %v2992, %v2988
    %v2999 = vlaneseq
    %v3000 = vshrl.u32 %v2999, 7
    %v3001 = vsub.s32 0, %v3000
    %v3002 = vrot.slane %v1270, %v3001
    %v3003 = vlaneseq
    %v3004 = vshrl.u32 %v3003, 7
    %v3005 = vsub.s32 1, %v3004
    %v3006 = vrot.slane %v1270, %v3005
    %v3007 = vlaneseq
    %v3008 = vshrl.u32 %v3007, 7
    %v3009 = vsub.s32 2, %v3008
    %v3010 = vrot.slane %v1270, %v3009
    %v3011 = vlaneseq
    %v3012 = vshrl.u32 %v3011, 7
    %v3013 = vsub.s32 3, %v3012
    %v3014 = vrot.slane %v1270, %v3013
    %v3147 = vunpack.c.l.b16 %v390
    %v3148 = vunpack.c.h.b16 %v390
    %v3149 = vunpack.c.l.b16 %v391
    %v3150 = vunpack.c.h.b16 %v391
    %v3151 = vunpack.c.l.b16 %v392
    %v3152 = vunpack.c.h.b16 %v392
    %v3153 = vunpack.c.l.b16 %v393
    %v3154 = vunpack.c.h.b16 %v393
    %v3155 = vunpack.c.l.b16 %v394
    %v3156 = vunpack.c.h.b16 %v394
    %v3157 = vunpack.c.l.b16 %v395
    %v3158 = vunpack.c.h.b16 %v395
    %v3159 = vunpack.c.l.b16 %v396
    %v3160 = vunpack.c.h.b16 %v396
    %v3161 = vunpack.c.l.b16 %v397
    %v3162 = vunpack.c.h.b16 %v397
    %v3163 = vunpack.c.l.b16 %v398
    %v3164 = vunpack.c.h.b16 %v398
    %v3165 = vunpack.c.l.b16 %v399
    %v3166 = vunpack.c.h.b16 %v399
    %v3167 = vunpack.c.l.b16 %v400
    %v3168 = vunpack.c.h.b16 %v400
    %v3169 = vunpack.c.l.b16 %v401
    %v3170 = vunpack.c.h.b16 %v401
    %v3171 = vunpack.c.l.b16 %v402
    %v3172 = vunpack.c.h.b16 %v402
    %v3173 = vunpack.c.l.b16 %v403
    %v3174 = vunpack.c.h.b16 %v403
    %v3175 = vunpack.c.l.b16 %v404
    %v3176 = vunpack.c.h.b16 %v404
    %v3177 = vunpack.c.l.b16 %v405
    %v3178 = vunpack.c.h.b16 %v405
    %v3179 = vunpack.c.l.b16 %v406
    %v3180 = vunpack.c.h.b16 %v406
    %v3181 = vunpack.c.l.b16 %v407
    %v3182 = vunpack.c.h.b16 %v407
    %v3183 = vunpack.c.l.b16 %v408
    %v3184 = vunpack.c.h.b16 %v408
    %v3185 = vunpack.c.l.b16 %v409
    %v3186 = vunpack.c.h.b16 %v409
    %v3187 = vunpack.c.l.b16 %v410
    %v3188 = vunpack.c.h.b16 %v410
    %v3189 = vunpack.c.l.b16 %v411
    %v3190 = vunpack.c.h.b16 %v411
    %v3191 = vunpack.c.l.b16 %v412
    %v3192 = vunpack.c.h.b16 %v412
    %v3193 = vunpack.c.l.b16 %v413
    %v3194 = vunpack.c.h.b16 %v413
    %v3195 = vunpack.c.l.b16 %v414
    %v3196 = vunpack.c.h.b16 %v414
    %v3197 = vunpack.c.l.b16 %v415
    %v3198 = vunpack.c.h.b16 %v415
    %v3199 = vunpack.c.l.b16 %v416
    %v3200 = vunpack.c.h.b16 %v416
    %v3201 = vunpack.c.l.b16 %v417
    %v3202 = vunpack.c.h.b16 %v417
    %v3203 = vunpack.c.l.b16 %v418
    %v3204 = vunpack.c.h.b16 %v418
    %v3205 = vunpack.c.l.b16 %v419
    %v3206 = vunpack.c.h.b16 %v419
    %v3207 = vunpack.c.l.b16 %v420
    %v3208 = vunpack.c.h.b16 %v420
    %v3209 = vunpack.c.l.b16 %v421
    %v3210 = vunpack.c.h.b16 %v421
    %v3211 = vunpack.c.l.b16 %v422
    %v3212 = vunpack.c.h.b16 %v422
    %v3213 = vunpack.c.l.b16 %v423
    %v3214 = vunpack.c.h.b16 %v423
    %v3215 = vunpack.c.l.b16 %v424
    %v3216 = vunpack.c.h.b16 %v424
    %v3217 = vunpack.c.l.b16 %v425
    %v3218 = vunpack.c.h.b16 %v425
    %v3219 = vunpack.c.l.b16 %v426
    %v3220 = vunpack.c.h.b16 %v426
    %v3221 = vunpack.c.l.b16 %v427
    %v3222 = vunpack.c.h.b16 %v427
    %v3223 = vunpack.c.l.b16 %v428
    %v3224 = vunpack.c.h.b16 %v428
    %v3225 = vunpack.c.l.b16 %v429
    %v3226 = vunpack.c.h.b16 %v429
    %v3227 = vunpack.c.l.b16 %v430
    %v3228 = vunpack.c.h.b16 %v430
    %v3229 = vunpack.c.l.b16 %v431
    %v3230 = vunpack.c.h.b16 %v431
    %v3231 = vunpack.c.l.b16 %v432
    %v3232 = vunpack.c.h.b16 %v432
    %v3233 = vunpack.c.l.b16 %v433
    %v3234 = vunpack.c.h.b16 %v433
    %v3235 = vunpack.c.l.b16 %v434
    %v3236 = vunpack.c.h.b16 %v434
    %v3237 = vunpack.c.l.b16 %v435
    %v3238 = vunpack.c.h.b16 %v435
    %v3239 = vunpack.c.l.b16 %v436
    %v3240 = vunpack.c.h.b16 %v436
    %v3241 = vunpack.c.l.b16 %v437
    %v3242 = vunpack.c.h.b16 %v437
    %v3243 = vunpack.c.l.b16 %v438
    %v3244 = vunpack.c.h.b16 %v438
    %v3245 = vunpack.c.l.b16 %v439
    %v3246 = vunpack.c.h.b16 %v439
    %v3247 = vunpack.c.l.b16 %v440
    %v3248 = vunpack.c.h.b16 %v440
    %v3249 = vunpack.c.l.b16 %v441
    %v3250 = vunpack.c.h.b16 %v441
    %v3251 = vunpack.c.l.b16 %v442
    %v3252 = vunpack.c.h.b16 %v442
    %v3253 = vunpack.c.l.b16 %v443
    %v3254 = vunpack.c.h.b16 %v443
    %v3255 = vunpack.c.l.b16 %v444
    %v3256 = vunpack.c.h.b16 %v444
    %v3257 = vunpack.c.l.b16 %v445
    %v3258 = vunpack.c.h.b16 %v445
    %v3259 = vunpack.c.l.b16 %v446
    %v3260 = vunpack.c.h.b16 %v446
    %v3261 = vunpack.c.l.b16 %v447
    %v3262 = vunpack.c.h.b16 %v447
    %v3263 = vunpack.c.l.b16 %v448
    %v3264 = vunpack.c.h.b16 %v448
    %v3265 = vunpack.c.l.b16 %v449
    %v3266 = vunpack.c.h.b16 %v449
    %v3267 = vunpack.c.l.b16 %v450
    %v3268 = vunpack.c.h.b16 %v450
    %v3269 = vunpack.c.l.b16 %v451
    %v3270 = vunpack.c.h.b16 %v451
    %v3271 = vunpack.c.l.b16 %v452
    %v3272 = vunpack.c.h.b16 %v452
    %v3273 = vunpack.c.l.b16 %v453
    %v3274 = vunpack.c.h.b16 %v453
    %v3275 = vunpack.c.l.b16 %v454
    %v3276 = vunpack.c.h.b16 %v454
    %v3277 = vunpack.c.l.b16 %v455
    %v3278 = vunpack.c.h.b16 %v455
    %v3279 = vunpack.c.l.b16 %v456
    %v3280 = vunpack.c.h.b16 %v456
    %v3281 = vunpack.c.l.b16 %v457
    %v3282 = vunpack.c.h.b16 %v457
    %v3283 = vunpack.c.l.b16 %v458
    %v3284 = vunpack.c.h.b16 %v458
    %v3285 = vunpack.c.l.b16 %v459
    %v3286 = vunpack.c.h.b16 %v459
    %v3287 = vunpack.c.l.b16 %v460
    %v3288 = vunpack.c.h.b16 %v460
    %v3289 = vunpack.c.l.b16 %v461
    %v3290 = vunpack.c.h.b16 %v461
    %v3291 = vunpack.c.l.b16 %v462
    %v3292 = vunpack.c.h.b16 %v462
    %v3293 = vunpack.c.l.b16 %v463
    %v3294 = vunpack.c.h.b16 %v463
    %v3295 = vunpack.c.l.b16 %v464
    %v3296 = vunpack.c.h.b16 %v464
    %v3297 = vunpack.c.l.b16 %v465
    %v3298 = vunpack.c.h.b16 %v465
    %v3299 = vunpack.c.l.b16 %v466
    %v3300 = vunpack.c.h.b16 %v466
    %v3301 = vunpack.c.l.b16 %v467
    %v3302 = vunpack.c.h.b16 %v467
    %v3303 = vunpack.c.l.b16 %v468
    %v3304 = vunpack.c.h.b16 %v468
    %v3305 = vunpack.c.l.b16 %v469
    %v3306 = vunpack.c.h.b16 %v469
    %v3307 = vunpack.c.l.b16 %v470
    %v3308 = vunpack.c.h.b16 %v470
    %v3309 = vunpack.c.l.b16 %v471
    %v3310 = vunpack.c.h.b16 %v471
    %v3311 = vunpack.c.l.b16 %v472
    %v3312 = vunpack.c.h.b16 %v472
    %v3313 = vunpack.c.l.b16 %v473
    %v3314 = vunpack.c.h.b16 %v473
    %v3315 = vunpack.c.l.b16 %v474
    %v3316 = vunpack.c.h.b16 %v474
    %v3317 = vunpack.c.l.b16 %v475
    %v3318 = vunpack.c.h.b16 %v475
    %v3319 = vunpack.c.l.b16 %v476
    %v3320 = vunpack.c.h.b16 %v476
    %v3321 = vunpack.c.l.b16 %v477
    %v3322 = vunpack.c.h.b16 %v477
    %v3323 = vunpack.c.l.b16 %v478
    %v3324 = vunpack.c.h.b16 %v478
    %v3325 = vunpack.c.l.b16 %v479
    %v3326 = vunpack.c.h.b16 %v479
    %v3327 = vunpack.c.l.b16 %v480
    %v3328 = vunpack.c.h.b16 %v480
    %v3329 = vunpack.c.l.b16 %v481
    %v3330 = vunpack.c.h.b16 %v481
    %v3331 = vunpack.c.l.b16 %v482
    %v3332 = vunpack.c.h.b16 %v482
    %v3333 = vunpack.c.l.b16 %v483
    %v3334 = vunpack.c.h.b16 %v483
    %v3335 = vunpack.c.l.b16 %v484
    %v3336 = vunpack.c.h.b16 %v484
    %v3337 = vunpack.c.l.b16 %v485
    %v3338 = vunpack.c.h.b16 %v485
    %v3339 = vunpack.c.l.b16 %v486
    %v3340 = vunpack.c.h.b16 %v486
    %v3341 = vunpack.c.l.b16 %v487
    %v3342 = vunpack.c.h.b16 %v487
    %v3343 = vunpack.c.l.b16 %v488
    %v3344 = vunpack.c.h.b16 %v488
    %v3345 = vunpack.c.l.b16 %v489
    %v3346 = vunpack.c.h.b16 %v489
    %v3347 = vunpack.c.l.b16 %v490
    %v3348 = vunpack.c.h.b16 %v490
    %v3349 = vunpack.c.l.b16 %v491
    %v3350 = vunpack.c.h.b16 %v491
    %v3351 = vunpack.c.l.b16 %v492
    %v3352 = vunpack.c.h.b16 %v492
    %v3353 = vunpack.c.l.b16 %v493
    %v3354 = vunpack.c.h.b16 %v493
    %v3355 = vunpack.c.l.b16 %v494
    %v3356 = vunpack.c.h.b16 %v494
    %v3357 = vunpack.c.l.b16 %v495
    %v3358 = vunpack.c.h.b16 %v495
    %v3359 = vunpack.c.l.b16 %v496
    %v3360 = vunpack.c.h.b16 %v496
    %v3361 = vunpack.c.l.b16 %v497
    %v3362 = vunpack.c.h.b16 %v497
    %v3363 = vunpack.c.l.b16 %v498
    %v3364 = vunpack.c.h.b16 %v498
    %v3365 = vunpack.c.l.b16 %v499
    %v3366 = vunpack.c.h.b16 %v499
    %v3367 = vunpack.c.l.b16 %v500
    %v3368 = vunpack.c.h.b16 %v500
    %v3369 = vunpack.c.l.b16 %v501
    %v3370 = vunpack.c.h.b16 %v501
    %v3371 = vunpack.c.l.b16 %v502
    %v3372 = vunpack.c.h.b16 %v502
    %v3373 = vunpack.c.l.b16 %v503
    %v3374 = vunpack.c.h.b16 %v503
    %v3375 = vunpack.c.l.b16 %v504
    %v3376 = vunpack.c.h.b16 %v504
    %v3377 = vunpack.c.l.b16 %v505
    %v3378 = vunpack.c.h.b16 %v505
    %v3379 = vunpack.c.l.b16 %v506
    %v3380 = vunpack.c.h.b16 %v506
    %v3381 = vunpack.c.l.b16 %v507
    %v3382 = vunpack.c.h.b16 %v507
    %v3383 = vunpack.c.l.b16 %v508
    %v3384 = vunpack.c.h.b16 %v508
    %v3385 = vunpack.c.l.b16 %v509
    %v3386 = vunpack.c.h.b16 %v509
    %v3387 = vunpack.c.l.b16 %v510
    %v3388 = vunpack.c.h.b16 %v510
    %v3389 = vunpack.c.l.b16 %v511
    %v3390 = vunpack.c.h.b16 %v511
    %v3391 = vunpack.c.l.b16 %v512
    %v3392 = vunpack.c.h.b16 %v512
    %v3393 = vunpack.c.l.b16 %v513
    %v3394 = vunpack.c.h.b16 %v513
    %v3395 = vunpack.c.l.b16 %v514
    %v3396 = vunpack.c.h.b16 %v514
    %v3397 = vunpack.c.l.b16 %v515
    %v3398 = vunpack.c.h.b16 %v515
    %v3399 = vunpack.c.l.b16 %v516
    %v3400 = vunpack.c.h.b16 %v516
    %v3401 = vunpack.c.l.b16 %v517
    %v3402 = vunpack.c.h.b16 %v517
    %v3403 = vpack.c.b16 %v3151, %v3147
    %v3404 = vpack.c.b16 %v3152, %v3148
    %v3405 = vpack.c.b16 %v3153, %v3149
    %v3406 = vpack.c.b16 %v3154, %v3150
    %v3407 = vpack.c.b16 %v3159, %v3155
    %v3408 = vpack.c.b16 %v3160, %v3156
    %v3409 = vpack.c.b16 %v3161, %v3157
    %v3410 = vpack.c.b16 %v3162, %v3158
    %v3411 = vpack.c.b16 %v3167, %v3163
    %v3412 = vpack.c.b16 %v3168, %v3164
    %v3413 = vpack.c.b16 %v3169, %v3165
    %v3414 = vpack.c.b16 %v3170, %v3166
    %v3415 = vpack.c.b16 %v3175, %v3171
    %v3416 = vpack.c.b16 %v3176, %v3172
    %v3417 = vpack.c.b16 %v3177, %v3173
    %v3418 = vpack.c.b16 %v3178, %v3174
    %v3419 = vpack.c.b16 %v3183, %v3179
    %v3420 = vpack.c.b16 %v3184, %v3180
    %v3421 = vpack.c.b16 %v3185, %v3181
    %v3422 = vpack.c.b16 %v3186, %v3182
    %v3423 = vpack.c.b16 %v3191, %v3187
    %v3424 = vpack.c.b16 %v3192, %v3188
    %v3425 = vpack.c.b16 %v3193, %v3189
    %v3426 = vpack.c.b16 %v3194, %v3190
    %v3427 = vpack.c.b16 %v3199, %v3195
    %v3428 = vpack.c.b16 %v3200, %v3196
    %v3429 = vpack.c.b16 %v3201, %v3197
    %v3430 = vpack.c.b16 %v3202, %v3198
    %v3431 = vpack.c.b16 %v3207, %v3203
    %v3432 = vpack.c.b16 %v3208, %v3204
    %v3433 = vpack.c.b16 %v3209, %v3205
    %v3434 = vpack.c.b16 %v3210, %v3206
    %v3435 = vpack.c.b16 %v3215, %v3211
    %v3436 = vpack.c.b16 %v3216, %v3212
    %v3437 = vpack.c.b16 %v3217, %v3213
    %v3438 = vpack.c.b16 %v3218, %v3214
    %v3439 = vpack.c.b16 %v3223, %v3219
    %v3440 = vpack.c.b16 %v3224, %v3220
    %v3441 = vpack.c.b16 %v3225, %v3221
    %v3442 = vpack.c.b16 %v3226, %v3222
    %v3443 = vpack.c.b16 %v3231, %v3227
    %v3444 = vpack.c.b16 %v3232, %v3228
    %v3445 = vpack.c.b16 %v3233, %v3229
    %v3446 = vpack.c.b16 %v3234, %v3230
    %v3447 = vpack.c.b16 %v3239, %v3235
    %v3448 = vpack.c.b16 %v3240, %v3236
    %v3449 = vpack.c.b16 %v3241, %v3237
    %v3450 = vpack.c.b16 %v3242, %v3238
    %v3451 = vpack.c.b16 %v3247, %v3243
    %v3452 = vpack.c.b16 %v3248, %v3244
    %v3453 = vpack.c.b16 %v3249, %v3245
    %v3454 = vpack.c.b16 %v3250, %v3246
    %v3455 = vpack.c.b16 %v3255, %v3251
    %v3456 = vpack.c.b16 %v3256, %v3252
    %v3457 = vpack.c.b16 %v3257, %v3253
    %v3458 = vpack.c.b16 %v3258, %v3254
    %v3459 = vpack.c.b16 %v3263, %v3259
    %v3460 = vpack.c.b16 %v3264, %v3260
    %v3461 = vpack.c.b16 %v3265, %v3261
    %v3462 = vpack.c.b16 %v3266, %v3262
    %v3463 = vpack.c.b16 %v3271, %v3267
    %v3464 = vpack.c.b16 %v3272, %v3268
    %v3465 = vpack.c.b16 %v3273, %v3269
    %v3466 = vpack.c.b16 %v3274, %v3270
    %v3467 = vpack.c.b16 %v3279, %v3275
    %v3468 = vpack.c.b16 %v3280, %v3276
    %v3469 = vpack.c.b16 %v3281, %v3277
    %v3470 = vpack.c.b16 %v3282, %v3278
    %v3471 = vpack.c.b16 %v3287, %v3283
    %v3472 = vpack.c.b16 %v3288, %v3284
    %v3473 = vpack.c.b16 %v3289, %v3285
    %v3474 = vpack.c.b16 %v3290, %v3286
    %v3475 = vpack.c.b16 %v3295, %v3291
    %v3476 = vpack.c.b16 %v3296, %v3292
    %v3477 = vpack.c.b16 %v3297, %v3293
    %v3478 = vpack.c.b16 %v3298, %v3294
    %v3479 = vpack.c.b16 %v3303, %v3299
    %v3480 = vpack.c.b16 %v3304, %v3300
    %v3481 = vpack.c.b16 %v3305, %v3301
    %v3482 = vpack.c.b16 %v3306, %v3302
    %v3483 = vpack.c.b16 %v3311, %v3307
    %v3484 = vpack.c.b16 %v3312, %v3308
    %v3485 = vpack.c.b16 %v3313, %v3309
    %v3486 = vpack.c.b16 %v3314, %v3310
    %v3487 = vpack.c.b16 %v3319, %v3315
    %v3488 = vpack.c.b16 %v3320, %v3316
    %v3489 = vpack.c.b16 %v3321, %v3317
    %v3490 = vpack.c.b16 %v3322, %v3318
    %v3491 = vpack.c.b16 %v3327, %v3323
    %v3492 = vpack.c.b16 %v3328, %v3324
    %v3493 = vpack.c.b16 %v3329, %v3325
    %v3494 = vpack.c.b16 %v3330, %v3326
    %v3495 = vpack.c.b16 %v3335, %v3331
    %v3496 = vpack.c.b16 %v3336, %v3332
    %v3497 = vpack.c.b16 %v3337, %v3333
    %v3498 = vpack.c.b16 %v3338, %v3334
    %v3499 = vpack.c.b16 %v3343, %v3339
    %v3500 = vpack.c.b16 %v3344, %v3340
    %v3501 = vpack.c.b16 %v3345, %v3341
    %v3502 = vpack.c.b16 %v3346, %v3342
    %v3503 = vpack.c.b16 %v3351, %v3347
    %v3504 = vpack.c.b16 %v3352, %v3348
    %v3505 = vpack.c.b16 %v3353, %v3349
    %v3506 = vpack.c.b16 %v3354, %v3350
    %v3507 = vpack.c.b16 %v3359, %v3355
    %v3508 = vpack.c.b16 %v3360, %v3356
    %v3509 = vpack.c.b16 %v3361, %v3357
    %v3510 = vpack.c.b16 %v3362, %v3358
    %v3511 = vpack.c.b16 %v3367, %v3363
    %v3512 = vpack.c.b16 %v3368, %v3364
    %v3513 = vpack.c.b16 %v3369, %v3365
    %v3514 = vpack.c.b16 %v3370, %v3366
    %v3515 = vpack.c.b16 %v3375, %v3371
    %v3516 = vpack.c.b16 %v3376, %v3372
    %v3517 = vpack.c.b16 %v3377, %v3373
    %v3518 = vpack.c.b16 %v3378, %v3374
    %v3519 = vpack.c.b16 %v3383, %v3379
    %v3520 = vpack.c.b16 %v3384, %v3380
    %v3521 = vpack.c.b16 %v3385, %v3381
    %v3522 = vpack.c.b16 %v3386, %v3382
    %v3523 = vpack.c.b16 %v3391, %v3387
    %v3524 = vpack.c.b16 %v3392, %v3388
    %v3525 = vpack.c.b16 %v3393, %v3389
    %v3526 = vpack.c.b16 %v3394, %v3390
    %v3527 = vpack.c.b16 %v3399, %v3395
    %v3528 = vpack.c.b16 %v3400, %v3396
    %v3529 = vpack.c.b16 %v3401, %v3397
    %v3530 = vpack.c.b16 %v3402, %v3398
    %3659 = vmatprep.subr.bf16.mxu0 %v3404
    %3660 = vmatpush1.bf16.msra.mxu0 %v3403
    %3661 = vmatprep.subr.bf16.mxu0 %v3408
    %3662 = vmatpush1.bf16.msra.mxu0 %v3407
    %3663 = vmatprep.subr.bf16.mxu0 %v3412
    %3664 = vmatpush1.bf16.msra.mxu0 %v3411
    %3665 = vmatprep.subr.bf16.mxu0 %v3416
    %3666 = vmatpush1.bf16.msra.mxu0 %v3415
    %3667 = vmatprep.subr.bf16.mxu0 %v3420
    %3668 = vmatpush1.bf16.msra.mxu0 %v3419
    %3669 = vmatprep.subr.bf16.mxu0 %v3424
    %3670 = vmatpush1.bf16.msra.mxu0 %v3423
    %3671 = vmatprep.subr.bf16.mxu0 %v3428
    %3672 = vmatpush1.bf16.msra.mxu0 %v3427
    %3673 = vmatprep.subr.bf16.mxu0 %v3432
    %3674 = vmatpush1.bf16.msra.mxu0 %v3431
    %3675 = vmatprep.subr.bf16.mxu0 %v3436
    %3676 = vmatpush1.bf16.msra.mxu0 %v3435
    %3677 = vmatprep.subr.bf16.mxu0 %v3440
    %3678 = vmatpush1.bf16.msra.mxu0 %v3439
    %3679 = vmatprep.subr.bf16.mxu0 %v3444
    %3680 = vmatpush1.bf16.msra.mxu0 %v3443
    %3681 = vmatprep.subr.bf16.mxu0 %v3448
    %3682 = vmatpush1.bf16.msra.mxu0 %v3447
    %3683 = vmatprep.subr.bf16.mxu0 %v3452
    %3684 = vmatpush1.bf16.msra.mxu0 %v3451
    %3685 = vmatprep.subr.bf16.mxu0 %v3456
    %3686 = vmatpush1.bf16.msra.mxu0 %v3455
    %3687 = vmatprep.subr.bf16.mxu0 %v3460
    %3688 = vmatpush1.bf16.msra.mxu0 %v3459
    %3689 = vmatprep.subr.bf16.mxu0 %v3464
    %3690 = vmatpush1.bf16.msra.mxu0 %v3463
    %3691 = vmatprep.mubr.bf16.mxu0 %v2995
    %3692 = vmatmul.mubr.bf16.gmra.mrb[0].mxu0 %v2994
    %v3693 = vpop.f32.mrb[0].mxu0
    %v3694 = vadd.f32 %v3002, %v3693
    %v3695 = vpop.f32.mrb[0].mxu0
    %v3696 = vadd.f32 %v3006, %v3695
    %v3697 = vpop.f32.mrb[0].mxu0
    %v3698 = vadd.f32 %v3002, %v3697
    %v3699 = vpop.f32.mrb[0].mxu0
    %v3700 = vadd.f32 %v3006, %v3699
    %3701 = vdwg.mxu0
    %3702 = vmatprep.subr.bf16.mxu0 %v3468
    %3703 = vmatpush1.bf16.msra.mxu0 %v3467
    %3704 = vmatprep.subr.bf16.mxu0 %v3472
    %3705 = vmatpush1.bf16.msra.mxu0 %v3471
    %3706 = vmatprep.subr.bf16.mxu0 %v3476
    %3707 = vmatpush1.bf16.msra.mxu0 %v3475
    %3708 = vmatprep.subr.bf16.mxu0 %v3480
    %3709 = vmatpush1.bf16.msra.mxu0 %v3479
    %3710 = vmatprep.subr.bf16.mxu0 %v3484
    %3711 = vmatpush1.bf16.msra.mxu0 %v3483
    %3712 = vmatprep.subr.bf16.mxu0 %v3488
    %3713 = vmatpush1.bf16.msra.mxu0 %v3487
    %3714 = vmatprep.subr.bf16.mxu0 %v3492
    %3715 = vmatpush1.bf16.msra.mxu0 %v3491
    %3716 = vmatprep.subr.bf16.mxu0 %v3496
    %3717 = vmatpush1.bf16.msra.mxu0 %v3495
    %3718 = vmatprep.subr.bf16.mxu0 %v3500
    %3719 = vmatpush1.bf16.msra.mxu0 %v3499
    %3720 = vmatprep.subr.bf16.mxu0 %v3504
    %3721 = vmatpush1.bf16.msra.mxu0 %v3503
    %3722 = vmatprep.subr.bf16.mxu0 %v3508
    %3723 = vmatpush1.bf16.msra.mxu0 %v3507
    %3724 = vmatprep.subr.bf16.mxu0 %v3512
    %3725 = vmatpush1.bf16.msra.mxu0 %v3511
    %3726 = vmatprep.subr.bf16.mxu0 %v3516
    %3727 = vmatpush1.bf16.msra.mxu0 %v3515
    %3728 = vmatprep.subr.bf16.mxu0 %v3520
    %3729 = vmatpush1.bf16.msra.mxu0 %v3519
    %3730 = vmatprep.subr.bf16.mxu0 %v3524
    %3731 = vmatpush1.bf16.msra.mxu0 %v3523
    %3732 = vmatprep.subr.bf16.mxu0 %v3528
    %3733 = vmatpush1.bf16.msra.mxu0 %v3527
    %3734 = vmatprep.mubr.bf16.mxu0 %v2997
    %3735 = vmatmul.mubr.bf16.gmra.mrb[0].mxu0 %v2996
    %v3736 = vpop.f32.mrb[0].mxu0
    %v3737 = vadd.f32 %v3694, %v3736
    %v3738 = vpop.f32.mrb[0].mxu0
    %v3739 = vadd.f32 %v3696, %v3738
    %v3740 = vpop.f32.mrb[0].mxu0
    %v3741 = vadd.f32 %v3698, %v3740
    %v3742 = vpop.f32.mrb[0].mxu0
    %v3743 = vadd.f32 %v3700, %v3742
    %3744 = vdwg.mxu0
    %3745 = vmatprep.subr.bf16.mxu0 %v3406
    %3746 = vmatpush1.bf16.msra.mxu0 %v3405
    %3747 = vmatprep.subr.bf16.mxu0 %v3410
    %3748 = vmatpush1.bf16.msra.mxu0 %v3409
    %3749 = vmatprep.subr.bf16.mxu0 %v3414
    %3750 = vmatpush1.bf16.msra.mxu0 %v3413
    %3751 = vmatprep.subr.bf16.mxu0 %v3418
    %3752 = vmatpush1.bf16.msra.mxu0 %v3417
    %3753 = vmatprep.subr.bf16.mxu0 %v3422
    %3754 = vmatpush1.bf16.msra.mxu0 %v3421
    %3755 = vmatprep.subr.bf16.mxu0 %v3426
    %3756 = vmatpush1.bf16.msra.mxu0 %v3425
    %3757 = vmatprep.subr.bf16.mxu0 %v3430
    %3758 = vmatpush1.bf16.msra.mxu0 %v3429
    %3759 = vmatprep.subr.bf16.mxu0 %v3434
    %3760 = vmatpush1.bf16.msra.mxu0 %v3433
    %3761 = vmatprep.subr.bf16.mxu0 %v3438
    %3762 = vmatpush1.bf16.msra.mxu0 %v3437
    %3763 = vmatprep.subr.bf16.mxu0 %v3442
    %3764 = vmatpush1.bf16.msra.mxu0 %v3441
    %3765 = vmatprep.subr.bf16.mxu0 %v3446
    %3766 = vmatpush1.bf16.msra.mxu0 %v3445
    %3767 = vmatprep.subr.bf16.mxu0 %v3450
    %3768 = vmatpush1.bf16.msra.mxu0 %v3449
    %3769 = vmatprep.subr.bf16.mxu0 %v3454
    %3770 = vmatpush1.bf16.msra.mxu0 %v3453
    %3771 = vmatprep.subr.bf16.mxu0 %v3458
    %3772 = vmatpush1.bf16.msra.mxu0 %v3457
    %3773 = vmatprep.subr.bf16.mxu0 %v3462
    %3774 = vmatpush1.bf16.msra.mxu0 %v3461
    %3775 = vmatprep.subr.bf16.mxu0 %v3466
    %3776 = vmatpush1.bf16.msra.mxu0 %v3465
    %3777 = vmatprep.mubr.bf16.mxu0 %v2995
    %3778 = vmatmul.mubr.bf16.gmra.mrb[0].mxu0 %v2994
    %v3779 = vpop.f32.mrb[0].mxu0
    %v3780 = vadd.f32 %v3010, %v3779
    %v3781 = vpop.f32.mrb[0].mxu0
    %v3782 = vadd.f32 %v3014, %v3781
    %v3783 = vpop.f32.mrb[0].mxu0
    %v3784 = vadd.f32 %v3010, %v3783
    %v3785 = vpop.f32.mrb[0].mxu0
    %v3786 = vadd.f32 %v3014, %v3785
    %3787 = vdwg.mxu0
    %3788 = vmatprep.subr.bf16.mxu0 %v3470
    %3789 = vmatpush1.bf16.msra.mxu0 %v3469
    %3790 = vmatprep.subr.bf16.mxu0 %v3474
    %3791 = vmatpush1.bf16.msra.mxu0 %v3473
    %3792 = vmatprep.subr.bf16.mxu0 %v3478
    %3793 = vmatpush1.bf16.msra.mxu0 %v3477
    %3794 = vmatprep.subr.bf16.mxu0 %v3482
    %3795 = vmatpush1.bf16.msra.mxu0 %v3481
    %3796 = vmatprep.subr.bf16.mxu0 %v3486
    %3797 = vmatpush1.bf16.msra.mxu0 %v3485
    %3798 = vmatprep.subr.bf16.mxu0 %v3490
    %3799 = vmatpush1.bf16.msra.mxu0 %v3489
    %3800 = vmatprep.subr.bf16.mxu0 %v3494
    %3801 = vmatpush1.bf16.msra.mxu0 %v3493
    %3802 = vmatprep.subr.bf16.mxu0 %v3498
    %3803 = vmatpush1.bf16.msra.mxu0 %v3497
    %3804 = vmatprep.subr.bf16.mxu0 %v3502
    %3805 = vmatpush1.bf16.msra.mxu0 %v3501
    %3806 = vmatprep.subr.bf16.mxu0 %v3506
    %3807 = vmatpush1.bf16.msra.mxu0 %v3505
    %3808 = vmatprep.subr.bf16.mxu0 %v3510
    %3809 = vmatpush1.bf16.msra.mxu0 %v3509
    %3810 = vmatprep.subr.bf16.mxu0 %v3514
    %3811 = vmatpush1.bf16.msra.mxu0 %v3513
    %3812 = vmatprep.subr.bf16.mxu0 %v3518
    %3813 = vmatpush1.bf16.msra.mxu0 %v3517
    %3814 = vmatprep.subr.bf16.mxu0 %v3522
    %3815 = vmatpush1.bf16.msra.mxu0 %v3521
    %3816 = vmatprep.subr.bf16.mxu0 %v3526
    %3817 = vmatpush1.bf16.msra.mxu0 %v3525
    %3818 = vmatprep.subr.bf16.mxu0 %v3530
    %3819 = vmatpush1.bf16.msra.mxu0 %v3529
    %3820 = vmatprep.mubr.bf16.mxu0 %v2997
    %3821 = vmatmul.mubr.bf16.gmra.mrb[0].mxu0 %v2996
    %v3822 = vpop.f32.mrb[0].mxu0
    %v3823 = vadd.f32 %v3780, %v3822
    %v3824 = vpop.f32.mrb[0].mxu0
    %v3825 = vadd.f32 %v3782, %v3824
    %v3826 = vpop.f32.mrb[0].mxu0
    %v3827 = vadd.f32 %v3784, %v3826
    %v3828 = vpop.f32.mrb[0].mxu0
    %v3829 = vadd.f32 %v3786, %v3828
    %3830 = vdwg.mxu0
    %v3831 = vmax.f32 %v3737, 0.0
    %v3832 = vmax.f32 %v3739, 0.0
    %v3833 = vmax.f32 %v3823, 0.0
    %v3834 = vmax.f32 %v3825, 0.0
    %v3835 = vmax.f32 %v3741, 0.0
    %v3836 = vmax.f32 %v3743, 0.0
    %v3837 = vmax.f32 %v3827, 0.0
    %v3838 = vmax.f32 %v3829, 0.0
    %v3839 = vadd.f32 %v3831, %v2900
    %v3840 = vadd.f32 %v3832, %v2902
    %v3841 = vadd.f32 %v3833, %v2986
    %v3842 = vadd.f32 %v3834, %v2988
    %v3843 = vadd.f32 %v3835, %v2904
    %v3844 = vadd.f32 %v3836, %v2906
    %v3845 = vadd.f32 %v3837, %v2990
    %v3846 = vadd.f32 %v3838, %v2992
    %v3847 = vadd.f32 %v3839, %v2900
    %v3848 = vadd.f32 %v3840, %v2902
    %v3849 = vadd.f32 %v3841, %v2986
    %v3850 = vadd.f32 %v3842, %v2988
    %v3851 = vadd.f32 %v3843, %v2904
    %v3852 = vadd.f32 %v3844, %v2906
    %v3853 = vadd.f32 %v3845, %v2990
    %v3854 = vadd.f32 %v3846, %v2992
    %v3855 = vadd.f32 %v3847, %v3848
    %v3856 = vadd.f32 %v3855, %v3849
    %v3857 = vadd.f32 %v3856, %v3850
    %3858 = vadd.xlane.f32.xlu0 %v3857
    %v3859 = vpop.xlane.xlu0 %3858
    %v3860 = vadd.f32 %v3851, %v3852
    %v3861 = vadd.f32 %v3860, %v3853
    %v3862 = vadd.f32 %v3861, %v3854
    %3863 = vadd.xlane.f32.xlu0 %v3862
    %v3864 = vpop.xlane.xlu0 %3863
    %v3865 = vrcp.pop 512.0
    %v3866 = vmul.f32 %v3859, %v3865
    %v3867 = vmul.f32 %v3864, %v3865
    %v3868 = vsub.f32 %v3847, %v3866
    %v3869 = vsub.f32 %v3848, %v3866
    %v3870 = vsub.f32 %v3849, %v3866
    %v3871 = vsub.f32 %v3850, %v3866
    %v3872 = vsub.f32 %v3851, %v3867
    %v3873 = vsub.f32 %v3852, %v3867
    %v3874 = vsub.f32 %v3853, %v3867
    %v3875 = vsub.f32 %v3854, %v3867
    %v3876 = vmul.f32 %v3868, %v3868
    %v3877 = vmul.f32 %v3869, %v3869
    %v3878 = vmul.f32 %v3870, %v3870
    %v3879 = vmul.f32 %v3871, %v3871
    %v3880 = vmul.f32 %v3872, %v3872
    %v3881 = vmul.f32 %v3873, %v3873
    %v3882 = vmul.f32 %v3874, %v3874
    %v3883 = vmul.f32 %v3875, %v3875
    %v3884 = vadd.f32 %v3876, %v3877
    %v3885 = vadd.f32 %v3884, %v3878
    %v3886 = vadd.f32 %v3885, %v3879
    %3887 = vadd.xlane.f32.xlu0 %v3886
    %v3888 = vpop.xlane.xlu0 %3887
    %v3889 = vadd.f32 %v3880, %v3881
    %v3890 = vadd.f32 %v3889, %v3882
    %v3891 = vadd.f32 %v3890, %v3883
    %3892 = vadd.xlane.f32.xlu0 %v3891
    %v3893 = vpop.xlane.xlu0 %3892
    %v3894 = vmul.f32 %v3888, %v3865
    %v3895 = vmul.f32 %v3893, %v3865
    %v3896 = vadd.f32 %v3894, 1e-05
    %v3897 = vadd.f32 %v3895, 1e-05
    %v3898 = vrsqrt.pop %v3896
    %v3899 = vrsqrt.pop %v3897
    %v3900 = vmul.f32 %v3868, %v3898
    %v3901 = vmul.f32 %v3869, %v3898
    %v3902 = vmul.f32 %v3870, %v3898
    %v3903 = vmul.f32 %v3871, %v3898
    %v3904 = vmul.f32 %v3872, %v3899
    %v3905 = vmul.f32 %v3873, %v3899
    %v3906 = vmul.f32 %v3874, %v3899
    %v3907 = vmul.f32 %v3875, %v3899
    %v3909 = vlaneseq
    %v3910 = vshrl.u32 %v3909, 7
    %v3911 = vsub.s32 0, %v3910
    %v3912 = vrot.slane %v1272, %v3911
    %v3913 = vlaneseq
    %v3914 = vshrl.u32 %v3913, 7
    %v3915 = vsub.s32 1, %v3914
    %v3916 = vrot.slane %v1272, %v3915
    %v3917 = vlaneseq
    %v3918 = vshrl.u32 %v3917, 7
    %v3919 = vsub.s32 2, %v3918
    %v3920 = vrot.slane %v1272, %v3919
    %v3921 = vlaneseq
    %v3922 = vshrl.u32 %v3921, 7
    %v3923 = vsub.s32 3, %v3922
    %v3924 = vrot.slane %v1272, %v3923
    %v3929 = vmul.f32 %v3900, %v3912
    %v3930 = vmul.f32 %v3901, %v3916
    %v3931 = vmul.f32 %v3902, %v3920
    %v3932 = vmul.f32 %v3903, %v3924
    %v3933 = vmul.f32 %v3904, %v3912
    %v3934 = vmul.f32 %v3905, %v3916
    %v3935 = vmul.f32 %v3906, %v3920
    %v3936 = vmul.f32 %v3907, %v3924
    %v3938 = vlaneseq
    %v3939 = vshrl.u32 %v3938, 7
    %v3940 = vsub.s32 0, %v3939
    %v3941 = vrot.slane %v1274, %v3940
    %v3942 = vlaneseq
    %v3943 = vshrl.u32 %v3942, 7
    %v3944 = vsub.s32 1, %v3943
    %v3945 = vrot.slane %v1274, %v3944
    %v3946 = vlaneseq
    %v3947 = vshrl.u32 %v3946, 7
    %v3948 = vsub.s32 2, %v3947
    %v3949 = vrot.slane %v1274, %v3948
    %v3950 = vlaneseq
    %v3951 = vshrl.u32 %v3950, 7
    %v3952 = vsub.s32 3, %v3951
    %v3953 = vrot.slane %v1274, %v3952
    %v3958 = vadd.f32 %v3929, %v3941
    %v3959 = vadd.f32 %v3930, %v3945
    %v3960 = vadd.f32 %v3931, %v3949
    %v3961 = vadd.f32 %v3932, %v3953
    %v3962 = vadd.f32 %v3933, %v3941
    %v3963 = vadd.f32 %v3934, %v3945
    %v3964 = vadd.f32 %v3935, %v3949
    %v3965 = vadd.f32 %v3936, %v3953
    %v3966 = vpack.c.bf16 %v1262, %v1258
    %v3967 = vpack.c.bf16 %v1263, %v1259
    %v3968 = vpack.c.bf16 %v1264, %v1260
    %v3969 = vpack.c.bf16 %v1265, %v1261
    %v3971 = vlaneseq
    %v3972 = vshrl.u32 %v3971, 7
    %v3973 = vsub.s32 0, %v3972
    %v3974 = vrot.slane %v1276, %v3973
    %v3975 = vlaneseq
    %v3976 = vshrl.u32 %v3975, 7
    %v3977 = vsub.s32 1, %v3976
    %v3978 = vrot.slane %v1276, %v3977
    %v3979 = vlaneseq
    %v3980 = vshrl.u32 %v3979, 7
    %v3981 = vsub.s32 2, %v3980
    %v3982 = vrot.slane %v1276, %v3981
    %v3983 = vlaneseq
    %v3984 = vshrl.u32 %v3983, 7
    %v3985 = vsub.s32 3, %v3984
    %v3986 = vrot.slane %v1276, %v3985
    %v4119 = vunpack.c.l.b16 %v518
    %v4120 = vunpack.c.h.b16 %v518
    %v4121 = vunpack.c.l.b16 %v519
    %v4122 = vunpack.c.h.b16 %v519
    %v4123 = vunpack.c.l.b16 %v520
    %v4124 = vunpack.c.h.b16 %v520
    %v4125 = vunpack.c.l.b16 %v521
    %v4126 = vunpack.c.h.b16 %v521
    %v4127 = vunpack.c.l.b16 %v522
    %v4128 = vunpack.c.h.b16 %v522
    %v4129 = vunpack.c.l.b16 %v523
    %v4130 = vunpack.c.h.b16 %v523
    %v4131 = vunpack.c.l.b16 %v524
    %v4132 = vunpack.c.h.b16 %v524
    %v4133 = vunpack.c.l.b16 %v525
    %v4134 = vunpack.c.h.b16 %v525
    %v4135 = vunpack.c.l.b16 %v526
    %v4136 = vunpack.c.h.b16 %v526
    %v4137 = vunpack.c.l.b16 %v527
    %v4138 = vunpack.c.h.b16 %v527
    %v4139 = vunpack.c.l.b16 %v528
    %v4140 = vunpack.c.h.b16 %v528
    %v4141 = vunpack.c.l.b16 %v529
    %v4142 = vunpack.c.h.b16 %v529
    %v4143 = vunpack.c.l.b16 %v530
    %v4144 = vunpack.c.h.b16 %v530
    %v4145 = vunpack.c.l.b16 %v531
    %v4146 = vunpack.c.h.b16 %v531
    %v4147 = vunpack.c.l.b16 %v532
    %v4148 = vunpack.c.h.b16 %v532
    %v4149 = vunpack.c.l.b16 %v533
    %v4150 = vunpack.c.h.b16 %v533
    %v4151 = vunpack.c.l.b16 %v534
    %v4152 = vunpack.c.h.b16 %v534
    %v4153 = vunpack.c.l.b16 %v535
    %v4154 = vunpack.c.h.b16 %v535
    %v4155 = vunpack.c.l.b16 %v536
    %v4156 = vunpack.c.h.b16 %v536
    %v4157 = vunpack.c.l.b16 %v537
    %v4158 = vunpack.c.h.b16 %v537
    %v4159 = vunpack.c.l.b16 %v538
    %v4160 = vunpack.c.h.b16 %v538
    %v4161 = vunpack.c.l.b16 %v539
    %v4162 = vunpack.c.h.b16 %v539
    %v4163 = vunpack.c.l.b16 %v540
    %v4164 = vunpack.c.h.b16 %v540
    %v4165 = vunpack.c.l.b16 %v541
    %v4166 = vunpack.c.h.b16 %v541
    %v4167 = vunpack.c.l.b16 %v542
    %v4168 = vunpack.c.h.b16 %v542
    %v4169 = vunpack.c.l.b16 %v543
    %v4170 = vunpack.c.h.b16 %v543
    %v4171 = vunpack.c.l.b16 %v544
    %v4172 = vunpack.c.h.b16 %v544
    %v4173 = vunpack.c.l.b16 %v545
    %v4174 = vunpack.c.h.b16 %v545
    %v4175 = vunpack.c.l.b16 %v546
    %v4176 = vunpack.c.h.b16 %v546
    %v4177 = vunpack.c.l.b16 %v547
    %v4178 = vunpack.c.h.b16 %v547
    %v4179 = vunpack.c.l.b16 %v548
    %v4180 = vunpack.c.h.b16 %v548
    %v4181 = vunpack.c.l.b16 %v549
    %v4182 = vunpack.c.h.b16 %v549
    %v4183 = vunpack.c.l.b16 %v550
    %v4184 = vunpack.c.h.b16 %v550
    %v4185 = vunpack.c.l.b16 %v551
    %v4186 = vunpack.c.h.b16 %v551
    %v4187 = vunpack.c.l.b16 %v552
    %v4188 = vunpack.c.h.b16 %v552
    %v4189 = vunpack.c.l.b16 %v553
    %v4190 = vunpack.c.h.b16 %v553
    %v4191 = vunpack.c.l.b16 %v554
    %v4192 = vunpack.c.h.b16 %v554
    %v4193 = vunpack.c.l.b16 %v555
    %v4194 = vunpack.c.h.b16 %v555
    %v4195 = vunpack.c.l.b16 %v556
    %v4196 = vunpack.c.h.b16 %v556
    %v4197 = vunpack.c.l.b16 %v557
    %v4198 = vunpack.c.h.b16 %v557
    %v4199 = vunpack.c.l.b16 %v558
    %v4200 = vunpack.c.h.b16 %v558
    %v4201 = vunpack.c.l.b16 %v559
    %v4202 = vunpack.c.h.b16 %v559
    %v4203 = vunpack.c.l.b16 %v560
    %v4204 = vunpack.c.h.b16 %v560
    %v4205 = vunpack.c.l.b16 %v561
    %v4206 = vunpack.c.h.b16 %v561
    %v4207 = vunpack.c.l.b16 %v562
    %v4208 = vunpack.c.h.b16 %v562
    %v4209 = vunpack.c.l.b16 %v563
    %v4210 = vunpack.c.h.b16 %v563
    %v4211 = vunpack.c.l.b16 %v564
    %v4212 = vunpack.c.h.b16 %v564
    %v4213 = vunpack.c.l.b16 %v565
    %v4214 = vunpack.c.h.b16 %v565
    %v4215 = vunpack.c.l.b16 %v566
    %v4216 = vunpack.c.h.b16 %v566
    %v4217 = vunpack.c.l.b16 %v567
    %v4218 = vunpack.c.h.b16 %v567
    %v4219 = vunpack.c.l.b16 %v568
    %v4220 = vunpack.c.h.b16 %v568
    %v4221 = vunpack.c.l.b16 %v569
    %v4222 = vunpack.c.h.b16 %v569
    %v4223 = vunpack.c.l.b16 %v570
    %v4224 = vunpack.c.h.b16 %v570
    %v4225 = vunpack.c.l.b16 %v571
    %v4226 = vunpack.c.h.b16 %v571
    %v4227 = vunpack.c.l.b16 %v572
    %v4228 = vunpack.c.h.b16 %v572
    %v4229 = vunpack.c.l.b16 %v573
    %v4230 = vunpack.c.h.b16 %v573
    %v4231 = vunpack.c.l.b16 %v574
    %v4232 = vunpack.c.h.b16 %v574
    %v4233 = vunpack.c.l.b16 %v575
    %v4234 = vunpack.c.h.b16 %v575
    %v4235 = vunpack.c.l.b16 %v576
    %v4236 = vunpack.c.h.b16 %v576
    %v4237 = vunpack.c.l.b16 %v577
    %v4238 = vunpack.c.h.b16 %v577
    %v4239 = vunpack.c.l.b16 %v578
    %v4240 = vunpack.c.h.b16 %v578
    %v4241 = vunpack.c.l.b16 %v579
    %v4242 = vunpack.c.h.b16 %v579
    %v4243 = vunpack.c.l.b16 %v580
    %v4244 = vunpack.c.h.b16 %v580
    %v4245 = vunpack.c.l.b16 %v581
    %v4246 = vunpack.c.h.b16 %v581
    %v4247 = vunpack.c.l.b16 %v582
    %v4248 = vunpack.c.h.b16 %v582
    %v4249 = vunpack.c.l.b16 %v583
    %v4250 = vunpack.c.h.b16 %v583
    %v4251 = vunpack.c.l.b16 %v584
    %v4252 = vunpack.c.h.b16 %v584
    %v4253 = vunpack.c.l.b16 %v585
    %v4254 = vunpack.c.h.b16 %v585
    %v4255 = vunpack.c.l.b16 %v586
    %v4256 = vunpack.c.h.b16 %v586
    %v4257 = vunpack.c.l.b16 %v587
    %v4258 = vunpack.c.h.b16 %v587
    %v4259 = vunpack.c.l.b16 %v588
    %v4260 = vunpack.c.h.b16 %v588
    %v4261 = vunpack.c.l.b16 %v589
    %v4262 = vunpack.c.h.b16 %v589
    %v4263 = vunpack.c.l.b16 %v590
    %v4264 = vunpack.c.h.b16 %v590
    %v4265 = vunpack.c.l.b16 %v591
    %v4266 = vunpack.c.h.b16 %v591
    %v4267 = vunpack.c.l.b16 %v592
    %v4268 = vunpack.c.h.b16 %v592
    %v4269 = vunpack.c.l.b16 %v593
    %v4270 = vunpack.c.h.b16 %v593
    %v4271 = vunpack.c.l.b16 %v594
    %v4272 = vunpack.c.h.b16 %v594
    %v4273 = vunpack.c.l.b16 %v595
    %v4274 = vunpack.c.h.b16 %v595
    %v4275 = vunpack.c.l.b16 %v596
    %v4276 = vunpack.c.h.b16 %v596
    %v4277 = vunpack.c.l.b16 %v597
    %v4278 = vunpack.c.h.b16 %v597
    %v4279 = vunpack.c.l.b16 %v598
    %v4280 = vunpack.c.h.b16 %v598
    %v4281 = vunpack.c.l.b16 %v599
    %v4282 = vunpack.c.h.b16 %v599
    %v4283 = vunpack.c.l.b16 %v600
    %v4284 = vunpack.c.h.b16 %v600
    %v4285 = vunpack.c.l.b16 %v601
    %v4286 = vunpack.c.h.b16 %v601
    %v4287 = vunpack.c.l.b16 %v602
    %v4288 = vunpack.c.h.b16 %v602
    %v4289 = vunpack.c.l.b16 %v603
    %v4290 = vunpack.c.h.b16 %v603
    %v4291 = vunpack.c.l.b16 %v604
    %v4292 = vunpack.c.h.b16 %v604
    %v4293 = vunpack.c.l.b16 %v605
    %v4294 = vunpack.c.h.b16 %v605
    %v4295 = vunpack.c.l.b16 %v606
    %v4296 = vunpack.c.h.b16 %v606
    %v4297 = vunpack.c.l.b16 %v607
    %v4298 = vunpack.c.h.b16 %v607
    %v4299 = vunpack.c.l.b16 %v608
    %v4300 = vunpack.c.h.b16 %v608
    %v4301 = vunpack.c.l.b16 %v609
    %v4302 = vunpack.c.h.b16 %v609
    %v4303 = vunpack.c.l.b16 %v610
    %v4304 = vunpack.c.h.b16 %v610
    %v4305 = vunpack.c.l.b16 %v611
    %v4306 = vunpack.c.h.b16 %v611
    %v4307 = vunpack.c.l.b16 %v612
    %v4308 = vunpack.c.h.b16 %v612
    %v4309 = vunpack.c.l.b16 %v613
    %v4310 = vunpack.c.h.b16 %v613
    %v4311 = vunpack.c.l.b16 %v614
    %v4312 = vunpack.c.h.b16 %v614
    %v4313 = vunpack.c.l.b16 %v615
    %v4314 = vunpack.c.h.b16 %v615
    %v4315 = vunpack.c.l.b16 %v616
    %v4316 = vunpack.c.h.b16 %v616
    %v4317 = vunpack.c.l.b16 %v617
    %v4318 = vunpack.c.h.b16 %v617
    %v4319 = vunpack.c.l.b16 %v618
    %v4320 = vunpack.c.h.b16 %v618
    %v4321 = vunpack.c.l.b16 %v619
    %v4322 = vunpack.c.h.b16 %v619
    %v4323 = vunpack.c.l.b16 %v620
    %v4324 = vunpack.c.h.b16 %v620
    %v4325 = vunpack.c.l.b16 %v621
    %v4326 = vunpack.c.h.b16 %v621
    %v4327 = vunpack.c.l.b16 %v622
    %v4328 = vunpack.c.h.b16 %v622
    %v4329 = vunpack.c.l.b16 %v623
    %v4330 = vunpack.c.h.b16 %v623
    %v4331 = vunpack.c.l.b16 %v624
    %v4332 = vunpack.c.h.b16 %v624
    %v4333 = vunpack.c.l.b16 %v625
    %v4334 = vunpack.c.h.b16 %v625
    %v4335 = vunpack.c.l.b16 %v626
    %v4336 = vunpack.c.h.b16 %v626
    %v4337 = vunpack.c.l.b16 %v627
    %v4338 = vunpack.c.h.b16 %v627
    %v4339 = vunpack.c.l.b16 %v628
    %v4340 = vunpack.c.h.b16 %v628
    %v4341 = vunpack.c.l.b16 %v629
    %v4342 = vunpack.c.h.b16 %v629
    %v4343 = vunpack.c.l.b16 %v630
    %v4344 = vunpack.c.h.b16 %v630
    %v4345 = vunpack.c.l.b16 %v631
    %v4346 = vunpack.c.h.b16 %v631
    %v4347 = vunpack.c.l.b16 %v632
    %v4348 = vunpack.c.h.b16 %v632
    %v4349 = vunpack.c.l.b16 %v633
    %v4350 = vunpack.c.h.b16 %v633
    %v4351 = vunpack.c.l.b16 %v634
    %v4352 = vunpack.c.h.b16 %v634
    %v4353 = vunpack.c.l.b16 %v635
    %v4354 = vunpack.c.h.b16 %v635
    %v4355 = vunpack.c.l.b16 %v636
    %v4356 = vunpack.c.h.b16 %v636
    %v4357 = vunpack.c.l.b16 %v637
    %v4358 = vunpack.c.h.b16 %v637
    %v4359 = vunpack.c.l.b16 %v638
    %v4360 = vunpack.c.h.b16 %v638
    %v4361 = vunpack.c.l.b16 %v639
    %v4362 = vunpack.c.h.b16 %v639
    %v4363 = vunpack.c.l.b16 %v640
    %v4364 = vunpack.c.h.b16 %v640
    %v4365 = vunpack.c.l.b16 %v641
    %v4366 = vunpack.c.h.b16 %v641
    %v4367 = vunpack.c.l.b16 %v642
    %v4368 = vunpack.c.h.b16 %v642
    %v4369 = vunpack.c.l.b16 %v643
    %v4370 = vunpack.c.h.b16 %v643
    %v4371 = vunpack.c.l.b16 %v644
    %v4372 = vunpack.c.h.b16 %v644
    %v4373 = vunpack.c.l.b16 %v645
    %v4374 = vunpack.c.h.b16 %v645
    %v4375 = vpack.c.b16 %v4123, %v4119
    %v4376 = vpack.c.b16 %v4124, %v4120
    %v4377 = vpack.c.b16 %v4125, %v4121
    %v4378 = vpack.c.b16 %v4126, %v4122
    %v4379 = vpack.c.b16 %v4131, %v4127
    %v4380 = vpack.c.b16 %v4132, %v4128
    %v4381 = vpack.c.b16 %v4133, %v4129
    %v4382 = vpack.c.b16 %v4134, %v4130
    %v4383 = vpack.c.b16 %v4139, %v4135
    %v4384 = vpack.c.b16 %v4140, %v4136
    %v4385 = vpack.c.b16 %v4141, %v4137
    %v4386 = vpack.c.b16 %v4142, %v4138
    %v4387 = vpack.c.b16 %v4147, %v4143
    %v4388 = vpack.c.b16 %v4148, %v4144
    %v4389 = vpack.c.b16 %v4149, %v4145
    %v4390 = vpack.c.b16 %v4150, %v4146
    %v4391 = vpack.c.b16 %v4155, %v4151
    %v4392 = vpack.c.b16 %v4156, %v4152
    %v4393 = vpack.c.b16 %v4157, %v4153
    %v4394 = vpack.c.b16 %v4158, %v4154
    %v4395 = vpack.c.b16 %v4163, %v4159
    %v4396 = vpack.c.b16 %v4164, %v4160
    %v4397 = vpack.c.b16 %v4165, %v4161
    %v4398 = vpack.c.b16 %v4166, %v4162
    %v4399 = vpack.c.b16 %v4171, %v4167
    %v4400 = vpack.c.b16 %v4172, %v4168
    %v4401 = vpack.c.b16 %v4173, %v4169
    %v4402 = vpack.c.b16 %v4174, %v4170
    %v4403 = vpack.c.b16 %v4179, %v4175
    %v4404 = vpack.c.b16 %v4180, %v4176
    %v4405 = vpack.c.b16 %v4181, %v4177
    %v4406 = vpack.c.b16 %v4182, %v4178
    %v4407 = vpack.c.b16 %v4187, %v4183
    %v4408 = vpack.c.b16 %v4188, %v4184
    %v4409 = vpack.c.b16 %v4189, %v4185
    %v4410 = vpack.c.b16 %v4190, %v4186
    %v4411 = vpack.c.b16 %v4195, %v4191
    %v4412 = vpack.c.b16 %v4196, %v4192
    %v4413 = vpack.c.b16 %v4197, %v4193
    %v4414 = vpack.c.b16 %v4198, %v4194
    %v4415 = vpack.c.b16 %v4203, %v4199
    %v4416 = vpack.c.b16 %v4204, %v4200
    %v4417 = vpack.c.b16 %v4205, %v4201
    %v4418 = vpack.c.b16 %v4206, %v4202
    %v4419 = vpack.c.b16 %v4211, %v4207
    %v4420 = vpack.c.b16 %v4212, %v4208
    %v4421 = vpack.c.b16 %v4213, %v4209
    %v4422 = vpack.c.b16 %v4214, %v4210
    %v4423 = vpack.c.b16 %v4219, %v4215
    %v4424 = vpack.c.b16 %v4220, %v4216
    %v4425 = vpack.c.b16 %v4221, %v4217
    %v4426 = vpack.c.b16 %v4222, %v4218
    %v4427 = vpack.c.b16 %v4227, %v4223
    %v4428 = vpack.c.b16 %v4228, %v4224
    %v4429 = vpack.c.b16 %v4229, %v4225
    %v4430 = vpack.c.b16 %v4230, %v4226
    %v4431 = vpack.c.b16 %v4235, %v4231
    %v4432 = vpack.c.b16 %v4236, %v4232
    %v4433 = vpack.c.b16 %v4237, %v4233
    %v4434 = vpack.c.b16 %v4238, %v4234
    %v4435 = vpack.c.b16 %v4243, %v4239
    %v4436 = vpack.c.b16 %v4244, %v4240
    %v4437 = vpack.c.b16 %v4245, %v4241
    %v4438 = vpack.c.b16 %v4246, %v4242
    %v4439 = vpack.c.b16 %v4251, %v4247
    %v4440 = vpack.c.b16 %v4252, %v4248
    %v4441 = vpack.c.b16 %v4253, %v4249
    %v4442 = vpack.c.b16 %v4254, %v4250
    %v4443 = vpack.c.b16 %v4259, %v4255
    %v4444 = vpack.c.b16 %v4260, %v4256
    %v4445 = vpack.c.b16 %v4261, %v4257
    %v4446 = vpack.c.b16 %v4262, %v4258
    %v4447 = vpack.c.b16 %v4267, %v4263
    %v4448 = vpack.c.b16 %v4268, %v4264
    %v4449 = vpack.c.b16 %v4269, %v4265
    %v4450 = vpack.c.b16 %v4270, %v4266
    %v4451 = vpack.c.b16 %v4275, %v4271
    %v4452 = vpack.c.b16 %v4276, %v4272
    %v4453 = vpack.c.b16 %v4277, %v4273
    %v4454 = vpack.c.b16 %v4278, %v4274
    %v4455 = vpack.c.b16 %v4283, %v4279
    %v4456 = vpack.c.b16 %v4284, %v4280
    %v4457 = vpack.c.b16 %v4285, %v4281
    %v4458 = vpack.c.b16 %v4286, %v4282
    %v4459 = vpack.c.b16 %v4291, %v4287
    %v4460 = vpack.c.b16 %v4292, %v4288
    %v4461 = vpack.c.b16 %v4293, %v4289
    %v4462 = vpack.c.b16 %v4294, %v4290
    %v4463 = vpack.c.b16 %v4299, %v4295
    %v4464 = vpack.c.b16 %v4300, %v4296
    %v4465 = vpack.c.b16 %v4301, %v4297
    %v4466 = vpack.c.b16 %v4302, %v4298
    %v4467 = vpack.c.b16 %v4307, %v4303
    %v4468 = vpack.c.b16 %v4308, %v4304
    %v4469 = vpack.c.b16 %v4309, %v4305
    %v4470 = vpack.c.b16 %v4310, %v4306
    %v4471 = vpack.c.b16 %v4315, %v4311
    %v4472 = vpack.c.b16 %v4316, %v4312
    %v4473 = vpack.c.b16 %v4317, %v4313
    %v4474 = vpack.c.b16 %v4318, %v4314
    %v4475 = vpack.c.b16 %v4323, %v4319
    %v4476 = vpack.c.b16 %v4324, %v4320
    %v4477 = vpack.c.b16 %v4325, %v4321
    %v4478 = vpack.c.b16 %v4326, %v4322
    %v4479 = vpack.c.b16 %v4331, %v4327
    %v4480 = vpack.c.b16 %v4332, %v4328
    %v4481 = vpack.c.b16 %v4333, %v4329
    %v4482 = vpack.c.b16 %v4334, %v4330
    %v4483 = vpack.c.b16 %v4339, %v4335
    %v4484 = vpack.c.b16 %v4340, %v4336
    %v4485 = vpack.c.b16 %v4341, %v4337
    %v4486 = vpack.c.b16 %v4342, %v4338
    %v4487 = vpack.c.b16 %v4347, %v4343
    %v4488 = vpack.c.b16 %v4348, %v4344
    %v4489 = vpack.c.b16 %v4349, %v4345
    %v4490 = vpack.c.b16 %v4350, %v4346
    %v4491 = vpack.c.b16 %v4355, %v4351
    %v4492 = vpack.c.b16 %v4356, %v4352
    %v4493 = vpack.c.b16 %v4357, %v4353
    %v4494 = vpack.c.b16 %v4358, %v4354
    %v4495 = vpack.c.b16 %v4363, %v4359
    %v4496 = vpack.c.b16 %v4364, %v4360
    %v4497 = vpack.c.b16 %v4365, %v4361
    %v4498 = vpack.c.b16 %v4366, %v4362
    %v4499 = vpack.c.b16 %v4371, %v4367
    %v4500 = vpack.c.b16 %v4372, %v4368
    %v4501 = vpack.c.b16 %v4373, %v4369
    %v4502 = vpack.c.b16 %v4374, %v4370
    %4631 = vmatprep.subr.bf16.mxu0 %v4376
    %4632 = vmatpush1.bf16.msra.mxu0 %v4375
    %4633 = vmatprep.subr.bf16.mxu0 %v4380
    %4634 = vmatpush1.bf16.msra.mxu0 %v4379
    %4635 = vmatprep.subr.bf16.mxu0 %v4384
    %4636 = vmatpush1.bf16.msra.mxu0 %v4383
    %4637 = vmatprep.subr.bf16.mxu0 %v4388
    %4638 = vmatpush1.bf16.msra.mxu0 %v4387
    %4639 = vmatprep.subr.bf16.mxu0 %v4392
    %4640 = vmatpush1.bf16.msra.mxu0 %v4391
    %4641 = vmatprep.subr.bf16.mxu0 %v4396
    %4642 = vmatpush1.bf16.msra.mxu0 %v4395
    %4643 = vmatprep.subr.bf16.mxu0 %v4400
    %4644 = vmatpush1.bf16.msra.mxu0 %v4399
    %4645 = vmatprep.subr.bf16.mxu0 %v4404
    %4646 = vmatpush1.bf16.msra.mxu0 %v4403
    %4647 = vmatprep.subr.bf16.mxu0 %v4408
    %4648 = vmatpush1.bf16.msra.mxu0 %v4407
    %4649 = vmatprep.subr.bf16.mxu0 %v4412
    %4650 = vmatpush1.bf16.msra.mxu0 %v4411
    %4651 = vmatprep.subr.bf16.mxu0 %v4416
    %4652 = vmatpush1.bf16.msra.mxu0 %v4415
    %4653 = vmatprep.subr.bf16.mxu0 %v4420
    %4654 = vmatpush1.bf16.msra.mxu0 %v4419
    %4655 = vmatprep.subr.bf16.mxu0 %v4424
    %4656 = vmatpush1.bf16.msra.mxu0 %v4423
    %4657 = vmatprep.subr.bf16.mxu0 %v4428
    %4658 = vmatpush1.bf16.msra.mxu0 %v4427
    %4659 = vmatprep.subr.bf16.mxu0 %v4432
    %4660 = vmatpush1.bf16.msra.mxu0 %v4431
    %4661 = vmatprep.subr.bf16.mxu0 %v4436
    %4662 = vmatpush1.bf16.msra.mxu0 %v4435
    %4663 = vmatprep.mubr.bf16.mxu0 %v3967
    %4664 = vmatmul.mubr.bf16.gmra.mrb[0].mxu0 %v3966
    %v4665 = vpop.f32.mrb[0].mxu0
    %v4666 = vadd.f32 %v3974, %v4665
    %v4667 = vpop.f32.mrb[0].mxu0
    %v4668 = vadd.f32 %v3978, %v4667
    %v4669 = vpop.f32.mrb[0].mxu0
    %v4670 = vadd.f32 %v3974, %v4669
    %v4671 = vpop.f32.mrb[0].mxu0
    %v4672 = vadd.f32 %v3978, %v4671
    %4673 = vdwg.mxu0
    %4674 = vmatprep.subr.bf16.mxu0 %v4440
    %4675 = vmatpush1.bf16.msra.mxu0 %v4439
    %4676 = vmatprep.subr.bf16.mxu0 %v4444
    %4677 = vmatpush1.bf16.msra.mxu0 %v4443
    %4678 = vmatprep.subr.bf16.mxu0 %v4448
    %4679 = vmatpush1.bf16.msra.mxu0 %v4447
    %4680 = vmatprep.subr.bf16.mxu0 %v4452
    %4681 = vmatpush1.bf16.msra.mxu0 %v4451
    %4682 = vmatprep.subr.bf16.mxu0 %v4456
    %4683 = vmatpush1.bf16.msra.mxu0 %v4455
    %4684 = vmatprep.subr.bf16.mxu0 %v4460
    %4685 = vmatpush1.bf16.msra.mxu0 %v4459
    %4686 = vmatprep.subr.bf16.mxu0 %v4464
    %4687 = vmatpush1.bf16.msra.mxu0 %v4463
    %4688 = vmatprep.subr.bf16.mxu0 %v4468
    %4689 = vmatpush1.bf16.msra.mxu0 %v4467
    %4690 = vmatprep.subr.bf16.mxu0 %v4472
    %4691 = vmatpush1.bf16.msra.mxu0 %v4471
    %4692 = vmatprep.subr.bf16.mxu0 %v4476
    %4693 = vmatpush1.bf16.msra.mxu0 %v4475
    %4694 = vmatprep.subr.bf16.mxu0 %v4480
    %4695 = vmatpush1.bf16.msra.mxu0 %v4479
    %4696 = vmatprep.subr.bf16.mxu0 %v4484
    %4697 = vmatpush1.bf16.msra.mxu0 %v4483
    %4698 = vmatprep.subr.bf16.mxu0 %v4488
    %4699 = vmatpush1.bf16.msra.mxu0 %v4487
    %4700 = vmatprep.subr.bf16.mxu0 %v4492
    %4701 = vmatpush1.bf16.msra.mxu0 %v4491
    %4702 = vmatprep.subr.bf16.mxu0 %v4496
    %4703 = vmatpush1.bf16.msra.mxu0 %v4495
    %4704 = vmatprep.subr.bf16.mxu0 %v4500
    %4705 = vmatpush1.bf16.msra.mxu0 %v4499
    %4706 = vmatprep.mubr.bf16.mxu0 %v3969
    %4707 = vmatmul.mubr.bf16.gmra.mrb[0].mxu0 %v3968
    %v4708 = vpop.f32.mrb[0].mxu0
    %v4709 = vadd.f32 %v4666, %v4708
    %v4710 = vpop.f32.mrb[0].mxu0
    %v4711 = vadd.f32 %v4668, %v4710
    %v4712 = vpop.f32.mrb[0].mxu0
    %v4713 = vadd.f32 %v4670, %v4712
    %v4714 = vpop.f32.mrb[0].mxu0
    %v4715 = vadd.f32 %v4672, %v4714
    %4716 = vdwg.mxu0
    %4717 = vmatprep.subr.bf16.mxu0 %v4378
    %4718 = vmatpush1.bf16.msra.mxu0 %v4377
    %4719 = vmatprep.subr.bf16.mxu0 %v4382
    %4720 = vmatpush1.bf16.msra.mxu0 %v4381
    %4721 = vmatprep.subr.bf16.mxu0 %v4386
    %4722 = vmatpush1.bf16.msra.mxu0 %v4385
    %4723 = vmatprep.subr.bf16.mxu0 %v4390
    %4724 = vmatpush1.bf16.msra.mxu0 %v4389
    %4725 = vmatprep.subr.bf16.mxu0 %v4394
    %4726 = vmatpush1.bf16.msra.mxu0 %v4393
    %4727 = vmatprep.subr.bf16.mxu0 %v4398
    %4728 = vmatpush1.bf16.msra.mxu0 %v4397
    %4729 = vmatprep.subr.bf16.mxu0 %v4402
    %4730 = vmatpush1.bf16.msra.mxu0 %v4401
    %4731 = vmatprep.subr.bf16.mxu0 %v4406
    %4732 = vmatpush1.bf16.msra.mxu0 %v4405
    %4733 = vmatprep.subr.bf16.mxu0 %v4410
    %4734 = vmatpush1.bf16.msra.mxu0 %v4409
    %4735 = vmatprep.subr.bf16.mxu0 %v4414
    %4736 = vmatpush1.bf16.msra.mxu0 %v4413
    %4737 = vmatprep.subr.bf16.mxu0 %v4418
    %4738 = vmatpush1.bf16.msra.mxu0 %v4417
    %4739 = vmatprep.subr.bf16.mxu0 %v4422
    %4740 = vmatpush1.bf16.msra.mxu0 %v4421
    %4741 = vmatprep.subr.bf16.mxu0 %v4426
    %4742 = vmatpush1.bf16.msra.mxu0 %v4425
    %4743 = vmatprep.subr.bf16.mxu0 %v4430
    %4744 = vmatpush1.bf16.msra.mxu0 %v4429
    %4745 = vmatprep.subr.bf16.mxu0 %v4434
    %4746 = vmatpush1.bf16.msra.mxu0 %v4433
    %4747 = vmatprep.subr.bf16.mxu0 %v4438
    %4748 = vmatpush1.bf16.msra.mxu0 %v4437
    %4749 = vmatprep.mubr.bf16.mxu0 %v3967
    %4750 = vmatmul.mubr.bf16.gmra.mrb[0].mxu0 %v3966
    %v4751 = vpop.f32.mrb[0].mxu0
    %v4752 = vadd.f32 %v3982, %v4751
    %v4753 = vpop.f32.mrb[0].mxu0
    %v4754 = vadd.f32 %v3986, %v4753
    %v4755 = vpop.f32.mrb[0].mxu0
    %v4756 = vadd.f32 %v3982, %v4755
    %v4757 = vpop.f32.mrb[0].mxu0
    %v4758 = vadd.f32 %v3986, %v4757
    %4759 = vdwg.mxu0
    %4760 = vmatprep.subr.bf16.mxu0 %v4442
    %4761 = vmatpush1.bf16.msra.mxu0 %v4441
    %4762 = vmatprep.subr.bf16.mxu0 %v4446
    %4763 = vmatpush1.bf16.msra.mxu0 %v4445
    %4764 = vmatprep.subr.bf16.mxu0 %v4450
    %4765 = vmatpush1.bf16.msra.mxu0 %v4449
    %4766 = vmatprep.subr.bf16.mxu0 %v4454
    %4767 = vmatpush1.bf16.msra.mxu0 %v4453
    %4768 = vmatprep.subr.bf16.mxu0 %v4458
    %4769 = vmatpush1.bf16.msra.mxu0 %v4457
    %4770 = vmatprep.subr.bf16.mxu0 %v4462
    %4771 = vmatpush1.bf16.msra.mxu0 %v4461
    %4772 = vmatprep.subr.bf16.mxu0 %v4466
    %4773 = vmatpush1.bf16.msra.mxu0 %v4465
    %4774 = vmatprep.subr.bf16.mxu0 %v4470
    %4775 = vmatpush1.bf16.msra.mxu0 %v4469
    %4776 = vmatprep.subr.bf16.mxu0 %v4474
    %4777 = vmatpush1.bf16.msra.mxu0 %v4473
    %4778 = vmatprep.subr.bf16.mxu0 %v4478
    %4779 = vmatpush1.bf16.msra.mxu0 %v4477
    %4780 = vmatprep.subr.bf16.mxu0 %v4482
    %4781 = vmatpush1.bf16.msra.mxu0 %v4481
    %4782 = vmatprep.subr.bf16.mxu0 %v4486
    %4783 = vmatpush1.bf16.msra.mxu0 %v4485
    %4784 = vmatprep.subr.bf16.mxu0 %v4490
    %4785 = vmatpush1.bf16.msra.mxu0 %v4489
    %4786 = vmatprep.subr.bf16.mxu0 %v4494
    %4787 = vmatpush1.bf16.msra.mxu0 %v4493
    %4788 = vmatprep.subr.bf16.mxu0 %v4498
    %4789 = vmatpush1.bf16.msra.mxu0 %v4497
    %4790 = vmatprep.subr.bf16.mxu0 %v4502
    %4791 = vmatpush1.bf16.msra.mxu0 %v4501
    %4792 = vmatprep.mubr.bf16.mxu0 %v3969
    %4793 = vmatmul.mubr.bf16.gmra.mrb[0].mxu0 %v3968
    %v4794 = vpop.f32.mrb[0].mxu0
    %v4795 = vadd.f32 %v4752, %v4794
    %v4796 = vpop.f32.mrb[0].mxu0
    %v4797 = vadd.f32 %v4754, %v4796
    %v4798 = vpop.f32.mrb[0].mxu0
    %v4799 = vadd.f32 %v4756, %v4798
    %v4800 = vpop.f32.mrb[0].mxu0
    %v4801 = vadd.f32 %v4758, %v4800
    %4802 = vdwg.mxu0
    %v4803 = vmax.f32 %v4709, 0.0
    %v4804 = vmax.f32 %v4711, 0.0
    %v4805 = vmax.f32 %v4795, 0.0
    %v4806 = vmax.f32 %v4797, 0.0
    %v4807 = vmax.f32 %v4713, 0.0
    %v4808 = vmax.f32 %v4715, 0.0
    %v4809 = vmax.f32 %v4799, 0.0
    %v4810 = vmax.f32 %v4801, 0.0
    %v4811 = vadd.f32 %v4803, %v3958
    %v4812 = vadd.f32 %v4804, %v3959
    %v4813 = vadd.f32 %v4805, %v3960
    %v4814 = vadd.f32 %v4806, %v3961
    %v4815 = vadd.f32 %v4807, %v3962
    %v4816 = vadd.f32 %v4808, %v3963
    %v4817 = vadd.f32 %v4809, %v3964
    %v4818 = vadd.f32 %v4810, %v3965
    %v4819 = vadd.f32 %v4811, %v1258
    %v4820 = vadd.f32 %v4812, %v1259
    %v4821 = vadd.f32 %v4813, %v1260
    %v4822 = vadd.f32 %v4814, %v1261
    %v4823 = vadd.f32 %v4815, %v1262
    %v4824 = vadd.f32 %v4816, %v1263
    %v4825 = vadd.f32 %v4817, %v1264
    %v4826 = vadd.f32 %v4818, %v1265
    %v4827 = vadd.f32 %v4819, %v4820
    %v4828 = vadd.f32 %v4827, %v4821
    %v4829 = vadd.f32 %v4828, %v4822
    %4830 = vadd.xlane.f32.xlu0 %v4829
    %v4831 = vpop.xlane.xlu0 %4830
    %v4832 = vadd.f32 %v4823, %v4824
    %v4833 = vadd.f32 %v4832, %v4825
    %v4834 = vadd.f32 %v4833, %v4826
    %4835 = vadd.xlane.f32.xlu0 %v4834
    %v4836 = vpop.xlane.xlu0 %4835
    %v4837 = vmul.f32 %v4831, %v3865
    %v4838 = vmul.f32 %v4836, %v3865
    %v4839 = vsub.f32 %v4819, %v4837
    %v4840 = vsub.f32 %v4820, %v4837
    %v4841 = vsub.f32 %v4821, %v4837
    %v4842 = vsub.f32 %v4822, %v4837
    %v4843 = vsub.f32 %v4823, %v4838
    %v4844 = vsub.f32 %v4824, %v4838
    %v4845 = vsub.f32 %v4825, %v4838
    %v4846 = vsub.f32 %v4826, %v4838
    %v4847 = vmul.f32 %v4839, %v4839
    %v4848 = vmul.f32 %v4840, %v4840
    %v4849 = vmul.f32 %v4841, %v4841
    %v4850 = vmul.f32 %v4842, %v4842
    %v4851 = vmul.f32 %v4843, %v4843
    %v4852 = vmul.f32 %v4844, %v4844
    %v4853 = vmul.f32 %v4845, %v4845
    %v4854 = vmul.f32 %v4846, %v4846
    %v4855 = vadd.f32 %v4847, %v4848
    %v4856 = vadd.f32 %v4855, %v4849
    %v4857 = vadd.f32 %v4856, %v4850
    %4858 = vadd.xlane.f32.xlu0 %v4857
    %v4859 = vpop.xlane.xlu0 %4858
    %v4860 = vadd.f32 %v4851, %v4852
    %v4861 = vadd.f32 %v4860, %v4853
    %v4862 = vadd.f32 %v4861, %v4854
    %4863 = vadd.xlane.f32.xlu0 %v4862
    %v4864 = vpop.xlane.xlu0 %4863
    %v4865 = vmul.f32 %v4859, %v3865
    %v4866 = vmul.f32 %v4864, %v3865
    %v4867 = vadd.f32 %v4865, 1e-05
    %v4868 = vadd.f32 %v4866, 1e-05
    %v4869 = vrsqrt.pop %v4867
    %v4870 = vrsqrt.pop %v4868
    %v4871 = vmul.f32 %v4839, %v4869
    %v4872 = vmul.f32 %v4840, %v4869
    %v4873 = vmul.f32 %v4841, %v4869
    %v4874 = vmul.f32 %v4842, %v4869
    %v4875 = vmul.f32 %v4843, %v4870
    %v4876 = vmul.f32 %v4844, %v4870
    %v4877 = vmul.f32 %v4845, %v4870
    %v4878 = vmul.f32 %v4846, %v4870
    %v4880 = vlaneseq
    %v4881 = vshrl.u32 %v4880, 7
    %v4882 = vsub.s32 0, %v4881
    %v4883 = vrot.slane %v1278, %v4882
    %v4884 = vlaneseq
    %v4885 = vshrl.u32 %v4884, 7
    %v4886 = vsub.s32 1, %v4885
    %v4887 = vrot.slane %v1278, %v4886
    %v4888 = vlaneseq
    %v4889 = vshrl.u32 %v4888, 7
    %v4890 = vsub.s32 2, %v4889
    %v4891 = vrot.slane %v1278, %v4890
    %v4892 = vlaneseq
    %v4893 = vshrl.u32 %v4892, 7
    %v4894 = vsub.s32 3, %v4893
    %v4895 = vrot.slane %v1278, %v4894
    %v4900 = vmul.f32 %v4871, %v4883
    %v4901 = vmul.f32 %v4872, %v4887
    %v4902 = vmul.f32 %v4873, %v4891
    %v4903 = vmul.f32 %v4874, %v4895
    %v4904 = vmul.f32 %v4875, %v4883
    %v4905 = vmul.f32 %v4876, %v4887
    %v4906 = vmul.f32 %v4877, %v4891
    %v4907 = vmul.f32 %v4878, %v4895
    %v4909 = vlaneseq
    %v4910 = vshrl.u32 %v4909, 7
    %v4911 = vsub.s32 0, %v4910
    %v4912 = vrot.slane %v1280, %v4911
    %v4913 = vlaneseq
    %v4914 = vshrl.u32 %v4913, 7
    %v4915 = vsub.s32 1, %v4914
    %v4916 = vrot.slane %v1280, %v4915
    %v4917 = vlaneseq
    %v4918 = vshrl.u32 %v4917, 7
    %v4919 = vsub.s32 2, %v4918
    %v4920 = vrot.slane %v1280, %v4919
    %v4921 = vlaneseq
    %v4922 = vshrl.u32 %v4921, 7
    %v4923 = vsub.s32 3, %v4922
    %v4924 = vrot.slane %v1280, %v4923
    %v4929 = vadd.f32 %v4900, %v4912
    %v4930 = vadd.f32 %v4901, %v4916
    %v4931 = vadd.f32 %v4902, %v4920
    %v4932 = vadd.f32 %v4903, %v4924
    %v4933 = vadd.f32 %v4904, %v4912
    %v4934 = vadd.f32 %v4905, %v4916
    %v4935 = vadd.f32 %v4906, %v4920
    %v4936 = vadd.f32 %v4907, %v4924
    %v4937 = vpack.c.bf16 %v4933, %v4929
    %v4938 = vpack.c.bf16 %v4934, %v4930
    %v4939 = vpack.c.bf16 %v4935, %v4931
    %v4940 = vpack.c.bf16 %v4936, %v4932
    %v4942 = vlaneseq
    %v4943 = vshrl.u32 %v4942, 7
    %v4944 = vsub.s32 0, %v4943
    %v4945 = vrot.slane %v1284, %v4944
    %v4946 = vlaneseq
    %v4947 = vshrl.u32 %v4946, 7
    %v4948 = vsub.s32 1, %v4947
    %v4949 = vrot.slane %v1284, %v4948
    %v4950 = vlaneseq
    %v4951 = vshrl.u32 %v4950, 7
    %v4952 = vsub.s32 2, %v4951
    %v4953 = vrot.slane %v1284, %v4952
    %v4954 = vlaneseq
    %v4955 = vshrl.u32 %v4954, 7
    %v4956 = vsub.s32 3, %v4955
    %v4957 = vrot.slane %v1284, %v4956
    %v4958 = vlaneseq
    %v4959 = vshrl.u32 %v4958, 7
    %v4960 = vsub.s32 4, %v4959
    %v4961 = vrot.slane %v1284, %v4960
    %v4962 = vlaneseq
    %v4963 = vshrl.u32 %v4962, 7
    %v4964 = vsub.s32 5, %v4963
    %v4965 = vrot.slane %v1284, %v4964
    %v4966 = vlaneseq
    %v4967 = vshrl.u32 %v4966, 7
    %v4968 = vsub.s32 6, %v4967
    %v4969 = vrot.slane %v1284, %v4968
    %v4970 = vlaneseq
    %v4971 = vshrl.u32 %v4970, 7
    %v4972 = vsub.s32 7, %v4971
    %v4973 = vrot.slane %v1284, %v4972
    %v5238 = vunpack.c.l.b16 %v646
    %v5239 = vunpack.c.h.b16 %v646
    %v5240 = vunpack.c.l.b16 %v647
    %v5241 = vunpack.c.h.b16 %v647
    %v5242 = vunpack.c.l.b16 %v648
    %v5243 = vunpack.c.h.b16 %v648
    %v5244 = vunpack.c.l.b16 %v649
    %v5245 = vunpack.c.h.b16 %v649
    %v5246 = vunpack.c.l.b16 %v650
    %v5247 = vunpack.c.h.b16 %v650
    %v5248 = vunpack.c.l.b16 %v651
    %v5249 = vunpack.c.h.b16 %v651
    %v5250 = vunpack.c.l.b16 %v652
    %v5251 = vunpack.c.h.b16 %v652
    %v5252 = vunpack.c.l.b16 %v653
    %v5253 = vunpack.c.h.b16 %v653
    %v5254 = vunpack.c.l.b16 %v654
    %v5255 = vunpack.c.h.b16 %v654
    %v5256 = vunpack.c.l.b16 %v655
    %v5257 = vunpack.c.h.b16 %v655
    %v5258 = vunpack.c.l.b16 %v656
    %v5259 = vunpack.c.h.b16 %v656
    %v5260 = vunpack.c.l.b16 %v657
    %v5261 = vunpack.c.h.b16 %v657
    %v5262 = vunpack.c.l.b16 %v658
    %v5263 = vunpack.c.h.b16 %v658
    %v5264 = vunpack.c.l.b16 %v659
    %v5265 = vunpack.c.h.b16 %v659
    %v5266 = vunpack.c.l.b16 %v660
    %v5267 = vunpack.c.h.b16 %v660
    %v5268 = vunpack.c.l.b16 %v661
    %v5269 = vunpack.c.h.b16 %v661
    %v5270 = vunpack.c.l.b16 %v662
    %v5271 = vunpack.c.h.b16 %v662
    %v5272 = vunpack.c.l.b16 %v663
    %v5273 = vunpack.c.h.b16 %v663
    %v5274 = vunpack.c.l.b16 %v664
    %v5275 = vunpack.c.h.b16 %v664
    %v5276 = vunpack.c.l.b16 %v665
    %v5277 = vunpack.c.h.b16 %v665
    %v5278 = vunpack.c.l.b16 %v666
    %v5279 = vunpack.c.h.b16 %v666
    %v5280 = vunpack.c.l.b16 %v667
    %v5281 = vunpack.c.h.b16 %v667
    %v5282 = vunpack.c.l.b16 %v668
    %v5283 = vunpack.c.h.b16 %v668
    %v5284 = vunpack.c.l.b16 %v669
    %v5285 = vunpack.c.h.b16 %v669
    %v5286 = vunpack.c.l.b16 %v670
    %v5287 = vunpack.c.h.b16 %v670
    %v5288 = vunpack.c.l.b16 %v671
    %v5289 = vunpack.c.h.b16 %v671
    %v5290 = vunpack.c.l.b16 %v672
    %v5291 = vunpack.c.h.b16 %v672
    %v5292 = vunpack.c.l.b16 %v673
    %v5293 = vunpack.c.h.b16 %v673
    %v5294 = vunpack.c.l.b16 %v674
    %v5295 = vunpack.c.h.b16 %v674
    %v5296 = vunpack.c.l.b16 %v675
    %v5297 = vunpack.c.h.b16 %v675
    %v5298 = vunpack.c.l.b16 %v676
    %v5299 = vunpack.c.h.b16 %v676
    %v5300 = vunpack.c.l.b16 %v677
    %v5301 = vunpack.c.h.b16 %v677
    %v5302 = vunpack.c.l.b16 %v678
    %v5303 = vunpack.c.h.b16 %v678
    %v5304 = vunpack.c.l.b16 %v679
    %v5305 = vunpack.c.h.b16 %v679
    %v5306 = vunpack.c.l.b16 %v680
    %v5307 = vunpack.c.h.b16 %v680
    %v5308 = vunpack.c.l.b16 %v681
    %v5309 = vunpack.c.h.b16 %v681
    %v5310 = vunpack.c.l.b16 %v682
    %v5311 = vunpack.c.h.b16 %v682
    %v5312 = vunpack.c.l.b16 %v683
    %v5313 = vunpack.c.h.b16 %v683
    %v5314 = vunpack.c.l.b16 %v684
    %v5315 = vunpack.c.h.b16 %v684
    %v5316 = vunpack.c.l.b16 %v685
    %v5317 = vunpack.c.h.b16 %v685
    %v5318 = vunpack.c.l.b16 %v686
    %v5319 = vunpack.c.h.b16 %v686
    %v5320 = vunpack.c.l.b16 %v687
    %v5321 = vunpack.c.h.b16 %v687
    %v5322 = vunpack.c.l.b16 %v688
    %v5323 = vunpack.c.h.b16 %v688
    %v5324 = vunpack.c.l.b16 %v689
    %v5325 = vunpack.c.h.b16 %v689
    %v5326 = vunpack.c.l.b16 %v690
    %v5327 = vunpack.c.h.b16 %v690
    %v5328 = vunpack.c.l.b16 %v691
    %v5329 = vunpack.c.h.b16 %v691
    %v5330 = vunpack.c.l.b16 %v692
    %v5331 = vunpack.c.h.b16 %v692
    %v5332 = vunpack.c.l.b16 %v693
    %v5333 = vunpack.c.h.b16 %v693
    %v5334 = vunpack.c.l.b16 %v694
    %v5335 = vunpack.c.h.b16 %v694
    %v5336 = vunpack.c.l.b16 %v695
    %v5337 = vunpack.c.h.b16 %v695
    %v5338 = vunpack.c.l.b16 %v696
    %v5339 = vunpack.c.h.b16 %v696
    %v5340 = vunpack.c.l.b16 %v697
    %v5341 = vunpack.c.h.b16 %v697
    %v5342 = vunpack.c.l.b16 %v698
    %v5343 = vunpack.c.h.b16 %v698
    %v5344 = vunpack.c.l.b16 %v699
    %v5345 = vunpack.c.h.b16 %v699
    %v5346 = vunpack.c.l.b16 %v700
    %v5347 = vunpack.c.h.b16 %v700
    %v5348 = vunpack.c.l.b16 %v701
    %v5349 = vunpack.c.h.b16 %v701
    %v5350 = vunpack.c.l.b16 %v702
    %v5351 = vunpack.c.h.b16 %v702
    %v5352 = vunpack.c.l.b16 %v703
    %v5353 = vunpack.c.h.b16 %v703
    %v5354 = vunpack.c.l.b16 %v704
    %v5355 = vunpack.c.h.b16 %v704
    %v5356 = vunpack.c.l.b16 %v705
    %v5357 = vunpack.c.h.b16 %v705
    %v5358 = vunpack.c.l.b16 %v706
    %v5359 = vunpack.c.h.b16 %v706
    %v5360 = vunpack.c.l.b16 %v707
    %v5361 = vunpack.c.h.b16 %v707
    %v5362 = vunpack.c.l.b16 %v708
    %v5363 = vunpack.c.h.b16 %v708
    %v5364 = vunpack.c.l.b16 %v709
    %v5365 = vunpack.c.h.b16 %v709
    %v5366 = vunpack.c.l.b16 %v710
    %v5367 = vunpack.c.h.b16 %v710
    %v5368 = vunpack.c.l.b16 %v711
    %v5369 = vunpack.c.h.b16 %v711
    %v5370 = vunpack.c.l.b16 %v712
    %v5371 = vunpack.c.h.b16 %v712
    %v5372 = vunpack.c.l.b16 %v713
    %v5373 = vunpack.c.h.b16 %v713
    %v5374 = vunpack.c.l.b16 %v714
    %v5375 = vunpack.c.h.b16 %v714
    %v5376 = vunpack.c.l.b16 %v715
    %v5377 = vunpack.c.h.b16 %v715
    %v5378 = vunpack.c.l.b16 %v716
    %v5379 = vunpack.c.h.b16 %v716
    %v5380 = vunpack.c.l.b16 %v717
    %v5381 = vunpack.c.h.b16 %v717
    %v5382 = vunpack.c.l.b16 %v718
    %v5383 = vunpack.c.h.b16 %v718
    %v5384 = vunpack.c.l.b16 %v719
    %v5385 = vunpack.c.h.b16 %v719
    %v5386 = vunpack.c.l.b16 %v720
    %v5387 = vunpack.c.h.b16 %v720
    %v5388 = vunpack.c.l.b16 %v721
    %v5389 = vunpack.c.h.b16 %v721
    %v5390 = vunpack.c.l.b16 %v722
    %v5391 = vunpack.c.h.b16 %v722
    %v5392 = vunpack.c.l.b16 %v723
    %v5393 = vunpack.c.h.b16 %v723
    %v5394 = vunpack.c.l.b16 %v724
    %v5395 = vunpack.c.h.b16 %v724
    %v5396 = vunpack.c.l.b16 %v725
    %v5397 = vunpack.c.h.b16 %v725
    %v5398 = vunpack.c.l.b16 %v726
    %v5399 = vunpack.c.h.b16 %v726
    %v5400 = vunpack.c.l.b16 %v727
    %v5401 = vunpack.c.h.b16 %v727
    %v5402 = vunpack.c.l.b16 %v728
    %v5403 = vunpack.c.h.b16 %v728
    %v5404 = vunpack.c.l.b16 %v729
    %v5405 = vunpack.c.h.b16 %v729
    %v5406 = vunpack.c.l.b16 %v730
    %v5407 = vunpack.c.h.b16 %v730
    %v5408 = vunpack.c.l.b16 %v731
    %v5409 = vunpack.c.h.b16 %v731
    %v5410 = vunpack.c.l.b16 %v732
    %v5411 = vunpack.c.h.b16 %v732
    %v5412 = vunpack.c.l.b16 %v733
    %v5413 = vunpack.c.h.b16 %v733
    %v5414 = vunpack.c.l.b16 %v734
    %v5415 = vunpack.c.h.b16 %v734
    %v5416 = vunpack.c.l.b16 %v735
    %v5417 = vunpack.c.h.b16 %v735
    %v5418 = vunpack.c.l.b16 %v736
    %v5419 = vunpack.c.h.b16 %v736
    %v5420 = vunpack.c.l.b16 %v737
    %v5421 = vunpack.c.h.b16 %v737
    %v5422 = vunpack.c.l.b16 %v738
    %v5423 = vunpack.c.h.b16 %v738
    %v5424 = vunpack.c.l.b16 %v739
    %v5425 = vunpack.c.h.b16 %v739
    %v5426 = vunpack.c.l.b16 %v740
    %v5427 = vunpack.c.h.b16 %v740
    %v5428 = vunpack.c.l.b16 %v741
    %v5429 = vunpack.c.h.b16 %v741
    %v5430 = vunpack.c.l.b16 %v742
    %v5431 = vunpack.c.h.b16 %v742
    %v5432 = vunpack.c.l.b16 %v743
    %v5433 = vunpack.c.h.b16 %v743
    %v5434 = vunpack.c.l.b16 %v744
    %v5435 = vunpack.c.h.b16 %v744
    %v5436 = vunpack.c.l.b16 %v745
    %v5437 = vunpack.c.h.b16 %v745
    %v5438 = vunpack.c.l.b16 %v746
    %v5439 = vunpack.c.h.b16 %v746
    %v5440 = vunpack.c.l.b16 %v747
    %v5441 = vunpack.c.h.b16 %v747
    %v5442 = vunpack.c.l.b16 %v748
    %v5443 = vunpack.c.h.b16 %v748
    %v5444 = vunpack.c.l.b16 %v749
    %v5445 = vunpack.c.h.b16 %v749
    %v5446 = vunpack.c.l.b16 %v750
    %v5447 = vunpack.c.h.b16 %v750
    %v5448 = vunpack.c.l.b16 %v751
    %v5449 = vunpack.c.h.b16 %v751
    %v5450 = vunpack.c.l.b16 %v752
    %v5451 = vunpack.c.h.b16 %v752
    %v5452 = vunpack.c.l.b16 %v753
    %v5453 = vunpack.c.h.b16 %v753
    %v5454 = vunpack.c.l.b16 %v754
    %v5455 = vunpack.c.h.b16 %v754
    %v5456 = vunpack.c.l.b16 %v755
    %v5457 = vunpack.c.h.b16 %v755
    %v5458 = vunpack.c.l.b16 %v756
    %v5459 = vunpack.c.h.b16 %v756
    %v5460 = vunpack.c.l.b16 %v757
    %v5461 = vunpack.c.h.b16 %v757
    %v5462 = vunpack.c.l.b16 %v758
    %v5463 = vunpack.c.h.b16 %v758
    %v5464 = vunpack.c.l.b16 %v759
    %v5465 = vunpack.c.h.b16 %v759
    %v5466 = vunpack.c.l.b16 %v760
    %v5467 = vunpack.c.h.b16 %v760
    %v5468 = vunpack.c.l.b16 %v761
    %v5469 = vunpack.c.h.b16 %v761
    %v5470 = vunpack.c.l.b16 %v762
    %v5471 = vunpack.c.h.b16 %v762
    %v5472 = vunpack.c.l.b16 %v763
    %v5473 = vunpack.c.h.b16 %v763
    %v5474 = vunpack.c.l.b16 %v764
    %v5475 = vunpack.c.h.b16 %v764
    %v5476 = vunpack.c.l.b16 %v765
    %v5477 = vunpack.c.h.b16 %v765
    %v5478 = vunpack.c.l.b16 %v766
    %v5479 = vunpack.c.h.b16 %v766
    %v5480 = vunpack.c.l.b16 %v767
    %v5481 = vunpack.c.h.b16 %v767
    %v5482 = vunpack.c.l.b16 %v768
    %v5483 = vunpack.c.h.b16 %v768
    %v5484 = vunpack.c.l.b16 %v769
    %v5485 = vunpack.c.h.b16 %v769
    %v5486 = vunpack.c.l.b16 %v770
    %v5487 = vunpack.c.h.b16 %v770
    %v5488 = vunpack.c.l.b16 %v771
    %v5489 = vunpack.c.h.b16 %v771
    %v5490 = vunpack.c.l.b16 %v772
    %v5491 = vunpack.c.h.b16 %v772
    %v5492 = vunpack.c.l.b16 %v773
    %v5493 = vunpack.c.h.b16 %v773
    %v5494 = vunpack.c.l.b16 %v774
    %v5495 = vunpack.c.h.b16 %v774
    %v5496 = vunpack.c.l.b16 %v775
    %v5497 = vunpack.c.h.b16 %v775
    %v5498 = vunpack.c.l.b16 %v776
    %v5499 = vunpack.c.h.b16 %v776
    %v5500 = vunpack.c.l.b16 %v777
    %v5501 = vunpack.c.h.b16 %v777
    %v5502 = vunpack.c.l.b16 %v778
    %v5503 = vunpack.c.h.b16 %v778
    %v5504 = vunpack.c.l.b16 %v779
    %v5505 = vunpack.c.h.b16 %v779
    %v5506 = vunpack.c.l.b16 %v780
    %v5507 = vunpack.c.h.b16 %v780
    %v5508 = vunpack.c.l.b16 %v781
    %v5509 = vunpack.c.h.b16 %v781
    %v5510 = vunpack.c.l.b16 %v782
    %v5511 = vunpack.c.h.b16 %v782
    %v5512 = vunpack.c.l.b16 %v783
    %v5513 = vunpack.c.h.b16 %v783
    %v5514 = vunpack.c.l.b16 %v784
    %v5515 = vunpack.c.h.b16 %v784
    %v5516 = vunpack.c.l.b16 %v785
    %v5517 = vunpack.c.h.b16 %v785
    %v5518 = vunpack.c.l.b16 %v786
    %v5519 = vunpack.c.h.b16 %v786
    %v5520 = vunpack.c.l.b16 %v787
    %v5521 = vunpack.c.h.b16 %v787
    %v5522 = vunpack.c.l.b16 %v788
    %v5523 = vunpack.c.h.b16 %v788
    %v5524 = vunpack.c.l.b16 %v789
    %v5525 = vunpack.c.h.b16 %v789
    %v5526 = vunpack.c.l.b16 %v790
    %v5527 = vunpack.c.h.b16 %v790
    %v5528 = vunpack.c.l.b16 %v791
    %v5529 = vunpack.c.h.b16 %v791
    %v5530 = vunpack.c.l.b16 %v792
    %v5531 = vunpack.c.h.b16 %v792
    %v5532 = vunpack.c.l.b16 %v793
    %v5533 = vunpack.c.h.b16 %v793
    %v5534 = vunpack.c.l.b16 %v794
    %v5535 = vunpack.c.h.b16 %v794
    %v5536 = vunpack.c.l.b16 %v795
    %v5537 = vunpack.c.h.b16 %v795
    %v5538 = vunpack.c.l.b16 %v796
    %v5539 = vunpack.c.h.b16 %v796
    %v5540 = vunpack.c.l.b16 %v797
    %v5541 = vunpack.c.h.b16 %v797
    %v5542 = vunpack.c.l.b16 %v798
    %v5543 = vunpack.c.h.b16 %v798
    %v5544 = vunpack.c.l.b16 %v799
    %v5545 = vunpack.c.h.b16 %v799
    %v5546 = vunpack.c.l.b16 %v800
    %v5547 = vunpack.c.h.b16 %v800
    %v5548 = vunpack.c.l.b16 %v801
    %v5549 = vunpack.c.h.b16 %v801
    %v5550 = vunpack.c.l.b16 %v802
    %v5551 = vunpack.c.h.b16 %v802
    %v5552 = vunpack.c.l.b16 %v803
    %v5553 = vunpack.c.h.b16 %v803
    %v5554 = vunpack.c.l.b16 %v804
    %v5555 = vunpack.c.h.b16 %v804
    %v5556 = vunpack.c.l.b16 %v805
    %v5557 = vunpack.c.h.b16 %v805
    %v5558 = vunpack.c.l.b16 %v806
    %v5559 = vunpack.c.h.b16 %v806
    %v5560 = vunpack.c.l.b16 %v807
    %v5561 = vunpack.c.h.b16 %v807
    %v5562 = vunpack.c.l.b16 %v808
    %v5563 = vunpack.c.h.b16 %v808
    %v5564 = vunpack.c.l.b16 %v809
    %v5565 = vunpack.c.h.b16 %v809
    %v5566 = vunpack.c.l.b16 %v810
    %v5567 = vunpack.c.h.b16 %v810
    %v5568 = vunpack.c.l.b16 %v811
    %v5569 = vunpack.c.h.b16 %v811
    %v5570 = vunpack.c.l.b16 %v812
    %v5571 = vunpack.c.h.b16 %v812
    %v5572 = vunpack.c.l.b16 %v813
    %v5573 = vunpack.c.h.b16 %v813
    %v5574 = vunpack.c.l.b16 %v814
    %v5575 = vunpack.c.h.b16 %v814
    %v5576 = vunpack.c.l.b16 %v815
    %v5577 = vunpack.c.h.b16 %v815
    %v5578 = vunpack.c.l.b16 %v816
    %v5579 = vunpack.c.h.b16 %v816
    %v5580 = vunpack.c.l.b16 %v817
    %v5581 = vunpack.c.h.b16 %v817
    %v5582 = vunpack.c.l.b16 %v818
    %v5583 = vunpack.c.h.b16 %v818
    %v5584 = vunpack.c.l.b16 %v819
    %v5585 = vunpack.c.h.b16 %v819
    %v5586 = vunpack.c.l.b16 %v820
    %v5587 = vunpack.c.h.b16 %v820
    %v5588 = vunpack.c.l.b16 %v821
    %v5589 = vunpack.c.h.b16 %v821
    %v5590 = vunpack.c.l.b16 %v822
    %v5591 = vunpack.c.h.b16 %v822
    %v5592 = vunpack.c.l.b16 %v823
    %v5593 = vunpack.c.h.b16 %v823
    %v5594 = vunpack.c.l.b16 %v824
    %v5595 = vunpack.c.h.b16 %v824
    %v5596 = vunpack.c.l.b16 %v825
    %v5597 = vunpack.c.h.b16 %v825
    %v5598 = vunpack.c.l.b16 %v826
    %v5599 = vunpack.c.h.b16 %v826
    %v5600 = vunpack.c.l.b16 %v827
    %v5601 = vunpack.c.h.b16 %v827
    %v5602 = vunpack.c.l.b16 %v828
    %v5603 = vunpack.c.h.b16 %v828
    %v5604 = vunpack.c.l.b16 %v829
    %v5605 = vunpack.c.h.b16 %v829
    %v5606 = vunpack.c.l.b16 %v830
    %v5607 = vunpack.c.h.b16 %v830
    %v5608 = vunpack.c.l.b16 %v831
    %v5609 = vunpack.c.h.b16 %v831
    %v5610 = vunpack.c.l.b16 %v832
    %v5611 = vunpack.c.h.b16 %v832
    %v5612 = vunpack.c.l.b16 %v833
    %v5613 = vunpack.c.h.b16 %v833
    %v5614 = vunpack.c.l.b16 %v834
    %v5615 = vunpack.c.h.b16 %v834
    %v5616 = vunpack.c.l.b16 %v835
    %v5617 = vunpack.c.h.b16 %v835
    %v5618 = vunpack.c.l.b16 %v836
    %v5619 = vunpack.c.h.b16 %v836
    %v5620 = vunpack.c.l.b16 %v837
    %v5621 = vunpack.c.h.b16 %v837
    %v5622 = vunpack.c.l.b16 %v838
    %v5623 = vunpack.c.h.b16 %v838
    %v5624 = vunpack.c.l.b16 %v839
    %v5625 = vunpack.c.h.b16 %v839
    %v5626 = vunpack.c.l.b16 %v840
    %v5627 = vunpack.c.h.b16 %v840
    %v5628 = vunpack.c.l.b16 %v841
    %v5629 = vunpack.c.h.b16 %v841
    %v5630 = vunpack.c.l.b16 %v842
    %v5631 = vunpack.c.h.b16 %v842
    %v5632 = vunpack.c.l.b16 %v843
    %v5633 = vunpack.c.h.b16 %v843
    %v5634 = vunpack.c.l.b16 %v844
    %v5635 = vunpack.c.h.b16 %v844
    %v5636 = vunpack.c.l.b16 %v845
    %v5637 = vunpack.c.h.b16 %v845
    %v5638 = vunpack.c.l.b16 %v846
    %v5639 = vunpack.c.h.b16 %v846
    %v5640 = vunpack.c.l.b16 %v847
    %v5641 = vunpack.c.h.b16 %v847
    %v5642 = vunpack.c.l.b16 %v848
    %v5643 = vunpack.c.h.b16 %v848
    %v5644 = vunpack.c.l.b16 %v849
    %v5645 = vunpack.c.h.b16 %v849
    %v5646 = vunpack.c.l.b16 %v850
    %v5647 = vunpack.c.h.b16 %v850
    %v5648 = vunpack.c.l.b16 %v851
    %v5649 = vunpack.c.h.b16 %v851
    %v5650 = vunpack.c.l.b16 %v852
    %v5651 = vunpack.c.h.b16 %v852
    %v5652 = vunpack.c.l.b16 %v853
    %v5653 = vunpack.c.h.b16 %v853
    %v5654 = vunpack.c.l.b16 %v854
    %v5655 = vunpack.c.h.b16 %v854
    %v5656 = vunpack.c.l.b16 %v855
    %v5657 = vunpack.c.h.b16 %v855
    %v5658 = vunpack.c.l.b16 %v856
    %v5659 = vunpack.c.h.b16 %v856
    %v5660 = vunpack.c.l.b16 %v857
    %v5661 = vunpack.c.h.b16 %v857
    %v5662 = vunpack.c.l.b16 %v858
    %v5663 = vunpack.c.h.b16 %v858
    %v5664 = vunpack.c.l.b16 %v859
    %v5665 = vunpack.c.h.b16 %v859
    %v5666 = vunpack.c.l.b16 %v860
    %v5667 = vunpack.c.h.b16 %v860
    %v5668 = vunpack.c.l.b16 %v861
    %v5669 = vunpack.c.h.b16 %v861
    %v5670 = vunpack.c.l.b16 %v862
    %v5671 = vunpack.c.h.b16 %v862
    %v5672 = vunpack.c.l.b16 %v863
    %v5673 = vunpack.c.h.b16 %v863
    %v5674 = vunpack.c.l.b16 %v864
    %v5675 = vunpack.c.h.b16 %v864
    %v5676 = vunpack.c.l.b16 %v865
    %v5677 = vunpack.c.h.b16 %v865
    %v5678 = vunpack.c.l.b16 %v866
    %v5679 = vunpack.c.h.b16 %v866
    %v5680 = vunpack.c.l.b16 %v867
    %v5681 = vunpack.c.h.b16 %v867
    %v5682 = vunpack.c.l.b16 %v868
    %v5683 = vunpack.c.h.b16 %v868
    %v5684 = vunpack.c.l.b16 %v869
    %v5685 = vunpack.c.h.b16 %v869
    %v5686 = vunpack.c.l.b16 %v870
    %v5687 = vunpack.c.h.b16 %v870
    %v5688 = vunpack.c.l.b16 %v871
    %v5689 = vunpack.c.h.b16 %v871
    %v5690 = vunpack.c.l.b16 %v872
    %v5691 = vunpack.c.h.b16 %v872
    %v5692 = vunpack.c.l.b16 %v873
    %v5693 = vunpack.c.h.b16 %v873
    %v5694 = vunpack.c.l.b16 %v874
    %v5695 = vunpack.c.h.b16 %v874
    %v5696 = vunpack.c.l.b16 %v875
    %v5697 = vunpack.c.h.b16 %v875
    %v5698 = vunpack.c.l.b16 %v876
    %v5699 = vunpack.c.h.b16 %v876
    %v5700 = vunpack.c.l.b16 %v877
    %v5701 = vunpack.c.h.b16 %v877
    %v5702 = vunpack.c.l.b16 %v878
    %v5703 = vunpack.c.h.b16 %v878
    %v5704 = vunpack.c.l.b16 %v879
    %v5705 = vunpack.c.h.b16 %v879
    %v5706 = vunpack.c.l.b16 %v880
    %v5707 = vunpack.c.h.b16 %v880
    %v5708 = vunpack.c.l.b16 %v881
    %v5709 = vunpack.c.h.b16 %v881
    %v5710 = vunpack.c.l.b16 %v882
    %v5711 = vunpack.c.h.b16 %v882
    %v5712 = vunpack.c.l.b16 %v883
    %v5713 = vunpack.c.h.b16 %v883
    %v5714 = vunpack.c.l.b16 %v884
    %v5715 = vunpack.c.h.b16 %v884
    %v5716 = vunpack.c.l.b16 %v885
    %v5717 = vunpack.c.h.b16 %v885
    %v5718 = vunpack.c.l.b16 %v886
    %v5719 = vunpack.c.h.b16 %v886
    %v5720 = vunpack.c.l.b16 %v887
    %v5721 = vunpack.c.h.b16 %v887
    %v5722 = vunpack.c.l.b16 %v888
    %v5723 = vunpack.c.h.b16 %v888
    %v5724 = vunpack.c.l.b16 %v889
    %v5725 = vunpack.c.h.b16 %v889
    %v5726 = vunpack.c.l.b16 %v890
    %v5727 = vunpack.c.h.b16 %v890
    %v5728 = vunpack.c.l.b16 %v891
    %v5729 = vunpack.c.h.b16 %v891
    %v5730 = vunpack.c.l.b16 %v892
    %v5731 = vunpack.c.h.b16 %v892
    %v5732 = vunpack.c.l.b16 %v893
    %v5733 = vunpack.c.h.b16 %v893
    %v5734 = vunpack.c.l.b16 %v894
    %v5735 = vunpack.c.h.b16 %v894
    %v5736 = vunpack.c.l.b16 %v895
    %v5737 = vunpack.c.h.b16 %v895
    %v5738 = vunpack.c.l.b16 %v896
    %v5739 = vunpack.c.h.b16 %v896
    %v5740 = vunpack.c.l.b16 %v897
    %v5741 = vunpack.c.h.b16 %v897
    %v5742 = vunpack.c.l.b16 %v898
    %v5743 = vunpack.c.h.b16 %v898
    %v5744 = vunpack.c.l.b16 %v899
    %v5745 = vunpack.c.h.b16 %v899
    %v5746 = vunpack.c.l.b16 %v900
    %v5747 = vunpack.c.h.b16 %v900
    %v5748 = vunpack.c.l.b16 %v901
    %v5749 = vunpack.c.h.b16 %v901
    %v5750 = vpack.c.b16 %v5246, %v5238
    %v5751 = vpack.c.b16 %v5247, %v5239
    %v5752 = vpack.c.b16 %v5248, %v5240
    %v5753 = vpack.c.b16 %v5249, %v5241
    %v5754 = vpack.c.b16 %v5250, %v5242
    %v5755 = vpack.c.b16 %v5251, %v5243
    %v5756 = vpack.c.b16 %v5252, %v5244
    %v5757 = vpack.c.b16 %v5253, %v5245
    %v5758 = vpack.c.b16 %v5262, %v5254
    %v5759 = vpack.c.b16 %v5263, %v5255
    %v5760 = vpack.c.b16 %v5264, %v5256
    %v5761 = vpack.c.b16 %v5265, %v5257
    %v5762 = vpack.c.b16 %v5266, %v5258
    %v5763 = vpack.c.b16 %v5267, %v5259
    %v5764 = vpack.c.b16 %v5268, %v5260
    %v5765 = vpack.c.b16 %v5269, %v5261
    %v5766 = vpack.c.b16 %v5278, %v5270
    %v5767 = vpack.c.b16 %v5279, %v5271
    %v5768 = vpack.c.b16 %v5280, %v5272
    %v5769 = vpack.c.b16 %v5281, %v5273
    %v5770 = vpack.c.b16 %v5282, %v5274
    %v5771 = vpack.c.b16 %v5283, %v5275
    %v5772 = vpack.c.b16 %v5284, %v5276
    %v5773 = vpack.c.b16 %v5285, %v5277
    %v5774 = vpack.c.b16 %v5294, %v5286
    %v5775 = vpack.c.b16 %v5295, %v5287
    %v5776 = vpack.c.b16 %v5296, %v5288
    %v5777 = vpack.c.b16 %v5297, %v5289
    %v5778 = vpack.c.b16 %v5298, %v5290
    %v5779 = vpack.c.b16 %v5299, %v5291
    %v5780 = vpack.c.b16 %v5300, %v5292
    %v5781 = vpack.c.b16 %v5301, %v5293
    %v5782 = vpack.c.b16 %v5310, %v5302
    %v5783 = vpack.c.b16 %v5311, %v5303
    %v5784 = vpack.c.b16 %v5312, %v5304
    %v5785 = vpack.c.b16 %v5313, %v5305
    %v5786 = vpack.c.b16 %v5314, %v5306
    %v5787 = vpack.c.b16 %v5315, %v5307
    %v5788 = vpack.c.b16 %v5316, %v5308
    %v5789 = vpack.c.b16 %v5317, %v5309
    %v5790 = vpack.c.b16 %v5326, %v5318
    %v5791 = vpack.c.b16 %v5327, %v5319
    %v5792 = vpack.c.b16 %v5328, %v5320
    %v5793 = vpack.c.b16 %v5329, %v5321
    %v5794 = vpack.c.b16 %v5330, %v5322
    %v5795 = vpack.c.b16 %v5331, %v5323
    %v5796 = vpack.c.b16 %v5332, %v5324
    %v5797 = vpack.c.b16 %v5333, %v5325
    %v5798 = vpack.c.b16 %v5342, %v5334
    %v5799 = vpack.c.b16 %v5343, %v5335
    %v5800 = vpack.c.b16 %v5344, %v5336
    %v5801 = vpack.c.b16 %v5345, %v5337
    %v5802 = vpack.c.b16 %v5346, %v5338
    %v5803 = vpack.c.b16 %v5347, %v5339
    %v5804 = vpack.c.b16 %v5348, %v5340
    %v5805 = vpack.c.b16 %v5349, %v5341
    %v5806 = vpack.c.b16 %v5358, %v5350
    %v5807 = vpack.c.b16 %v5359, %v5351
    %v5808 = vpack.c.b16 %v5360, %v5352
    %v5809 = vpack.c.b16 %v5361, %v5353
    %v5810 = vpack.c.b16 %v5362, %v5354
    %v5811 = vpack.c.b16 %v5363, %v5355
    %v5812 = vpack.c.b16 %v5364, %v5356
    %v5813 = vpack.c.b16 %v5365, %v5357
    %v5814 = vpack.c.b16 %v5374, %v5366
    %v5815 = vpack.c.b16 %v5375, %v5367
    %v5816 = vpack.c.b16 %v5376, %v5368
    %v5817 = vpack.c.b16 %v5377, %v5369
    %v5818 = vpack.c.b16 %v5378, %v5370
    %v5819 = vpack.c.b16 %v5379, %v5371
    %v5820 = vpack.c.b16 %v5380, %v5372
    %v5821 = vpack.c.b16 %v5381, %v5373
    %v5822 = vpack.c.b16 %v5390, %v5382
    %v5823 = vpack.c.b16 %v5391, %v5383
    %v5824 = vpack.c.b16 %v5392, %v5384
    %v5825 = vpack.c.b16 %v5393, %v5385
    %v5826 = vpack.c.b16 %v5394, %v5386
    %v5827 = vpack.c.b16 %v5395, %v5387
    %v5828 = vpack.c.b16 %v5396, %v5388
    %v5829 = vpack.c.b16 %v5397, %v5389
    %v5830 = vpack.c.b16 %v5406, %v5398
    %v5831 = vpack.c.b16 %v5407, %v5399
    %v5832 = vpack.c.b16 %v5408, %v5400
    %v5833 = vpack.c.b16 %v5409, %v5401
    %v5834 = vpack.c.b16 %v5410, %v5402
    %v5835 = vpack.c.b16 %v5411, %v5403
    %v5836 = vpack.c.b16 %v5412, %v5404
    %v5837 = vpack.c.b16 %v5413, %v5405
    %v5838 = vpack.c.b16 %v5422, %v5414
    %v5839 = vpack.c.b16 %v5423, %v5415
    %v5840 = vpack.c.b16 %v5424, %v5416
    %v5841 = vpack.c.b16 %v5425, %v5417
    %v5842 = vpack.c.b16 %v5426, %v5418
    %v5843 = vpack.c.b16 %v5427, %v5419
    %v5844 = vpack.c.b16 %v5428, %v5420
    %v5845 = vpack.c.b16 %v5429, %v5421
    %v5846 = vpack.c.b16 %v5438, %v5430
    %v5847 = vpack.c.b16 %v5439, %v5431
    %v5848 = vpack.c.b16 %v5440, %v5432
    %v5849 = vpack.c.b16 %v5441, %v5433
    %v5850 = vpack.c.b16 %v5442, %v5434
    %v5851 = vpack.c.b16 %v5443, %v5435
    %v5852 = vpack.c.b16 %v5444, %v5436
    %v5853 = vpack.c.b16 %v5445, %v5437
    %v5854 = vpack.c.b16 %v5454, %v5446
    %v5855 = vpack.c.b16 %v5455, %v5447
    %v5856 = vpack.c.b16 %v5456, %v5448
    %v5857 = vpack.c.b16 %v5457, %v5449
    %v5858 = vpack.c.b16 %v5458, %v5450
    %v5859 = vpack.c.b16 %v5459, %v5451
    %v5860 = vpack.c.b16 %v5460, %v5452
    %v5861 = vpack.c.b16 %v5461, %v5453
    %v5862 = vpack.c.b16 %v5470, %v5462
    %v5863 = vpack.c.b16 %v5471, %v5463
    %v5864 = vpack.c.b16 %v5472, %v5464
    %v5865 = vpack.c.b16 %v5473, %v5465
    %v5866 = vpack.c.b16 %v5474, %v5466
    %v5867 = vpack.c.b16 %v5475, %v5467
    %v5868 = vpack.c.b16 %v5476, %v5468
    %v5869 = vpack.c.b16 %v5477, %v5469
    %v5870 = vpack.c.b16 %v5486, %v5478
    %v5871 = vpack.c.b16 %v5487, %v5479
    %v5872 = vpack.c.b16 %v5488, %v5480
    %v5873 = vpack.c.b16 %v5489, %v5481
    %v5874 = vpack.c.b16 %v5490, %v5482
    %v5875 = vpack.c.b16 %v5491, %v5483
    %v5876 = vpack.c.b16 %v5492, %v5484
    %v5877 = vpack.c.b16 %v5493, %v5485
    %v5878 = vpack.c.b16 %v5502, %v5494
    %v5879 = vpack.c.b16 %v5503, %v5495
    %v5880 = vpack.c.b16 %v5504, %v5496
    %v5881 = vpack.c.b16 %v5505, %v5497
    %v5882 = vpack.c.b16 %v5506, %v5498
    %v5883 = vpack.c.b16 %v5507, %v5499
    %v5884 = vpack.c.b16 %v5508, %v5500
    %v5885 = vpack.c.b16 %v5509, %v5501
    %v5886 = vpack.c.b16 %v5518, %v5510
    %v5887 = vpack.c.b16 %v5519, %v5511
    %v5888 = vpack.c.b16 %v5520, %v5512
    %v5889 = vpack.c.b16 %v5521, %v5513
    %v5890 = vpack.c.b16 %v5522, %v5514
    %v5891 = vpack.c.b16 %v5523, %v5515
    %v5892 = vpack.c.b16 %v5524, %v5516
    %v5893 = vpack.c.b16 %v5525, %v5517
    %v5894 = vpack.c.b16 %v5534, %v5526
    %v5895 = vpack.c.b16 %v5535, %v5527
    %v5896 = vpack.c.b16 %v5536, %v5528
    %v5897 = vpack.c.b16 %v5537, %v5529
    %v5898 = vpack.c.b16 %v5538, %v5530
    %v5899 = vpack.c.b16 %v5539, %v5531
    %v5900 = vpack.c.b16 %v5540, %v5532
    %v5901 = vpack.c.b16 %v5541, %v5533
    %v5902 = vpack.c.b16 %v5550, %v5542
    %v5903 = vpack.c.b16 %v5551, %v5543
    %v5904 = vpack.c.b16 %v5552, %v5544
    %v5905 = vpack.c.b16 %v5553, %v5545
    %v5906 = vpack.c.b16 %v5554, %v5546
    %v5907 = vpack.c.b16 %v5555, %v5547
    %v5908 = vpack.c.b16 %v5556, %v5548
    %v5909 = vpack.c.b16 %v5557, %v5549
    %v5910 = vpack.c.b16 %v5566, %v5558
    %v5911 = vpack.c.b16 %v5567, %v5559
    %v5912 = vpack.c.b16 %v5568, %v5560
    %v5913 = vpack.c.b16 %v5569, %v5561
    %v5914 = vpack.c.b16 %v5570, %v5562
    %v5915 = vpack.c.b16 %v5571, %v5563
    %v5916 = vpack.c.b16 %v5572, %v5564
    %v5917 = vpack.c.b16 %v5573, %v5565
    %v5918 = vpack.c.b16 %v5582, %v5574
    %v5919 = vpack.c.b16 %v5583, %v5575
    %v5920 = vpack.c.b16 %v5584, %v5576
    %v5921 = vpack.c.b16 %v5585, %v5577
    %v5922 = vpack.c.b16 %v5586, %v5578
    %v5923 = vpack.c.b16 %v5587, %v5579
    %v5924 = vpack.c.b16 %v5588, %v5580
    %v5925 = vpack.c.b16 %v5589, %v5581
    %v5926 = vpack.c.b16 %v5598, %v5590
    %v5927 = vpack.c.b16 %v5599, %v5591
    %v5928 = vpack.c.b16 %v5600, %v5592
    %v5929 = vpack.c.b16 %v5601, %v5593
    %v5930 = vpack.c.b16 %v5602, %v5594
    %v5931 = vpack.c.b16 %v5603, %v5595
    %v5932 = vpack.c.b16 %v5604, %v5596
    %v5933 = vpack.c.b16 %v5605, %v5597
    %v5934 = vpack.c.b16 %v5614, %v5606
    %v5935 = vpack.c.b16 %v5615, %v5607
    %v5936 = vpack.c.b16 %v5616, %v5608
    %v5937 = vpack.c.b16 %v5617, %v5609
    %v5938 = vpack.c.b16 %v5618, %v5610
    %v5939 = vpack.c.b16 %v5619, %v5611
    %v5940 = vpack.c.b16 %v5620, %v5612
    %v5941 = vpack.c.b16 %v5621, %v5613
    %v5942 = vpack.c.b16 %v5630, %v5622
    %v5943 = vpack.c.b16 %v5631, %v5623
    %v5944 = vpack.c.b16 %v5632, %v5624
    %v5945 = vpack.c.b16 %v5633, %v5625
    %v5946 = vpack.c.b16 %v5634, %v5626
    %v5947 = vpack.c.b16 %v5635, %v5627
    %v5948 = vpack.c.b16 %v5636, %v5628
    %v5949 = vpack.c.b16 %v5637, %v5629
    %v5950 = vpack.c.b16 %v5646, %v5638
    %v5951 = vpack.c.b16 %v5647, %v5639
    %v5952 = vpack.c.b16 %v5648, %v5640
    %v5953 = vpack.c.b16 %v5649, %v5641
    %v5954 = vpack.c.b16 %v5650, %v5642
    %v5955 = vpack.c.b16 %v5651, %v5643
    %v5956 = vpack.c.b16 %v5652, %v5644
    %v5957 = vpack.c.b16 %v5653, %v5645
    %v5958 = vpack.c.b16 %v5662, %v5654
    %v5959 = vpack.c.b16 %v5663, %v5655
    %v5960 = vpack.c.b16 %v5664, %v5656
    %v5961 = vpack.c.b16 %v5665, %v5657
    %v5962 = vpack.c.b16 %v5666, %v5658
    %v5963 = vpack.c.b16 %v5667, %v5659
    %v5964 = vpack.c.b16 %v5668, %v5660
    %v5965 = vpack.c.b16 %v5669, %v5661
    %v5966 = vpack.c.b16 %v5678, %v5670
    %v5967 = vpack.c.b16 %v5679, %v5671
    %v5968 = vpack.c.b16 %v5680, %v5672
    %v5969 = vpack.c.b16 %v5681, %v5673
    %v5970 = vpack.c.b16 %v5682, %v5674
    %v5971 = vpack.c.b16 %v5683, %v5675
    %v5972 = vpack.c.b16 %v5684, %v5676
    %v5973 = vpack.c.b16 %v5685, %v5677
    %v5974 = vpack.c.b16 %v5694, %v5686
    %v5975 = vpack.c.b16 %v5695, %v5687
    %v5976 = vpack.c.b16 %v5696, %v5688
    %v5977 = vpack.c.b16 %v5697, %v5689
    %v5978 = vpack.c.b16 %v5698, %v5690
    %v5979 = vpack.c.b16 %v5699, %v5691
    %v5980 = vpack.c.b16 %v5700, %v5692
    %v5981 = vpack.c.b16 %v5701, %v5693
    %v5982 = vpack.c.b16 %v5710, %v5702
    %v5983 = vpack.c.b16 %v5711, %v5703
    %v5984 = vpack.c.b16 %v5712, %v5704
    %v5985 = vpack.c.b16 %v5713, %v5705
    %v5986 = vpack.c.b16 %v5714, %v5706
    %v5987 = vpack.c.b16 %v5715, %v5707
    %v5988 = vpack.c.b16 %v5716, %v5708
    %v5989 = vpack.c.b16 %v5717, %v5709
    %v5990 = vpack.c.b16 %v5726, %v5718
    %v5991 = vpack.c.b16 %v5727, %v5719
    %v5992 = vpack.c.b16 %v5728, %v5720
    %v5993 = vpack.c.b16 %v5729, %v5721
    %v5994 = vpack.c.b16 %v5730, %v5722
    %v5995 = vpack.c.b16 %v5731, %v5723
    %v5996 = vpack.c.b16 %v5732, %v5724
    %v5997 = vpack.c.b16 %v5733, %v5725
    %v5998 = vpack.c.b16 %v5742, %v5734
    %v5999 = vpack.c.b16 %v5743, %v5735
    %v6000 = vpack.c.b16 %v5744, %v5736
    %v6001 = vpack.c.b16 %v5745, %v5737
    %v6002 = vpack.c.b16 %v5746, %v5738
    %v6003 = vpack.c.b16 %v5747, %v5739
    %v6004 = vpack.c.b16 %v5748, %v5740
    %v6005 = vpack.c.b16 %v5749, %v5741
    %6262 = vmatprep.subr.bf16.mxu0 %v5751
    %6263 = vmatpush1.bf16.msra.mxu0 %v5750
    %6264 = vmatprep.subr.bf16.mxu0 %v5759
    %6265 = vmatpush1.bf16.msra.mxu0 %v5758
    %6266 = vmatprep.subr.bf16.mxu0 %v5767
    %6267 = vmatpush1.bf16.msra.mxu0 %v5766
    %6268 = vmatprep.subr.bf16.mxu0 %v5775
    %6269 = vmatpush1.bf16.msra.mxu0 %v5774
    %6270 = vmatprep.subr.bf16.mxu0 %v5783
    %6271 = vmatpush1.bf16.msra.mxu0 %v5782
    %6272 = vmatprep.subr.bf16.mxu0 %v5791
    %6273 = vmatpush1.bf16.msra.mxu0 %v5790
    %6274 = vmatprep.subr.bf16.mxu0 %v5799
    %6275 = vmatpush1.bf16.msra.mxu0 %v5798
    %6276 = vmatprep.subr.bf16.mxu0 %v5807
    %6277 = vmatpush1.bf16.msra.mxu0 %v5806
    %6278 = vmatprep.subr.bf16.mxu0 %v5815
    %6279 = vmatpush1.bf16.msra.mxu0 %v5814
    %6280 = vmatprep.subr.bf16.mxu0 %v5823
    %6281 = vmatpush1.bf16.msra.mxu0 %v5822
    %6282 = vmatprep.subr.bf16.mxu0 %v5831
    %6283 = vmatpush1.bf16.msra.mxu0 %v5830
    %6284 = vmatprep.subr.bf16.mxu0 %v5839
    %6285 = vmatpush1.bf16.msra.mxu0 %v5838
    %6286 = vmatprep.subr.bf16.mxu0 %v5847
    %6287 = vmatpush1.bf16.msra.mxu0 %v5846
    %6288 = vmatprep.subr.bf16.mxu0 %v5855
    %6289 = vmatpush1.bf16.msra.mxu0 %v5854
    %6290 = vmatprep.subr.bf16.mxu0 %v5863
    %6291 = vmatpush1.bf16.msra.mxu0 %v5862
    %6292 = vmatprep.subr.bf16.mxu0 %v5871
    %6293 = vmatpush1.bf16.msra.mxu0 %v5870
    %6294 = vmatprep.mubr.bf16.mxu0 %v4938
    %6295 = vmatmul.mubr.bf16.gmra.mrb[0].mxu0 %v4937
    %v6296 = vpop.f32.mrb[0].mxu0
    %v6297 = vadd.f32 %v4945, %v6296
    %v6298 = vpop.f32.mrb[0].mxu0
    %v6299 = vadd.f32 %v4949, %v6298
    %v6300 = vpop.f32.mrb[0].mxu0
    %v6301 = vadd.f32 %v4945, %v6300
    %v6302 = vpop.f32.mrb[0].mxu0
    %v6303 = vadd.f32 %v4949, %v6302
    %6304 = vdwg.mxu0
    %6305 = vmatprep.subr.bf16.mxu0 %v5879
    %6306 = vmatpush1.bf16.msra.mxu0 %v5878
    %6307 = vmatprep.subr.bf16.mxu0 %v5887
    %6308 = vmatpush1.bf16.msra.mxu0 %v5886
    %6309 = vmatprep.subr.bf16.mxu0 %v5895
    %6310 = vmatpush1.bf16.msra.mxu0 %v5894
    %6311 = vmatprep.subr.bf16.mxu0 %v5903
    %6312 = vmatpush1.bf16.msra.mxu0 %v5902
    %6313 = vmatprep.subr.bf16.mxu0 %v5911
    %6314 = vmatpush1.bf16.msra.mxu0 %v5910
    %6315 = vmatprep.subr.bf16.mxu0 %v5919
    %6316 = vmatpush1.bf16.msra.mxu0 %v5918
    %6317 = vmatprep.subr.bf16.mxu0 %v5927
    %6318 = vmatpush1.bf16.msra.mxu0 %v5926
    %6319 = vmatprep.subr.bf16.mxu0 %v5935
    %6320 = vmatpush1.bf16.msra.mxu0 %v5934
    %6321 = vmatprep.subr.bf16.mxu0 %v5943
    %6322 = vmatpush1.bf16.msra.mxu0 %v5942
    %6323 = vmatprep.subr.bf16.mxu0 %v5951
    %6324 = vmatpush1.bf16.msra.mxu0 %v5950
    %6325 = vmatprep.subr.bf16.mxu0 %v5959
    %6326 = vmatpush1.bf16.msra.mxu0 %v5958
    %6327 = vmatprep.subr.bf16.mxu0 %v5967
    %6328 = vmatpush1.bf16.msra.mxu0 %v5966
    %6329 = vmatprep.subr.bf16.mxu0 %v5975
    %6330 = vmatpush1.bf16.msra.mxu0 %v5974
    %6331 = vmatprep.subr.bf16.mxu0 %v5983
    %6332 = vmatpush1.bf16.msra.mxu0 %v5982
    %6333 = vmatprep.subr.bf16.mxu0 %v5991
    %6334 = vmatpush1.bf16.msra.mxu0 %v5990
    %6335 = vmatprep.subr.bf16.mxu0 %v5999
    %6336 = vmatpush1.bf16.msra.mxu0 %v5998
    %6337 = vmatprep.mubr.bf16.mxu0 %v4940
    %6338 = vmatmul.mubr.bf16.gmra.mrb[0].mxu0 %v4939
    %v6339 = vpop.f32.mrb[0].mxu0
    %v6340 = vadd.f32 %v6297, %v6339
    %v6341 = vpop.f32.mrb[0].mxu0
    %v6342 = vadd.f32 %v6299, %v6341
    %v6343 = vpop.f32.mrb[0].mxu0
    %v6344 = vadd.f32 %v6301, %v6343
    %v6345 = vpop.f32.mrb[0].mxu0
    %v6346 = vadd.f32 %v6303, %v6345
    %6347 = vdwg.mxu0
    %6348 = vmatprep.subr.bf16.mxu0 %v5753
    %6349 = vmatpush1.bf16.msra.mxu0 %v5752
    %6350 = vmatprep.subr.bf16.mxu0 %v5761
    %6351 = vmatpush1.bf16.msra.mxu0 %v5760
    %6352 = vmatprep.subr.bf16.mxu0 %v5769
    %6353 = vmatpush1.bf16.msra.mxu0 %v5768
    %6354 = vmatprep.subr.bf16.mxu0 %v5777
    %6355 = vmatpush1.bf16.msra.mxu0 %v5776
    %6356 = vmatprep.subr.bf16.mxu0 %v5785
    %6357 = vmatpush1.bf16.msra.mxu0 %v5784
    %6358 = vmatprep.subr.bf16.mxu0 %v5793
    %6359 = vmatpush1.bf16.msra.mxu0 %v5792
    %6360 = vmatprep.subr.bf16.mxu0 %v5801
    %6361 = vmatpush1.bf16.msra.mxu0 %v5800
    %6362 = vmatprep.subr.bf16.mxu0 %v5809
    %6363 = vmatpush1.bf16.msra.mxu0 %v5808
    %6364 = vmatprep.subr.bf16.mxu0 %v5817
    %6365 = vmatpush1.bf16.msra.mxu0 %v5816
    %6366 = vmatprep.subr.bf16.mxu0 %v5825
    %6367 = vmatpush1.bf16.msra.mxu0 %v5824
    %6368 = vmatprep.subr.bf16.mxu0 %v5833
    %6369 = vmatpush1.bf16.msra.mxu0 %v5832
    %6370 = vmatprep.subr.bf16.mxu0 %v5841
    %6371 = vmatpush1.bf16.msra.mxu0 %v5840
    %6372 = vmatprep.subr.bf16.mxu0 %v5849
    %6373 = vmatpush1.bf16.msra.mxu0 %v5848
    %6374 = vmatprep.subr.bf16.mxu0 %v5857
    %6375 = vmatpush1.bf16.msra.mxu0 %v5856
    %6376 = vmatprep.subr.bf16.mxu0 %v5865
    %6377 = vmatpush1.bf16.msra.mxu0 %v5864
    %6378 = vmatprep.subr.bf16.mxu0 %v5873
    %6379 = vmatpush1.bf16.msra.mxu0 %v5872
    %6380 = vmatprep.mubr.bf16.mxu0 %v4938
    %6381 = vmatmul.mubr.bf16.gmra.mrb[0].mxu0 %v4937
    %v6382 = vpop.f32.mrb[0].mxu0
    %v6383 = vadd.f32 %v4953, %v6382
    %v6384 = vpop.f32.mrb[0].mxu0
    %v6385 = vadd.f32 %v4957, %v6384
    %v6386 = vpop.f32.mrb[0].mxu0
    %v6387 = vadd.f32 %v4953, %v6386
    %v6388 = vpop.f32.mrb[0].mxu0
    %v6389 = vadd.f32 %v4957, %v6388
    %6390 = vdwg.mxu0
    %6391 = vmatprep.subr.bf16.mxu0 %v5881
    %6392 = vmatpush1.bf16.msra.mxu0 %v5880
    %6393 = vmatprep.subr.bf16.mxu0 %v5889
    %6394 = vmatpush1.bf16.msra.mxu0 %v5888
    %6395 = vmatprep.subr.bf16.mxu0 %v5897
    %6396 = vmatpush1.bf16.msra.mxu0 %v5896
    %6397 = vmatprep.subr.bf16.mxu0 %v5905
    %6398 = vmatpush1.bf16.msra.mxu0 %v5904
    %6399 = vmatprep.subr.bf16.mxu0 %v5913
    %6400 = vmatpush1.bf16.msra.mxu0 %v5912
    %6401 = vmatprep.subr.bf16.mxu0 %v5921
    %6402 = vmatpush1.bf16.msra.mxu0 %v5920
    %6403 = vmatprep.subr.bf16.mxu0 %v5929
    %6404 = vmatpush1.bf16.msra.mxu0 %v5928
    %6405 = vmatprep.subr.bf16.mxu0 %v5937
    %6406 = vmatpush1.bf16.msra.mxu0 %v5936
    %6407 = vmatprep.subr.bf16.mxu0 %v5945
    %6408 = vmatpush1.bf16.msra.mxu0 %v5944
    %6409 = vmatprep.subr.bf16.mxu0 %v5953
    %6410 = vmatpush1.bf16.msra.mxu0 %v5952
    %6411 = vmatprep.subr.bf16.mxu0 %v5961
    %6412 = vmatpush1.bf16.msra.mxu0 %v5960
    %6413 = vmatprep.subr.bf16.mxu0 %v5969
    %6414 = vmatpush1.bf16.msra.mxu0 %v5968
    %6415 = vmatprep.subr.bf16.mxu0 %v5977
    %6416 = vmatpush1.bf16.msra.mxu0 %v5976
    %6417 = vmatprep.subr.bf16.mxu0 %v5985
    %6418 = vmatpush1.bf16.msra.mxu0 %v5984
    %6419 = vmatprep.subr.bf16.mxu0 %v5993
    %6420 = vmatpush1.bf16.msra.mxu0 %v5992
    %6421 = vmatprep.subr.bf16.mxu0 %v6001
    %6422 = vmatpush1.bf16.msra.mxu0 %v6000
    %6423 = vmatprep.mubr.bf16.mxu0 %v4940
    %6424 = vmatmul.mubr.bf16.gmra.mrb[0].mxu0 %v4939
    %v6425 = vpop.f32.mrb[0].mxu0
    %v6426 = vadd.f32 %v6383, %v6425
    %v6427 = vpop.f32.mrb[0].mxu0
    %v6428 = vadd.f32 %v6385, %v6427
    %v6429 = vpop.f32.mrb[0].mxu0
    %v6430 = vadd.f32 %v6387, %v6429
    %v6431 = vpop.f32.mrb[0].mxu0
    %v6432 = vadd.f32 %v6389, %v6431
    %6433 = vdwg.mxu0
    %6434 = vmatprep.subr.bf16.mxu0 %v5755
    %6435 = vmatpush1.bf16.msra.mxu0 %v5754
    %6436 = vmatprep.subr.bf16.mxu0 %v5763
    %6437 = vmatpush1.bf16.msra.mxu0 %v5762
    %6438 = vmatprep.subr.bf16.mxu0 %v5771
    %6439 = vmatpush1.bf16.msra.mxu0 %v5770
    %6440 = vmatprep.subr.bf16.mxu0 %v5779
    %6441 = vmatpush1.bf16.msra.mxu0 %v5778
    %6442 = vmatprep.subr.bf16.mxu0 %v5787
    %6443 = vmatpush1.bf16.msra.mxu0 %v5786
    %6444 = vmatprep.subr.bf16.mxu0 %v5795
    %6445 = vmatpush1.bf16.msra.mxu0 %v5794
    %6446 = vmatprep.subr.bf16.mxu0 %v5803
    %6447 = vmatpush1.bf16.msra.mxu0 %v5802
    %6448 = vmatprep.subr.bf16.mxu0 %v5811
    %6449 = vmatpush1.bf16.msra.mxu0 %v5810
    %6450 = vmatprep.subr.bf16.mxu0 %v5819
    %6451 = vmatpush1.bf16.msra.mxu0 %v5818
    %6452 = vmatprep.subr.bf16.mxu0 %v5827
    %6453 = vmatpush1.bf16.msra.mxu0 %v5826
    %6454 = vmatprep.subr.bf16.mxu0 %v5835
    %6455 = vmatpush1.bf16.msra.mxu0 %v5834
    %6456 = vmatprep.subr.bf16.mxu0 %v5843
    %6457 = vmatpush1.bf16.msra.mxu0 %v5842
    %6458 = vmatprep.subr.bf16.mxu0 %v5851
    %6459 = vmatpush1.bf16.msra.mxu0 %v5850
    %6460 = vmatprep.subr.bf16.mxu0 %v5859
    %6461 = vmatpush1.bf16.msra.mxu0 %v5858
    %6462 = vmatprep.subr.bf16.mxu0 %v5867
    %6463 = vmatpush1.bf16.msra.mxu0 %v5866
    %6464 = vmatprep.subr.bf16.mxu0 %v5875
    %6465 = vmatpush1.bf16.msra.mxu0 %v5874
    %6466 = vmatprep.mubr.bf16.mxu0 %v4938
    %6467 = vmatmul.mubr.bf16.gmra.mrb[0].mxu0 %v4937
    %v6468 = vpop.f32.mrb[0].mxu0
    %v6469 = vadd.f32 %v4961, %v6468
    %v6470 = vpop.f32.mrb[0].mxu0
    %v6471 = vadd.f32 %v4965, %v6470
    %v6472 = vpop.f32.mrb[0].mxu0
    %v6473 = vadd.f32 %v4961, %v6472
    %v6474 = vpop.f32.mrb[0].mxu0
    %v6475 = vadd.f32 %v4965, %v6474
    %6476 = vdwg.mxu0
    %6477 = vmatprep.subr.bf16.mxu0 %v5883
    %6478 = vmatpush1.bf16.msra.mxu0 %v5882
    %6479 = vmatprep.subr.bf16.mxu0 %v5891
    %6480 = vmatpush1.bf16.msra.mxu0 %v5890
    %6481 = vmatprep.subr.bf16.mxu0 %v5899
    %6482 = vmatpush1.bf16.msra.mxu0 %v5898
    %6483 = vmatprep.subr.bf16.mxu0 %v5907
    %6484 = vmatpush1.bf16.msra.mxu0 %v5906
    %6485 = vmatprep.subr.bf16.mxu0 %v5915
    %6486 = vmatpush1.bf16.msra.mxu0 %v5914
    %6487 = vmatprep.subr.bf16.mxu0 %v5923
    %6488 = vmatpush1.bf16.msra.mxu0 %v5922
    %6489 = vmatprep.subr.bf16.mxu0 %v5931
    %6490 = vmatpush1.bf16.msra.mxu0 %v5930
    %6491 = vmatprep.subr.bf16.mxu0 %v5939
    %6492 = vmatpush1.bf16.msra.mxu0 %v5938
    %6493 = vmatprep.subr.bf16.mxu0 %v5947
    %6494 = vmatpush1.bf16.msra.mxu0 %v5946
    %6495 = vmatprep.subr.bf16.mxu0 %v5955
    %6496 = vmatpush1.bf16.msra.mxu0 %v5954
    %6497 = vmatprep.subr.bf16.mxu0 %v5963
    %6498 = vmatpush1.bf16.msra.mxu0 %v5962
    %6499 = vmatprep.subr.bf16.mxu0 %v5971
    %6500 = vmatpush1.bf16.msra.mxu0 %v5970
    %6501 = vmatprep.subr.bf16.mxu0 %v5979
    %6502 = vmatpush1.bf16.msra.mxu0 %v5978
    %6503 = vmatprep.subr.bf16.mxu0 %v5987
    %6504 = vmatpush1.bf16.msra.mxu0 %v5986
    %6505 = vmatprep.subr.bf16.mxu0 %v5995
    %6506 = vmatpush1.bf16.msra.mxu0 %v5994
    %6507 = vmatprep.subr.bf16.mxu0 %v6003
    %6508 = vmatpush1.bf16.msra.mxu0 %v6002
    %6509 = vmatprep.mubr.bf16.mxu0 %v4940
    %6510 = vmatmul.mubr.bf16.gmra.mrb[0].mxu0 %v4939
    %v6511 = vpop.f32.mrb[0].mxu0
    %v6512 = vadd.f32 %v6469, %v6511
    %v6513 = vpop.f32.mrb[0].mxu0
    %v6514 = vadd.f32 %v6471, %v6513
    %v6515 = vpop.f32.mrb[0].mxu0
    %v6516 = vadd.f32 %v6473, %v6515
    %v6517 = vpop.f32.mrb[0].mxu0
    %v6518 = vadd.f32 %v6475, %v6517
    %6519 = vdwg.mxu0
    %6520 = vmatprep.subr.bf16.mxu0 %v5757
    %6521 = vmatpush1.bf16.msra.mxu0 %v5756
    %6522 = vmatprep.subr.bf16.mxu0 %v5765
    %6523 = vmatpush1.bf16.msra.mxu0 %v5764
    %6524 = vmatprep.subr.bf16.mxu0 %v5773
    %6525 = vmatpush1.bf16.msra.mxu0 %v5772
    %6526 = vmatprep.subr.bf16.mxu0 %v5781
    %6527 = vmatpush1.bf16.msra.mxu0 %v5780
    %6528 = vmatprep.subr.bf16.mxu0 %v5789
    %6529 = vmatpush1.bf16.msra.mxu0 %v5788
    %6530 = vmatprep.subr.bf16.mxu0 %v5797
    %6531 = vmatpush1.bf16.msra.mxu0 %v5796
    %6532 = vmatprep.subr.bf16.mxu0 %v5805
    %6533 = vmatpush1.bf16.msra.mxu0 %v5804
    %6534 = vmatprep.subr.bf16.mxu0 %v5813
    %6535 = vmatpush1.bf16.msra.mxu0 %v5812
    %6536 = vmatprep.subr.bf16.mxu0 %v5821
    %6537 = vmatpush1.bf16.msra.mxu0 %v5820
    %6538 = vmatprep.subr.bf16.mxu0 %v5829
    %6539 = vmatpush1.bf16.msra.mxu0 %v5828
    %6540 = vmatprep.subr.bf16.mxu0 %v5837
    %6541 = vmatpush1.bf16.msra.mxu0 %v5836
    %6542 = vmatprep.subr.bf16.mxu0 %v5845
    %6543 = vmatpush1.bf16.msra.mxu0 %v5844
    %6544 = vmatprep.subr.bf16.mxu0 %v5853
    %6545 = vmatpush1.bf16.msra.mxu0 %v5852
    %6546 = vmatprep.subr.bf16.mxu0 %v5861
    %6547 = vmatpush1.bf16.msra.mxu0 %v5860
    %6548 = vmatprep.subr.bf16.mxu0 %v5869
    %6549 = vmatpush1.bf16.msra.mxu0 %v5868
    %6550 = vmatprep.subr.bf16.mxu0 %v5877
    %6551 = vmatpush1.bf16.msra.mxu0 %v5876
    %6552 = vmatprep.mubr.bf16.mxu0 %v4938
    %6553 = vmatmul.mubr.bf16.gmra.mrb[0].mxu0 %v4937
    %v6554 = vpop.f32.mrb[0].mxu0
    %v6555 = vadd.f32 %v4969, %v6554
    %v6556 = vpop.f32.mrb[0].mxu0
    %v6557 = vadd.f32 %v4973, %v6556
    %v6558 = vpop.f32.mrb[0].mxu0
    %v6559 = vadd.f32 %v4969, %v6558
    %v6560 = vpop.f32.mrb[0].mxu0
    %v6561 = vadd.f32 %v4973, %v6560
    %6562 = vdwg.mxu0
    %6563 = vmatprep.subr.bf16.mxu0 %v5885
    %6564 = vmatpush1.bf16.msra.mxu0 %v5884
    %6565 = vmatprep.subr.bf16.mxu0 %v5893
    %6566 = vmatpush1.bf16.msra.mxu0 %v5892
    %6567 = vmatprep.subr.bf16.mxu0 %v5901
    %6568 = vmatpush1.bf16.msra.mxu0 %v5900
    %6569 = vmatprep.subr.bf16.mxu0 %v5909
    %6570 = vmatpush1.bf16.msra.mxu0 %v5908
    %6571 = vmatprep.subr.bf16.mxu0 %v5917
    %6572 = vmatpush1.bf16.msra.mxu0 %v5916
    %6573 = vmatprep.subr.bf16.mxu0 %v5925
    %6574 = vmatpush1.bf16.msra.mxu0 %v5924
    %6575 = vmatprep.subr.bf16.mxu0 %v5933
    %6576 = vmatpush1.bf16.msra.mxu0 %v5932
    %6577 = vmatprep.subr.bf16.mxu0 %v5941
    %6578 = vmatpush1.bf16.msra.mxu0 %v5940
    %6579 = vmatprep.subr.bf16.mxu0 %v5949
    %6580 = vmatpush1.bf16.msra.mxu0 %v5948
    %6581 = vmatprep.subr.bf16.mxu0 %v5957
    %6582 = vmatpush1.bf16.msra.mxu0 %v5956
    %6583 = vmatprep.subr.bf16.mxu0 %v5965
    %6584 = vmatpush1.bf16.msra.mxu0 %v5964
    %6585 = vmatprep.subr.bf16.mxu0 %v5973
    %6586 = vmatpush1.bf16.msra.mxu0 %v5972
    %6587 = vmatprep.subr.bf16.mxu0 %v5981
    %6588 = vmatpush1.bf16.msra.mxu0 %v5980
    %6589 = vmatprep.subr.bf16.mxu0 %v5989
    %6590 = vmatpush1.bf16.msra.mxu0 %v5988
    %6591 = vmatprep.subr.bf16.mxu0 %v5997
    %6592 = vmatpush1.bf16.msra.mxu0 %v5996
    %6593 = vmatprep.subr.bf16.mxu0 %v6005
    %6594 = vmatpush1.bf16.msra.mxu0 %v6004
    %6595 = vmatprep.mubr.bf16.mxu0 %v4940
    %6596 = vmatmul.mubr.bf16.gmra.mrb[0].mxu0 %v4939
    %v6597 = vpop.f32.mrb[0].mxu0
    %v6598 = vadd.f32 %v6555, %v6597
    %v6599 = vpop.f32.mrb[0].mxu0
    %v6600 = vadd.f32 %v6557, %v6599
    %v6601 = vpop.f32.mrb[0].mxu0
    %v6602 = vadd.f32 %v6559, %v6601
    %v6603 = vpop.f32.mrb[0].mxu0
    %v6604 = vadd.f32 %v6561, %v6603
    %6605 = vdwg.mxu0
    %v6606 = vmax.f32 %v6340, 0.0
    %v6607 = vmax.f32 %v6342, 0.0
    %v6608 = vmax.f32 %v6426, 0.0
    %v6609 = vmax.f32 %v6428, 0.0
    %v6610 = vmax.f32 %v6512, 0.0
    %v6611 = vmax.f32 %v6514, 0.0
    %v6612 = vmax.f32 %v6598, 0.0
    %v6613 = vmax.f32 %v6600, 0.0
    %v6614 = vmax.f32 %v6344, 0.0
    %v6615 = vmax.f32 %v6346, 0.0
    %v6616 = vmax.f32 %v6430, 0.0
    %v6617 = vmax.f32 %v6432, 0.0
    %v6618 = vmax.f32 %v6516, 0.0
    %v6619 = vmax.f32 %v6518, 0.0
    %v6620 = vmax.f32 %v6602, 0.0
    %v6621 = vmax.f32 %v6604, 0.0
    %v6622 = vpack.c.bf16 %v6614, %v6606
    %v6623 = vpack.c.bf16 %v6615, %v6607
    %v6624 = vpack.c.bf16 %v6616, %v6608
    %v6625 = vpack.c.bf16 %v6617, %v6609
    %v6626 = vpack.c.bf16 %v6618, %v6610
    %v6627 = vpack.c.bf16 %v6619, %v6611
    %v6628 = vpack.c.bf16 %v6620, %v6612
    %v6629 = vpack.c.bf16 %v6621, %v6613
    %v6631 = vlaneseq
    %v6632 = vshrl.u32 %v6631, 7
    %v6633 = vsub.s32 0, %v6632
    %v6634 = vrot.slane %v1286, %v6633
    %v6635 = vlaneseq
    %v6636 = vshrl.u32 %v6635, 7
    %v6637 = vsub.s32 1, %v6636
    %v6638 = vrot.slane %v1286, %v6637
    %v6639 = vlaneseq
    %v6640 = vshrl.u32 %v6639, 7
    %v6641 = vsub.s32 2, %v6640
    %v6642 = vrot.slane %v1286, %v6641
    %v6643 = vlaneseq
    %v6644 = vshrl.u32 %v6643, 7
    %v6645 = vsub.s32 3, %v6644
    %v6646 = vrot.slane %v1286, %v6645
    %v6907 = vunpack.c.l.b16 %v902
    %v6908 = vunpack.c.h.b16 %v902
    %v6909 = vunpack.c.l.b16 %v903
    %v6910 = vunpack.c.h.b16 %v903
    %v6911 = vunpack.c.l.b16 %v904
    %v6912 = vunpack.c.h.b16 %v904
    %v6913 = vunpack.c.l.b16 %v905
    %v6914 = vunpack.c.h.b16 %v905
    %v6915 = vunpack.c.l.b16 %v906
    %v6916 = vunpack.c.h.b16 %v906
    %v6917 = vunpack.c.l.b16 %v907
    %v6918 = vunpack.c.h.b16 %v907
    %v6919 = vunpack.c.l.b16 %v908
    %v6920 = vunpack.c.h.b16 %v908
    %v6921 = vunpack.c.l.b16 %v909
    %v6922 = vunpack.c.h.b16 %v909
    %v6923 = vunpack.c.l.b16 %v910
    %v6924 = vunpack.c.h.b16 %v910
    %v6925 = vunpack.c.l.b16 %v911
    %v6926 = vunpack.c.h.b16 %v911
    %v6927 = vunpack.c.l.b16 %v912
    %v6928 = vunpack.c.h.b16 %v912
    %v6929 = vunpack.c.l.b16 %v913
    %v6930 = vunpack.c.h.b16 %v913
    %v6931 = vunpack.c.l.b16 %v914
    %v6932 = vunpack.c.h.b16 %v914
    %v6933 = vunpack.c.l.b16 %v915
    %v6934 = vunpack.c.h.b16 %v915
    %v6935 = vunpack.c.l.b16 %v916
    %v6936 = vunpack.c.h.b16 %v916
    %v6937 = vunpack.c.l.b16 %v917
    %v6938 = vunpack.c.h.b16 %v917
    %v6939 = vunpack.c.l.b16 %v918
    %v6940 = vunpack.c.h.b16 %v918
    %v6941 = vunpack.c.l.b16 %v919
    %v6942 = vunpack.c.h.b16 %v919
    %v6943 = vunpack.c.l.b16 %v920
    %v6944 = vunpack.c.h.b16 %v920
    %v6945 = vunpack.c.l.b16 %v921
    %v6946 = vunpack.c.h.b16 %v921
    %v6947 = vunpack.c.l.b16 %v922
    %v6948 = vunpack.c.h.b16 %v922
    %v6949 = vunpack.c.l.b16 %v923
    %v6950 = vunpack.c.h.b16 %v923
    %v6951 = vunpack.c.l.b16 %v924
    %v6952 = vunpack.c.h.b16 %v924
    %v6953 = vunpack.c.l.b16 %v925
    %v6954 = vunpack.c.h.b16 %v925
    %v6955 = vunpack.c.l.b16 %v926
    %v6956 = vunpack.c.h.b16 %v926
    %v6957 = vunpack.c.l.b16 %v927
    %v6958 = vunpack.c.h.b16 %v927
    %v6959 = vunpack.c.l.b16 %v928
    %v6960 = vunpack.c.h.b16 %v928
    %v6961 = vunpack.c.l.b16 %v929
    %v6962 = vunpack.c.h.b16 %v929
    %v6963 = vunpack.c.l.b16 %v930
    %v6964 = vunpack.c.h.b16 %v930
    %v6965 = vunpack.c.l.b16 %v931
    %v6966 = vunpack.c.h.b16 %v931
    %v6967 = vunpack.c.l.b16 %v932
    %v6968 = vunpack.c.h.b16 %v932
    %v6969 = vunpack.c.l.b16 %v933
    %v6970 = vunpack.c.h.b16 %v933
    %v6971 = vunpack.c.l.b16 %v934
    %v6972 = vunpack.c.h.b16 %v934
    %v6973 = vunpack.c.l.b16 %v935
    %v6974 = vunpack.c.h.b16 %v935
    %v6975 = vunpack.c.l.b16 %v936
    %v6976 = vunpack.c.h.b16 %v936
    %v6977 = vunpack.c.l.b16 %v937
    %v6978 = vunpack.c.h.b16 %v937
    %v6979 = vunpack.c.l.b16 %v938
    %v6980 = vunpack.c.h.b16 %v938
    %v6981 = vunpack.c.l.b16 %v939
    %v6982 = vunpack.c.h.b16 %v939
    %v6983 = vunpack.c.l.b16 %v940
    %v6984 = vunpack.c.h.b16 %v940
    %v6985 = vunpack.c.l.b16 %v941
    %v6986 = vunpack.c.h.b16 %v941
    %v6987 = vunpack.c.l.b16 %v942
    %v6988 = vunpack.c.h.b16 %v942
    %v6989 = vunpack.c.l.b16 %v943
    %v6990 = vunpack.c.h.b16 %v943
    %v6991 = vunpack.c.l.b16 %v944
    %v6992 = vunpack.c.h.b16 %v944
    %v6993 = vunpack.c.l.b16 %v945
    %v6994 = vunpack.c.h.b16 %v945
    %v6995 = vunpack.c.l.b16 %v946
    %v6996 = vunpack.c.h.b16 %v946
    %v6997 = vunpack.c.l.b16 %v947
    %v6998 = vunpack.c.h.b16 %v947
    %v6999 = vunpack.c.l.b16 %v948
    %v7000 = vunpack.c.h.b16 %v948
    %v7001 = vunpack.c.l.b16 %v949
    %v7002 = vunpack.c.h.b16 %v949
    %v7003 = vunpack.c.l.b16 %v950
    %v7004 = vunpack.c.h.b16 %v950
    %v7005 = vunpack.c.l.b16 %v951
    %v7006 = vunpack.c.h.b16 %v951
    %v7007 = vunpack.c.l.b16 %v952
    %v7008 = vunpack.c.h.b16 %v952
    %v7009 = vunpack.c.l.b16 %v953
    %v7010 = vunpack.c.h.b16 %v953
    %v7011 = vunpack.c.l.b16 %v954
    %v7012 = vunpack.c.h.b16 %v954
    %v7013 = vunpack.c.l.b16 %v955
    %v7014 = vunpack.c.h.b16 %v955
    %v7015 = vunpack.c.l.b16 %v956
    %v7016 = vunpack.c.h.b16 %v956
    %v7017 = vunpack.c.l.b16 %v957
    %v7018 = vunpack.c.h.b16 %v957
    %v7019 = vunpack.c.l.b16 %v958
    %v7020 = vunpack.c.h.b16 %v958
    %v7021 = vunpack.c.l.b16 %v959
    %v7022 = vunpack.c.h.b16 %v959
    %v7023 = vunpack.c.l.b16 %v960
    %v7024 = vunpack.c.h.b16 %v960
    %v7025 = vunpack.c.l.b16 %v961
    %v7026 = vunpack.c.h.b16 %v961
    %v7027 = vunpack.c.l.b16 %v962
    %v7028 = vunpack.c.h.b16 %v962
    %v7029 = vunpack.c.l.b16 %v963
    %v7030 = vunpack.c.h.b16 %v963
    %v7031 = vunpack.c.l.b16 %v964
    %v7032 = vunpack.c.h.b16 %v964
    %v7033 = vunpack.c.l.b16 %v965
    %v7034 = vunpack.c.h.b16 %v965
    %v7035 = vunpack.c.l.b16 %v966
    %v7036 = vunpack.c.h.b16 %v966
    %v7037 = vunpack.c.l.b16 %v967
    %v7038 = vunpack.c.h.b16 %v967
    %v7039 = vunpack.c.l.b16 %v968
    %v7040 = vunpack.c.h.b16 %v968
    %v7041 = vunpack.c.l.b16 %v969
    %v7042 = vunpack.c.h.b16 %v969
    %v7043 = vunpack.c.l.b16 %v970
    %v7044 = vunpack.c.h.b16 %v970
    %v7045 = vunpack.c.l.b16 %v971
    %v7046 = vunpack.c.h.b16 %v971
    %v7047 = vunpack.c.l.b16 %v972
    %v7048 = vunpack.c.h.b16 %v972
    %v7049 = vunpack.c.l.b16 %v973
    %v7050 = vunpack.c.h.b16 %v973
    %v7051 = vunpack.c.l.b16 %v974
    %v7052 = vunpack.c.h.b16 %v974
    %v7053 = vunpack.c.l.b16 %v975
    %v7054 = vunpack.c.h.b16 %v975
    %v7055 = vunpack.c.l.b16 %v976
    %v7056 = vunpack.c.h.b16 %v976
    %v7057 = vunpack.c.l.b16 %v977
    %v7058 = vunpack.c.h.b16 %v977
    %v7059 = vunpack.c.l.b16 %v978
    %v7060 = vunpack.c.h.b16 %v978
    %v7061 = vunpack.c.l.b16 %v979
    %v7062 = vunpack.c.h.b16 %v979
    %v7063 = vunpack.c.l.b16 %v980
    %v7064 = vunpack.c.h.b16 %v980
    %v7065 = vunpack.c.l.b16 %v981
    %v7066 = vunpack.c.h.b16 %v981
    %v7067 = vunpack.c.l.b16 %v982
    %v7068 = vunpack.c.h.b16 %v982
    %v7069 = vunpack.c.l.b16 %v983
    %v7070 = vunpack.c.h.b16 %v983
    %v7071 = vunpack.c.l.b16 %v984
    %v7072 = vunpack.c.h.b16 %v984
    %v7073 = vunpack.c.l.b16 %v985
    %v7074 = vunpack.c.h.b16 %v985
    %v7075 = vunpack.c.l.b16 %v986
    %v7076 = vunpack.c.h.b16 %v986
    %v7077 = vunpack.c.l.b16 %v987
    %v7078 = vunpack.c.h.b16 %v987
    %v7079 = vunpack.c.l.b16 %v988
    %v7080 = vunpack.c.h.b16 %v988
    %v7081 = vunpack.c.l.b16 %v989
    %v7082 = vunpack.c.h.b16 %v989
    %v7083 = vunpack.c.l.b16 %v990
    %v7084 = vunpack.c.h.b16 %v990
    %v7085 = vunpack.c.l.b16 %v991
    %v7086 = vunpack.c.h.b16 %v991
    %v7087 = vunpack.c.l.b16 %v992
    %v7088 = vunpack.c.h.b16 %v992
    %v7089 = vunpack.c.l.b16 %v993
    %v7090 = vunpack.c.h.b16 %v993
    %v7091 = vunpack.c.l.b16 %v994
    %v7092 = vunpack.c.h.b16 %v994
    %v7093 = vunpack.c.l.b16 %v995
    %v7094 = vunpack.c.h.b16 %v995
    %v7095 = vunpack.c.l.b16 %v996
    %v7096 = vunpack.c.h.b16 %v996
    %v7097 = vunpack.c.l.b16 %v997
    %v7098 = vunpack.c.h.b16 %v997
    %v7099 = vunpack.c.l.b16 %v998
    %v7100 = vunpack.c.h.b16 %v998
    %v7101 = vunpack.c.l.b16 %v999
    %v7102 = vunpack.c.h.b16 %v999
    %v7103 = vunpack.c.l.b16 %v1000
    %v7104 = vunpack.c.h.b16 %v1000
    %v7105 = vunpack.c.l.b16 %v1001
    %v7106 = vunpack.c.h.b16 %v1001
    %v7107 = vunpack.c.l.b16 %v1002
    %v7108 = vunpack.c.h.b16 %v1002
    %v7109 = vunpack.c.l.b16 %v1003
    %v7110 = vunpack.c.h.b16 %v1003
    %v7111 = vunpack.c.l.b16 %v1004
    %v7112 = vunpack.c.h.b16 %v1004
    %v7113 = vunpack.c.l.b16 %v1005
    %v7114 = vunpack.c.h.b16 %v1005
    %v7115 = vunpack.c.l.b16 %v1006
    %v7116 = vunpack.c.h.b16 %v1006
    %v7117 = vunpack.c.l.b16 %v1007
    %v7118 = vunpack.c.h.b16 %v1007
    %v7119 = vunpack.c.l.b16 %v1008
    %v7120 = vunpack.c.h.b16 %v1008
    %v7121 = vunpack.c.l.b16 %v1009
    %v7122 = vunpack.c.h.b16 %v1009
    %v7123 = vunpack.c.l.b16 %v1010
    %v7124 = vunpack.c.h.b16 %v1010
    %v7125 = vunpack.c.l.b16 %v1011
    %v7126 = vunpack.c.h.b16 %v1011
    %v7127 = vunpack.c.l.b16 %v1012
    %v7128 = vunpack.c.h.b16 %v1012
    %v7129 = vunpack.c.l.b16 %v1013
    %v7130 = vunpack.c.h.b16 %v1013
    %v7131 = vunpack.c.l.b16 %v1014
    %v7132 = vunpack.c.h.b16 %v1014
    %v7133 = vunpack.c.l.b16 %v1015
    %v7134 = vunpack.c.h.b16 %v1015
    %v7135 = vunpack.c.l.b16 %v1016
    %v7136 = vunpack.c.h.b16 %v1016
    %v7137 = vunpack.c.l.b16 %v1017
    %v7138 = vunpack.c.h.b16 %v1017
    %v7139 = vunpack.c.l.b16 %v1018
    %v7140 = vunpack.c.h.b16 %v1018
    %v7141 = vunpack.c.l.b16 %v1019
    %v7142 = vunpack.c.h.b16 %v1019
    %v7143 = vunpack.c.l.b16 %v1020
    %v7144 = vunpack.c.h.b16 %v1020
    %v7145 = vunpack.c.l.b16 %v1021
    %v7146 = vunpack.c.h.b16 %v1021
    %v7147 = vunpack.c.l.b16 %v1022
    %v7148 = vunpack.c.h.b16 %v1022
    %v7149 = vunpack.c.l.b16 %v1023
    %v7150 = vunpack.c.h.b16 %v1023
    %v7151 = vunpack.c.l.b16 %v1024
    %v7152 = vunpack.c.h.b16 %v1024
    %v7153 = vunpack.c.l.b16 %v1025
    %v7154 = vunpack.c.h.b16 %v1025
    %v7155 = vunpack.c.l.b16 %v1026
    %v7156 = vunpack.c.h.b16 %v1026
    %v7157 = vunpack.c.l.b16 %v1027
    %v7158 = vunpack.c.h.b16 %v1027
    %v7159 = vunpack.c.l.b16 %v1028
    %v7160 = vunpack.c.h.b16 %v1028
    %v7161 = vunpack.c.l.b16 %v1029
    %v7162 = vunpack.c.h.b16 %v1029
    %v7163 = vunpack.c.l.b16 %v1030
    %v7164 = vunpack.c.h.b16 %v1030
    %v7165 = vunpack.c.l.b16 %v1031
    %v7166 = vunpack.c.h.b16 %v1031
    %v7167 = vunpack.c.l.b16 %v1032
    %v7168 = vunpack.c.h.b16 %v1032
    %v7169 = vunpack.c.l.b16 %v1033
    %v7170 = vunpack.c.h.b16 %v1033
    %v7171 = vunpack.c.l.b16 %v1034
    %v7172 = vunpack.c.h.b16 %v1034
    %v7173 = vunpack.c.l.b16 %v1035
    %v7174 = vunpack.c.h.b16 %v1035
    %v7175 = vunpack.c.l.b16 %v1036
    %v7176 = vunpack.c.h.b16 %v1036
    %v7177 = vunpack.c.l.b16 %v1037
    %v7178 = vunpack.c.h.b16 %v1037
    %v7179 = vunpack.c.l.b16 %v1038
    %v7180 = vunpack.c.h.b16 %v1038
    %v7181 = vunpack.c.l.b16 %v1039
    %v7182 = vunpack.c.h.b16 %v1039
    %v7183 = vunpack.c.l.b16 %v1040
    %v7184 = vunpack.c.h.b16 %v1040
    %v7185 = vunpack.c.l.b16 %v1041
    %v7186 = vunpack.c.h.b16 %v1041
    %v7187 = vunpack.c.l.b16 %v1042
    %v7188 = vunpack.c.h.b16 %v1042
    %v7189 = vunpack.c.l.b16 %v1043
    %v7190 = vunpack.c.h.b16 %v1043
    %v7191 = vunpack.c.l.b16 %v1044
    %v7192 = vunpack.c.h.b16 %v1044
    %v7193 = vunpack.c.l.b16 %v1045
    %v7194 = vunpack.c.h.b16 %v1045
    %v7195 = vunpack.c.l.b16 %v1046
    %v7196 = vunpack.c.h.b16 %v1046
    %v7197 = vunpack.c.l.b16 %v1047
    %v7198 = vunpack.c.h.b16 %v1047
    %v7199 = vunpack.c.l.b16 %v1048
    %v7200 = vunpack.c.h.b16 %v1048
    %v7201 = vunpack.c.l.b16 %v1049
    %v7202 = vunpack.c.h.b16 %v1049
    %v7203 = vunpack.c.l.b16 %v1050
    %v7204 = vunpack.c.h.b16 %v1050
    %v7205 = vunpack.c.l.b16 %v1051
    %v7206 = vunpack.c.h.b16 %v1051
    %v7207 = vunpack.c.l.b16 %v1052
    %v7208 = vunpack.c.h.b16 %v1052
    %v7209 = vunpack.c.l.b16 %v1053
    %v7210 = vunpack.c.h.b16 %v1053
    %v7211 = vunpack.c.l.b16 %v1054
    %v7212 = vunpack.c.h.b16 %v1054
    %v7213 = vunpack.c.l.b16 %v1055
    %v7214 = vunpack.c.h.b16 %v1055
    %v7215 = vunpack.c.l.b16 %v1056
    %v7216 = vunpack.c.h.b16 %v1056
    %v7217 = vunpack.c.l.b16 %v1057
    %v7218 = vunpack.c.h.b16 %v1057
    %v7219 = vunpack.c.l.b16 %v1058
    %v7220 = vunpack.c.h.b16 %v1058
    %v7221 = vunpack.c.l.b16 %v1059
    %v7222 = vunpack.c.h.b16 %v1059
    %v7223 = vunpack.c.l.b16 %v1060
    %v7224 = vunpack.c.h.b16 %v1060
    %v7225 = vunpack.c.l.b16 %v1061
    %v7226 = vunpack.c.h.b16 %v1061
    %v7227 = vunpack.c.l.b16 %v1062
    %v7228 = vunpack.c.h.b16 %v1062
    %v7229 = vunpack.c.l.b16 %v1063
    %v7230 = vunpack.c.h.b16 %v1063
    %v7231 = vunpack.c.l.b16 %v1064
    %v7232 = vunpack.c.h.b16 %v1064
    %v7233 = vunpack.c.l.b16 %v1065
    %v7234 = vunpack.c.h.b16 %v1065
    %v7235 = vunpack.c.l.b16 %v1066
    %v7236 = vunpack.c.h.b16 %v1066
    %v7237 = vunpack.c.l.b16 %v1067
    %v7238 = vunpack.c.h.b16 %v1067
    %v7239 = vunpack.c.l.b16 %v1068
    %v7240 = vunpack.c.h.b16 %v1068
    %v7241 = vunpack.c.l.b16 %v1069
    %v7242 = vunpack.c.h.b16 %v1069
    %v7243 = vunpack.c.l.b16 %v1070
    %v7244 = vunpack.c.h.b16 %v1070
    %v7245 = vunpack.c.l.b16 %v1071
    %v7246 = vunpack.c.h.b16 %v1071
    %v7247 = vunpack.c.l.b16 %v1072
    %v7248 = vunpack.c.h.b16 %v1072
    %v7249 = vunpack.c.l.b16 %v1073
    %v7250 = vunpack.c.h.b16 %v1073
    %v7251 = vunpack.c.l.b16 %v1074
    %v7252 = vunpack.c.h.b16 %v1074
    %v7253 = vunpack.c.l.b16 %v1075
    %v7254 = vunpack.c.h.b16 %v1075
    %v7255 = vunpack.c.l.b16 %v1076
    %v7256 = vunpack.c.h.b16 %v1076
    %v7257 = vunpack.c.l.b16 %v1077
    %v7258 = vunpack.c.h.b16 %v1077
    %v7259 = vunpack.c.l.b16 %v1078
    %v7260 = vunpack.c.h.b16 %v1078
    %v7261 = vunpack.c.l.b16 %v1079
    %v7262 = vunpack.c.h.b16 %v1079
    %v7263 = vunpack.c.l.b16 %v1080
    %v7264 = vunpack.c.h.b16 %v1080
    %v7265 = vunpack.c.l.b16 %v1081
    %v7266 = vunpack.c.h.b16 %v1081
    %v7267 = vunpack.c.l.b16 %v1082
    %v7268 = vunpack.c.h.b16 %v1082
    %v7269 = vunpack.c.l.b16 %v1083
    %v7270 = vunpack.c.h.b16 %v1083
    %v7271 = vunpack.c.l.b16 %v1084
    %v7272 = vunpack.c.h.b16 %v1084
    %v7273 = vunpack.c.l.b16 %v1085
    %v7274 = vunpack.c.h.b16 %v1085
    %v7275 = vunpack.c.l.b16 %v1086
    %v7276 = vunpack.c.h.b16 %v1086
    %v7277 = vunpack.c.l.b16 %v1087
    %v7278 = vunpack.c.h.b16 %v1087
    %v7279 = vunpack.c.l.b16 %v1088
    %v7280 = vunpack.c.h.b16 %v1088
    %v7281 = vunpack.c.l.b16 %v1089
    %v7282 = vunpack.c.h.b16 %v1089
    %v7283 = vunpack.c.l.b16 %v1090
    %v7284 = vunpack.c.h.b16 %v1090
    %v7285 = vunpack.c.l.b16 %v1091
    %v7286 = vunpack.c.h.b16 %v1091
    %v7287 = vunpack.c.l.b16 %v1092
    %v7288 = vunpack.c.h.b16 %v1092
    %v7289 = vunpack.c.l.b16 %v1093
    %v7290 = vunpack.c.h.b16 %v1093
    %v7291 = vunpack.c.l.b16 %v1094
    %v7292 = vunpack.c.h.b16 %v1094
    %v7293 = vunpack.c.l.b16 %v1095
    %v7294 = vunpack.c.h.b16 %v1095
    %v7295 = vunpack.c.l.b16 %v1096
    %v7296 = vunpack.c.h.b16 %v1096
    %v7297 = vunpack.c.l.b16 %v1097
    %v7298 = vunpack.c.h.b16 %v1097
    %v7299 = vunpack.c.l.b16 %v1098
    %v7300 = vunpack.c.h.b16 %v1098
    %v7301 = vunpack.c.l.b16 %v1099
    %v7302 = vunpack.c.h.b16 %v1099
    %v7303 = vunpack.c.l.b16 %v1100
    %v7304 = vunpack.c.h.b16 %v1100
    %v7305 = vunpack.c.l.b16 %v1101
    %v7306 = vunpack.c.h.b16 %v1101
    %v7307 = vunpack.c.l.b16 %v1102
    %v7308 = vunpack.c.h.b16 %v1102
    %v7309 = vunpack.c.l.b16 %v1103
    %v7310 = vunpack.c.h.b16 %v1103
    %v7311 = vunpack.c.l.b16 %v1104
    %v7312 = vunpack.c.h.b16 %v1104
    %v7313 = vunpack.c.l.b16 %v1105
    %v7314 = vunpack.c.h.b16 %v1105
    %v7315 = vunpack.c.l.b16 %v1106
    %v7316 = vunpack.c.h.b16 %v1106
    %v7317 = vunpack.c.l.b16 %v1107
    %v7318 = vunpack.c.h.b16 %v1107
    %v7319 = vunpack.c.l.b16 %v1108
    %v7320 = vunpack.c.h.b16 %v1108
    %v7321 = vunpack.c.l.b16 %v1109
    %v7322 = vunpack.c.h.b16 %v1109
    %v7323 = vunpack.c.l.b16 %v1110
    %v7324 = vunpack.c.h.b16 %v1110
    %v7325 = vunpack.c.l.b16 %v1111
    %v7326 = vunpack.c.h.b16 %v1111
    %v7327 = vunpack.c.l.b16 %v1112
    %v7328 = vunpack.c.h.b16 %v1112
    %v7329 = vunpack.c.l.b16 %v1113
    %v7330 = vunpack.c.h.b16 %v1113
    %v7331 = vunpack.c.l.b16 %v1114
    %v7332 = vunpack.c.h.b16 %v1114
    %v7333 = vunpack.c.l.b16 %v1115
    %v7334 = vunpack.c.h.b16 %v1115
    %v7335 = vunpack.c.l.b16 %v1116
    %v7336 = vunpack.c.h.b16 %v1116
    %v7337 = vunpack.c.l.b16 %v1117
    %v7338 = vunpack.c.h.b16 %v1117
    %v7339 = vunpack.c.l.b16 %v1118
    %v7340 = vunpack.c.h.b16 %v1118
    %v7341 = vunpack.c.l.b16 %v1119
    %v7342 = vunpack.c.h.b16 %v1119
    %v7343 = vunpack.c.l.b16 %v1120
    %v7344 = vunpack.c.h.b16 %v1120
    %v7345 = vunpack.c.l.b16 %v1121
    %v7346 = vunpack.c.h.b16 %v1121
    %v7347 = vunpack.c.l.b16 %v1122
    %v7348 = vunpack.c.h.b16 %v1122
    %v7349 = vunpack.c.l.b16 %v1123
    %v7350 = vunpack.c.h.b16 %v1123
    %v7351 = vunpack.c.l.b16 %v1124
    %v7352 = vunpack.c.h.b16 %v1124
    %v7353 = vunpack.c.l.b16 %v1125
    %v7354 = vunpack.c.h.b16 %v1125
    %v7355 = vunpack.c.l.b16 %v1126
    %v7356 = vunpack.c.h.b16 %v1126
    %v7357 = vunpack.c.l.b16 %v1127
    %v7358 = vunpack.c.h.b16 %v1127
    %v7359 = vunpack.c.l.b16 %v1128
    %v7360 = vunpack.c.h.b16 %v1128
    %v7361 = vunpack.c.l.b16 %v1129
    %v7362 = vunpack.c.h.b16 %v1129
    %v7363 = vunpack.c.l.b16 %v1130
    %v7364 = vunpack.c.h.b16 %v1130
    %v7365 = vunpack.c.l.b16 %v1131
    %v7366 = vunpack.c.h.b16 %v1131
    %v7367 = vunpack.c.l.b16 %v1132
    %v7368 = vunpack.c.h.b16 %v1132
    %v7369 = vunpack.c.l.b16 %v1133
    %v7370 = vunpack.c.h.b16 %v1133
    %v7371 = vunpack.c.l.b16 %v1134
    %v7372 = vunpack.c.h.b16 %v1134
    %v7373 = vunpack.c.l.b16 %v1135
    %v7374 = vunpack.c.h.b16 %v1135
    %v7375 = vunpack.c.l.b16 %v1136
    %v7376 = vunpack.c.h.b16 %v1136
    %v7377 = vunpack.c.l.b16 %v1137
    %v7378 = vunpack.c.h.b16 %v1137
    %v7379 = vunpack.c.l.b16 %v1138
    %v7380 = vunpack.c.h.b16 %v1138
    %v7381 = vunpack.c.l.b16 %v1139
    %v7382 = vunpack.c.h.b16 %v1139
    %v7383 = vunpack.c.l.b16 %v1140
    %v7384 = vunpack.c.h.b16 %v1140
    %v7385 = vunpack.c.l.b16 %v1141
    %v7386 = vunpack.c.h.b16 %v1141
    %v7387 = vunpack.c.l.b16 %v1142
    %v7388 = vunpack.c.h.b16 %v1142
    %v7389 = vunpack.c.l.b16 %v1143
    %v7390 = vunpack.c.h.b16 %v1143
    %v7391 = vunpack.c.l.b16 %v1144
    %v7392 = vunpack.c.h.b16 %v1144
    %v7393 = vunpack.c.l.b16 %v1145
    %v7394 = vunpack.c.h.b16 %v1145
    %v7395 = vunpack.c.l.b16 %v1146
    %v7396 = vunpack.c.h.b16 %v1146
    %v7397 = vunpack.c.l.b16 %v1147
    %v7398 = vunpack.c.h.b16 %v1147
    %v7399 = vunpack.c.l.b16 %v1148
    %v7400 = vunpack.c.h.b16 %v1148
    %v7401 = vunpack.c.l.b16 %v1149
    %v7402 = vunpack.c.h.b16 %v1149
    %v7403 = vunpack.c.l.b16 %v1150
    %v7404 = vunpack.c.h.b16 %v1150
    %v7405 = vunpack.c.l.b16 %v1151
    %v7406 = vunpack.c.h.b16 %v1151
    %v7407 = vunpack.c.l.b16 %v1152
    %v7408 = vunpack.c.h.b16 %v1152
    %v7409 = vunpack.c.l.b16 %v1153
    %v7410 = vunpack.c.h.b16 %v1153
    %v7411 = vunpack.c.l.b16 %v1154
    %v7412 = vunpack.c.h.b16 %v1154
    %v7413 = vunpack.c.l.b16 %v1155
    %v7414 = vunpack.c.h.b16 %v1155
    %v7415 = vunpack.c.l.b16 %v1156
    %v7416 = vunpack.c.h.b16 %v1156
    %v7417 = vunpack.c.l.b16 %v1157
    %v7418 = vunpack.c.h.b16 %v1157
    %v7419 = vpack.c.b16 %v6911, %v6907
    %v7420 = vpack.c.b16 %v6912, %v6908
    %v7421 = vpack.c.b16 %v6913, %v6909
    %v7422 = vpack.c.b16 %v6914, %v6910
    %v7423 = vpack.c.b16 %v6919, %v6915
    %v7424 = vpack.c.b16 %v6920, %v6916
    %v7425 = vpack.c.b16 %v6921, %v6917
    %v7426 = vpack.c.b16 %v6922, %v6918
    %v7427 = vpack.c.b16 %v6927, %v6923
    %v7428 = vpack.c.b16 %v6928, %v6924
    %v7429 = vpack.c.b16 %v6929, %v6925
    %v7430 = vpack.c.b16 %v6930, %v6926
    %v7431 = vpack.c.b16 %v6935, %v6931
    %v7432 = vpack.c.b16 %v6936, %v6932
    %v7433 = vpack.c.b16 %v6937, %v6933
    %v7434 = vpack.c.b16 %v6938, %v6934
    %v7435 = vpack.c.b16 %v6943, %v6939
    %v7436 = vpack.c.b16 %v6944, %v6940
    %v7437 = vpack.c.b16 %v6945, %v6941
    %v7438 = vpack.c.b16 %v6946, %v6942
    %v7439 = vpack.c.b16 %v6951, %v6947
    %v7440 = vpack.c.b16 %v6952, %v6948
    %v7441 = vpack.c.b16 %v6953, %v6949
    %v7442 = vpack.c.b16 %v6954, %v6950
    %v7443 = vpack.c.b16 %v6959, %v6955
    %v7444 = vpack.c.b16 %v6960, %v6956
    %v7445 = vpack.c.b16 %v6961, %v6957
    %v7446 = vpack.c.b16 %v6962, %v6958
    %v7447 = vpack.c.b16 %v6967, %v6963
    %v7448 = vpack.c.b16 %v6968, %v6964
    %v7449 = vpack.c.b16 %v6969, %v6965
    %v7450 = vpack.c.b16 %v6970, %v6966
    %v7451 = vpack.c.b16 %v6975, %v6971
    %v7452 = vpack.c.b16 %v6976, %v6972
    %v7453 = vpack.c.b16 %v6977, %v6973
    %v7454 = vpack.c.b16 %v6978, %v6974
    %v7455 = vpack.c.b16 %v6983, %v6979
    %v7456 = vpack.c.b16 %v6984, %v6980
    %v7457 = vpack.c.b16 %v6985, %v6981
    %v7458 = vpack.c.b16 %v6986, %v6982
    %v7459 = vpack.c.b16 %v6991, %v6987
    %v7460 = vpack.c.b16 %v6992, %v6988
    %v7461 = vpack.c.b16 %v6993, %v6989
    %v7462 = vpack.c.b16 %v6994, %v6990
    %v7463 = vpack.c.b16 %v6999, %v6995
    %v7464 = vpack.c.b16 %v7000, %v6996
    %v7465 = vpack.c.b16 %v7001, %v6997
    %v7466 = vpack.c.b16 %v7002, %v6998
    %v7467 = vpack.c.b16 %v7007, %v7003
    %v7468 = vpack.c.b16 %v7008, %v7004
    %v7469 = vpack.c.b16 %v7009, %v7005
    %v7470 = vpack.c.b16 %v7010, %v7006
    %v7471 = vpack.c.b16 %v7015, %v7011
    %v7472 = vpack.c.b16 %v7016, %v7012
    %v7473 = vpack.c.b16 %v7017, %v7013
    %v7474 = vpack.c.b16 %v7018, %v7014
    %v7475 = vpack.c.b16 %v7023, %v7019
    %v7476 = vpack.c.b16 %v7024, %v7020
    %v7477 = vpack.c.b16 %v7025, %v7021
    %v7478 = vpack.c.b16 %v7026, %v7022
    %v7479 = vpack.c.b16 %v7031, %v7027
    %v7480 = vpack.c.b16 %v7032, %v7028
    %v7481 = vpack.c.b16 %v7033, %v7029
    %v7482 = vpack.c.b16 %v7034, %v7030
    %v7483 = vpack.c.b16 %v7039, %v7035
    %v7484 = vpack.c.b16 %v7040, %v7036
    %v7485 = vpack.c.b16 %v7041, %v7037
    %v7486 = vpack.c.b16 %v7042, %v7038
    %v7487 = vpack.c.b16 %v7047, %v7043
    %v7488 = vpack.c.b16 %v7048, %v7044
    %v7489 = vpack.c.b16 %v7049, %v7045
    %v7490 = vpack.c.b16 %v7050, %v7046
    %v7491 = vpack.c.b16 %v7055, %v7051
    %v7492 = vpack.c.b16 %v7056, %v7052
    %v7493 = vpack.c.b16 %v7057, %v7053
    %v7494 = vpack.c.b16 %v7058, %v7054
    %v7495 = vpack.c.b16 %v7063, %v7059
    %v7496 = vpack.c.b16 %v7064, %v7060
    %v7497 = vpack.c.b16 %v7065, %v7061
    %v7498 = vpack.c.b16 %v7066, %v7062
    %v7499 = vpack.c.b16 %v7071, %v7067
    %v7500 = vpack.c.b16 %v7072, %v7068
    %v7501 = vpack.c.b16 %v7073, %v7069
    %v7502 = vpack.c.b16 %v7074, %v7070
    %v7503 = vpack.c.b16 %v7079, %v7075
    %v7504 = vpack.c.b16 %v7080, %v7076
    %v7505 = vpack.c.b16 %v7081, %v7077
    %v7506 = vpack.c.b16 %v7082, %v7078
    %v7507 = vpack.c.b16 %v7087, %v7083
    %v7508 = vpack.c.b16 %v7088, %v7084
    %v7509 = vpack.c.b16 %v7089, %v7085
    %v7510 = vpack.c.b16 %v7090, %v7086
    %v7511 = vpack.c.b16 %v7095, %v7091
    %v7512 = vpack.c.b16 %v7096, %v7092
    %v7513 = vpack.c.b16 %v7097, %v7093
    %v7514 = vpack.c.b16 %v7098, %v7094
    %v7515 = vpack.c.b16 %v7103, %v7099
    %v7516 = vpack.c.b16 %v7104, %v7100
    %v7517 = vpack.c.b16 %v7105, %v7101
    %v7518 = vpack.c.b16 %v7106, %v7102
    %v7519 = vpack.c.b16 %v7111, %v7107
    %v7520 = vpack.c.b16 %v7112, %v7108
    %v7521 = vpack.c.b16 %v7113, %v7109
    %v7522 = vpack.c.b16 %v7114, %v7110
    %v7523 = vpack.c.b16 %v7119, %v7115
    %v7524 = vpack.c.b16 %v7120, %v7116
    %v7525 = vpack.c.b16 %v7121, %v7117
    %v7526 = vpack.c.b16 %v7122, %v7118
    %v7527 = vpack.c.b16 %v7127, %v7123
    %v7528 = vpack.c.b16 %v7128, %v7124
    %v7529 = vpack.c.b16 %v7129, %v7125
    %v7530 = vpack.c.b16 %v7130, %v7126
    %v7531 = vpack.c.b16 %v7135, %v7131
    %v7532 = vpack.c.b16 %v7136, %v7132
    %v7533 = vpack.c.b16 %v7137, %v7133
    %v7534 = vpack.c.b16 %v7138, %v7134
    %v7535 = vpack.c.b16 %v7143, %v7139
    %v7536 = vpack.c.b16 %v7144, %v7140
    %v7537 = vpack.c.b16 %v7145, %v7141
    %v7538 = vpack.c.b16 %v7146, %v7142
    %v7539 = vpack.c.b16 %v7151, %v7147
    %v7540 = vpack.c.b16 %v7152, %v7148
    %v7541 = vpack.c.b16 %v7153, %v7149
    %v7542 = vpack.c.b16 %v7154, %v7150
    %v7543 = vpack.c.b16 %v7159, %v7155
    %v7544 = vpack.c.b16 %v7160, %v7156
    %v7545 = vpack.c.b16 %v7161, %v7157
    %v7546 = vpack.c.b16 %v7162, %v7158
    %v7547 = vpack.c.b16 %v7167, %v7163
    %v7548 = vpack.c.b16 %v7168, %v7164
    %v7549 = vpack.c.b16 %v7169, %v7165
    %v7550 = vpack.c.b16 %v7170, %v7166
    %v7551 = vpack.c.b16 %v7175, %v7171
    %v7552 = vpack.c.b16 %v7176, %v7172
    %v7553 = vpack.c.b16 %v7177, %v7173
    %v7554 = vpack.c.b16 %v7178, %v7174
    %v7555 = vpack.c.b16 %v7183, %v7179
    %v7556 = vpack.c.b16 %v7184, %v7180
    %v7557 = vpack.c.b16 %v7185, %v7181
    %v7558 = vpack.c.b16 %v7186, %v7182
    %v7559 = vpack.c.b16 %v7191, %v7187
    %v7560 = vpack.c.b16 %v7192, %v7188
    %v7561 = vpack.c.b16 %v7193, %v7189
    %v7562 = vpack.c.b16 %v7194, %v7190
    %v7563 = vpack.c.b16 %v7199, %v7195
    %v7564 = vpack.c.b16 %v7200, %v7196
    %v7565 = vpack.c.b16 %v7201, %v7197
    %v7566 = vpack.c.b16 %v7202, %v7198
    %v7567 = vpack.c.b16 %v7207, %v7203
    %v7568 = vpack.c.b16 %v7208, %v7204
    %v7569 = vpack.c.b16 %v7209, %v7205
    %v7570 = vpack.c.b16 %v7210, %v7206
    %v7571 = vpack.c.b16 %v7215, %v7211
    %v7572 = vpack.c.b16 %v7216, %v7212
    %v7573 = vpack.c.b16 %v7217, %v7213
    %v7574 = vpack.c.b16 %v7218, %v7214
    %v7575 = vpack.c.b16 %v7223, %v7219
    %v7576 = vpack.c.b16 %v7224, %v7220
    %v7577 = vpack.c.b16 %v7225, %v7221
    %v7578 = vpack.c.b16 %v7226, %v7222
    %v7579 = vpack.c.b16 %v7231, %v7227
    %v7580 = vpack.c.b16 %v7232, %v7228
    %v7581 = vpack.c.b16 %v7233, %v7229
    %v7582 = vpack.c.b16 %v7234, %v7230
    %v7583 = vpack.c.b16 %v7239, %v7235
    %v7584 = vpack.c.b16 %v7240, %v7236
    %v7585 = vpack.c.b16 %v7241, %v7237
    %v7586 = vpack.c.b16 %v7242, %v7238
    %v7587 = vpack.c.b16 %v7247, %v7243
    %v7588 = vpack.c.b16 %v7248, %v7244
    %v7589 = vpack.c.b16 %v7249, %v7245
    %v7590 = vpack.c.b16 %v7250, %v7246
    %v7591 = vpack.c.b16 %v7255, %v7251
    %v7592 = vpack.c.b16 %v7256, %v7252
    %v7593 = vpack.c.b16 %v7257, %v7253
    %v7594 = vpack.c.b16 %v7258, %v7254
    %v7595 = vpack.c.b16 %v7263, %v7259
    %v7596 = vpack.c.b16 %v7264, %v7260
    %v7597 = vpack.c.b16 %v7265, %v7261
    %v7598 = vpack.c.b16 %v7266, %v7262
    %v7599 = vpack.c.b16 %v7271, %v7267
    %v7600 = vpack.c.b16 %v7272, %v7268
    %v7601 = vpack.c.b16 %v7273, %v7269
    %v7602 = vpack.c.b16 %v7274, %v7270
    %v7603 = vpack.c.b16 %v7279, %v7275
    %v7604 = vpack.c.b16 %v7280, %v7276
    %v7605 = vpack.c.b16 %v7281, %v7277
    %v7606 = vpack.c.b16 %v7282, %v7278
    %v7607 = vpack.c.b16 %v7287, %v7283
    %v7608 = vpack.c.b16 %v7288, %v7284
    %v7609 = vpack.c.b16 %v7289, %v7285
    %v7610 = vpack.c.b16 %v7290, %v7286
    %v7611 = vpack.c.b16 %v7295, %v7291
    %v7612 = vpack.c.b16 %v7296, %v7292
    %v7613 = vpack.c.b16 %v7297, %v7293
    %v7614 = vpack.c.b16 %v7298, %v7294
    %v7615 = vpack.c.b16 %v7303, %v7299
    %v7616 = vpack.c.b16 %v7304, %v7300
    %v7617 = vpack.c.b16 %v7305, %v7301
    %v7618 = vpack.c.b16 %v7306, %v7302
    %v7619 = vpack.c.b16 %v7311, %v7307
    %v7620 = vpack.c.b16 %v7312, %v7308
    %v7621 = vpack.c.b16 %v7313, %v7309
    %v7622 = vpack.c.b16 %v7314, %v7310
    %v7623 = vpack.c.b16 %v7319, %v7315
    %v7624 = vpack.c.b16 %v7320, %v7316
    %v7625 = vpack.c.b16 %v7321, %v7317
    %v7626 = vpack.c.b16 %v7322, %v7318
    %v7627 = vpack.c.b16 %v7327, %v7323
    %v7628 = vpack.c.b16 %v7328, %v7324
    %v7629 = vpack.c.b16 %v7329, %v7325
    %v7630 = vpack.c.b16 %v7330, %v7326
    %v7631 = vpack.c.b16 %v7335, %v7331
    %v7632 = vpack.c.b16 %v7336, %v7332
    %v7633 = vpack.c.b16 %v7337, %v7333
    %v7634 = vpack.c.b16 %v7338, %v7334
    %v7635 = vpack.c.b16 %v7343, %v7339
    %v7636 = vpack.c.b16 %v7344, %v7340
    %v7637 = vpack.c.b16 %v7345, %v7341
    %v7638 = vpack.c.b16 %v7346, %v7342
    %v7639 = vpack.c.b16 %v7351, %v7347
    %v7640 = vpack.c.b16 %v7352, %v7348
    %v7641 = vpack.c.b16 %v7353, %v7349
    %v7642 = vpack.c.b16 %v7354, %v7350
    %v7643 = vpack.c.b16 %v7359, %v7355
    %v7644 = vpack.c.b16 %v7360, %v7356
    %v7645 = vpack.c.b16 %v7361, %v7357
    %v7646 = vpack.c.b16 %v7362, %v7358
    %v7647 = vpack.c.b16 %v7367, %v7363
    %v7648 = vpack.c.b16 %v7368, %v7364
    %v7649 = vpack.c.b16 %v7369, %v7365
    %v7650 = vpack.c.b16 %v7370, %v7366
    %v7651 = vpack.c.b16 %v7375, %v7371
    %v7652 = vpack.c.b16 %v7376, %v7372
    %v7653 = vpack.c.b16 %v7377, %v7373
    %v7654 = vpack.c.b16 %v7378, %v7374
    %v7655 = vpack.c.b16 %v7383, %v7379
    %v7656 = vpack.c.b16 %v7384, %v7380
    %v7657 = vpack.c.b16 %v7385, %v7381
    %v7658 = vpack.c.b16 %v7386, %v7382
    %v7659 = vpack.c.b16 %v7391, %v7387
    %v7660 = vpack.c.b16 %v7392, %v7388
    %v7661 = vpack.c.b16 %v7393, %v7389
    %v7662 = vpack.c.b16 %v7394, %v7390
    %v7663 = vpack.c.b16 %v7399, %v7395
    %v7664 = vpack.c.b16 %v7400, %v7396
    %v7665 = vpack.c.b16 %v7401, %v7397
    %v7666 = vpack.c.b16 %v7402, %v7398
    %v7667 = vpack.c.b16 %v7407, %v7403
    %v7668 = vpack.c.b16 %v7408, %v7404
    %v7669 = vpack.c.b16 %v7409, %v7405
    %v7670 = vpack.c.b16 %v7410, %v7406
    %v7671 = vpack.c.b16 %v7415, %v7411
    %v7672 = vpack.c.b16 %v7416, %v7412
    %v7673 = vpack.c.b16 %v7417, %v7413
    %v7674 = vpack.c.b16 %v7418, %v7414
    %7931 = vmatprep.subr.bf16.mxu0 %v7420
    %7932 = vmatpush1.bf16.msra.mxu0 %v7419
    %7933 = vmatprep.subr.bf16.mxu0 %v7424
    %7934 = vmatpush1.bf16.msra.mxu0 %v7423
    %7935 = vmatprep.subr.bf16.mxu0 %v7428
    %7936 = vmatpush1.bf16.msra.mxu0 %v7427
    %7937 = vmatprep.subr.bf16.mxu0 %v7432
    %7938 = vmatpush1.bf16.msra.mxu0 %v7431
    %7939 = vmatprep.subr.bf16.mxu0 %v7436
    %7940 = vmatpush1.bf16.msra.mxu0 %v7435
    %7941 = vmatprep.subr.bf16.mxu0 %v7440
    %7942 = vmatpush1.bf16.msra.mxu0 %v7439
    %7943 = vmatprep.subr.bf16.mxu0 %v7444
    %7944 = vmatpush1.bf16.msra.mxu0 %v7443
    %7945 = vmatprep.subr.bf16.mxu0 %v7448
    %7946 = vmatpush1.bf16.msra.mxu0 %v7447
    %7947 = vmatprep.subr.bf16.mxu0 %v7452
    %7948 = vmatpush1.bf16.msra.mxu0 %v7451
    %7949 = vmatprep.subr.bf16.mxu0 %v7456
    %7950 = vmatpush1.bf16.msra.mxu0 %v7455
    %7951 = vmatprep.subr.bf16.mxu0 %v7460
    %7952 = vmatpush1.bf16.msra.mxu0 %v7459
    %7953 = vmatprep.subr.bf16.mxu0 %v7464
    %7954 = vmatpush1.bf16.msra.mxu0 %v7463
    %7955 = vmatprep.subr.bf16.mxu0 %v7468
    %7956 = vmatpush1.bf16.msra.mxu0 %v7467
    %7957 = vmatprep.subr.bf16.mxu0 %v7472
    %7958 = vmatpush1.bf16.msra.mxu0 %v7471
    %7959 = vmatprep.subr.bf16.mxu0 %v7476
    %7960 = vmatpush1.bf16.msra.mxu0 %v7475
    %7961 = vmatprep.subr.bf16.mxu0 %v7480
    %7962 = vmatpush1.bf16.msra.mxu0 %v7479
    %7963 = vmatprep.mubr.bf16.mxu0 %v6623
    %7964 = vmatmul.mubr.bf16.gmra.mrb[0].mxu0 %v6622
    %v7965 = vpop.f32.mrb[0].mxu0
    %v7966 = vadd.f32 %v6634, %v7965
    %v7967 = vpop.f32.mrb[0].mxu0
    %v7968 = vadd.f32 %v6638, %v7967
    %v7969 = vpop.f32.mrb[0].mxu0
    %v7970 = vadd.f32 %v6634, %v7969
    %v7971 = vpop.f32.mrb[0].mxu0
    %v7972 = vadd.f32 %v6638, %v7971
    %7973 = vdwg.mxu0
    %7974 = vmatprep.subr.bf16.mxu0 %v7484
    %7975 = vmatpush1.bf16.msra.mxu0 %v7483
    %7976 = vmatprep.subr.bf16.mxu0 %v7488
    %7977 = vmatpush1.bf16.msra.mxu0 %v7487
    %7978 = vmatprep.subr.bf16.mxu0 %v7492
    %7979 = vmatpush1.bf16.msra.mxu0 %v7491
    %7980 = vmatprep.subr.bf16.mxu0 %v7496
    %7981 = vmatpush1.bf16.msra.mxu0 %v7495
    %7982 = vmatprep.subr.bf16.mxu0 %v7500
    %7983 = vmatpush1.bf16.msra.mxu0 %v7499
    %7984 = vmatprep.subr.bf16.mxu0 %v7504
    %7985 = vmatpush1.bf16.msra.mxu0 %v7503
    %7986 = vmatprep.subr.bf16.mxu0 %v7508
    %7987 = vmatpush1.bf16.msra.mxu0 %v7507
    %7988 = vmatprep.subr.bf16.mxu0 %v7512
    %7989 = vmatpush1.bf16.msra.mxu0 %v7511
    %7990 = vmatprep.subr.bf16.mxu0 %v7516
    %7991 = vmatpush1.bf16.msra.mxu0 %v7515
    %7992 = vmatprep.subr.bf16.mxu0 %v7520
    %7993 = vmatpush1.bf16.msra.mxu0 %v7519
    %7994 = vmatprep.subr.bf16.mxu0 %v7524
    %7995 = vmatpush1.bf16.msra.mxu0 %v7523
    %7996 = vmatprep.subr.bf16.mxu0 %v7528
    %7997 = vmatpush1.bf16.msra.mxu0 %v7527
    %7998 = vmatprep.subr.bf16.mxu0 %v7532
    %7999 = vmatpush1.bf16.msra.mxu0 %v7531
    %8000 = vmatprep.subr.bf16.mxu0 %v7536
    %8001 = vmatpush1.bf16.msra.mxu0 %v7535
    %8002 = vmatprep.subr.bf16.mxu0 %v7540
    %8003 = vmatpush1.bf16.msra.mxu0 %v7539
    %8004 = vmatprep.subr.bf16.mxu0 %v7544
    %8005 = vmatpush1.bf16.msra.mxu0 %v7543
    %8006 = vmatprep.mubr.bf16.mxu0 %v6625
    %8007 = vmatmul.mubr.bf16.gmra.mrb[0].mxu0 %v6624
    %v8008 = vpop.f32.mrb[0].mxu0
    %v8009 = vadd.f32 %v7966, %v8008
    %v8010 = vpop.f32.mrb[0].mxu0
    %v8011 = vadd.f32 %v7968, %v8010
    %v8012 = vpop.f32.mrb[0].mxu0
    %v8013 = vadd.f32 %v7970, %v8012
    %v8014 = vpop.f32.mrb[0].mxu0
    %v8015 = vadd.f32 %v7972, %v8014
    %8016 = vdwg.mxu0
    %8017 = vmatprep.subr.bf16.mxu0 %v7548
    %8018 = vmatpush1.bf16.msra.mxu0 %v7547
    %8019 = vmatprep.subr.bf16.mxu0 %v7552
    %8020 = vmatpush1.bf16.msra.mxu0 %v7551
    %8021 = vmatprep.subr.bf16.mxu0 %v7556
    %8022 = vmatpush1.bf16.msra.mxu0 %v7555
    %8023 = vmatprep.subr.bf16.mxu0 %v7560
    %8024 = vmatpush1.bf16.msra.mxu0 %v7559
    %8025 = vmatprep.subr.bf16.mxu0 %v7564
    %8026 = vmatpush1.bf16.msra.mxu0 %v7563
    %8027 = vmatprep.subr.bf16.mxu0 %v7568
    %8028 = vmatpush1.bf16.msra.mxu0 %v7567
    %8029 = vmatprep.subr.bf16.mxu0 %v7572
    %8030 = vmatpush1.bf16.msra.mxu0 %v7571
    %8031 = vmatprep.subr.bf16.mxu0 %v7576
    %8032 = vmatpush1.bf16.msra.mxu0 %v7575
    %8033 = vmatprep.subr.bf16.mxu0 %v7580
    %8034 = vmatpush1.bf16.msra.mxu0 %v7579
    %8035 = vmatprep.subr.bf16.mxu0 %v7584
    %8036 = vmatpush1.bf16.msra.mxu0 %v7583
    %8037 = vmatprep.subr.bf16.mxu0 %v7588
    %8038 = vmatpush1.bf16.msra.mxu0 %v7587
    %8039 = vmatprep.subr.bf16.mxu0 %v7592
    %8040 = vmatpush1.bf16.msra.mxu0 %v7591
    %8041 = vmatprep.subr.bf16.mxu0 %v7596
    %8042 = vmatpush1.bf16.msra.mxu0 %v7595
    %8043 = vmatprep.subr.bf16.mxu0 %v7600
    %8044 = vmatpush1.bf16.msra.mxu0 %v7599
    %8045 = vmatprep.subr.bf16.mxu0 %v7604
    %8046 = vmatpush1.bf16.msra.mxu0 %v7603
    %8047 = vmatprep.subr.bf16.mxu0 %v7608
    %8048 = vmatpush1.bf16.msra.mxu0 %v7607
    %8049 = vmatprep.mubr.bf16.mxu0 %v6627
    %8050 = vmatmul.mubr.bf16.gmra.mrb[0].mxu0 %v6626
    %v8051 = vpop.f32.mrb[0].mxu0
    %v8052 = vadd.f32 %v8009, %v8051
    %v8053 = vpop.f32.mrb[0].mxu0
    %v8054 = vadd.f32 %v8011, %v8053
    %v8055 = vpop.f32.mrb[0].mxu0
    %v8056 = vadd.f32 %v8013, %v8055
    %v8057 = vpop.f32.mrb[0].mxu0
    %v8058 = vadd.f32 %v8015, %v8057
    %8059 = vdwg.mxu0
    %8060 = vmatprep.subr.bf16.mxu0 %v7612
    %8061 = vmatpush1.bf16.msra.mxu0 %v7611
    %8062 = vmatprep.subr.bf16.mxu0 %v7616
    %8063 = vmatpush1.bf16.msra.mxu0 %v7615
    %8064 = vmatprep.subr.bf16.mxu0 %v7620
    %8065 = vmatpush1.bf16.msra.mxu0 %v7619
    %8066 = vmatprep.subr.bf16.mxu0 %v7624
    %8067 = vmatpush1.bf16.msra.mxu0 %v7623
    %8068 = vmatprep.subr.bf16.mxu0 %v7628
    %8069 = vmatpush1.bf16.msra.mxu0 %v7627
    %8070 = vmatprep.subr.bf16.mxu0 %v7632
    %8071 = vmatpush1.bf16.msra.mxu0 %v7631
    %8072 = vmatprep.subr.bf16.mxu0 %v7636
    %8073 = vmatpush1.bf16.msra.mxu0 %v7635
    %8074 = vmatprep.subr.bf16.mxu0 %v7640
    %8075 = vmatpush1.bf16.msra.mxu0 %v7639
    %8076 = vmatprep.subr.bf16.mxu0 %v7644
    %8077 = vmatpush1.bf16.msra.mxu0 %v7643
    %8078 = vmatprep.subr.bf16.mxu0 %v7648
    %8079 = vmatpush1.bf16.msra.mxu0 %v7647
    %8080 = vmatprep.subr.bf16.mxu0 %v7652
    %8081 = vmatpush1.bf16.msra.mxu0 %v7651
    %8082 = vmatprep.subr.bf16.mxu0 %v7656
    %8083 = vmatpush1.bf16.msra.mxu0 %v7655
    %8084 = vmatprep.subr.bf16.mxu0 %v7660
    %8085 = vmatpush1.bf16.msra.mxu0 %v7659
    %8086 = vmatprep.subr.bf16.mxu0 %v7664
    %8087 = vmatpush1.bf16.msra.mxu0 %v7663
    %8088 = vmatprep.subr.bf16.mxu0 %v7668
    %8089 = vmatpush1.bf16.msra.mxu0 %v7667
    %8090 = vmatprep.subr.bf16.mxu0 %v7672
    %8091 = vmatpush1.bf16.msra.mxu0 %v7671
    %8092 = vmatprep.mubr.bf16.mxu0 %v6629
    %8093 = vmatmul.mubr.bf16.gmra.mrb[0].mxu0 %v6628
    %v8094 = vpop.f32.mrb[0].mxu0
    %v8095 = vadd.f32 %v8052, %v8094
    %v8096 = vpop.f32.mrb[0].mxu0
    %v8097 = vadd.f32 %v8054, %v8096
    %v8098 = vpop.f32.mrb[0].mxu0
    %v8099 = vadd.f32 %v8056, %v8098
    %v8100 = vpop.f32.mrb[0].mxu0
    %v8101 = vadd.f32 %v8058, %v8100
    %8102 = vdwg.mxu0
    %8103 = vmatprep.subr.bf16.mxu0 %v7422
    %8104 = vmatpush1.bf16.msra.mxu0 %v7421
    %8105 = vmatprep.subr.bf16.mxu0 %v7426
    %8106 = vmatpush1.bf16.msra.mxu0 %v7425
    %8107 = vmatprep.subr.bf16.mxu0 %v7430
    %8108 = vmatpush1.bf16.msra.mxu0 %v7429
    %8109 = vmatprep.subr.bf16.mxu0 %v7434
    %8110 = vmatpush1.bf16.msra.mxu0 %v7433
    %8111 = vmatprep.subr.bf16.mxu0 %v7438
    %8112 = vmatpush1.bf16.msra.mxu0 %v7437
    %8113 = vmatprep.subr.bf16.mxu0 %v7442
    %8114 = vmatpush1.bf16.msra.mxu0 %v7441
    %8115 = vmatprep.subr.bf16.mxu0 %v7446
    %8116 = vmatpush1.bf16.msra.mxu0 %v7445
    %8117 = vmatprep.subr.bf16.mxu0 %v7450
    %8118 = vmatpush1.bf16.msra.mxu0 %v7449
    %8119 = vmatprep.subr.bf16.mxu0 %v7454
    %8120 = vmatpush1.bf16.msra.mxu0 %v7453
    %8121 = vmatprep.subr.bf16.mxu0 %v7458
    %8122 = vmatpush1.bf16.msra.mxu0 %v7457
    %8123 = vmatprep.subr.bf16.mxu0 %v7462
    %8124 = vmatpush1.bf16.msra.mxu0 %v7461
    %8125 = vmatprep.subr.bf16.mxu0 %v7466
    %8126 = vmatpush1.bf16.msra.mxu0 %v7465
    %8127 = vmatprep.subr.bf16.mxu0 %v7470
    %8128 = vmatpush1.bf16.msra.mxu0 %v7469
    %8129 = vmatprep.subr.bf16.mxu0 %v7474
    %8130 = vmatpush1.bf16.msra.mxu0 %v7473
    %8131 = vmatprep.subr.bf16.mxu0 %v7478
    %8132 = vmatpush1.bf16.msra.mxu0 %v7477
    %8133 = vmatprep.subr.bf16.mxu0 %v7482
    %8134 = vmatpush1.bf16.msra.mxu0 %v7481
    %8135 = vmatprep.mubr.bf16.mxu0 %v6623
    %8136 = vmatmul.mubr.bf16.gmra.mrb[0].mxu0 %v6622
    %v8137 = vpop.f32.mrb[0].mxu0
    %v8138 = vadd.f32 %v6642, %v8137
    %v8139 = vpop.f32.mrb[0].mxu0
    %v8140 = vadd.f32 %v6646, %v8139
    %v8141 = vpop.f32.mrb[0].mxu0
    %v8142 = vadd.f32 %v6642, %v8141
    %v8143 = vpop.f32.mrb[0].mxu0
    %v8144 = vadd.f32 %v6646, %v8143
    %8145 = vdwg.mxu0
    %8146 = vmatprep.subr.bf16.mxu0 %v7486
    %8147 = vmatpush1.bf16.msra.mxu0 %v7485
    %8148 = vmatprep.subr.bf16.mxu0 %v7490
    %8149 = vmatpush1.bf16.msra.mxu0 %v7489
    %8150 = vmatprep.subr.bf16.mxu0 %v7494
    %8151 = vmatpush1.bf16.msra.mxu0 %v7493
    %8152 = vmatprep.subr.bf16.mxu0 %v7498
    %8153 = vmatpush1.bf16.msra.mxu0 %v7497
    %8154 = vmatprep.subr.bf16.mxu0 %v7502
    %8155 = vmatpush1.bf16.msra.mxu0 %v7501
    %8156 = vmatprep.subr.bf16.mxu0 %v7506
    %8157 = vmatpush1.bf16.msra.mxu0 %v7505
    %8158 = vmatprep.subr.bf16.mxu0 %v7510
    %8159 = vmatpush1.bf16.msra.mxu0 %v7509
    %8160 = vmatprep.subr.bf16.mxu0 %v7514
    %8161 = vmatpush1.bf16.msra.mxu0 %v7513
    %8162 = vmatprep.subr.bf16.mxu0 %v7518
    %8163 = vmatpush1.bf16.msra.mxu0 %v7517
    %8164 = vmatprep.subr.bf16.mxu0 %v7522
    %8165 = vmatpush1.bf16.msra.mxu0 %v7521
    %8166 = vmatprep.subr.bf16.mxu0 %v7526
    %8167 = vmatpush1.bf16.msra.mxu0 %v7525
    %8168 = vmatprep.subr.bf16.mxu0 %v7530
    %8169 = vmatpush1.bf16.msra.mxu0 %v7529
    %8170 = vmatprep.subr.bf16.mxu0 %v7534
    %8171 = vmatpush1.bf16.msra.mxu0 %v7533
    %8172 = vmatprep.subr.bf16.mxu0 %v7538
    %8173 = vmatpush1.bf16.msra.mxu0 %v7537
    %8174 = vmatprep.subr.bf16.mxu0 %v7542
    %8175 = vmatpush1.bf16.msra.mxu0 %v7541
    %8176 = vmatprep.subr.bf16.mxu0 %v7546
    %8177 = vmatpush1.bf16.msra.mxu0 %v7545
    %8178 = vmatprep.mubr.bf16.mxu0 %v6625
    %8179 = vmatmul.mubr.bf16.gmra.mrb[0].mxu0 %v6624
    %v8180 = vpop.f32.mrb[0].mxu0
    %v8181 = vadd.f32 %v8138, %v8180
    %v8182 = vpop.f32.mrb[0].mxu0
    %v8183 = vadd.f32 %v8140, %v8182
    %v8184 = vpop.f32.mrb[0].mxu0
    %v8185 = vadd.f32 %v8142, %v8184
    %v8186 = vpop.f32.mrb[0].mxu0
    %v8187 = vadd.f32 %v8144, %v8186
    %8188 = vdwg.mxu0
    %8189 = vmatprep.subr.bf16.mxu0 %v7550
    %8190 = vmatpush1.bf16.msra.mxu0 %v7549
    %8191 = vmatprep.subr.bf16.mxu0 %v7554
    %8192 = vmatpush1.bf16.msra.mxu0 %v7553
    %8193 = vmatprep.subr.bf16.mxu0 %v7558
    %8194 = vmatpush1.bf16.msra.mxu0 %v7557
    %8195 = vmatprep.subr.bf16.mxu0 %v7562
    %8196 = vmatpush1.bf16.msra.mxu0 %v7561
    %8197 = vmatprep.subr.bf16.mxu0 %v7566
    %8198 = vmatpush1.bf16.msra.mxu0 %v7565
    %8199 = vmatprep.subr.bf16.mxu0 %v7570
    %8200 = vmatpush1.bf16.msra.mxu0 %v7569
    %8201 = vmatprep.subr.bf16.mxu0 %v7574
    %8202 = vmatpush1.bf16.msra.mxu0 %v7573
    %8203 = vmatprep.subr.bf16.mxu0 %v7578
    %8204 = vmatpush1.bf16.msra.mxu0 %v7577
    %8205 = vmatprep.subr.bf16.mxu0 %v7582
    %8206 = vmatpush1.bf16.msra.mxu0 %v7581
    %8207 = vmatprep.subr.bf16.mxu0 %v7586
    %8208 = vmatpush1.bf16.msra.mxu0 %v7585
    %8209 = vmatprep.subr.bf16.mxu0 %v7590
    %8210 = vmatpush1.bf16.msra.mxu0 %v7589
    %8211 = vmatprep.subr.bf16.mxu0 %v7594
    %8212 = vmatpush1.bf16.msra.mxu0 %v7593
    %8213 = vmatprep.subr.bf16.mxu0 %v7598
    %8214 = vmatpush1.bf16.msra.mxu0 %v7597
    %8215 = vmatprep.subr.bf16.mxu0 %v7602
    %8216 = vmatpush1.bf16.msra.mxu0 %v7601
    %8217 = vmatprep.subr.bf16.mxu0 %v7606
    %8218 = vmatpush1.bf16.msra.mxu0 %v7605
    %8219 = vmatprep.subr.bf16.mxu0 %v7610
    %8220 = vmatpush1.bf16.msra.mxu0 %v7609
    %8221 = vmatprep.mubr.bf16.mxu0 %v6627
    %8222 = vmatmul.mubr.bf16.gmra.mrb[0].mxu0 %v6626
    %v8223 = vpop.f32.mrb[0].mxu0
    %v8224 = vadd.f32 %v8181, %v8223
    %v8225 = vpop.f32.mrb[0].mxu0
    %v8226 = vadd.f32 %v8183, %v8225
    %v8227 = vpop.f32.mrb[0].mxu0
    %v8228 = vadd.f32 %v8185, %v8227
    %v8229 = vpop.f32.mrb[0].mxu0
    %v8230 = vadd.f32 %v8187, %v8229
    %8231 = vdwg.mxu0
    %8232 = vmatprep.subr.bf16.mxu0 %v7614
    %8233 = vmatpush1.bf16.msra.mxu0 %v7613
    %8234 = vmatprep.subr.bf16.mxu0 %v7618
    %8235 = vmatpush1.bf16.msra.mxu0 %v7617
    %8236 = vmatprep.subr.bf16.mxu0 %v7622
    %8237 = vmatpush1.bf16.msra.mxu0 %v7621
    %8238 = vmatprep.subr.bf16.mxu0 %v7626
    %8239 = vmatpush1.bf16.msra.mxu0 %v7625
    %8240 = vmatprep.subr.bf16.mxu0 %v7630
    %8241 = vmatpush1.bf16.msra.mxu0 %v7629
    %8242 = vmatprep.subr.bf16.mxu0 %v7634
    %8243 = vmatpush1.bf16.msra.mxu0 %v7633
    %8244 = vmatprep.subr.bf16.mxu0 %v7638
    %8245 = vmatpush1.bf16.msra.mxu0 %v7637
    %8246 = vmatprep.subr.bf16.mxu0 %v7642
    %8247 = vmatpush1.bf16.msra.mxu0 %v7641
    %8248 = vmatprep.subr.bf16.mxu0 %v7646
    %8249 = vmatpush1.bf16.msra.mxu0 %v7645
    %8250 = vmatprep.subr.bf16.mxu0 %v7650
    %8251 = vmatpush1.bf16.msra.mxu0 %v7649
    %8252 = vmatprep.subr.bf16.mxu0 %v7654
    %8253 = vmatpush1.bf16.msra.mxu0 %v7653
    %8254 = vmatprep.subr.bf16.mxu0 %v7658
    %8255 = vmatpush1.bf16.msra.mxu0 %v7657
    %8256 = vmatprep.subr.bf16.mxu0 %v7662
    %8257 = vmatpush1.bf16.msra.mxu0 %v7661
    %8258 = vmatprep.subr.bf16.mxu0 %v7666
    %8259 = vmatpush1.bf16.msra.mxu0 %v7665
    %8260 = vmatprep.subr.bf16.mxu0 %v7670
    %8261 = vmatpush1.bf16.msra.mxu0 %v7669
    %8262 = vmatprep.subr.bf16.mxu0 %v7674
    %8263 = vmatpush1.bf16.msra.mxu0 %v7673
    %8264 = vmatprep.mubr.bf16.mxu0 %v6629
    %8265 = vmatmul.mubr.bf16.gmra.mrb[0].mxu0 %v6628
    %v8266 = vpop.f32.mrb[0].mxu0
    %v8267 = vadd.f32 %v8224, %v8266
    %v8268 = vpop.f32.mrb[0].mxu0
    %v8269 = vadd.f32 %v8226, %v8268
    %v8270 = vpop.f32.mrb[0].mxu0
    %v8271 = vadd.f32 %v8228, %v8270
    %v8272 = vpop.f32.mrb[0].mxu0
    %v8273 = vadd.f32 %v8230, %v8272
    %8274 = vdwg.mxu0
    %v8275 = vadd.f32 %v8095, %v4929
    %v8276 = vadd.f32 %v8097, %v4930
    %v8277 = vadd.f32 %v8267, %v4931
    %v8278 = vadd.f32 %v8269, %v4932
    %v8279 = vadd.f32 %v8099, %v4933
    %v8280 = vadd.f32 %v8101, %v4934
    %v8281 = vadd.f32 %v8271, %v4935
    %v8282 = vadd.f32 %v8273, %v4936
    %v8283 = vadd.f32 %v8275, %v8276
    %v8284 = vadd.f32 %v8283, %v8277
    %v8285 = vadd.f32 %v8284, %v8278
    %8286 = vadd.xlane.f32.xlu0 %v8285
    %v8287 = vpop.xlane.xlu0 %8286
    %v8288 = vadd.f32 %v8279, %v8280
    %v8289 = vadd.f32 %v8288, %v8281
    %v8290 = vadd.f32 %v8289, %v8282
    %8291 = vadd.xlane.f32.xlu0 %v8290
    %v8292 = vpop.xlane.xlu0 %8291
    %v8293 = vmul.f32 %v8287, %v3865
    %v8294 = vmul.f32 %v8292, %v3865
    %v8295 = vsub.f32 %v8275, %v8293
    %v8296 = vsub.f32 %v8276, %v8293
    %v8297 = vsub.f32 %v8277, %v8293
    %v8298 = vsub.f32 %v8278, %v8293
    %v8299 = vsub.f32 %v8279, %v8294
    %v8300 = vsub.f32 %v8280, %v8294
    %v8301 = vsub.f32 %v8281, %v8294
    %v8302 = vsub.f32 %v8282, %v8294
    %v8303 = vmul.f32 %v8295, %v8295
    %v8304 = vmul.f32 %v8296, %v8296
    %v8305 = vmul.f32 %v8297, %v8297
    %v8306 = vmul.f32 %v8298, %v8298
    %v8307 = vmul.f32 %v8299, %v8299
    %v8308 = vmul.f32 %v8300, %v8300
    %v8309 = vmul.f32 %v8301, %v8301
    %v8310 = vmul.f32 %v8302, %v8302
    %v8311 = vadd.f32 %v8303, %v8304
    %v8312 = vadd.f32 %v8311, %v8305
    %v8313 = vadd.f32 %v8312, %v8306
    %8314 = vadd.xlane.f32.xlu0 %v8313
    %v8315 = vpop.xlane.xlu0 %8314
    %v8316 = vadd.f32 %v8307, %v8308
    %v8317 = vadd.f32 %v8316, %v8309
    %v8318 = vadd.f32 %v8317, %v8310
    %8319 = vadd.xlane.f32.xlu0 %v8318
    %v8320 = vpop.xlane.xlu0 %8319
    %v8321 = vmul.f32 %v8315, %v3865
    %v8322 = vmul.f32 %v8320, %v3865
    %v8323 = vadd.f32 %v8321, 1e-05
    %v8324 = vadd.f32 %v8322, 1e-05
    %v8325 = vrsqrt.pop %v8323
    %v8326 = vrsqrt.pop %v8324
    %v8327 = vmul.f32 %v8295, %v8325
    %v8328 = vmul.f32 %v8296, %v8325
    %v8329 = vmul.f32 %v8297, %v8325
    %v8330 = vmul.f32 %v8298, %v8325
    %v8331 = vmul.f32 %v8299, %v8326
    %v8332 = vmul.f32 %v8300, %v8326
    %v8333 = vmul.f32 %v8301, %v8326
    %v8334 = vmul.f32 %v8302, %v8326
    %v8336 = vlaneseq
    %v8337 = vshrl.u32 %v8336, 7
    %v8338 = vsub.s32 0, %v8337
    %v8339 = vrot.slane %v1288, %v8338
    %v8340 = vlaneseq
    %v8341 = vshrl.u32 %v8340, 7
    %v8342 = vsub.s32 1, %v8341
    %v8343 = vrot.slane %v1288, %v8342
    %v8344 = vlaneseq
    %v8345 = vshrl.u32 %v8344, 7
    %v8346 = vsub.s32 2, %v8345
    %v8347 = vrot.slane %v1288, %v8346
    %v8348 = vlaneseq
    %v8349 = vshrl.u32 %v8348, 7
    %v8350 = vsub.s32 3, %v8349
    %v8351 = vrot.slane %v1288, %v8350
    %v8356 = vmul.f32 %v8327, %v8339
    %v8357 = vmul.f32 %v8328, %v8343
    %v8358 = vmul.f32 %v8329, %v8347
    %v8359 = vmul.f32 %v8330, %v8351
    %v8360 = vmul.f32 %v8331, %v8339
    %v8361 = vmul.f32 %v8332, %v8343
    %v8362 = vmul.f32 %v8333, %v8347
    %v8363 = vmul.f32 %v8334, %v8351
    %v8365 = vlaneseq
    %v8366 = vshrl.u32 %v8365, 7
    %v8367 = vsub.s32 0, %v8366
    %v8368 = vrot.slane %v1290, %v8367
    %v8369 = vlaneseq
    %v8370 = vshrl.u32 %v8369, 7
    %v8371 = vsub.s32 1, %v8370
    %v8372 = vrot.slane %v1290, %v8371
    %v8373 = vlaneseq
    %v8374 = vshrl.u32 %v8373, 7
    %v8375 = vsub.s32 2, %v8374
    %v8376 = vrot.slane %v1290, %v8375
    %v8377 = vlaneseq
    %v8378 = vshrl.u32 %v8377, 7
    %v8379 = vsub.s32 3, %v8378
    %v8380 = vrot.slane %v1290, %v8379
    %v8385 = vadd.f32 %v8356, %v8368
    %v8386 = vadd.f32 %v8357, %v8372
    %v8387 = vadd.f32 %v8358, %v8376
    %v8388 = vadd.f32 %v8359, %v8380
    %v8389 = vadd.f32 %v8360, %v8368
    %v8390 = vadd.f32 %v8361, %v8372
    %v8391 = vadd.f32 %v8362, %v8376
    %v8392 = vadd.f32 %v8363, %v8380
    %v8393 = vpack.c.bf16 %v8389, %v8385
    %v8394 = vpack.c.bf16 %v8390, %v8386
    %v8395 = vpack.c.bf16 %v8391, %v8387
    %v8396 = vpack.c.bf16 %v8392, %v8388
    %v8398 = vlaneseq
    %v8399 = vshrl.u32 %v8398, 7
    %v8400 = vsub.s32 0, %v8399
    %v8401 = vrot.slane %v1292, %v8400
    %v8402 = vlaneseq
    %v8403 = vshrl.u32 %v8402, 7
    %v8404 = vsub.s32 1, %v8403
    %v8405 = vrot.slane %v1292, %v8404
    %v8472 = vunpack.c.l.b16 %v1158
    %v8473 = vunpack.c.h.b16 %v1158
    %v8474 = vunpack.c.l.b16 %v1159
    %v8475 = vunpack.c.h.b16 %v1159
    %v8476 = vunpack.c.l.b16 %v1160
    %v8477 = vunpack.c.h.b16 %v1160
    %v8478 = vunpack.c.l.b16 %v1161
    %v8479 = vunpack.c.h.b16 %v1161
    %v8480 = vunpack.c.l.b16 %v1162
    %v8481 = vunpack.c.h.b16 %v1162
    %v8482 = vunpack.c.l.b16 %v1163
    %v8483 = vunpack.c.h.b16 %v1163
    %v8484 = vunpack.c.l.b16 %v1164
    %v8485 = vunpack.c.h.b16 %v1164
    %v8486 = vunpack.c.l.b16 %v1165
    %v8487 = vunpack.c.h.b16 %v1165
    %v8488 = vunpack.c.l.b16 %v1166
    %v8489 = vunpack.c.h.b16 %v1166
    %v8490 = vunpack.c.l.b16 %v1167
    %v8491 = vunpack.c.h.b16 %v1167
    %v8492 = vunpack.c.l.b16 %v1168
    %v8493 = vunpack.c.h.b16 %v1168
    %v8494 = vunpack.c.l.b16 %v1169
    %v8495 = vunpack.c.h.b16 %v1169
    %v8496 = vunpack.c.l.b16 %v1170
    %v8497 = vunpack.c.h.b16 %v1170
    %v8498 = vunpack.c.l.b16 %v1171
    %v8499 = vunpack.c.h.b16 %v1171
    %v8500 = vunpack.c.l.b16 %v1172
    %v8501 = vunpack.c.h.b16 %v1172
    %v8502 = vunpack.c.l.b16 %v1173
    %v8503 = vunpack.c.h.b16 %v1173
    %v8504 = vunpack.c.l.b16 %v1174
    %v8505 = vunpack.c.h.b16 %v1174
    %v8506 = vunpack.c.l.b16 %v1175
    %v8507 = vunpack.c.h.b16 %v1175
    %v8508 = vunpack.c.l.b16 %v1176
    %v8509 = vunpack.c.h.b16 %v1176
    %v8510 = vunpack.c.l.b16 %v1177
    %v8511 = vunpack.c.h.b16 %v1177
    %v8512 = vunpack.c.l.b16 %v1178
    %v8513 = vunpack.c.h.b16 %v1178
    %v8514 = vunpack.c.l.b16 %v1179
    %v8515 = vunpack.c.h.b16 %v1179
    %v8516 = vunpack.c.l.b16 %v1180
    %v8517 = vunpack.c.h.b16 %v1180
    %v8518 = vunpack.c.l.b16 %v1181
    %v8519 = vunpack.c.h.b16 %v1181
    %v8520 = vunpack.c.l.b16 %v1182
    %v8521 = vunpack.c.h.b16 %v1182
    %v8522 = vunpack.c.l.b16 %v1183
    %v8523 = vunpack.c.h.b16 %v1183
    %v8524 = vunpack.c.l.b16 %v1184
    %v8525 = vunpack.c.h.b16 %v1184
    %v8526 = vunpack.c.l.b16 %v1185
    %v8527 = vunpack.c.h.b16 %v1185
    %v8528 = vunpack.c.l.b16 %v1186
    %v8529 = vunpack.c.h.b16 %v1186
    %v8530 = vunpack.c.l.b16 %v1187
    %v8531 = vunpack.c.h.b16 %v1187
    %v8532 = vunpack.c.l.b16 %v1188
    %v8533 = vunpack.c.h.b16 %v1188
    %v8534 = vunpack.c.l.b16 %v1189
    %v8535 = vunpack.c.h.b16 %v1189
    %v8536 = vunpack.c.l.b16 %v1190
    %v8537 = vunpack.c.h.b16 %v1190
    %v8538 = vunpack.c.l.b16 %v1191
    %v8539 = vunpack.c.h.b16 %v1191
    %v8540 = vunpack.c.l.b16 %v1192
    %v8541 = vunpack.c.h.b16 %v1192
    %v8542 = vunpack.c.l.b16 %v1193
    %v8543 = vunpack.c.h.b16 %v1193
    %v8544 = vunpack.c.l.b16 %v1194
    %v8545 = vunpack.c.h.b16 %v1194
    %v8546 = vunpack.c.l.b16 %v1195
    %v8547 = vunpack.c.h.b16 %v1195
    %v8548 = vunpack.c.l.b16 %v1196
    %v8549 = vunpack.c.h.b16 %v1196
    %v8550 = vunpack.c.l.b16 %v1197
    %v8551 = vunpack.c.h.b16 %v1197
    %v8552 = vunpack.c.l.b16 %v1198
    %v8553 = vunpack.c.h.b16 %v1198
    %v8554 = vunpack.c.l.b16 %v1199
    %v8555 = vunpack.c.h.b16 %v1199
    %v8556 = vunpack.c.l.b16 %v1200
    %v8557 = vunpack.c.h.b16 %v1200
    %v8558 = vunpack.c.l.b16 %v1201
    %v8559 = vunpack.c.h.b16 %v1201
    %v8560 = vunpack.c.l.b16 %v1202
    %v8561 = vunpack.c.h.b16 %v1202
    %v8562 = vunpack.c.l.b16 %v1203
    %v8563 = vunpack.c.h.b16 %v1203
    %v8564 = vunpack.c.l.b16 %v1204
    %v8565 = vunpack.c.h.b16 %v1204
    %v8566 = vunpack.c.l.b16 %v1205
    %v8567 = vunpack.c.h.b16 %v1205
    %v8568 = vunpack.c.l.b16 %v1206
    %v8569 = vunpack.c.h.b16 %v1206
    %v8570 = vunpack.c.l.b16 %v1207
    %v8571 = vunpack.c.h.b16 %v1207
    %v8572 = vunpack.c.l.b16 %v1208
    %v8573 = vunpack.c.h.b16 %v1208
    %v8574 = vunpack.c.l.b16 %v1209
    %v8575 = vunpack.c.h.b16 %v1209
    %v8576 = vunpack.c.l.b16 %v1210
    %v8577 = vunpack.c.h.b16 %v1210
    %v8578 = vunpack.c.l.b16 %v1211
    %v8579 = vunpack.c.h.b16 %v1211
    %v8580 = vunpack.c.l.b16 %v1212
    %v8581 = vunpack.c.h.b16 %v1212
    %v8582 = vunpack.c.l.b16 %v1213
    %v8583 = vunpack.c.h.b16 %v1213
    %v8584 = vunpack.c.l.b16 %v1214
    %v8585 = vunpack.c.h.b16 %v1214
    %v8586 = vunpack.c.l.b16 %v1215
    %v8587 = vunpack.c.h.b16 %v1215
    %v8588 = vunpack.c.l.b16 %v1216
    %v8589 = vunpack.c.h.b16 %v1216
    %v8590 = vunpack.c.l.b16 %v1217
    %v8591 = vunpack.c.h.b16 %v1217
    %v8592 = vunpack.c.l.b16 %v1218
    %v8593 = vunpack.c.h.b16 %v1218
    %v8594 = vunpack.c.l.b16 %v1219
    %v8595 = vunpack.c.h.b16 %v1219
    %v8596 = vunpack.c.l.b16 %v1220
    %v8597 = vunpack.c.h.b16 %v1220
    %v8598 = vunpack.c.l.b16 %v1221
    %v8599 = vunpack.c.h.b16 %v1221
    %v8600 = vpack.c.b16 %v8474, %v8472
    %v8601 = vpack.c.b16 %v8475, %v8473
    %v8602 = vpack.c.b16 %v8478, %v8476
    %v8603 = vpack.c.b16 %v8479, %v8477
    %v8604 = vpack.c.b16 %v8482, %v8480
    %v8605 = vpack.c.b16 %v8483, %v8481
    %v8606 = vpack.c.b16 %v8486, %v8484
    %v8607 = vpack.c.b16 %v8487, %v8485
    %v8608 = vpack.c.b16 %v8490, %v8488
    %v8609 = vpack.c.b16 %v8491, %v8489
    %v8610 = vpack.c.b16 %v8494, %v8492
    %v8611 = vpack.c.b16 %v8495, %v8493
    %v8612 = vpack.c.b16 %v8498, %v8496
    %v8613 = vpack.c.b16 %v8499, %v8497
    %v8614 = vpack.c.b16 %v8502, %v8500
    %v8615 = vpack.c.b16 %v8503, %v8501
    %v8616 = vpack.c.b16 %v8506, %v8504
    %v8617 = vpack.c.b16 %v8507, %v8505
    %v8618 = vpack.c.b16 %v8510, %v8508
    %v8619 = vpack.c.b16 %v8511, %v8509
    %v8620 = vpack.c.b16 %v8514, %v8512
    %v8621 = vpack.c.b16 %v8515, %v8513
    %v8622 = vpack.c.b16 %v8518, %v8516
    %v8623 = vpack.c.b16 %v8519, %v8517
    %v8624 = vpack.c.b16 %v8522, %v8520
    %v8625 = vpack.c.b16 %v8523, %v8521
    %v8626 = vpack.c.b16 %v8526, %v8524
    %v8627 = vpack.c.b16 %v8527, %v8525
    %v8628 = vpack.c.b16 %v8530, %v8528
    %v8629 = vpack.c.b16 %v8531, %v8529
    %v8630 = vpack.c.b16 %v8534, %v8532
    %v8631 = vpack.c.b16 %v8535, %v8533
    %v8632 = vpack.c.b16 %v8538, %v8536
    %v8633 = vpack.c.b16 %v8539, %v8537
    %v8634 = vpack.c.b16 %v8542, %v8540
    %v8635 = vpack.c.b16 %v8543, %v8541
    %v8636 = vpack.c.b16 %v8546, %v8544
    %v8637 = vpack.c.b16 %v8547, %v8545
    %v8638 = vpack.c.b16 %v8550, %v8548
    %v8639 = vpack.c.b16 %v8551, %v8549
    %v8640 = vpack.c.b16 %v8554, %v8552
    %v8641 = vpack.c.b16 %v8555, %v8553
    %v8642 = vpack.c.b16 %v8558, %v8556
    %v8643 = vpack.c.b16 %v8559, %v8557
    %v8644 = vpack.c.b16 %v8562, %v8560
    %v8645 = vpack.c.b16 %v8563, %v8561
    %v8646 = vpack.c.b16 %v8566, %v8564
    %v8647 = vpack.c.b16 %v8567, %v8565
    %v8648 = vpack.c.b16 %v8570, %v8568
    %v8649 = vpack.c.b16 %v8571, %v8569
    %v8650 = vpack.c.b16 %v8574, %v8572
    %v8651 = vpack.c.b16 %v8575, %v8573
    %v8652 = vpack.c.b16 %v8578, %v8576
    %v8653 = vpack.c.b16 %v8579, %v8577
    %v8654 = vpack.c.b16 %v8582, %v8580
    %v8655 = vpack.c.b16 %v8583, %v8581
    %v8656 = vpack.c.b16 %v8586, %v8584
    %v8657 = vpack.c.b16 %v8587, %v8585
    %v8658 = vpack.c.b16 %v8590, %v8588
    %v8659 = vpack.c.b16 %v8591, %v8589
    %v8660 = vpack.c.b16 %v8594, %v8592
    %v8661 = vpack.c.b16 %v8595, %v8593
    %v8662 = vpack.c.b16 %v8598, %v8596
    %v8663 = vpack.c.b16 %v8599, %v8597
    %8728 = vmatprep.subr.bf16.mxu0 %v8601
    %8729 = vmatpush1.bf16.msra.mxu0 %v8600
    %8730 = vmatprep.subr.bf16.mxu0 %v8603
    %8731 = vmatpush1.bf16.msra.mxu0 %v8602
    %8732 = vmatprep.subr.bf16.mxu0 %v8605
    %8733 = vmatpush1.bf16.msra.mxu0 %v8604
    %8734 = vmatprep.subr.bf16.mxu0 %v8607
    %8735 = vmatpush1.bf16.msra.mxu0 %v8606
    %8736 = vmatprep.subr.bf16.mxu0 %v8609
    %8737 = vmatpush1.bf16.msra.mxu0 %v8608
    %8738 = vmatprep.subr.bf16.mxu0 %v8611
    %8739 = vmatpush1.bf16.msra.mxu0 %v8610
    %8740 = vmatprep.subr.bf16.mxu0 %v8613
    %8741 = vmatpush1.bf16.msra.mxu0 %v8612
    %8742 = vmatprep.subr.bf16.mxu0 %v8615
    %8743 = vmatpush1.bf16.msra.mxu0 %v8614
    %8744 = vmatprep.subr.bf16.mxu0 %v8617
    %8745 = vmatpush1.bf16.msra.mxu0 %v8616
    %8746 = vmatprep.subr.bf16.mxu0 %v8619
    %8747 = vmatpush1.bf16.msra.mxu0 %v8618
    %8748 = vmatprep.subr.bf16.mxu0 %v8621
    %8749 = vmatpush1.bf16.msra.mxu0 %v8620
    %8750 = vmatprep.subr.bf16.mxu0 %v8623
    %8751 = vmatpush1.bf16.msra.mxu0 %v8622
    %8752 = vmatprep.subr.bf16.mxu0 %v8625
    %8753 = vmatpush1.bf16.msra.mxu0 %v8624
    %8754 = vmatprep.subr.bf16.mxu0 %v8627
    %8755 = vmatpush1.bf16.msra.mxu0 %v8626
    %8756 = vmatprep.subr.bf16.mxu0 %v8629
    %8757 = vmatpush1.bf16.msra.mxu0 %v8628
    %8758 = vmatprep.subr.bf16.mxu0 %v8631
    %8759 = vmatpush1.bf16.msra.mxu0 %v8630
    %8760 = vmatprep.mubr.bf16.mxu0 %v8394
    %8761 = vmatmul.mubr.bf16.gmra.mrb[0].mxu0 %v8393
    %v8762 = vpop.f32.mrb[0].mxu0
    %v8763 = vadd.f32 %v8401, %v8762
    %v8764 = vpop.f32.mrb[0].mxu0
    %v8765 = vadd.f32 %v8405, %v8764
    %v8766 = vpop.f32.mrb[0].mxu0
    %v8767 = vadd.f32 %v8401, %v8766
    %v8768 = vpop.f32.mrb[0].mxu0
    %v8769 = vadd.f32 %v8405, %v8768
    %8770 = vdwg.mxu0
    %8771 = vmatprep.subr.bf16.mxu0 %v8633
    %8772 = vmatpush1.bf16.msra.mxu0 %v8632
    %8773 = vmatprep.subr.bf16.mxu0 %v8635
    %8774 = vmatpush1.bf16.msra.mxu0 %v8634
    %8775 = vmatprep.subr.bf16.mxu0 %v8637
    %8776 = vmatpush1.bf16.msra.mxu0 %v8636
    %8777 = vmatprep.subr.bf16.mxu0 %v8639
    %8778 = vmatpush1.bf16.msra.mxu0 %v8638
    %8779 = vmatprep.subr.bf16.mxu0 %v8641
    %8780 = vmatpush1.bf16.msra.mxu0 %v8640
    %8781 = vmatprep.subr.bf16.mxu0 %v8643
    %8782 = vmatpush1.bf16.msra.mxu0 %v8642
    %8783 = vmatprep.subr.bf16.mxu0 %v8645
    %8784 = vmatpush1.bf16.msra.mxu0 %v8644
    %8785 = vmatprep.subr.bf16.mxu0 %v8647
    %8786 = vmatpush1.bf16.msra.mxu0 %v8646
    %8787 = vmatprep.subr.bf16.mxu0 %v8649
    %8788 = vmatpush1.bf16.msra.mxu0 %v8648
    %8789 = vmatprep.subr.bf16.mxu0 %v8651
    %8790 = vmatpush1.bf16.msra.mxu0 %v8650
    %8791 = vmatprep.subr.bf16.mxu0 %v8653
    %8792 = vmatpush1.bf16.msra.mxu0 %v8652
    %8793 = vmatprep.subr.bf16.mxu0 %v8655
    %8794 = vmatpush1.bf16.msra.mxu0 %v8654
    %8795 = vmatprep.subr.bf16.mxu0 %v8657
    %8796 = vmatpush1.bf16.msra.mxu0 %v8656
    %8797 = vmatprep.subr.bf16.mxu0 %v8659
    %8798 = vmatpush1.bf16.msra.mxu0 %v8658
    %8799 = vmatprep.subr.bf16.mxu0 %v8661
    %8800 = vmatpush1.bf16.msra.mxu0 %v8660
    %8801 = vmatprep.subr.bf16.mxu0 %v8663
    %8802 = vmatpush1.bf16.msra.mxu0 %v8662
    %8803 = vmatprep.mubr.bf16.mxu0 %v8396
    %8804 = vmatmul.mubr.bf16.gmra.mrb[0].mxu0 %v8395
    %v8805 = vpop.f32.mrb[0].mxu0
    %v8806 = vadd.f32 %v8763, %v8805
    %v8807 = vpop.f32.mrb[0].mxu0
    %v8808 = vadd.f32 %v8765, %v8807
    %v8809 = vpop.f32.mrb[0].mxu0
    %v8810 = vadd.f32 %v8767, %v8809
    %v8811 = vpop.f32.mrb[0].mxu0
    %v8812 = vadd.f32 %v8769, %v8811
    %8813 = vdwg.mxu0
    %v8814 = vmax.f32 %v8806, 0.0
    %v8815 = vmax.f32 %v8808, 0.0
    %v8816 = vmax.f32 %v8810, 0.0
    %v8817 = vmax.f32 %v8812, 0.0
    %v8818 = vpack.c.bf16 %v8816, %v8814
    %v8819 = vpack.c.bf16 %v8817, %v8815
    %v8852 = vunpack.c.l.b16 %v1222
    %v8853 = vunpack.c.l.b16 %v1223
    %v8854 = vunpack.c.l.b16 %v1224
    %v8855 = vunpack.c.l.b16 %v1225
    %v8856 = vunpack.c.l.b16 %v1226
    %v8857 = vunpack.c.l.b16 %v1227
    %v8858 = vunpack.c.l.b16 %v1228
    %v8859 = vunpack.c.l.b16 %v1229
    %v8860 = vunpack.c.l.b16 %v1230
    %v8861 = vunpack.c.l.b16 %v1231
    %v8862 = vunpack.c.l.b16 %v1232
    %v8863 = vunpack.c.l.b16 %v1233
    %v8864 = vunpack.c.l.b16 %v1234
    %v8865 = vunpack.c.l.b16 %v1235
    %v8866 = vunpack.c.l.b16 %v1236
    %v8867 = vunpack.c.l.b16 %v1237
    %v8868 = vunpack.c.l.b16 %v1238
    %v8869 = vunpack.c.l.b16 %v1239
    %v8870 = vunpack.c.l.b16 %v1240
    %v8871 = vunpack.c.l.b16 %v1241
    %v8872 = vunpack.c.l.b16 %v1242
    %v8873 = vunpack.c.l.b16 %v1243
    %v8874 = vunpack.c.l.b16 %v1244
    %v8875 = vunpack.c.l.b16 %v1245
    %v8876 = vunpack.c.l.b16 %v1246
    %v8877 = vunpack.c.l.b16 %v1247
    %v8878 = vunpack.c.l.b16 %v1248
    %v8879 = vunpack.c.l.b16 %v1249
    %v8880 = vunpack.c.l.b16 %v1250
    %v8881 = vunpack.c.l.b16 %v1251
    %v8882 = vunpack.c.l.b16 %v1252
    %v8883 = vunpack.c.l.b16 %v1253
    %v8884 = vpack.c.b16 %v8853, %v8852
    %v8885 = vpack.c.b16 %v8855, %v8854
    %v8886 = vpack.c.b16 %v8857, %v8856
    %v8887 = vpack.c.b16 %v8859, %v8858
    %v8888 = vpack.c.b16 %v8861, %v8860
    %v8889 = vpack.c.b16 %v8863, %v8862
    %v8890 = vpack.c.b16 %v8865, %v8864
    %v8891 = vpack.c.b16 %v8867, %v8866
    %v8892 = vpack.c.b16 %v8869, %v8868
    %v8893 = vpack.c.b16 %v8871, %v8870
    %v8894 = vpack.c.b16 %v8873, %v8872
    %v8895 = vpack.c.b16 %v8875, %v8874
    %v8896 = vpack.c.b16 %v8877, %v8876
    %v8897 = vpack.c.b16 %v8879, %v8878
    %v8898 = vpack.c.b16 %v8881, %v8880
    %v8899 = vpack.c.b16 %v8883, %v8882
    %8916 = vmatprep.subr.bf16.mxu0 0
    %8917 = vmatpush1.bf16.msra.mxu0 %v8884
    %8918 = vmatprep.subr.bf16.mxu0 0
    %8919 = vmatpush1.bf16.msra.mxu0 %v8885
    %8920 = vmatprep.subr.bf16.mxu0 0
    %8921 = vmatpush1.bf16.msra.mxu0 %v8886
    %8922 = vmatprep.subr.bf16.mxu0 0
    %8923 = vmatpush1.bf16.msra.mxu0 %v8887
    %8924 = vmatprep.subr.bf16.mxu0 0
    %8925 = vmatpush1.bf16.msra.mxu0 %v8888
    %8926 = vmatprep.subr.bf16.mxu0 0
    %8927 = vmatpush1.bf16.msra.mxu0 %v8889
    %8928 = vmatprep.subr.bf16.mxu0 0
    %8929 = vmatpush1.bf16.msra.mxu0 %v8890
    %8930 = vmatprep.subr.bf16.mxu0 0
    %8931 = vmatpush1.bf16.msra.mxu0 %v8891
    %8932 = vmatprep.subr.bf16.mxu0 0
    %8933 = vmatpush1.bf16.msra.mxu0 %v8892
    %8934 = vmatprep.subr.bf16.mxu0 0
    %8935 = vmatpush1.bf16.msra.mxu0 %v8893
    %8936 = vmatprep.subr.bf16.mxu0 0
    %8937 = vmatpush1.bf16.msra.mxu0 %v8894
    %8938 = vmatprep.subr.bf16.mxu0 0
    %8939 = vmatpush1.bf16.msra.mxu0 %v8895
    %8940 = vmatprep.subr.bf16.mxu0 0
    %8941 = vmatpush1.bf16.msra.mxu0 %v8896
    %8942 = vmatprep.subr.bf16.mxu0 0
    %8943 = vmatpush1.bf16.msra.mxu0 %v8897
    %8944 = vmatprep.subr.bf16.mxu0 0
    %8945 = vmatpush1.bf16.msra.mxu0 %v8898
    %8946 = vmatprep.subr.bf16.mxu0 0
    %8947 = vmatpush1.bf16.msra.mxu0 %v8899
    %8948 = vmatprep.mubr.bf16.mxu0 %v8819
    %8949 = vmatmul.mubr.bf16.gmra.mrb[0].mxu0 %v8818
    %v8950 = vpop.f32.mrb[0].mxu0
    %v8951 = vadd.f32 %v1293, %v8950
    %v8952 = vpop.f32.mrb[0].mxu0
    %v8953 = vpop.f32.mrb[0].mxu0
    %v8954 = vadd.f32 %v1293, %v8953
    %v8955 = vpop.f32.mrb[0].mxu0
    %8956 = vdwg.mxu0
    %v8957 = vmax.f32 %v8951, 0.0
    %v8958 = vmax.f32 %v8954, 0.0
    %v8959 = vmul.f32 %v8957, %v1294
    %v8960 = vmul.f32 %v8958, %v1294
    %vm8961 = vcmask 195584
    %v8962 = vsel %vm8961, %v8959, 0.0
    %8963 = vadd.xlane.f32.xlu0 %v8962
    %v8964 = vpop.xlane.xlu0 %8963
    %v8965 = vsel %vm8961, %v8960, 0.0
    %8966 = vadd.xlane.f32.xlu0 %v8965
    %v8967 = vpop.xlane.xlu0 %8966
    %v8968 = vadd.f32 %v8964, %v1295
    %v8969 = vadd.f32 %v8967, %v1295
    %vm8970 = vcmask 7168
    %8971 = vst.msk [vmem:[%s11] sm:$0xff] %vm8970, %v8968
    %8972 = vst.msk [vmem:[%s11 + $0x8] sm:$0xff] %vm8970, %v8969
    // Predicated region
    $region74: #{multimodal_forward.1} parent=1 // pred_check
      _
    $region75: #{multimodal_forward.1} parent=1 // pred_check_branch
      %8974 = sbr.rel (0) target = $region77
    $region76: #{multimodal_forward.1} parent=1 // pred_region
      _
    $region77: #{multimodal_forward.1} parent=1 // pred_fallthru
      _
    // Predicated region
    $region78: #{multimodal_forward.1} parent=1 // pred_check
      _
    $region79: #{multimodal_forward.1} parent=1 // pred_check_branch
      %8976 = sbr.rel (0) target = $region81
    $region80: #{multimodal_forward.1} parent=1 // pred_region
      _
    $region81: #{multimodal_forward.1} parent=1 // pred_fallthru
      _
    %8977 = vsyncpa [#allocation3], 1
    %8978 = vsyncpa [#allocation5], 1
    %8979 = vsyncpa [#allocation8], 1
    %8980 = vsyncpa [#allocation11], 1

</llo_original>
